<compile_context>
chip_gen: v7x
topology: tpu7x:2x2x1
jax: 0.10.0
libtpu: 0.0.40
codegen_flags: <defaults>
</compile_context>

<pallas_src>
import numpy as np
import jax
import jax.numpy as jnp
from jax import lax
from jax.experimental import pallas as pl
from jax.experimental.pallas import tpu as pltpu

# --- small shapes consistent with the module ---
T = 16          # encoder sequence length per sample (source.shape[0])
S = 4           # number of samples iterated in the outer encoder loop (source.shape[1])
BITS = 8        # variable_bits = encoder LSTM input size
H = 32          # hidden_size (shared by encoder and decoder LSTMs)
E = 16          # decoder embedding_size
V = 16          # vocab_size
VP = 128        # vocab padded to a full lane width (lane-dense logits / stores)
TL = 8          # target_len (decoder steps; row 0 of outputs stays zero, like torch.zeros)
NUM_LAYERS = 1  # single-layer LSTMs


def seq2seq_kernel(tgt0_ref, src_ref,
                   we_ih_ref, be_ref, we_hh_bf_ref,
                   emb_ref, wd_ih_ref, bd_ref, wcat_bf_ref, bl_ref,
                   out_ref):
    """Whole encoder-decoder forward in a single kernel invocation.

    tgt0_ref   : SMEM (1,) int32            first decoder input token (target[0])
    src_ref    : VMEM (S*T, BITS) f32       flattened encoder input
    we_ih_ref  : VMEM (BITS, 4H) f32        encoder input->gate weights (x @ W^T layout)
    be_ref     : VMEM (1, 4H) f32           encoder combined bias (b_ih + b_hh)
    we_hh_bf   : VMEM (H, 4H) bf16          encoder hidden->gate weights
    emb_ref    : VMEM (VP, E) f32           decoder embedding table (rows >= V are zero)
    wd_ih_ref  : VMEM (E, 4H) f32           decoder input->gate weights
    bd_ref     : VMEM (1, 4H) f32           decoder combined bias
    wcat_bf    : VMEM (H, 4H+VP) bf16       fused [W_hh_dec | W_out_pad]
    bl_ref     : VMEM (1, VP) f32           output bias, padded lanes = -1e30
    out_ref    : VMEM (TL, VP) f32          logits per decoder step (row 0 = zeros)
    """
    # ---- hoisted constants (loop invariant) ----
    # Per-lane gate activation: act = scale*tanh(scale*g) + beta
    #   i/f/o lane blocks: scale=0.5, beta=0.5  -> sigmoid(g)
    #   g lane block     : scale=1.0, beta=0.0  -> tanh(g)
    lane4h = lax.broadcasted_iota(jnp.int32, (1, 4 * H), 1)
    is_g = (lane4h >= 2 * H) & (lane4h < 3 * H)
    g_scale = jnp.where(is_g, 1.0, 0.5).astype(jnp.float32)
    g_beta = jnp.where(is_g, 0.0, 0.5).astype(jnp.float32)

    w_hh_enc = we_hh_bf_ref[...]          # (H, 4H)    bf16, hoisted
    w_cat = wcat_bf_ref[...]              # (H, 4H+VP) bf16, hoisted
    bl = bl_ref[...]                      # (1, VP)    f32,  hoisted

    def cell(gx, hh, c):
        gates = gx + hh                                        # (1, 4H) f32
        act = g_scale * jnp.tanh(g_scale * gates) + g_beta     # single EUP push for gates
        i = act[:, 0 * H:1 * H]
        f = act[:, 1 * H:2 * H]
        g = act[:, 2 * H:3 * H]
        o = act[:, 3 * H:4 * H]
        c_new = f * c + i * g
        h_new = o * jnp.tanh(c_new)
        return h_new, c_new

    # ---- encoder: precompute all input projections in one f32 MXU matmul ----
    gx_all = (jnp.dot(src_ref[...], we_ih_ref[...],
                      preferred_element_type=jnp.float32) + be_ref[...])   # (S*T, 4H), stays in vregs

    h = jnp.zeros((1, H), jnp.float32)
    c = jnp.zeros((1, H), jnp.float32)
    # Fully unrolled serial recurrence (64 steps); bf16 operands, f32 accumulation.
    for t in range(S * T):
        hh = jnp.dot(h.astype(jnp.bfloat16), w_hh_enc,
                     preferred_element_type=jnp.float32)
        h, c = cell(gx_all[t:t + 1, :], hh, c)

    # ---- decoder: greedy (teacher=False) argmax feedback, dropout_p=0 -> identity ----
    # Embedding -> gate projection for every vocab token, computed once off the chain.
    e_gx = (jnp.dot(emb_ref[...], wd_ih_ref[...],
                    preferred_element_type=jnp.float32)
            + bd_ref[...]).astype(jnp.bfloat16)                            # (VP, 4H)

    lane_vp = lax.broadcasted_iota(jnp.int32, (1, VP), 1)
    lane_f = lane_vp.astype(jnp.float32)

    tok0 = tgt0_ref[0]
    onehot = (lane_vp == tok0).astype(jnp.bfloat16)
    gx = jnp.dot(onehot, e_gx, preferred_element_type=jnp.float32)         # (1, 4H)

    # Hidden-gate contribution for the first decoder cell, from the encoder-final h.
    hcat = jnp.dot(h.astype(jnp.bfloat16), w_cat,
                   preferred_element_type=jnp.float32)                     # (1, 4H+VP)
    hh = hcat[:, :4 * H]

    rows = [jnp.zeros((1, VP), jnp.float32)]     # outputs[0] stays zero (torch.zeros)
    for t in range(1, TL):                       # fully unrolled: TL-1 = 7 steps
        h, c = cell(gx, hh, c)
        # Fused matmul: logits for this step AND hidden-gate contribution for the next.
        hcat = jnp.dot(h.astype(jnp.bfloat16), w_cat,
                       preferred_element_type=jnp.float32)
        hh = hcat[:, :4 * H]
        logits = hcat[:, 4 * H:] + bl            # padded lanes carry -1e30 -> never win max
        rows.append(logits)
        if t < TL - 1:
            # Deterministic argmax (lowest-index max, matches torch.argmax on ties)
            # -> one-hot -> next gate projection directly from E_gx.
            m = jnp.max(logits, axis=-1, keepdims=True)
            is_max = logits >= m
            idx = jnp.min(jnp.where(is_max, lane_f, float(VP)),
                          axis=-1, keepdims=True)
            onehot = (lane_f == idx).astype(jnp.bfloat16)
            gx = jnp.dot(onehot, e_gx, preferred_element_type=jnp.float32)

    out_ref[...] = jnp.concatenate(rows, axis=0)   # single lane-dense (TL, VP) store


def make_params(key):
    ks = jax.random.split(key, 10)
    kscale = 1.0 / np.sqrt(H)

    def u(k, shape, s):
        return jax.random.uniform(k, shape, jnp.float32, -s, s)

    return dict(
        # encoder LSTM (weights stored pre-transposed for x @ W^T layout, gate order i,f,g,o)
        we_ih_T=u(ks[0], (BITS, 4 * H), kscale),
        we_hh_T=u(ks[1], (H, 4 * H), kscale),
        be=u(ks[2], (1, 4 * H), kscale) + u(ks[3], (1, 4 * H), kscale),  # b_ih + b_hh
        # decoder
        emb=jax.random.normal(ks[4], (V, E), jnp.float32),
        wd_ih_T=u(ks[5], (E, 4 * H), kscale),
        wd_hh_T=u(ks[6], (H, 4 * H), kscale),
        bd=2.0 * u(ks[7], (1, 4 * H), kscale),                           # b_ih + b_hh
        wl_T=u(ks[8], (H, V), kscale),
        bl=u(ks[9], (1, V), kscale),
    )


@jax.jit
def encoder_decoder_forward(source, target, params):
    # sample-major flatten: for sample in range(S): feed source[:, sample, :]
    src_flat = jnp.transpose(source, (1, 0, 2)).reshape(S * T, BITS).astype(jnp.float32)
    tgt0 = target[0].astype(jnp.int32).reshape(1)

    # Lane-dense padding of the vocab axis (V=16 -> VP=128).
    emb_pad = jnp.zeros((VP, E), jnp.float32).at[:V].set(params["emb"])
    wl_pad = jnp.zeros((H, VP), jnp.float32).at[:, :V].set(params["wl_T"])
    bl_pad = jnp.full((1, VP), -1e30, jnp.float32).at[:, :V].set(params["bl"])

    # Fused decoder weight [W_hh | W_out_pad] and recurrent bf16 casts (layout-only prep).
    wcat_bf = jnp.concatenate([params["wd_hh_T"], wl_pad], axis=1).astype(jnp.bfloat16)
    we_hh_bf = params["we_hh_T"].astype(jnp.bfloat16)

    vmem = pl.BlockSpec(memory_space=pltpu.MemorySpace.VMEM)
    smem = pl.BlockSpec(memory_space=pltpu.MemorySpace.SMEM)

    out_padded = pl.pallas_call(
        seq2seq_kernel,
        out_shape=jax.ShapeDtypeStruct((TL, VP), jnp.float32),
        in_specs=[smem] + [vmem] * 9,
        out_specs=vmem,
    )(tgt0, src_flat,
      params["we_ih_T"], params["be"], we_hh_bf,
      emb_pad, params["wd_ih_T"], params["bd"], wcat_bf, bl_pad)
    return out_padded[:, :V]


def _bf16_round(x):
    """Round-to-nearest-even f32 -> bf16 -> f32 (emulates the kernel's MXU operand cast)."""
    return np.asarray(jnp.asarray(np.asarray(x, np.float32))
                      .astype(jnp.bfloat16).astype(jnp.float32))


def reference_forward(source, target, params):
    """NumPy re-implementation of the PyTorch forward (attention=False, teacher=False).

    MXU operands that the kernel casts to bf16 are rounded identically here so the
    greedy argmax feedback follows the same discrete trajectory.
    """
    p = {k: np.asarray(v, np.float32) for k, v in params.items()}
    src_flat = np.transpose(np.asarray(source, np.float32), (1, 0, 2)).reshape(S * T, BITS)

    def sigmoid(x):
        return 1.0 / (1.0 + np.exp(-x))

    def cell(gx, hh, c):
        gates = gx + hh
        i = sigmoid(gates[:, 0 * H:1 * H])
        f = sigmoid(gates[:, 1 * H:2 * H])
        g = np.tanh(gates[:, 2 * H:3 * H])
        o = sigmoid(gates[:, 3 * H:4 * H])
        c = f * c + i * g
        h = o * np.tanh(c)
        return h, c

    w_hh_enc = _bf16_round(p["we_hh_T"])
    w_hh_dec = _bf16_round(p["wd_hh_T"])
    w_out = _bf16_round(p["wl_T"])
    e_gx = _bf16_round(p["emb"] @ p["wd_ih_T"] + p["bd"])       # (V, 4H)

    gx_all = src_flat @ p["we_ih_T"] + p["be"]
    h = np.zeros((1, H), np.float32)
    c = np.zeros((1, H), np.float32)
    for t in range(S * T):
        hh = _bf16_round(h) @ w_hh_enc
        h, c = cell(gx_all[t:t + 1], hh, c)

    outputs = np.zeros((TL, V), np.float32)
    tok = int(np.asarray(target)[0])
    gx = e_gx[tok:tok + 1]
    for t in range(1, TL):
        hh = _bf16_round(h) @ w_hh_dec
        h, c = cell(gx, hh, c)
        logits = _bf16_round(h) @ w_out + p["bl"]
        outputs[t] = logits[0]
        tok = int(np.argmax(logits))            # first max on ties, same as the kernel
        gx = e_gx[tok:tok + 1]
    return outputs


if __name__ == "__main__":
    key = jax.random.PRNGKey(0)
    kp, ksrc, ktgt = jax.random.split(key, 3)

    params = make_params(kp)
    source = jax.random.normal(ksrc, (T, S, BITS), jnp.float32)   # (T=16, S=4, BITS=8)
    target = jax.random.randint(ktgt, (TL,), 0, V, jnp.int32)     # (TL=8,) token ids

    out = encoder_decoder_forward(source, target, params)
    out = jax.block_until_ready(out)

    assert out.shape == (TL, V)
    assert bool(jnp.all(jnp.isfinite(out)))

    ref = reference_forward(source, target, params)
    np.testing.assert_allclose(np.asarray(out), ref, rtol=5e-3, atol=5e-3)

    print("KERNEL_OK")
</pallas_src>

<mosaic_0001>
module attributes {stable_mosaic.version = 11 : i64} {
  func.func @seq2seq_kernel(%arg0: memref<1xi32, #tpu.memory_space<smem>>, %arg1: memref<64x8xf32, #tpu.memory_space<vmem>>, %arg2: memref<8x128xf32, #tpu.memory_space<vmem>>, %arg3: memref<1x128xf32, #tpu.memory_space<vmem>>, %arg4: memref<32x128xbf16, #tpu.memory_space<vmem>>, %arg5: memref<128x16xf32, #tpu.memory_space<vmem>>, %arg6: memref<16x128xf32, #tpu.memory_space<vmem>>, %arg7: memref<1x128xf32, #tpu.memory_space<vmem>>, %arg8: memref<32x256xbf16, #tpu.memory_space<vmem>>, %arg9: memref<1x128xf32, #tpu.memory_space<vmem>>, %arg10: memref<8x128xf32, #tpu.memory_space<vmem>>) attributes {dimension_semantics = [], scalar_prefetch = 0 : i64, scratch_operands = 0 : i64, tpu.core_type = #tpu.core_type<tc>} {
    %0 = tpu.iota {dimensions = array<i32: 1>} : vector<1x128xi32>
    %c64_i32 = arith.constant 64 : i32
    %1 = vector.broadcast %c64_i32 : i32 to vector<1x128xi32>
    %2 = arith.cmpi sge, %0, %1 : vector<1x128xi32>
    %c96_i32 = arith.constant 96 : i32
    %3 = vector.broadcast %c96_i32 : i32 to vector<1x128xi32>
    %4 = arith.cmpi slt, %0, %3 : vector<1x128xi32>
    %5 = arith.andi %2, %4 : vector<1x128xi1>
    %cst = arith.constant 1.000000e+00 : f32
    %cst_0 = arith.constant 5.000000e-01 : f32
    %6 = vector.broadcast %cst : f32 to vector<1x128xf32>
    %7 = vector.broadcast %cst_0 : f32 to vector<1x128xf32>
    %8 = arith.select %5, %6, %7 : vector<1x128xi1>, vector<1x128xf32>
    %cst_1 = arith.constant 0.000000e+00 : f32
    %cst_2 = arith.constant 5.000000e-01 : f32
    %9 = vector.broadcast %cst_1 : f32 to vector<1x128xf32>
    %10 = vector.broadcast %cst_2 : f32 to vector<1x128xf32>
    %11 = arith.select %5, %9, %10 : vector<1x128xi1>, vector<1x128xf32>
    %c0 = arith.constant 0 : index
    %c0_3 = arith.constant 0 : index
    %12 = vector.load %arg4[%c0, %c0_3] : memref<32x128xbf16, #tpu.memory_space<vmem>>, vector<32x128xbf16>
    %c0_4 = arith.constant 0 : index
    %c0_5 = arith.constant 0 : index
    %13 = vector.load %arg8[%c0_4, %c0_5] : memref<32x256xbf16, #tpu.memory_space<vmem>>, vector<32x256xbf16>
    %c0_6 = arith.constant 0 : index
    %c0_7 = arith.constant 0 : index
    %14 = vector.load %arg9[%c0_6, %c0_7] : memref<1x128xf32, #tpu.memory_space<vmem>>, vector<1x128xf32>
    %c0_8 = arith.constant 0 : index
    %c0_9 = arith.constant 0 : index
    %15 = vector.load %arg1[%c0_8, %c0_9] : memref<64x8xf32, #tpu.memory_space<vmem>>, vector<64x8xf32>
    %c0_10 = arith.constant 0 : index
    %c0_11 = arith.constant 0 : index
    %16 = vector.load %arg2[%c0_10, %c0_11] : memref<8x128xf32, #tpu.memory_space<vmem>>, vector<8x128xf32>
    %cst_12 = arith.constant dense<0.000000e+00> : vector<64x128xf32>
    %17 = tpu.matmul %15, %16, %cst_12 {dimension_numbers = #tpu.dot_dimension_numbers<[1], [0], [0], [1], [0, 0, 1, 1], [], []>} : vector<64x8xf32>, vector<8x128xf32>, vector<64x128xf32> -> vector<64x128xf32>
    %c0_13 = arith.constant 0 : index
    %c0_14 = arith.constant 0 : index
    %18 = vector.load %arg3[%c0_13, %c0_14] : memref<1x128xf32, #tpu.memory_space<vmem>>, vector<1x128xf32>
    %19 = vector.broadcast %18 : vector<1x128xf32> to vector<64x128xf32>
    %20 = arith.addf %17, %19 : vector<64x128xf32>
    %cst_15 = arith.constant 0.000000e+00 : f32
    %21 = vector.broadcast %cst_15 : f32 to vector<1x32xf32>
    %cst_16 = arith.constant 0.000000e+00 : f32
    %22 = vector.broadcast %cst_16 : f32 to vector<1x32xf32>
    %23 = arith.truncf %21 : vector<1x32xf32> to vector<1x32xbf16>
    %cst_17 = arith.constant dense<0.000000e+00> : vector<1x128xf32>
    %24 = tpu.matmul %23, %12, %cst_17 {dimension_numbers = #tpu.dot_dimension_numbers<[1], [0], [0], [1], [0, 0, 1, 1], [], []>} : vector<1x32xbf16>, vector<32x128xbf16>, vector<1x128xf32> -> vector<1x128xf32>
    %25 = vector.extract_strided_slice %20 {offsets = [0, 0], sizes = [1, 128], strides = [1, 1]} : vector<64x128xf32> to vector<1x128xf32>
    %26 = arith.addf %25, %24 : vector<1x128xf32>
    %27 = arith.mulf %8, %26 : vector<1x128xf32>
    %28 = math.tanh %27 : vector<1x128xf32>
    %29 = arith.mulf %8, %28 : vector<1x128xf32>
    %30 = arith.addf %29, %11 : vector<1x128xf32>
    %31 = vector.extract_strided_slice %30 {offsets = [0, 0], sizes = [1, 32], strides = [1, 1]} : vector<1x128xf32> to vector<1x32xf32>
    %32 = vector.extract_strided_slice %30 {offsets = [0, 32], sizes = [1, 32], strides = [1, 1]} : vector<1x128xf32> to vector<1x32xf32>
    %33 = vector.extract_strided_slice %30 {offsets = [0, 64], sizes = [1, 32], strides = [1, 1]} : vector<1x128xf32> to vector<1x32xf32>
    %34 = vector.extract_strided_slice %30 {offsets = [0, 96], sizes = [1, 32], strides = [1, 1]} : vector<1x128xf32> to vector<1x32xf32>
    %35 = arith.mulf %32, %22 : vector<1x32xf32>
    %36 = arith.mulf %31, %33 : vector<1x32xf32>
    %37 = arith.addf %35, %36 : vector<1x32xf32>
    %38 = math.tanh %37 : vector<1x32xf32>
    %39 = arith.mulf %34, %38 : vector<1x32xf32>
    %40 = arith.truncf %39 : vector<1x32xf32> to vector<1x32xbf16>
    %cst_18 = arith.constant dense<0.000000e+00> : vector<1x128xf32>
    %41 = tpu.matmul %40, %12, %cst_18 {dimension_numbers = #tpu.dot_dimension_numbers<[1], [0], [0], [1], [0, 0, 1, 1], [], []>} : vector<1x32xbf16>, vector<32x128xbf16>, vector<1x128xf32> -> vector<1x128xf32>
    %42 = vector.extract_strided_slice %20 {offsets = [1, 0], sizes = [1, 128], strides = [1, 1]} : vector<64x128xf32> to vector<1x128xf32>
    %43 = arith.addf %42, %41 : vector<1x128xf32>
    %44 = arith.mulf %8, %43 : vector<1x128xf32>
    %45 = math.tanh %44 : vector<1x128xf32>
    %46 = arith.mulf %8, %45 : vector<1x128xf32>
    %47 = arith.addf %46, %11 : vector<1x128xf32>
    %48 = vector.extract_strided_slice %47 {offsets = [0, 0], sizes = [1, 32], strides = [1, 1]} : vector<1x128xf32> to vector<1x32xf32>
    %49 = vector.extract_strided_slice %47 {offsets = [0, 32], sizes = [1, 32], strides = [1, 1]} : vector<1x128xf32> to vector<1x32xf32>
    %50 = vector.extract_strided_slice %47 {offsets = [0, 64], sizes = [1, 32], strides = [1, 1]} : vector<1x128xf32> to vector<1x32xf32>
    %51 = vector.extract_strided_slice %47 {offsets = [0, 96], sizes = [1, 32], strides = [1, 1]} : vector<1x128xf32> to vector<1x32xf32>
    %52 = arith.mulf %49, %37 : vector<1x32xf32>
    %53 = arith.mulf %48, %50 : vector<1x32xf32>
    %54 = arith.addf %52, %53 : vector<1x32xf32>
    %55 = math.tanh %54 : vector<1x32xf32>
    %56 = arith.mulf %51, %55 : vector<1x32xf32>
    %57 = arith.truncf %56 : vector<1x32xf32> to vector<1x32xbf16>
    %cst_19 = arith.constant dense<0.000000e+00> : vector<1x128xf32>
    %58 = tpu.matmul %57, %12, %cst_19 {dimension_numbers = #tpu.dot_dimension_numbers<[1], [0], [0], [1], [0, 0, 1, 1], [], []>} : vector<1x32xbf16>, vector<32x128xbf16>, vector<1x128xf32> -> vector<1x128xf32>
    %59 = vector.extract_strided_slice %20 {offsets = [2, 0], sizes = [1, 128], strides = [1, 1]} : vector<64x128xf32> to vector<1x128xf32>
    %60 = arith.addf %59, %58 : vector<1x128xf32>
    %61 = arith.mulf %8, %60 : vector<1x128xf32>
    %62 = math.tanh %61 : vector<1x128xf32>
    %63 = arith.mulf %8, %62 : vector<1x128xf32>
    %64 = arith.addf %63, %11 : vector<1x128xf32>
    %65 = vector.extract_strided_slice %64 {offsets = [0, 0], sizes = [1, 32], strides = [1, 1]} : vector<1x128xf32> to vector<1x32xf32>
    %66 = vector.extract_strided_slice %64 {offsets = [0, 32], sizes = [1, 32], strides = [1, 1]} : vector<1x128xf32> to vector<1x32xf32>
    %67 = vector.extract_strided_slice %64 {offsets = [0, 64], sizes = [1, 32], strides = [1, 1]} : vector<1x128xf32> to vector<1x32xf32>
    %68 = vector.extract_strided_slice %64 {offsets = [0, 96], sizes = [1, 32], strides = [1, 1]} : vector<1x128xf32> to vector<1x32xf32>
    %69 = arith.mulf %66, %54 : vector<1x32xf32>
    %70 = arith.mulf %65, %67 : vector<1x32xf32>
    %71 = arith.addf %69, %70 : vector<1x32xf32>
    %72 = math.tanh %71 : vector<1x32xf32>
    %73 = arith.mulf %68, %72 : vector<1x32xf32>
    %74 = arith.truncf %73 : vector<1x32xf32> to vector<1x32xbf16>
    %cst_20 = arith.constant dense<0.000000e+00> : vector<1x128xf32>
    %75 = tpu.matmul %74, %12, %cst_20 {dimension_numbers = #tpu.dot_dimension_numbers<[1], [0], [0], [1], [0, 0, 1, 1], [], []>} : vector<1x32xbf16>, vector<32x128xbf16>, vector<1x128xf32> -> vector<1x128xf32>
    %76 = vector.extract_strided_slice %20 {offsets = [3, 0], sizes = [1, 128], strides = [1, 1]} : vector<64x128xf32> to vector<1x128xf32>
    %77 = arith.addf %76, %75 : vector<1x128xf32>
    %78 = arith.mulf %8, %77 : vector<1x128xf32>
    %79 = math.tanh %78 : vector<1x128xf32>
    %80 = arith.mulf %8, %79 : vector<1x128xf32>
    %81 = arith.addf %80, %11 : vector<1x128xf32>
    %82 = vector.extract_strided_slice %81 {offsets = [0, 0], sizes = [1, 32], strides = [1, 1]} : vector<1x128xf32> to vector<1x32xf32>
    %83 = vector.extract_strided_slice %81 {offsets = [0, 32], sizes = [1, 32], strides = [1, 1]} : vector<1x128xf32> to vector<1x32xf32>
    %84 = vector.extract_strided_slice %81 {offsets = [0, 64], sizes = [1, 32], strides = [1, 1]} : vector<1x128xf32> to vector<1x32xf32>
    %85 = vector.extract_strided_slice %81 {offsets = [0, 96], sizes = [1, 32], strides = [1, 1]} : vector<1x128xf32> to vector<1x32xf32>
    %86 = arith.mulf %83, %71 : vector<1x32xf32>
    %87 = arith.mulf %82, %84 : vector<1x32xf32>
    %88 = arith.addf %86, %87 : vector<1x32xf32>
    %89 = math.tanh %88 : vector<1x32xf32>
    %90 = arith.mulf %85, %89 : vector<1x32xf32>
    %91 = arith.truncf %90 : vector<1x32xf32> to vector<1x32xbf16>
    %cst_21 = arith.constant dense<0.000000e+00> : vector<1x128xf32>
    %92 = tpu.matmul %91, %12, %cst_21 {dimension_numbers = #tpu.dot_dimension_numbers<[1], [0], [0], [1], [0, 0, 1, 1], [], []>} : vector<1x32xbf16>, vector<32x128xbf16>, vector<1x128xf32> -> vector<1x128xf32>
    %93 = vector.extract_strided_slice %20 {offsets = [4, 0], sizes = [1, 128], strides = [1, 1]} : vector<64x128xf32> to vector<1x128xf32>
    %94 = arith.addf %93, %92 : vector<1x128xf32>
    %95 = arith.mulf %8, %94 : vector<1x128xf32>
    %96 = math.tanh %95 : vector<1x128xf32>
    %97 = arith.mulf %8, %96 : vector<1x128xf32>
    %98 = arith.addf %97, %11 : vector<1x128xf32>
    %99 = vector.extract_strided_slice %98 {offsets = [0, 0], sizes = [1, 32], strides = [1, 1]} : vector<1x128xf32> to vector<1x32xf32>
    %100 = vector.extract_strided_slice %98 {offsets = [0, 32], sizes = [1, 32], strides = [1, 1]} : vector<1x128xf32> to vector<1x32xf32>
    %101 = vector.extract_strided_slice %98 {offsets = [0, 64], sizes = [1, 32], strides = [1, 1]} : vector<1x128xf32> to vector<1x32xf32>
    %102 = vector.extract_strided_slice %98 {offsets = [0, 96], sizes = [1, 32], strides = [1, 1]} : vector<1x128xf32> to vector<1x32xf32>
    %103 = arith.mulf %100, %88 : vector<1x32xf32>
    %104 = arith.mulf %99, %101 : vector<1x32xf32>
    %105 = arith.addf %103, %104 : vector<1x32xf32>
    %106 = math.tanh %105 : vector<1x32xf32>
    %107 = arith.mulf %102, %106 : vector<1x32xf32>
    %108 = arith.truncf %107 : vector<1x32xf32> to vector<1x32xbf16>
    %cst_22 = arith.constant dense<0.000000e+00> : vector<1x128xf32>
    %109 = tpu.matmul %108, %12, %cst_22 {dimension_numbers = #tpu.dot_dimension_numbers<[1], [0], [0], [1], [0, 0, 1, 1], [], []>} : vector<1x32xbf16>, vector<32x128xbf16>, vector<1x128xf32> -> vector<1x128xf32>
    %110 = vector.extract_strided_slice %20 {offsets = [5, 0], sizes = [1, 128], strides = [1, 1]} : vector<64x128xf32> to vector<1x128xf32>
    %111 = arith.addf %110, %109 : vector<1x128xf32>
    %112 = arith.mulf %8, %111 : vector<1x128xf32>
    %113 = math.tanh %112 : vector<1x128xf32>
    %114 = arith.mulf %8, %113 : vector<1x128xf32>
    %115 = arith.addf %114, %11 : vector<1x128xf32>
    %116 = vector.extract_strided_slice %115 {offsets = [0, 0], sizes = [1, 32], strides = [1, 1]} : vector<1x128xf32> to vector<1x32xf32>
    %117 = vector.extract_strided_slice %115 {offsets = [0, 32], sizes = [1, 32], strides = [1, 1]} : vector<1x128xf32> to vector<1x32xf32>
    %118 = vector.extract_strided_slice %115 {offsets = [0, 64], sizes = [1, 32], strides = [1, 1]} : vector<1x128xf32> to vector<1x32xf32>
    %119 = vector.extract_strided_slice %115 {offsets = [0, 96], sizes = [1, 32], strides = [1, 1]} : vector<1x128xf32> to vector<1x32xf32>
    %120 = arith.mulf %117, %105 : vector<1x32xf32>
    %121 = arith.mulf %116, %118 : vector<1x32xf32>
    %122 = arith.addf %120, %121 : vector<1x32xf32>
    %123 = math.tanh %122 : vector<1x32xf32>
    %124 = arith.mulf %119, %123 : vector<1x32xf32>
    %125 = arith.truncf %124 : vector<1x32xf32> to vector<1x32xbf16>
    %cst_23 = arith.constant dense<0.000000e+00> : vector<1x128xf32>
    %126 = tpu.matmul %125, %12, %cst_23 {dimension_numbers = #tpu.dot_dimension_numbers<[1], [0], [0], [1], [0, 0, 1, 1], [], []>} : vector<1x32xbf16>, vector<32x128xbf16>, vector<1x128xf32> -> vector<1x128xf32>
    %127 = vector.extract_strided_slice %20 {offsets = [6, 0], sizes = [1, 128], strides = [1, 1]} : vector<64x128xf32> to vector<1x128xf32>
    %128 = arith.addf %127, %126 : vector<1x128xf32>
    %129 = arith.mulf %8, %128 : vector<1x128xf32>
    %130 = math.tanh %129 : vector<1x128xf32>
    %131 = arith.mulf %8, %130 : vector<1x128xf32>
    %132 = arith.addf %131, %11 : vector<1x128xf32>
    %133 = vector.extract_strided_slice %132 {offsets = [0, 0], sizes = [1, 32], strides = [1, 1]} : vector<1x128xf32> to vector<1x32xf32>
    %134 = vector.extract_strided_slice %132 {offsets = [0, 32], sizes = [1, 32], strides = [1, 1]} : vector<1x128xf32> to vector<1x32xf32>
    %135 = vector.extract_strided_slice %132 {offsets = [0, 64], sizes = [1, 32], strides = [1, 1]} : vector<1x128xf32> to vector<1x32xf32>
    %136 = vector.extract_strided_slice %132 {offsets = [0, 96], sizes = [1, 32], strides = [1, 1]} : vector<1x128xf32> to vector<1x32xf32>
    %137 = arith.mulf %134, %122 : vector<1x32xf32>
    %138 = arith.mulf %133, %135 : vector<1x32xf32>
    %139 = arith.addf %137, %138 : vector<1x32xf32>
    %140 = math.tanh %139 : vector<1x32xf32>
    %141 = arith.mulf %136, %140 : vector<1x32xf32>
    %142 = arith.truncf %141 : vector<1x32xf32> to vector<1x32xbf16>
    %cst_24 = arith.constant dense<0.000000e+00> : vector<1x128xf32>
    %143 = tpu.matmul %142, %12, %cst_24 {dimension_numbers = #tpu.dot_dimension_numbers<[1], [0], [0], [1], [0, 0, 1, 1], [], []>} : vector<1x32xbf16>, vector<32x128xbf16>, vector<1x128xf32> -> vector<1x128xf32>
    %144 = vector.extract_strided_slice %20 {offsets = [7, 0], sizes = [1, 128], strides = [1, 1]} : vector<64x128xf32> to vector<1x128xf32>
    %145 = arith.addf %144, %143 : vector<1x128xf32>
    %146 = arith.mulf %8, %145 : vector<1x128xf32>
    %147 = math.tanh %146 : vector<1x128xf32>
    %148 = arith.mulf %8, %147 : vector<1x128xf32>
    %149 = arith.addf %148, %11 : vector<1x128xf32>
    %150 = vector.extract_strided_slice %149 {offsets = [0, 0], sizes = [1, 32], strides = [1, 1]} : vector<1x128xf32> to vector<1x32xf32>
    %151 = vector.extract_strided_slice %149 {offsets = [0, 32], sizes = [1, 32], strides = [1, 1]} : vector<1x128xf32> to vector<1x32xf32>
    %152 = vector.extract_strided_slice %149 {offsets = [0, 64], sizes = [1, 32], strides = [1, 1]} : vector<1x128xf32> to vector<1x32xf32>
    %153 = vector.extract_strided_slice %149 {offsets = [0, 96], sizes = [1, 32], strides = [1, 1]} : vector<1x128xf32> to vector<1x32xf32>
    %154 = arith.mulf %151, %139 : vector<1x32xf32>
    %155 = arith.mulf %150, %152 : vector<1x32xf32>
    %156 = arith.addf %154, %155 : vector<1x32xf32>
    %157 = math.tanh %156 : vector<1x32xf32>
    %158 = arith.mulf %153, %157 : vector<1x32xf32>
    %159 = arith.truncf %158 : vector<1x32xf32> to vector<1x32xbf16>
    %cst_25 = arith.constant dense<0.000000e+00> : vector<1x128xf32>
    %160 = tpu.matmul %159, %12, %cst_25 {dimension_numbers = #tpu.dot_dimension_numbers<[1], [0], [0], [1], [0, 0, 1, 1], [], []>} : vector<1x32xbf16>, vector<32x128xbf16>, vector<1x128xf32> -> vector<1x128xf32>
    %161 = vector.extract_strided_slice %20 {offsets = [8, 0], sizes = [1, 128], strides = [1, 1]} : vector<64x128xf32> to vector<1x128xf32>
    %162 = arith.addf %161, %160 : vector<1x128xf32>
    %163 = arith.mulf %8, %162 : vector<1x128xf32>
    %164 = math.tanh %163 : vector<1x128xf32>
    %165 = arith.mulf %8, %164 : vector<1x128xf32>
    %166 = arith.addf %165, %11 : vector<1x128xf32>
    %167 = vector.extract_strided_slice %166 {offsets = [0, 0], sizes = [1, 32], strides = [1, 1]} : vector<1x128xf32> to vector<1x32xf32>
    %168 = vector.extract_strided_slice %166 {offsets = [0, 32], sizes = [1, 32], strides = [1, 1]} : vector<1x128xf32> to vector<1x32xf32>
    %169 = vector.extract_strided_slice %166 {offsets = [0, 64], sizes = [1, 32], strides = [1, 1]} : vector<1x128xf32> to vector<1x32xf32>
    %170 = vector.extract_strided_slice %166 {offsets = [0, 96], sizes = [1, 32], strides = [1, 1]} : vector<1x128xf32> to vector<1x32xf32>
    %171 = arith.mulf %168, %156 : vector<1x32xf32>
    %172 = arith.mulf %167, %169 : vector<1x32xf32>
    %173 = arith.addf %171, %172 : vector<1x32xf32>
    %174 = math.tanh %173 : vector<1x32xf32>
    %175 = arith.mulf %170, %174 : vector<1x32xf32>
    %176 = arith.truncf %175 : vector<1x32xf32> to vector<1x32xbf16>
    %cst_26 = arith.constant dense<0.000000e+00> : vector<1x128xf32>
    %177 = tpu.matmul %176, %12, %cst_26 {dimension_numbers = #tpu.dot_dimension_numbers<[1], [0], [0], [1], [0, 0, 1, 1], [], []>} : vector<1x32xbf16>, vector<32x128xbf16>, vector<1x128xf32> -> vector<1x128xf32>
    %178 = vector.extract_strided_slice %20 {offsets = [9, 0], sizes = [1, 128], strides = [1, 1]} : vector<64x128xf32> to vector<1x128xf32>
    %179 = arith.addf %178, %177 : vector<1x128xf32>
    %180 = arith.mulf %8, %179 : vector<1x128xf32>
    %181 = math.tanh %180 : vector<1x128xf32>
    %182 = arith.mulf %8, %181 : vector<1x128xf32>
    %183 = arith.addf %182, %11 : vector<1x128xf32>
    %184 = vector.extract_strided_slice %183 {offsets = [0, 0], sizes = [1, 32], strides = [1, 1]} : vector<1x128xf32> to vector<1x32xf32>
    %185 = vector.extract_strided_slice %183 {offsets = [0, 32], sizes = [1, 32], strides = [1, 1]} : vector<1x128xf32> to vector<1x32xf32>
    %186 = vector.extract_strided_slice %183 {offsets = [0, 64], sizes = [1, 32], strides = [1, 1]} : vector<1x128xf32> to vector<1x32xf32>
    %187 = vector.extract_strided_slice %183 {offsets = [0, 96], sizes = [1, 32], strides = [1, 1]} : vector<1x128xf32> to vector<1x32xf32>
    %188 = arith.mulf %185, %173 : vector<1x32xf32>
    %189 = arith.mulf %184, %186 : vector<1x32xf32>
    %190 = arith.addf %188, %189 : vector<1x32xf32>
    %191 = math.tanh %190 : vector<1x32xf32>
    %192 = arith.mulf %187, %191 : vector<1x32xf32>
    %193 = arith.truncf %192 : vector<1x32xf32> to vector<1x32xbf16>
    %cst_27 = arith.constant dense<0.000000e+00> : vector<1x128xf32>
    %194 = tpu.matmul %193, %12, %cst_27 {dimension_numbers = #tpu.dot_dimension_numbers<[1], [0], [0], [1], [0, 0, 1, 1], [], []>} : vector<1x32xbf16>, vector<32x128xbf16>, vector<1x128xf32> -> vector<1x128xf32>
    %195 = vector.extract_strided_slice %20 {offsets = [10, 0], sizes = [1, 128], strides = [1, 1]} : vector<64x128xf32> to vector<1x128xf32>
    %196 = arith.addf %195, %194 : vector<1x128xf32>
    %197 = arith.mulf %8, %196 : vector<1x128xf32>
    %198 = math.tanh %197 : vector<1x128xf32>
    %199 = arith.mulf %8, %198 : vector<1x128xf32>
    %200 = arith.addf %199, %11 : vector<1x128xf32>
    %201 = vector.extract_strided_slice %200 {offsets = [0, 0], sizes = [1, 32], strides = [1, 1]} : vector<1x128xf32> to vector<1x32xf32>
    %202 = vector.extract_strided_slice %200 {offsets = [0, 32], sizes = [1, 32], strides = [1, 1]} : vector<1x128xf32> to vector<1x32xf32>
    %203 = vector.extract_strided_slice %200 {offsets = [0, 64], sizes = [1, 32], strides = [1, 1]} : vector<1x128xf32> to vector<1x32xf32>
    %204 = vector.extract_strided_slice %200 {offsets = [0, 96], sizes = [1, 32], strides = [1, 1]} : vector<1x128xf32> to vector<1x32xf32>
    %205 = arith.mulf %202, %190 : vector<1x32xf32>
    %206 = arith.mulf %201, %203 : vector<1x32xf32>
    %207 = arith.addf %205, %206 : vector<1x32xf32>
    %208 = math.tanh %207 : vector<1x32xf32>
    %209 = arith.mulf %204, %208 : vector<1x32xf32>
    %210 = arith.truncf %209 : vector<1x32xf32> to vector<1x32xbf16>
    %cst_28 = arith.constant dense<0.000000e+00> : vector<1x128xf32>
    %211 = tpu.matmul %210, %12, %cst_28 {dimension_numbers = #tpu.dot_dimension_numbers<[1], [0], [0], [1], [0, 0, 1, 1], [], []>} : vector<1x32xbf16>, vector<32x128xbf16>, vector<1x128xf32> -> vector<1x128xf32>
    %212 = vector.extract_strided_slice %20 {offsets = [11, 0], sizes = [1, 128], strides = [1, 1]} : vector<64x128xf32> to vector<1x128xf32>
    %213 = arith.addf %212, %211 : vector<1x128xf32>
    %214 = arith.mulf %8, %213 : vector<1x128xf32>
    %215 = math.tanh %214 : vector<1x128xf32>
    %216 = arith.mulf %8, %215 : vector<1x128xf32>
    %217 = arith.addf %216, %11 : vector<1x128xf32>
    %218 = vector.extract_strided_slice %217 {offsets = [0, 0], sizes = [1, 32], strides = [1, 1]} : vector<1x128xf32> to vector<1x32xf32>
    %219 = vector.extract_strided_slice %217 {offsets = [0, 32], sizes = [1, 32], strides = [1, 1]} : vector<1x128xf32> to vector<1x32xf32>
    %220 = vector.extract_strided_slice %217 {offsets = [0, 64], sizes = [1, 32], strides = [1, 1]} : vector<1x128xf32> to vector<1x32xf32>
    %221 = vector.extract_strided_slice %217 {offsets = [0, 96], sizes = [1, 32], strides = [1, 1]} : vector<1x128xf32> to vector<1x32xf32>
    %222 = arith.mulf %219, %207 : vector<1x32xf32>
    %223 = arith.mulf %218, %220 : vector<1x32xf32>
    %224 = arith.addf %222, %223 : vector<1x32xf32>
    %225 = math.tanh %224 : vector<1x32xf32>
    %226 = arith.mulf %221, %225 : vector<1x32xf32>
    %227 = arith.truncf %226 : vector<1x32xf32> to vector<1x32xbf16>
    %cst_29 = arith.constant dense<0.000000e+00> : vector<1x128xf32>
    %228 = tpu.matmul %227, %12, %cst_29 {dimension_numbers = #tpu.dot_dimension_numbers<[1], [0], [0], [1], [0, 0, 1, 1], [], []>} : vector<1x32xbf16>, vector<32x128xbf16>, vector<1x128xf32> -> vector<1x128xf32>
    %229 = vector.extract_strided_slice %20 {offsets = [12, 0], sizes = [1, 128], strides = [1, 1]} : vector<64x128xf32> to vector<1x128xf32>
    %230 = arith.addf %229, %228 : vector<1x128xf32>
    %231 = arith.mulf %8, %230 : vector<1x128xf32>
    %232 = math.tanh %231 : vector<1x128xf32>
    %233 = arith.mulf %8, %232 : vector<1x128xf32>
    %234 = arith.addf %233, %11 : vector<1x128xf32>
    %235 = vector.extract_strided_slice %234 {offsets = [0, 0], sizes = [1, 32], strides = [1, 1]} : vector<1x128xf32> to vector<1x32xf32>
    %236 = vector.extract_strided_slice %234 {offsets = [0, 32], sizes = [1, 32], strides = [1, 1]} : vector<1x128xf32> to vector<1x32xf32>
    %237 = vector.extract_strided_slice %234 {offsets = [0, 64], sizes = [1, 32], strides = [1, 1]} : vector<1x128xf32> to vector<1x32xf32>
    %238 = vector.extract_strided_slice %234 {offsets = [0, 96], sizes = [1, 32], strides = [1, 1]} : vector<1x128xf32> to vector<1x32xf32>
    %239 = arith.mulf %236, %224 : vector<1x32xf32>
    %240 = arith.mulf %235, %237 : vector<1x32xf32>
    %241 = arith.addf %239, %240 : vector<1x32xf32>
    %242 = math.tanh %241 : vector<1x32xf32>
    %243 = arith.mulf %238, %242 : vector<1x32xf32>
    %244 = arith.truncf %243 : vector<1x32xf32> to vector<1x32xbf16>
    %cst_30 = arith.constant dense<0.000000e+00> : vector<1x128xf32>
    %245 = tpu.matmul %244, %12, %cst_30 {dimension_numbers = #tpu.dot_dimension_numbers<[1], [0], [0], [1], [0, 0, 1, 1], [], []>} : vector<1x32xbf16>, vector<32x128xbf16>, vector<1x128xf32> -> vector<1x128xf32>
    %246 = vector.extract_strided_slice %20 {offsets = [13, 0], sizes = [1, 128], strides = [1, 1]} : vector<64x128xf32> to vector<1x128xf32>
    %247 = arith.addf %246, %245 : vector<1x128xf32>
    %248 = arith.mulf %8, %247 : vector<1x128xf32>
    %249 = math.tanh %248 : vector<1x128xf32>
    %250 = arith.mulf %8, %249 : vector<1x128xf32>
    %251 = arith.addf %250, %11 : vector<1x128xf32>
    %252 = vector.extract_strided_slice %251 {offsets = [0, 0], sizes = [1, 32], strides = [1, 1]} : vector<1x128xf32> to vector<1x32xf32>
    %253 = vector.extract_strided_slice %251 {offsets = [0, 32], sizes = [1, 32], strides = [1, 1]} : vector<1x128xf32> to vector<1x32xf32>
    %254 = vector.extract_strided_slice %251 {offsets = [0, 64], sizes = [1, 32], strides = [1, 1]} : vector<1x128xf32> to vector<1x32xf32>
    %255 = vector.extract_strided_slice %251 {offsets = [0, 96], sizes = [1, 32], strides = [1, 1]} : vector<1x128xf32> to vector<1x32xf32>
    %256 = arith.mulf %253, %241 : vector<1x32xf32>
    %257 = arith.mulf %252, %254 : vector<1x32xf32>
    %258 = arith.addf %256, %257 : vector<1x32xf32>
    %259 = math.tanh %258 : vector<1x32xf32>
    %260 = arith.mulf %255, %259 : vector<1x32xf32>
    %261 = arith.truncf %260 : vector<1x32xf32> to vector<1x32xbf16>
    %cst_31 = arith.constant dense<0.000000e+00> : vector<1x128xf32>
    %262 = tpu.matmul %261, %12, %cst_31 {dimension_numbers = #tpu.dot_dimension_numbers<[1], [0], [0], [1], [0, 0, 1, 1], [], []>} : vector<1x32xbf16>, vector<32x128xbf16>, vector<1x128xf32> -> vector<1x128xf32>
    %263 = vector.extract_strided_slice %20 {offsets = [14, 0], sizes = [1, 128], strides = [1, 1]} : vector<64x128xf32> to vector<1x128xf32>
    %264 = arith.addf %263, %262 : vector<1x128xf32>
    %265 = arith.mulf %8, %264 : vector<1x128xf32>
    %266 = math.tanh %265 : vector<1x128xf32>
    %267 = arith.mulf %8, %266 : vector<1x128xf32>
    %268 = arith.addf %267, %11 : vector<1x128xf32>
    %269 = vector.extract_strided_slice %268 {offsets = [0, 0], sizes = [1, 32], strides = [1, 1]} : vector<1x128xf32> to vector<1x32xf32>
    %270 = vector.extract_strided_slice %268 {offsets = [0, 32], sizes = [1, 32], strides = [1, 1]} : vector<1x128xf32> to vector<1x32xf32>
    %271 = vector.extract_strided_slice %268 {offsets = [0, 64], sizes = [1, 32], strides = [1, 1]} : vector<1x128xf32> to vector<1x32xf32>
    %272 = vector.extract_strided_slice %268 {offsets = [0, 96], sizes = [1, 32], strides = [1, 1]} : vector<1x128xf32> to vector<1x32xf32>
    %273 = arith.mulf %270, %258 : vector<1x32xf32>
    %274 = arith.mulf %269, %271 : vector<1x32xf32>
    %275 = arith.addf %273, %274 : vector<1x32xf32>
    %276 = math.tanh %275 : vector<1x32xf32>
    %277 = arith.mulf %272, %276 : vector<1x32xf32>
    %278 = arith.truncf %277 : vector<1x32xf32> to vector<1x32xbf16>
    %cst_32 = arith.constant dense<0.000000e+00> : vector<1x128xf32>
    %279 = tpu.matmul %278, %12, %cst_32 {dimension_numbers = #tpu.dot_dimension_numbers<[1], [0], [0], [1], [0, 0, 1, 1], [], []>} : vector<1x32xbf16>, vector<32x128xbf16>, vector<1x128xf32> -> vector<1x128xf32>
    %280 = vector.extract_strided_slice %20 {offsets = [15, 0], sizes = [1, 128], strides = [1, 1]} : vector<64x128xf32> to vector<1x128xf32>
    %281 = arith.addf %280, %279 : vector<1x128xf32>
    %282 = arith.mulf %8, %281 : vector<1x128xf32>
    %283 = math.tanh %282 : vector<1x128xf32>
    %284 = arith.mulf %8, %283 : vector<1x128xf32>
    %285 = arith.addf %284, %11 : vector<1x128xf32>
    %286 = vector.extract_strided_slice %285 {offsets = [0, 0], sizes = [1, 32], strides = [1, 1]} : vector<1x128xf32> to vector<1x32xf32>
    %287 = vector.extract_strided_slice %285 {offsets = [0, 32], sizes = [1, 32], strides = [1, 1]} : vector<1x128xf32> to vector<1x32xf32>
    %288 = vector.extract_strided_slice %285 {offsets = [0, 64], sizes = [1, 32], strides = [1, 1]} : vector<1x128xf32> to vector<1x32xf32>
    %289 = vector.extract_strided_slice %285 {offsets = [0, 96], sizes = [1, 32], strides = [1, 1]} : vector<1x128xf32> to vector<1x32xf32>
    %290 = arith.mulf %287, %275 : vector<1x32xf32>
    %291 = arith.mulf %286, %288 : vector<1x32xf32>
    %292 = arith.addf %290, %291 : vector<1x32xf32>
    %293 = math.tanh %292 : vector<1x32xf32>
    %294 = arith.mulf %289, %293 : vector<1x32xf32>
    %295 = arith.truncf %294 : vector<1x32xf32> to vector<1x32xbf16>
    %cst_33 = arith.constant dense<0.000000e+00> : vector<1x128xf32>
    %296 = tpu.matmul %295, %12, %cst_33 {dimension_numbers = #tpu.dot_dimension_numbers<[1], [0], [0], [1], [0, 0, 1, 1], [], []>} : vector<1x32xbf16>, vector<32x128xbf16>, vector<1x128xf32> -> vector<1x128xf32>
    %297 = vector.extract_strided_slice %20 {offsets = [16, 0], sizes = [1, 128], strides = [1, 1]} : vector<64x128xf32> to vector<1x128xf32>
    %298 = arith.addf %297, %296 : vector<1x128xf32>
    %299 = arith.mulf %8, %298 : vector<1x128xf32>
    %300 = math.tanh %299 : vector<1x128xf32>
    %301 = arith.mulf %8, %300 : vector<1x128xf32>
    %302 = arith.addf %301, %11 : vector<1x128xf32>
    %303 = vector.extract_strided_slice %302 {offsets = [0, 0], sizes = [1, 32], strides = [1, 1]} : vector<1x128xf32> to vector<1x32xf32>
    %304 = vector.extract_strided_slice %302 {offsets = [0, 32], sizes = [1, 32], strides = [1, 1]} : vector<1x128xf32> to vector<1x32xf32>
    %305 = vector.extract_strided_slice %302 {offsets = [0, 64], sizes = [1, 32], strides = [1, 1]} : vector<1x128xf32> to vector<1x32xf32>
    %306 = vector.extract_strided_slice %302 {offsets = [0, 96], sizes = [1, 32], strides = [1, 1]} : vector<1x128xf32> to vector<1x32xf32>
    %307 = arith.mulf %304, %292 : vector<1x32xf32>
    %308 = arith.mulf %303, %305 : vector<1x32xf32>
    %309 = arith.addf %307, %308 : vector<1x32xf32>
    %310 = math.tanh %309 : vector<1x32xf32>
    %311 = arith.mulf %306, %310 : vector<1x32xf32>
    %312 = arith.truncf %311 : vector<1x32xf32> to vector<1x32xbf16>
    %cst_34 = arith.constant dense<0.000000e+00> : vector<1x128xf32>
    %313 = tpu.matmul %312, %12, %cst_34 {dimension_numbers = #tpu.dot_dimension_numbers<[1], [0], [0], [1], [0, 0, 1, 1], [], []>} : vector<1x32xbf16>, vector<32x128xbf16>, vector<1x128xf32> -> vector<1x128xf32>
    %314 = vector.extract_strided_slice %20 {offsets = [17, 0], sizes = [1, 128], strides = [1, 1]} : vector<64x128xf32> to vector<1x128xf32>
    %315 = arith.addf %314, %313 : vector<1x128xf32>
    %316 = arith.mulf %8, %315 : vector<1x128xf32>
    %317 = math.tanh %316 : vector<1x128xf32>
    %318 = arith.mulf %8, %317 : vector<1x128xf32>
    %319 = arith.addf %318, %11 : vector<1x128xf32>
    %320 = vector.extract_strided_slice %319 {offsets = [0, 0], sizes = [1, 32], strides = [1, 1]} : vector<1x128xf32> to vector<1x32xf32>
    %321 = vector.extract_strided_slice %319 {offsets = [0, 32], sizes = [1, 32], strides = [1, 1]} : vector<1x128xf32> to vector<1x32xf32>
    %322 = vector.extract_strided_slice %319 {offsets = [0, 64], sizes = [1, 32], strides = [1, 1]} : vector<1x128xf32> to vector<1x32xf32>
    %323 = vector.extract_strided_slice %319 {offsets = [0, 96], sizes = [1, 32], strides = [1, 1]} : vector<1x128xf32> to vector<1x32xf32>
    %324 = arith.mulf %321, %309 : vector<1x32xf32>
    %325 = arith.mulf %320, %322 : vector<1x32xf32>
    %326 = arith.addf %324, %325 : vector<1x32xf32>
    %327 = math.tanh %326 : vector<1x32xf32>
    %328 = arith.mulf %323, %327 : vector<1x32xf32>
    %329 = arith.truncf %328 : vector<1x32xf32> to vector<1x32xbf16>
    %cst_35 = arith.constant dense<0.000000e+00> : vector<1x128xf32>
    %330 = tpu.matmul %329, %12, %cst_35 {dimension_numbers = #tpu.dot_dimension_numbers<[1], [0], [0], [1], [0, 0, 1, 1], [], []>} : vector<1x32xbf16>, vector<32x128xbf16>, vector<1x128xf32> -> vector<1x128xf32>
    %331 = vector.extract_strided_slice %20 {offsets = [18, 0], sizes = [1, 128], strides = [1, 1]} : vector<64x128xf32> to vector<1x128xf32>
    %332 = arith.addf %331, %330 : vector<1x128xf32>
    %333 = arith.mulf %8, %332 : vector<1x128xf32>
    %334 = math.tanh %333 : vector<1x128xf32>
    %335 = arith.mulf %8, %334 : vector<1x128xf32>
    %336 = arith.addf %335, %11 : vector<1x128xf32>
    %337 = vector.extract_strided_slice %336 {offsets = [0, 0], sizes = [1, 32], strides = [1, 1]} : vector<1x128xf32> to vector<1x32xf32>
    %338 = vector.extract_strided_slice %336 {offsets = [0, 32], sizes = [1, 32], strides = [1, 1]} : vector<1x128xf32> to vector<1x32xf32>
    %339 = vector.extract_strided_slice %336 {offsets = [0, 64], sizes = [1, 32], strides = [1, 1]} : vector<1x128xf32> to vector<1x32xf32>
    %340 = vector.extract_strided_slice %336 {offsets = [0, 96], sizes = [1, 32], strides = [1, 1]} : vector<1x128xf32> to vector<1x32xf32>
    %341 = arith.mulf %338, %326 : vector<1x32xf32>
    %342 = arith.mulf %337, %339 : vector<1x32xf32>
    %343 = arith.addf %341, %342 : vector<1x32xf32>
    %344 = math.tanh %343 : vector<1x32xf32>
    %345 = arith.mulf %340, %344 : vector<1x32xf32>
    %346 = arith.truncf %345 : vector<1x32xf32> to vector<1x32xbf16>
    %cst_36 = arith.constant dense<0.000000e+00> : vector<1x128xf32>
    %347 = tpu.matmul %346, %12, %cst_36 {dimension_numbers = #tpu.dot_dimension_numbers<[1], [0], [0], [1], [0, 0, 1, 1], [], []>} : vector<1x32xbf16>, vector<32x128xbf16>, vector<1x128xf32> -> vector<1x128xf32>
    %348 = vector.extract_strided_slice %20 {offsets = [19, 0], sizes = [1, 128], strides = [1, 1]} : vector<64x128xf32> to vector<1x128xf32>
    %349 = arith.addf %348, %347 : vector<1x128xf32>
    %350 = arith.mulf %8, %349 : vector<1x128xf32>
    %351 = math.tanh %350 : vector<1x128xf32>
    %352 = arith.mulf %8, %351 : vector<1x128xf32>
    %353 = arith.addf %352, %11 : vector<1x128xf32>
    %354 = vector.extract_strided_slice %353 {offsets = [0, 0], sizes = [1, 32], strides = [1, 1]} : vector<1x128xf32> to vector<1x32xf32>
    %355 = vector.extract_strided_slice %353 {offsets = [0, 32], sizes = [1, 32], strides = [1, 1]} : vector<1x128xf32> to vector<1x32xf32>
    %356 = vector.extract_strided_slice %353 {offsets = [0, 64], sizes = [1, 32], strides = [1, 1]} : vector<1x128xf32> to vector<1x32xf32>
    %357 = vector.extract_strided_slice %353 {offsets = [0, 96], sizes = [1, 32], strides = [1, 1]} : vector<1x128xf32> to vector<1x32xf32>
    %358 = arith.mulf %355, %343 : vector<1x32xf32>
    %359 = arith.mulf %354, %356 : vector<1x32xf32>
    %360 = arith.addf %358, %359 : vector<1x32xf32>
    %361 = math.tanh %360 : vector<1x32xf32>
    %362 = arith.mulf %357, %361 : vector<1x32xf32>
    %363 = arith.truncf %362 : vector<1x32xf32> to vector<1x32xbf16>
    %cst_37 = arith.constant dense<0.000000e+00> : vector<1x128xf32>
    %364 = tpu.matmul %363, %12, %cst_37 {dimension_numbers = #tpu.dot_dimension_numbers<[1], [0], [0], [1], [0, 0, 1, 1], [], []>} : vector<1x32xbf16>, vector<32x128xbf16>, vector<1x128xf32> -> vector<1x128xf32>
    %365 = vector.extract_strided_slice %20 {offsets = [20, 0], sizes = [1, 128], strides = [1, 1]} : vector<64x128xf32> to vector<1x128xf32>
    %366 = arith.addf %365, %364 : vector<1x128xf32>
    %367 = arith.mulf %8, %366 : vector<1x128xf32>
    %368 = math.tanh %367 : vector<1x128xf32>
    %369 = arith.mulf %8, %368 : vector<1x128xf32>
    %370 = arith.addf %369, %11 : vector<1x128xf32>
    %371 = vector.extract_strided_slice %370 {offsets = [0, 0], sizes = [1, 32], strides = [1, 1]} : vector<1x128xf32> to vector<1x32xf32>
    %372 = vector.extract_strided_slice %370 {offsets = [0, 32], sizes = [1, 32], strides = [1, 1]} : vector<1x128xf32> to vector<1x32xf32>
    %373 = vector.extract_strided_slice %370 {offsets = [0, 64], sizes = [1, 32], strides = [1, 1]} : vector<1x128xf32> to vector<1x32xf32>
    %374 = vector.extract_strided_slice %370 {offsets = [0, 96], sizes = [1, 32], strides = [1, 1]} : vector<1x128xf32> to vector<1x32xf32>
    %375 = arith.mulf %372, %360 : vector<1x32xf32>
    %376 = arith.mulf %371, %373 : vector<1x32xf32>
    %377 = arith.addf %375, %376 : vector<1x32xf32>
    %378 = math.tanh %377 : vector<1x32xf32>
    %379 = arith.mulf %374, %378 : vector<1x32xf32>
    %380 = arith.truncf %379 : vector<1x32xf32> to vector<1x32xbf16>
    %cst_38 = arith.constant dense<0.000000e+00> : vector<1x128xf32>
    %381 = tpu.matmul %380, %12, %cst_38 {dimension_numbers = #tpu.dot_dimension_numbers<[1], [0], [0], [1], [0, 0, 1, 1], [], []>} : vector<1x32xbf16>, vector<32x128xbf16>, vector<1x128xf32> -> vector<1x128xf32>
    %382 = vector.extract_strided_slice %20 {offsets = [21, 0], sizes = [1, 128], strides = [1, 1]} : vector<64x128xf32> to vector<1x128xf32>
    %383 = arith.addf %382, %381 : vector<1x128xf32>
    %384 = arith.mulf %8, %383 : vector<1x128xf32>
    %385 = math.tanh %384 : vector<1x128xf32>
    %386 = arith.mulf %8, %385 : vector<1x128xf32>
    %387 = arith.addf %386, %11 : vector<1x128xf32>
    %388 = vector.extract_strided_slice %387 {offsets = [0, 0], sizes = [1, 32], strides = [1, 1]} : vector<1x128xf32> to vector<1x32xf32>
    %389 = vector.extract_strided_slice %387 {offsets = [0, 32], sizes = [1, 32], strides = [1, 1]} : vector<1x128xf32> to vector<1x32xf32>
    %390 = vector.extract_strided_slice %387 {offsets = [0, 64], sizes = [1, 32], strides = [1, 1]} : vector<1x128xf32> to vector<1x32xf32>
    %391 = vector.extract_strided_slice %387 {offsets = [0, 96], sizes = [1, 32], strides = [1, 1]} : vector<1x128xf32> to vector<1x32xf32>
    %392 = arith.mulf %389, %377 : vector<1x32xf32>
    %393 = arith.mulf %388, %390 : vector<1x32xf32>
    %394 = arith.addf %392, %393 : vector<1x32xf32>
    %395 = math.tanh %394 : vector<1x32xf32>
    %396 = arith.mulf %391, %395 : vector<1x32xf32>
    %397 = arith.truncf %396 : vector<1x32xf32> to vector<1x32xbf16>
    %cst_39 = arith.constant dense<0.000000e+00> : vector<1x128xf32>
    %398 = tpu.matmul %397, %12, %cst_39 {dimension_numbers = #tpu.dot_dimension_numbers<[1], [0], [0], [1], [0, 0, 1, 1], [], []>} : vector<1x32xbf16>, vector<32x128xbf16>, vector<1x128xf32> -> vector<1x128xf32>
    %399 = vector.extract_strided_slice %20 {offsets = [22, 0], sizes = [1, 128], strides = [1, 1]} : vector<64x128xf32> to vector<1x128xf32>
    %400 = arith.addf %399, %398 : vector<1x128xf32>
    %401 = arith.mulf %8, %400 : vector<1x128xf32>
    %402 = math.tanh %401 : vector<1x128xf32>
    %403 = arith.mulf %8, %402 : vector<1x128xf32>
    %404 = arith.addf %403, %11 : vector<1x128xf32>
    %405 = vector.extract_strided_slice %404 {offsets = [0, 0], sizes = [1, 32], strides = [1, 1]} : vector<1x128xf32> to vector<1x32xf32>
    %406 = vector.extract_strided_slice %404 {offsets = [0, 32], sizes = [1, 32], strides = [1, 1]} : vector<1x128xf32> to vector<1x32xf32>
    %407 = vector.extract_strided_slice %404 {offsets = [0, 64], sizes = [1, 32], strides = [1, 1]} : vector<1x128xf32> to vector<1x32xf32>
    %408 = vector.extract_strided_slice %404 {offsets = [0, 96], sizes = [1, 32], strides = [1, 1]} : vector<1x128xf32> to vector<1x32xf32>
    %409 = arith.mulf %406, %394 : vector<1x32xf32>
    %410 = arith.mulf %405, %407 : vector<1x32xf32>
    %411 = arith.addf %409, %410 : vector<1x32xf32>
    %412 = math.tanh %411 : vector<1x32xf32>
    %413 = arith.mulf %408, %412 : vector<1x32xf32>
    %414 = arith.truncf %413 : vector<1x32xf32> to vector<1x32xbf16>
    %cst_40 = arith.constant dense<0.000000e+00> : vector<1x128xf32>
    %415 = tpu.matmul %414, %12, %cst_40 {dimension_numbers = #tpu.dot_dimension_numbers<[1], [0], [0], [1], [0, 0, 1, 1], [], []>} : vector<1x32xbf16>, vector<32x128xbf16>, vector<1x128xf32> -> vector<1x128xf32>
    %416 = vector.extract_strided_slice %20 {offsets = [23, 0], sizes = [1, 128], strides = [1, 1]} : vector<64x128xf32> to vector<1x128xf32>
    %417 = arith.addf %416, %415 : vector<1x128xf32>
    %418 = arith.mulf %8, %417 : vector<1x128xf32>
    %419 = math.tanh %418 : vector<1x128xf32>
    %420 = arith.mulf %8, %419 : vector<1x128xf32>
    %421 = arith.addf %420, %11 : vector<1x128xf32>
    %422 = vector.extract_strided_slice %421 {offsets = [0, 0], sizes = [1, 32], strides = [1, 1]} : vector<1x128xf32> to vector<1x32xf32>
    %423 = vector.extract_strided_slice %421 {offsets = [0, 32], sizes = [1, 32], strides = [1, 1]} : vector<1x128xf32> to vector<1x32xf32>
    %424 = vector.extract_strided_slice %421 {offsets = [0, 64], sizes = [1, 32], strides = [1, 1]} : vector<1x128xf32> to vector<1x32xf32>
    %425 = vector.extract_strided_slice %421 {offsets = [0, 96], sizes = [1, 32], strides = [1, 1]} : vector<1x128xf32> to vector<1x32xf32>
    %426 = arith.mulf %423, %411 : vector<1x32xf32>
    %427 = arith.mulf %422, %424 : vector<1x32xf32>
    %428 = arith.addf %426, %427 : vector<1x32xf32>
    %429 = math.tanh %428 : vector<1x32xf32>
    %430 = arith.mulf %425, %429 : vector<1x32xf32>
    %431 = arith.truncf %430 : vector<1x32xf32> to vector<1x32xbf16>
    %cst_41 = arith.constant dense<0.000000e+00> : vector<1x128xf32>
    %432 = tpu.matmul %431, %12, %cst_41 {dimension_numbers = #tpu.dot_dimension_numbers<[1], [0], [0], [1], [0, 0, 1, 1], [], []>} : vector<1x32xbf16>, vector<32x128xbf16>, vector<1x128xf32> -> vector<1x128xf32>
    %433 = vector.extract_strided_slice %20 {offsets = [24, 0], sizes = [1, 128], strides = [1, 1]} : vector<64x128xf32> to vector<1x128xf32>
    %434 = arith.addf %433, %432 : vector<1x128xf32>
    %435 = arith.mulf %8, %434 : vector<1x128xf32>
    %436 = math.tanh %435 : vector<1x128xf32>
    %437 = arith.mulf %8, %436 : vector<1x128xf32>
    %438 = arith.addf %437, %11 : vector<1x128xf32>
    %439 = vector.extract_strided_slice %438 {offsets = [0, 0], sizes = [1, 32], strides = [1, 1]} : vector<1x128xf32> to vector<1x32xf32>
    %440 = vector.extract_strided_slice %438 {offsets = [0, 32], sizes = [1, 32], strides = [1, 1]} : vector<1x128xf32> to vector<1x32xf32>
    %441 = vector.extract_strided_slice %438 {offsets = [0, 64], sizes = [1, 32], strides = [1, 1]} : vector<1x128xf32> to vector<1x32xf32>
    %442 = vector.extract_strided_slice %438 {offsets = [0, 96], sizes = [1, 32], strides = [1, 1]} : vector<1x128xf32> to vector<1x32xf32>
    %443 = arith.mulf %440, %428 : vector<1x32xf32>
    %444 = arith.mulf %439, %441 : vector<1x32xf32>
    %445 = arith.addf %443, %444 : vector<1x32xf32>
    %446 = math.tanh %445 : vector<1x32xf32>
    %447 = arith.mulf %442, %446 : vector<1x32xf32>
    %448 = arith.truncf %447 : vector<1x32xf32> to vector<1x32xbf16>
    %cst_42 = arith.constant dense<0.000000e+00> : vector<1x128xf32>
    %449 = tpu.matmul %448, %12, %cst_42 {dimension_numbers = #tpu.dot_dimension_numbers<[1], [0], [0], [1], [0, 0, 1, 1], [], []>} : vector<1x32xbf16>, vector<32x128xbf16>, vector<1x128xf32> -> vector<1x128xf32>
    %450 = vector.extract_strided_slice %20 {offsets = [25, 0], sizes = [1, 128], strides = [1, 1]} : vector<64x128xf32> to vector<1x128xf32>
    %451 = arith.addf %450, %449 : vector<1x128xf32>
    %452 = arith.mulf %8, %451 : vector<1x128xf32>
    %453 = math.tanh %452 : vector<1x128xf32>
    %454 = arith.mulf %8, %453 : vector<1x128xf32>
    %455 = arith.addf %454, %11 : vector<1x128xf32>
    %456 = vector.extract_strided_slice %455 {offsets = [0, 0], sizes = [1, 32], strides = [1, 1]} : vector<1x128xf32> to vector<1x32xf32>
    %457 = vector.extract_strided_slice %455 {offsets = [0, 32], sizes = [1, 32], strides = [1, 1]} : vector<1x128xf32> to vector<1x32xf32>
    %458 = vector.extract_strided_slice %455 {offsets = [0, 64], sizes = [1, 32], strides = [1, 1]} : vector<1x128xf32> to vector<1x32xf32>
    %459 = vector.extract_strided_slice %455 {offsets = [0, 96], sizes = [1, 32], strides = [1, 1]} : vector<1x128xf32> to vector<1x32xf32>
    %460 = arith.mulf %457, %445 : vector<1x32xf32>
    %461 = arith.mulf %456, %458 : vector<1x32xf32>
    %462 = arith.addf %460, %461 : vector<1x32xf32>
    %463 = math.tanh %462 : vector<1x32xf32>
    %464 = arith.mulf %459, %463 : vector<1x32xf32>
    %465 = arith.truncf %464 : vector<1x32xf32> to vector<1x32xbf16>
    %cst_43 = arith.constant dense<0.000000e+00> : vector<1x128xf32>
    %466 = tpu.matmul %465, %12, %cst_43 {dimension_numbers = #tpu.dot_dimension_numbers<[1], [0], [0], [1], [0, 0, 1, 1], [], []>} : vector<1x32xbf16>, vector<32x128xbf16>, vector<1x128xf32> -> vector<1x128xf32>
    %467 = vector.extract_strided_slice %20 {offsets = [26, 0], sizes = [1, 128], strides = [1, 1]} : vector<64x128xf32> to vector<1x128xf32>
    %468 = arith.addf %467, %466 : vector<1x128xf32>
    %469 = arith.mulf %8, %468 : vector<1x128xf32>
    %470 = math.tanh %469 : vector<1x128xf32>
    %471 = arith.mulf %8, %470 : vector<1x128xf32>
    %472 = arith.addf %471, %11 : vector<1x128xf32>
    %473 = vector.extract_strided_slice %472 {offsets = [0, 0], sizes = [1, 32], strides = [1, 1]} : vector<1x128xf32> to vector<1x32xf32>
    %474 = vector.extract_strided_slice %472 {offsets = [0, 32], sizes = [1, 32], strides = [1, 1]} : vector<1x128xf32> to vector<1x32xf32>
    %475 = vector.extract_strided_slice %472 {offsets = [0, 64], sizes = [1, 32], strides = [1, 1]} : vector<1x128xf32> to vector<1x32xf32>
    %476 = vector.extract_strided_slice %472 {offsets = [0, 96], sizes = [1, 32], strides = [1, 1]} : vector<1x128xf32> to vector<1x32xf32>
    %477 = arith.mulf %474, %462 : vector<1x32xf32>
    %478 = arith.mulf %473, %475 : vector<1x32xf32>
    %479 = arith.addf %477, %478 : vector<1x32xf32>
    %480 = math.tanh %479 : vector<1x32xf32>
    %481 = arith.mulf %476, %480 : vector<1x32xf32>
    %482 = arith.truncf %481 : vector<1x32xf32> to vector<1x32xbf16>
    %cst_44 = arith.constant dense<0.000000e+00> : vector<1x128xf32>
    %483 = tpu.matmul %482, %12, %cst_44 {dimension_numbers = #tpu.dot_dimension_numbers<[1], [0], [0], [1], [0, 0, 1, 1], [], []>} : vector<1x32xbf16>, vector<32x128xbf16>, vector<1x128xf32> -> vector<1x128xf32>
    %484 = vector.extract_strided_slice %20 {offsets = [27, 0], sizes = [1, 128], strides = [1, 1]} : vector<64x128xf32> to vector<1x128xf32>
    %485 = arith.addf %484, %483 : vector<1x128xf32>
    %486 = arith.mulf %8, %485 : vector<1x128xf32>
    %487 = math.tanh %486 : vector<1x128xf32>
    %488 = arith.mulf %8, %487 : vector<1x128xf32>
    %489 = arith.addf %488, %11 : vector<1x128xf32>
    %490 = vector.extract_strided_slice %489 {offsets = [0, 0], sizes = [1, 32], strides = [1, 1]} : vector<1x128xf32> to vector<1x32xf32>
    %491 = vector.extract_strided_slice %489 {offsets = [0, 32], sizes = [1, 32], strides = [1, 1]} : vector<1x128xf32> to vector<1x32xf32>
    %492 = vector.extract_strided_slice %489 {offsets = [0, 64], sizes = [1, 32], strides = [1, 1]} : vector<1x128xf32> to vector<1x32xf32>
    %493 = vector.extract_strided_slice %489 {offsets = [0, 96], sizes = [1, 32], strides = [1, 1]} : vector<1x128xf32> to vector<1x32xf32>
    %494 = arith.mulf %491, %479 : vector<1x32xf32>
    %495 = arith.mulf %490, %492 : vector<1x32xf32>
    %496 = arith.addf %494, %495 : vector<1x32xf32>
    %497 = math.tanh %496 : vector<1x32xf32>
    %498 = arith.mulf %493, %497 : vector<1x32xf32>
    %499 = arith.truncf %498 : vector<1x32xf32> to vector<1x32xbf16>
    %cst_45 = arith.constant dense<0.000000e+00> : vector<1x128xf32>
    %500 = tpu.matmul %499, %12, %cst_45 {dimension_numbers = #tpu.dot_dimension_numbers<[1], [0], [0], [1], [0, 0, 1, 1], [], []>} : vector<1x32xbf16>, vector<32x128xbf16>, vector<1x128xf32> -> vector<1x128xf32>
    %501 = vector.extract_strided_slice %20 {offsets = [28, 0], sizes = [1, 128], strides = [1, 1]} : vector<64x128xf32> to vector<1x128xf32>
    %502 = arith.addf %501, %500 : vector<1x128xf32>
    %503 = arith.mulf %8, %502 : vector<1x128xf32>
    %504 = math.tanh %503 : vector<1x128xf32>
    %505 = arith.mulf %8, %504 : vector<1x128xf32>
    %506 = arith.addf %505, %11 : vector<1x128xf32>
    %507 = vector.extract_strided_slice %506 {offsets = [0, 0], sizes = [1, 32], strides = [1, 1]} : vector<1x128xf32> to vector<1x32xf32>
    %508 = vector.extract_strided_slice %506 {offsets = [0, 32], sizes = [1, 32], strides = [1, 1]} : vector<1x128xf32> to vector<1x32xf32>
    %509 = vector.extract_strided_slice %506 {offsets = [0, 64], sizes = [1, 32], strides = [1, 1]} : vector<1x128xf32> to vector<1x32xf32>
    %510 = vector.extract_strided_slice %506 {offsets = [0, 96], sizes = [1, 32], strides = [1, 1]} : vector<1x128xf32> to vector<1x32xf32>
    %511 = arith.mulf %508, %496 : vector<1x32xf32>
    %512 = arith.mulf %507, %509 : vector<1x32xf32>
    %513 = arith.addf %511, %512 : vector<1x32xf32>
    %514 = math.tanh %513 : vector<1x32xf32>
    %515 = arith.mulf %510, %514 : vector<1x32xf32>
    %516 = arith.truncf %515 : vector<1x32xf32> to vector<1x32xbf16>
    %cst_46 = arith.constant dense<0.000000e+00> : vector<1x128xf32>
    %517 = tpu.matmul %516, %12, %cst_46 {dimension_numbers = #tpu.dot_dimension_numbers<[1], [0], [0], [1], [0, 0, 1, 1], [], []>} : vector<1x32xbf16>, vector<32x128xbf16>, vector<1x128xf32> -> vector<1x128xf32>
    %518 = vector.extract_strided_slice %20 {offsets = [29, 0], sizes = [1, 128], strides = [1, 1]} : vector<64x128xf32> to vector<1x128xf32>
    %519 = arith.addf %518, %517 : vector<1x128xf32>
    %520 = arith.mulf %8, %519 : vector<1x128xf32>
    %521 = math.tanh %520 : vector<1x128xf32>
    %522 = arith.mulf %8, %521 : vector<1x128xf32>
    %523 = arith.addf %522, %11 : vector<1x128xf32>
    %524 = vector.extract_strided_slice %523 {offsets = [0, 0], sizes = [1, 32], strides = [1, 1]} : vector<1x128xf32> to vector<1x32xf32>
    %525 = vector.extract_strided_slice %523 {offsets = [0, 32], sizes = [1, 32], strides = [1, 1]} : vector<1x128xf32> to vector<1x32xf32>
    %526 = vector.extract_strided_slice %523 {offsets = [0, 64], sizes = [1, 32], strides = [1, 1]} : vector<1x128xf32> to vector<1x32xf32>
    %527 = vector.extract_strided_slice %523 {offsets = [0, 96], sizes = [1, 32], strides = [1, 1]} : vector<1x128xf32> to vector<1x32xf32>
    %528 = arith.mulf %525, %513 : vector<1x32xf32>
    %529 = arith.mulf %524, %526 : vector<1x32xf32>
    %530 = arith.addf %528, %529 : vector<1x32xf32>
    %531 = math.tanh %530 : vector<1x32xf32>
    %532 = arith.mulf %527, %531 : vector<1x32xf32>
    %533 = arith.truncf %532 : vector<1x32xf32> to vector<1x32xbf16>
    %cst_47 = arith.constant dense<0.000000e+00> : vector<1x128xf32>
    %534 = tpu.matmul %533, %12, %cst_47 {dimension_numbers = #tpu.dot_dimension_numbers<[1], [0], [0], [1], [0, 0, 1, 1], [], []>} : vector<1x32xbf16>, vector<32x128xbf16>, vector<1x128xf32> -> vector<1x128xf32>
    %535 = vector.extract_strided_slice %20 {offsets = [30, 0], sizes = [1, 128], strides = [1, 1]} : vector<64x128xf32> to vector<1x128xf32>
    %536 = arith.addf %535, %534 : vector<1x128xf32>
    %537 = arith.mulf %8, %536 : vector<1x128xf32>
    %538 = math.tanh %537 : vector<1x128xf32>
    %539 = arith.mulf %8, %538 : vector<1x128xf32>
    %540 = arith.addf %539, %11 : vector<1x128xf32>
    %541 = vector.extract_strided_slice %540 {offsets = [0, 0], sizes = [1, 32], strides = [1, 1]} : vector<1x128xf32> to vector<1x32xf32>
    %542 = vector.extract_strided_slice %540 {offsets = [0, 32], sizes = [1, 32], strides = [1, 1]} : vector<1x128xf32> to vector<1x32xf32>
    %543 = vector.extract_strided_slice %540 {offsets = [0, 64], sizes = [1, 32], strides = [1, 1]} : vector<1x128xf32> to vector<1x32xf32>
    %544 = vector.extract_strided_slice %540 {offsets = [0, 96], sizes = [1, 32], strides = [1, 1]} : vector<1x128xf32> to vector<1x32xf32>
    %545 = arith.mulf %542, %530 : vector<1x32xf32>
    %546 = arith.mulf %541, %543 : vector<1x32xf32>
    %547 = arith.addf %545, %546 : vector<1x32xf32>
    %548 = math.tanh %547 : vector<1x32xf32>
    %549 = arith.mulf %544, %548 : vector<1x32xf32>
    %550 = arith.truncf %549 : vector<1x32xf32> to vector<1x32xbf16>
    %cst_48 = arith.constant dense<0.000000e+00> : vector<1x128xf32>
    %551 = tpu.matmul %550, %12, %cst_48 {dimension_numbers = #tpu.dot_dimension_numbers<[1], [0], [0], [1], [0, 0, 1, 1], [], []>} : vector<1x32xbf16>, vector<32x128xbf16>, vector<1x128xf32> -> vector<1x128xf32>
    %552 = vector.extract_strided_slice %20 {offsets = [31, 0], sizes = [1, 128], strides = [1, 1]} : vector<64x128xf32> to vector<1x128xf32>
    %553 = arith.addf %552, %551 : vector<1x128xf32>
    %554 = arith.mulf %8, %553 : vector<1x128xf32>
    %555 = math.tanh %554 : vector<1x128xf32>
    %556 = arith.mulf %8, %555 : vector<1x128xf32>
    %557 = arith.addf %556, %11 : vector<1x128xf32>
    %558 = vector.extract_strided_slice %557 {offsets = [0, 0], sizes = [1, 32], strides = [1, 1]} : vector<1x128xf32> to vector<1x32xf32>
    %559 = vector.extract_strided_slice %557 {offsets = [0, 32], sizes = [1, 32], strides = [1, 1]} : vector<1x128xf32> to vector<1x32xf32>
    %560 = vector.extract_strided_slice %557 {offsets = [0, 64], sizes = [1, 32], strides = [1, 1]} : vector<1x128xf32> to vector<1x32xf32>
    %561 = vector.extract_strided_slice %557 {offsets = [0, 96], sizes = [1, 32], strides = [1, 1]} : vector<1x128xf32> to vector<1x32xf32>
    %562 = arith.mulf %559, %547 : vector<1x32xf32>
    %563 = arith.mulf %558, %560 : vector<1x32xf32>
    %564 = arith.addf %562, %563 : vector<1x32xf32>
    %565 = math.tanh %564 : vector<1x32xf32>
    %566 = arith.mulf %561, %565 : vector<1x32xf32>
    %567 = arith.truncf %566 : vector<1x32xf32> to vector<1x32xbf16>
    %cst_49 = arith.constant dense<0.000000e+00> : vector<1x128xf32>
    %568 = tpu.matmul %567, %12, %cst_49 {dimension_numbers = #tpu.dot_dimension_numbers<[1], [0], [0], [1], [0, 0, 1, 1], [], []>} : vector<1x32xbf16>, vector<32x128xbf16>, vector<1x128xf32> -> vector<1x128xf32>
    %569 = vector.extract_strided_slice %20 {offsets = [32, 0], sizes = [1, 128], strides = [1, 1]} : vector<64x128xf32> to vector<1x128xf32>
    %570 = arith.addf %569, %568 : vector<1x128xf32>
    %571 = arith.mulf %8, %570 : vector<1x128xf32>
    %572 = math.tanh %571 : vector<1x128xf32>
    %573 = arith.mulf %8, %572 : vector<1x128xf32>
    %574 = arith.addf %573, %11 : vector<1x128xf32>
    %575 = vector.extract_strided_slice %574 {offsets = [0, 0], sizes = [1, 32], strides = [1, 1]} : vector<1x128xf32> to vector<1x32xf32>
    %576 = vector.extract_strided_slice %574 {offsets = [0, 32], sizes = [1, 32], strides = [1, 1]} : vector<1x128xf32> to vector<1x32xf32>
    %577 = vector.extract_strided_slice %574 {offsets = [0, 64], sizes = [1, 32], strides = [1, 1]} : vector<1x128xf32> to vector<1x32xf32>
    %578 = vector.extract_strided_slice %574 {offsets = [0, 96], sizes = [1, 32], strides = [1, 1]} : vector<1x128xf32> to vector<1x32xf32>
    %579 = arith.mulf %576, %564 : vector<1x32xf32>
    %580 = arith.mulf %575, %577 : vector<1x32xf32>
    %581 = arith.addf %579, %580 : vector<1x32xf32>
    %582 = math.tanh %581 : vector<1x32xf32>
    %583 = arith.mulf %578, %582 : vector<1x32xf32>
    %584 = arith.truncf %583 : vector<1x32xf32> to vector<1x32xbf16>
    %cst_50 = arith.constant dense<0.000000e+00> : vector<1x128xf32>
    %585 = tpu.matmul %584, %12, %cst_50 {dimension_numbers = #tpu.dot_dimension_numbers<[1], [0], [0], [1], [0, 0, 1, 1], [], []>} : vector<1x32xbf16>, vector<32x128xbf16>, vector<1x128xf32> -> vector<1x128xf32>
    %586 = vector.extract_strided_slice %20 {offsets = [33, 0], sizes = [1, 128], strides = [1, 1]} : vector<64x128xf32> to vector<1x128xf32>
    %587 = arith.addf %586, %585 : vector<1x128xf32>
    %588 = arith.mulf %8, %587 : vector<1x128xf32>
    %589 = math.tanh %588 : vector<1x128xf32>
    %590 = arith.mulf %8, %589 : vector<1x128xf32>
    %591 = arith.addf %590, %11 : vector<1x128xf32>
    %592 = vector.extract_strided_slice %591 {offsets = [0, 0], sizes = [1, 32], strides = [1, 1]} : vector<1x128xf32> to vector<1x32xf32>
    %593 = vector.extract_strided_slice %591 {offsets = [0, 32], sizes = [1, 32], strides = [1, 1]} : vector<1x128xf32> to vector<1x32xf32>
    %594 = vector.extract_strided_slice %591 {offsets = [0, 64], sizes = [1, 32], strides = [1, 1]} : vector<1x128xf32> to vector<1x32xf32>
    %595 = vector.extract_strided_slice %591 {offsets = [0, 96], sizes = [1, 32], strides = [1, 1]} : vector<1x128xf32> to vector<1x32xf32>
    %596 = arith.mulf %593, %581 : vector<1x32xf32>
    %597 = arith.mulf %592, %594 : vector<1x32xf32>
    %598 = arith.addf %596, %597 : vector<1x32xf32>
    %599 = math.tanh %598 : vector<1x32xf32>
    %600 = arith.mulf %595, %599 : vector<1x32xf32>
    %601 = arith.truncf %600 : vector<1x32xf32> to vector<1x32xbf16>
    %cst_51 = arith.constant dense<0.000000e+00> : vector<1x128xf32>
    %602 = tpu.matmul %601, %12, %cst_51 {dimension_numbers = #tpu.dot_dimension_numbers<[1], [0], [0], [1], [0, 0, 1, 1], [], []>} : vector<1x32xbf16>, vector<32x128xbf16>, vector<1x128xf32> -> vector<1x128xf32>
    %603 = vector.extract_strided_slice %20 {offsets = [34, 0], sizes = [1, 128], strides = [1, 1]} : vector<64x128xf32> to vector<1x128xf32>
    %604 = arith.addf %603, %602 : vector<1x128xf32>
    %605 = arith.mulf %8, %604 : vector<1x128xf32>
    %606 = math.tanh %605 : vector<1x128xf32>
    %607 = arith.mulf %8, %606 : vector<1x128xf32>
    %608 = arith.addf %607, %11 : vector<1x128xf32>
    %609 = vector.extract_strided_slice %608 {offsets = [0, 0], sizes = [1, 32], strides = [1, 1]} : vector<1x128xf32> to vector<1x32xf32>
    %610 = vector.extract_strided_slice %608 {offsets = [0, 32], sizes = [1, 32], strides = [1, 1]} : vector<1x128xf32> to vector<1x32xf32>
    %611 = vector.extract_strided_slice %608 {offsets = [0, 64], sizes = [1, 32], strides = [1, 1]} : vector<1x128xf32> to vector<1x32xf32>
    %612 = vector.extract_strided_slice %608 {offsets = [0, 96], sizes = [1, 32], strides = [1, 1]} : vector<1x128xf32> to vector<1x32xf32>
    %613 = arith.mulf %610, %598 : vector<1x32xf32>
    %614 = arith.mulf %609, %611 : vector<1x32xf32>
    %615 = arith.addf %613, %614 : vector<1x32xf32>
    %616 = math.tanh %615 : vector<1x32xf32>
    %617 = arith.mulf %612, %616 : vector<1x32xf32>
    %618 = arith.truncf %617 : vector<1x32xf32> to vector<1x32xbf16>
    %cst_52 = arith.constant dense<0.000000e+00> : vector<1x128xf32>
    %619 = tpu.matmul %618, %12, %cst_52 {dimension_numbers = #tpu.dot_dimension_numbers<[1], [0], [0], [1], [0, 0, 1, 1], [], []>} : vector<1x32xbf16>, vector<32x128xbf16>, vector<1x128xf32> -> vector<1x128xf32>
    %620 = vector.extract_strided_slice %20 {offsets = [35, 0], sizes = [1, 128], strides = [1, 1]} : vector<64x128xf32> to vector<1x128xf32>
    %621 = arith.addf %620, %619 : vector<1x128xf32>
    %622 = arith.mulf %8, %621 : vector<1x128xf32>
    %623 = math.tanh %622 : vector<1x128xf32>
    %624 = arith.mulf %8, %623 : vector<1x128xf32>
    %625 = arith.addf %624, %11 : vector<1x128xf32>
    %626 = vector.extract_strided_slice %625 {offsets = [0, 0], sizes = [1, 32], strides = [1, 1]} : vector<1x128xf32> to vector<1x32xf32>
    %627 = vector.extract_strided_slice %625 {offsets = [0, 32], sizes = [1, 32], strides = [1, 1]} : vector<1x128xf32> to vector<1x32xf32>
    %628 = vector.extract_strided_slice %625 {offsets = [0, 64], sizes = [1, 32], strides = [1, 1]} : vector<1x128xf32> to vector<1x32xf32>
    %629 = vector.extract_strided_slice %625 {offsets = [0, 96], sizes = [1, 32], strides = [1, 1]} : vector<1x128xf32> to vector<1x32xf32>
    %630 = arith.mulf %627, %615 : vector<1x32xf32>
    %631 = arith.mulf %626, %628 : vector<1x32xf32>
    %632 = arith.addf %630, %631 : vector<1x32xf32>
    %633 = math.tanh %632 : vector<1x32xf32>
    %634 = arith.mulf %629, %633 : vector<1x32xf32>
    %635 = arith.truncf %634 : vector<1x32xf32> to vector<1x32xbf16>
    %cst_53 = arith.constant dense<0.000000e+00> : vector<1x128xf32>
    %636 = tpu.matmul %635, %12, %cst_53 {dimension_numbers = #tpu.dot_dimension_numbers<[1], [0], [0], [1], [0, 0, 1, 1], [], []>} : vector<1x32xbf16>, vector<32x128xbf16>, vector<1x128xf32> -> vector<1x128xf32>
    %637 = vector.extract_strided_slice %20 {offsets = [36, 0], sizes = [1, 128], strides = [1, 1]} : vector<64x128xf32> to vector<1x128xf32>
    %638 = arith.addf %637, %636 : vector<1x128xf32>
    %639 = arith.mulf %8, %638 : vector<1x128xf32>
    %640 = math.tanh %639 : vector<1x128xf32>
    %641 = arith.mulf %8, %640 : vector<1x128xf32>
    %642 = arith.addf %641, %11 : vector<1x128xf32>
    %643 = vector.extract_strided_slice %642 {offsets = [0, 0], sizes = [1, 32], strides = [1, 1]} : vector<1x128xf32> to vector<1x32xf32>
    %644 = vector.extract_strided_slice %642 {offsets = [0, 32], sizes = [1, 32], strides = [1, 1]} : vector<1x128xf32> to vector<1x32xf32>
    %645 = vector.extract_strided_slice %642 {offsets = [0, 64], sizes = [1, 32], strides = [1, 1]} : vector<1x128xf32> to vector<1x32xf32>
    %646 = vector.extract_strided_slice %642 {offsets = [0, 96], sizes = [1, 32], strides = [1, 1]} : vector<1x128xf32> to vector<1x32xf32>
    %647 = arith.mulf %644, %632 : vector<1x32xf32>
    %648 = arith.mulf %643, %645 : vector<1x32xf32>
    %649 = arith.addf %647, %648 : vector<1x32xf32>
    %650 = math.tanh %649 : vector<1x32xf32>
    %651 = arith.mulf %646, %650 : vector<1x32xf32>
    %652 = arith.truncf %651 : vector<1x32xf32> to vector<1x32xbf16>
    %cst_54 = arith.constant dense<0.000000e+00> : vector<1x128xf32>
    %653 = tpu.matmul %652, %12, %cst_54 {dimension_numbers = #tpu.dot_dimension_numbers<[1], [0], [0], [1], [0, 0, 1, 1], [], []>} : vector<1x32xbf16>, vector<32x128xbf16>, vector<1x128xf32> -> vector<1x128xf32>
    %654 = vector.extract_strided_slice %20 {offsets = [37, 0], sizes = [1, 128], strides = [1, 1]} : vector<64x128xf32> to vector<1x128xf32>
    %655 = arith.addf %654, %653 : vector<1x128xf32>
    %656 = arith.mulf %8, %655 : vector<1x128xf32>
    %657 = math.tanh %656 : vector<1x128xf32>
    %658 = arith.mulf %8, %657 : vector<1x128xf32>
    %659 = arith.addf %658, %11 : vector<1x128xf32>
    %660 = vector.extract_strided_slice %659 {offsets = [0, 0], sizes = [1, 32], strides = [1, 1]} : vector<1x128xf32> to vector<1x32xf32>
    %661 = vector.extract_strided_slice %659 {offsets = [0, 32], sizes = [1, 32], strides = [1, 1]} : vector<1x128xf32> to vector<1x32xf32>
    %662 = vector.extract_strided_slice %659 {offsets = [0, 64], sizes = [1, 32], strides = [1, 1]} : vector<1x128xf32> to vector<1x32xf32>
    %663 = vector.extract_strided_slice %659 {offsets = [0, 96], sizes = [1, 32], strides = [1, 1]} : vector<1x128xf32> to vector<1x32xf32>
    %664 = arith.mulf %661, %649 : vector<1x32xf32>
    %665 = arith.mulf %660, %662 : vector<1x32xf32>
    %666 = arith.addf %664, %665 : vector<1x32xf32>
    %667 = math.tanh %666 : vector<1x32xf32>
    %668 = arith.mulf %663, %667 : vector<1x32xf32>
    %669 = arith.truncf %668 : vector<1x32xf32> to vector<1x32xbf16>
    %cst_55 = arith.constant dense<0.000000e+00> : vector<1x128xf32>
    %670 = tpu.matmul %669, %12, %cst_55 {dimension_numbers = #tpu.dot_dimension_numbers<[1], [0], [0], [1], [0, 0, 1, 1], [], []>} : vector<1x32xbf16>, vector<32x128xbf16>, vector<1x128xf32> -> vector<1x128xf32>
    %671 = vector.extract_strided_slice %20 {offsets = [38, 0], sizes = [1, 128], strides = [1, 1]} : vector<64x128xf32> to vector<1x128xf32>
    %672 = arith.addf %671, %670 : vector<1x128xf32>
    %673 = arith.mulf %8, %672 : vector<1x128xf32>
    %674 = math.tanh %673 : vector<1x128xf32>
    %675 = arith.mulf %8, %674 : vector<1x128xf32>
    %676 = arith.addf %675, %11 : vector<1x128xf32>
    %677 = vector.extract_strided_slice %676 {offsets = [0, 0], sizes = [1, 32], strides = [1, 1]} : vector<1x128xf32> to vector<1x32xf32>
    %678 = vector.extract_strided_slice %676 {offsets = [0, 32], sizes = [1, 32], strides = [1, 1]} : vector<1x128xf32> to vector<1x32xf32>
    %679 = vector.extract_strided_slice %676 {offsets = [0, 64], sizes = [1, 32], strides = [1, 1]} : vector<1x128xf32> to vector<1x32xf32>
    %680 = vector.extract_strided_slice %676 {offsets = [0, 96], sizes = [1, 32], strides = [1, 1]} : vector<1x128xf32> to vector<1x32xf32>
    %681 = arith.mulf %678, %666 : vector<1x32xf32>
    %682 = arith.mulf %677, %679 : vector<1x32xf32>
    %683 = arith.addf %681, %682 : vector<1x32xf32>
    %684 = math.tanh %683 : vector<1x32xf32>
    %685 = arith.mulf %680, %684 : vector<1x32xf32>
    %686 = arith.truncf %685 : vector<1x32xf32> to vector<1x32xbf16>
    %cst_56 = arith.constant dense<0.000000e+00> : vector<1x128xf32>
    %687 = tpu.matmul %686, %12, %cst_56 {dimension_numbers = #tpu.dot_dimension_numbers<[1], [0], [0], [1], [0, 0, 1, 1], [], []>} : vector<1x32xbf16>, vector<32x128xbf16>, vector<1x128xf32> -> vector<1x128xf32>
    %688 = vector.extract_strided_slice %20 {offsets = [39, 0], sizes = [1, 128], strides = [1, 1]} : vector<64x128xf32> to vector<1x128xf32>
    %689 = arith.addf %688, %687 : vector<1x128xf32>
    %690 = arith.mulf %8, %689 : vector<1x128xf32>
    %691 = math.tanh %690 : vector<1x128xf32>
    %692 = arith.mulf %8, %691 : vector<1x128xf32>
    %693 = arith.addf %692, %11 : vector<1x128xf32>
    %694 = vector.extract_strided_slice %693 {offsets = [0, 0], sizes = [1, 32], strides = [1, 1]} : vector<1x128xf32> to vector<1x32xf32>
    %695 = vector.extract_strided_slice %693 {offsets = [0, 32], sizes = [1, 32], strides = [1, 1]} : vector<1x128xf32> to vector<1x32xf32>
    %696 = vector.extract_strided_slice %693 {offsets = [0, 64], sizes = [1, 32], strides = [1, 1]} : vector<1x128xf32> to vector<1x32xf32>
    %697 = vector.extract_strided_slice %693 {offsets = [0, 96], sizes = [1, 32], strides = [1, 1]} : vector<1x128xf32> to vector<1x32xf32>
    %698 = arith.mulf %695, %683 : vector<1x32xf32>
    %699 = arith.mulf %694, %696 : vector<1x32xf32>
    %700 = arith.addf %698, %699 : vector<1x32xf32>
    %701 = math.tanh %700 : vector<1x32xf32>
    %702 = arith.mulf %697, %701 : vector<1x32xf32>
    %703 = arith.truncf %702 : vector<1x32xf32> to vector<1x32xbf16>
    %cst_57 = arith.constant dense<0.000000e+00> : vector<1x128xf32>
    %704 = tpu.matmul %703, %12, %cst_57 {dimension_numbers = #tpu.dot_dimension_numbers<[1], [0], [0], [1], [0, 0, 1, 1], [], []>} : vector<1x32xbf16>, vector<32x128xbf16>, vector<1x128xf32> -> vector<1x128xf32>
    %705 = vector.extract_strided_slice %20 {offsets = [40, 0], sizes = [1, 128], strides = [1, 1]} : vector<64x128xf32> to vector<1x128xf32>
    %706 = arith.addf %705, %704 : vector<1x128xf32>
    %707 = arith.mulf %8, %706 : vector<1x128xf32>
    %708 = math.tanh %707 : vector<1x128xf32>
    %709 = arith.mulf %8, %708 : vector<1x128xf32>
    %710 = arith.addf %709, %11 : vector<1x128xf32>
    %711 = vector.extract_strided_slice %710 {offsets = [0, 0], sizes = [1, 32], strides = [1, 1]} : vector<1x128xf32> to vector<1x32xf32>
    %712 = vector.extract_strided_slice %710 {offsets = [0, 32], sizes = [1, 32], strides = [1, 1]} : vector<1x128xf32> to vector<1x32xf32>
    %713 = vector.extract_strided_slice %710 {offsets = [0, 64], sizes = [1, 32], strides = [1, 1]} : vector<1x128xf32> to vector<1x32xf32>
    %714 = vector.extract_strided_slice %710 {offsets = [0, 96], sizes = [1, 32], strides = [1, 1]} : vector<1x128xf32> to vector<1x32xf32>
    %715 = arith.mulf %712, %700 : vector<1x32xf32>
    %716 = arith.mulf %711, %713 : vector<1x32xf32>
    %717 = arith.addf %715, %716 : vector<1x32xf32>
    %718 = math.tanh %717 : vector<1x32xf32>
    %719 = arith.mulf %714, %718 : vector<1x32xf32>
    %720 = arith.truncf %719 : vector<1x32xf32> to vector<1x32xbf16>
    %cst_58 = arith.constant dense<0.000000e+00> : vector<1x128xf32>
    %721 = tpu.matmul %720, %12, %cst_58 {dimension_numbers = #tpu.dot_dimension_numbers<[1], [0], [0], [1], [0, 0, 1, 1], [], []>} : vector<1x32xbf16>, vector<32x128xbf16>, vector<1x128xf32> -> vector<1x128xf32>
    %722 = vector.extract_strided_slice %20 {offsets = [41, 0], sizes = [1, 128], strides = [1, 1]} : vector<64x128xf32> to vector<1x128xf32>
    %723 = arith.addf %722, %721 : vector<1x128xf32>
    %724 = arith.mulf %8, %723 : vector<1x128xf32>
    %725 = math.tanh %724 : vector<1x128xf32>
    %726 = arith.mulf %8, %725 : vector<1x128xf32>
    %727 = arith.addf %726, %11 : vector<1x128xf32>
    %728 = vector.extract_strided_slice %727 {offsets = [0, 0], sizes = [1, 32], strides = [1, 1]} : vector<1x128xf32> to vector<1x32xf32>
    %729 = vector.extract_strided_slice %727 {offsets = [0, 32], sizes = [1, 32], strides = [1, 1]} : vector<1x128xf32> to vector<1x32xf32>
    %730 = vector.extract_strided_slice %727 {offsets = [0, 64], sizes = [1, 32], strides = [1, 1]} : vector<1x128xf32> to vector<1x32xf32>
    %731 = vector.extract_strided_slice %727 {offsets = [0, 96], sizes = [1, 32], strides = [1, 1]} : vector<1x128xf32> to vector<1x32xf32>
    %732 = arith.mulf %729, %717 : vector<1x32xf32>
    %733 = arith.mulf %728, %730 : vector<1x32xf32>
    %734 = arith.addf %732, %733 : vector<1x32xf32>
    %735 = math.tanh %734 : vector<1x32xf32>
    %736 = arith.mulf %731, %735 : vector<1x32xf32>
    %737 = arith.truncf %736 : vector<1x32xf32> to vector<1x32xbf16>
    %cst_59 = arith.constant dense<0.000000e+00> : vector<1x128xf32>
    %738 = tpu.matmul %737, %12, %cst_59 {dimension_numbers = #tpu.dot_dimension_numbers<[1], [0], [0], [1], [0, 0, 1, 1], [], []>} : vector<1x32xbf16>, vector<32x128xbf16>, vector<1x128xf32> -> vector<1x128xf32>
    %739 = vector.extract_strided_slice %20 {offsets = [42, 0], sizes = [1, 128], strides = [1, 1]} : vector<64x128xf32> to vector<1x128xf32>
    %740 = arith.addf %739, %738 : vector<1x128xf32>
    %741 = arith.mulf %8, %740 : vector<1x128xf32>
    %742 = math.tanh %741 : vector<1x128xf32>
    %743 = arith.mulf %8, %742 : vector<1x128xf32>
    %744 = arith.addf %743, %11 : vector<1x128xf32>
    %745 = vector.extract_strided_slice %744 {offsets = [0, 0], sizes = [1, 32], strides = [1, 1]} : vector<1x128xf32> to vector<1x32xf32>
    %746 = vector.extract_strided_slice %744 {offsets = [0, 32], sizes = [1, 32], strides = [1, 1]} : vector<1x128xf32> to vector<1x32xf32>
    %747 = vector.extract_strided_slice %744 {offsets = [0, 64], sizes = [1, 32], strides = [1, 1]} : vector<1x128xf32> to vector<1x32xf32>
    %748 = vector.extract_strided_slice %744 {offsets = [0, 96], sizes = [1, 32], strides = [1, 1]} : vector<1x128xf32> to vector<1x32xf32>
    %749 = arith.mulf %746, %734 : vector<1x32xf32>
    %750 = arith.mulf %745, %747 : vector<1x32xf32>
    %751 = arith.addf %749, %750 : vector<1x32xf32>
    %752 = math.tanh %751 : vector<1x32xf32>
    %753 = arith.mulf %748, %752 : vector<1x32xf32>
    %754 = arith.truncf %753 : vector<1x32xf32> to vector<1x32xbf16>
    %cst_60 = arith.constant dense<0.000000e+00> : vector<1x128xf32>
    %755 = tpu.matmul %754, %12, %cst_60 {dimension_numbers = #tpu.dot_dimension_numbers<[1], [0], [0], [1], [0, 0, 1, 1], [], []>} : vector<1x32xbf16>, vector<32x128xbf16>, vector<1x128xf32> -> vector<1x128xf32>
    %756 = vector.extract_strided_slice %20 {offsets = [43, 0], sizes = [1, 128], strides = [1, 1]} : vector<64x128xf32> to vector<1x128xf32>
    %757 = arith.addf %756, %755 : vector<1x128xf32>
    %758 = arith.mulf %8, %757 : vector<1x128xf32>
    %759 = math.tanh %758 : vector<1x128xf32>
    %760 = arith.mulf %8, %759 : vector<1x128xf32>
    %761 = arith.addf %760, %11 : vector<1x128xf32>
    %762 = vector.extract_strided_slice %761 {offsets = [0, 0], sizes = [1, 32], strides = [1, 1]} : vector<1x128xf32> to vector<1x32xf32>
    %763 = vector.extract_strided_slice %761 {offsets = [0, 32], sizes = [1, 32], strides = [1, 1]} : vector<1x128xf32> to vector<1x32xf32>
    %764 = vector.extract_strided_slice %761 {offsets = [0, 64], sizes = [1, 32], strides = [1, 1]} : vector<1x128xf32> to vector<1x32xf32>
    %765 = vector.extract_strided_slice %761 {offsets = [0, 96], sizes = [1, 32], strides = [1, 1]} : vector<1x128xf32> to vector<1x32xf32>
    %766 = arith.mulf %763, %751 : vector<1x32xf32>
    %767 = arith.mulf %762, %764 : vector<1x32xf32>
    %768 = arith.addf %766, %767 : vector<1x32xf32>
    %769 = math.tanh %768 : vector<1x32xf32>
    %770 = arith.mulf %765, %769 : vector<1x32xf32>
    %771 = arith.truncf %770 : vector<1x32xf32> to vector<1x32xbf16>
    %cst_61 = arith.constant dense<0.000000e+00> : vector<1x128xf32>
    %772 = tpu.matmul %771, %12, %cst_61 {dimension_numbers = #tpu.dot_dimension_numbers<[1], [0], [0], [1], [0, 0, 1, 1], [], []>} : vector<1x32xbf16>, vector<32x128xbf16>, vector<1x128xf32> -> vector<1x128xf32>
    %773 = vector.extract_strided_slice %20 {offsets = [44, 0], sizes = [1, 128], strides = [1, 1]} : vector<64x128xf32> to vector<1x128xf32>
    %774 = arith.addf %773, %772 : vector<1x128xf32>
    %775 = arith.mulf %8, %774 : vector<1x128xf32>
    %776 = math.tanh %775 : vector<1x128xf32>
    %777 = arith.mulf %8, %776 : vector<1x128xf32>
    %778 = arith.addf %777, %11 : vector<1x128xf32>
    %779 = vector.extract_strided_slice %778 {offsets = [0, 0], sizes = [1, 32], strides = [1, 1]} : vector<1x128xf32> to vector<1x32xf32>
    %780 = vector.extract_strided_slice %778 {offsets = [0, 32], sizes = [1, 32], strides = [1, 1]} : vector<1x128xf32> to vector<1x32xf32>
    %781 = vector.extract_strided_slice %778 {offsets = [0, 64], sizes = [1, 32], strides = [1, 1]} : vector<1x128xf32> to vector<1x32xf32>
    %782 = vector.extract_strided_slice %778 {offsets = [0, 96], sizes = [1, 32], strides = [1, 1]} : vector<1x128xf32> to vector<1x32xf32>
    %783 = arith.mulf %780, %768 : vector<1x32xf32>
    %784 = arith.mulf %779, %781 : vector<1x32xf32>
    %785 = arith.addf %783, %784 : vector<1x32xf32>
    %786 = math.tanh %785 : vector<1x32xf32>
    %787 = arith.mulf %782, %786 : vector<1x32xf32>
    %788 = arith.truncf %787 : vector<1x32xf32> to vector<1x32xbf16>
    %cst_62 = arith.constant dense<0.000000e+00> : vector<1x128xf32>
    %789 = tpu.matmul %788, %12, %cst_62 {dimension_numbers = #tpu.dot_dimension_numbers<[1], [0], [0], [1], [0, 0, 1, 1], [], []>} : vector<1x32xbf16>, vector<32x128xbf16>, vector<1x128xf32> -> vector<1x128xf32>
    %790 = vector.extract_strided_slice %20 {offsets = [45, 0], sizes = [1, 128], strides = [1, 1]} : vector<64x128xf32> to vector<1x128xf32>
    %791 = arith.addf %790, %789 : vector<1x128xf32>
    %792 = arith.mulf %8, %791 : vector<1x128xf32>
    %793 = math.tanh %792 : vector<1x128xf32>
    %794 = arith.mulf %8, %793 : vector<1x128xf32>
    %795 = arith.addf %794, %11 : vector<1x128xf32>
    %796 = vector.extract_strided_slice %795 {offsets = [0, 0], sizes = [1, 32], strides = [1, 1]} : vector<1x128xf32> to vector<1x32xf32>
    %797 = vector.extract_strided_slice %795 {offsets = [0, 32], sizes = [1, 32], strides = [1, 1]} : vector<1x128xf32> to vector<1x32xf32>
    %798 = vector.extract_strided_slice %795 {offsets = [0, 64], sizes = [1, 32], strides = [1, 1]} : vector<1x128xf32> to vector<1x32xf32>
    %799 = vector.extract_strided_slice %795 {offsets = [0, 96], sizes = [1, 32], strides = [1, 1]} : vector<1x128xf32> to vector<1x32xf32>
    %800 = arith.mulf %797, %785 : vector<1x32xf32>
    %801 = arith.mulf %796, %798 : vector<1x32xf32>
    %802 = arith.addf %800, %801 : vector<1x32xf32>
    %803 = math.tanh %802 : vector<1x32xf32>
    %804 = arith.mulf %799, %803 : vector<1x32xf32>
    %805 = arith.truncf %804 : vector<1x32xf32> to vector<1x32xbf16>
    %cst_63 = arith.constant dense<0.000000e+00> : vector<1x128xf32>
    %806 = tpu.matmul %805, %12, %cst_63 {dimension_numbers = #tpu.dot_dimension_numbers<[1], [0], [0], [1], [0, 0, 1, 1], [], []>} : vector<1x32xbf16>, vector<32x128xbf16>, vector<1x128xf32> -> vector<1x128xf32>
    %807 = vector.extract_strided_slice %20 {offsets = [46, 0], sizes = [1, 128], strides = [1, 1]} : vector<64x128xf32> to vector<1x128xf32>
    %808 = arith.addf %807, %806 : vector<1x128xf32>
    %809 = arith.mulf %8, %808 : vector<1x128xf32>
    %810 = math.tanh %809 : vector<1x128xf32>
    %811 = arith.mulf %8, %810 : vector<1x128xf32>
    %812 = arith.addf %811, %11 : vector<1x128xf32>
    %813 = vector.extract_strided_slice %812 {offsets = [0, 0], sizes = [1, 32], strides = [1, 1]} : vector<1x128xf32> to vector<1x32xf32>
    %814 = vector.extract_strided_slice %812 {offsets = [0, 32], sizes = [1, 32], strides = [1, 1]} : vector<1x128xf32> to vector<1x32xf32>
    %815 = vector.extract_strided_slice %812 {offsets = [0, 64], sizes = [1, 32], strides = [1, 1]} : vector<1x128xf32> to vector<1x32xf32>
    %816 = vector.extract_strided_slice %812 {offsets = [0, 96], sizes = [1, 32], strides = [1, 1]} : vector<1x128xf32> to vector<1x32xf32>
    %817 = arith.mulf %814, %802 : vector<1x32xf32>
    %818 = arith.mulf %813, %815 : vector<1x32xf32>
    %819 = arith.addf %817, %818 : vector<1x32xf32>
    %820 = math.tanh %819 : vector<1x32xf32>
    %821 = arith.mulf %816, %820 : vector<1x32xf32>
    %822 = arith.truncf %821 : vector<1x32xf32> to vector<1x32xbf16>
    %cst_64 = arith.constant dense<0.000000e+00> : vector<1x128xf32>
    %823 = tpu.matmul %822, %12, %cst_64 {dimension_numbers = #tpu.dot_dimension_numbers<[1], [0], [0], [1], [0, 0, 1, 1], [], []>} : vector<1x32xbf16>, vector<32x128xbf16>, vector<1x128xf32> -> vector<1x128xf32>
    %824 = vector.extract_strided_slice %20 {offsets = [47, 0], sizes = [1, 128], strides = [1, 1]} : vector<64x128xf32> to vector<1x128xf32>
    %825 = arith.addf %824, %823 : vector<1x128xf32>
    %826 = arith.mulf %8, %825 : vector<1x128xf32>
    %827 = math.tanh %826 : vector<1x128xf32>
    %828 = arith.mulf %8, %827 : vector<1x128xf32>
    %829 = arith.addf %828, %11 : vector<1x128xf32>
    %830 = vector.extract_strided_slice %829 {offsets = [0, 0], sizes = [1, 32], strides = [1, 1]} : vector<1x128xf32> to vector<1x32xf32>
    %831 = vector.extract_strided_slice %829 {offsets = [0, 32], sizes = [1, 32], strides = [1, 1]} : vector<1x128xf32> to vector<1x32xf32>
    %832 = vector.extract_strided_slice %829 {offsets = [0, 64], sizes = [1, 32], strides = [1, 1]} : vector<1x128xf32> to vector<1x32xf32>
    %833 = vector.extract_strided_slice %829 {offsets = [0, 96], sizes = [1, 32], strides = [1, 1]} : vector<1x128xf32> to vector<1x32xf32>
    %834 = arith.mulf %831, %819 : vector<1x32xf32>
    %835 = arith.mulf %830, %832 : vector<1x32xf32>
    %836 = arith.addf %834, %835 : vector<1x32xf32>
    %837 = math.tanh %836 : vector<1x32xf32>
    %838 = arith.mulf %833, %837 : vector<1x32xf32>
    %839 = arith.truncf %838 : vector<1x32xf32> to vector<1x32xbf16>
    %cst_65 = arith.constant dense<0.000000e+00> : vector<1x128xf32>
    %840 = tpu.matmul %839, %12, %cst_65 {dimension_numbers = #tpu.dot_dimension_numbers<[1], [0], [0], [1], [0, 0, 1, 1], [], []>} : vector<1x32xbf16>, vector<32x128xbf16>, vector<1x128xf32> -> vector<1x128xf32>
    %841 = vector.extract_strided_slice %20 {offsets = [48, 0], sizes = [1, 128], strides = [1, 1]} : vector<64x128xf32> to vector<1x128xf32>
    %842 = arith.addf %841, %840 : vector<1x128xf32>
    %843 = arith.mulf %8, %842 : vector<1x128xf32>
    %844 = math.tanh %843 : vector<1x128xf32>
    %845 = arith.mulf %8, %844 : vector<1x128xf32>
    %846 = arith.addf %845, %11 : vector<1x128xf32>
    %847 = vector.extract_strided_slice %846 {offsets = [0, 0], sizes = [1, 32], strides = [1, 1]} : vector<1x128xf32> to vector<1x32xf32>
    %848 = vector.extract_strided_slice %846 {offsets = [0, 32], sizes = [1, 32], strides = [1, 1]} : vector<1x128xf32> to vector<1x32xf32>
    %849 = vector.extract_strided_slice %846 {offsets = [0, 64], sizes = [1, 32], strides = [1, 1]} : vector<1x128xf32> to vector<1x32xf32>
    %850 = vector.extract_strided_slice %846 {offsets = [0, 96], sizes = [1, 32], strides = [1, 1]} : vector<1x128xf32> to vector<1x32xf32>
    %851 = arith.mulf %848, %836 : vector<1x32xf32>
    %852 = arith.mulf %847, %849 : vector<1x32xf32>
    %853 = arith.addf %851, %852 : vector<1x32xf32>
    %854 = math.tanh %853 : vector<1x32xf32>
    %855 = arith.mulf %850, %854 : vector<1x32xf32>
    %856 = arith.truncf %855 : vector<1x32xf32> to vector<1x32xbf16>
    %cst_66 = arith.constant dense<0.000000e+00> : vector<1x128xf32>
    %857 = tpu.matmul %856, %12, %cst_66 {dimension_numbers = #tpu.dot_dimension_numbers<[1], [0], [0], [1], [0, 0, 1, 1], [], []>} : vector<1x32xbf16>, vector<32x128xbf16>, vector<1x128xf32> -> vector<1x128xf32>
    %858 = vector.extract_strided_slice %20 {offsets = [49, 0], sizes = [1, 128], strides = [1, 1]} : vector<64x128xf32> to vector<1x128xf32>
    %859 = arith.addf %858, %857 : vector<1x128xf32>
    %860 = arith.mulf %8, %859 : vector<1x128xf32>
    %861 = math.tanh %860 : vector<1x128xf32>
    %862 = arith.mulf %8, %861 : vector<1x128xf32>
    %863 = arith.addf %862, %11 : vector<1x128xf32>
    %864 = vector.extract_strided_slice %863 {offsets = [0, 0], sizes = [1, 32], strides = [1, 1]} : vector<1x128xf32> to vector<1x32xf32>
    %865 = vector.extract_strided_slice %863 {offsets = [0, 32], sizes = [1, 32], strides = [1, 1]} : vector<1x128xf32> to vector<1x32xf32>
    %866 = vector.extract_strided_slice %863 {offsets = [0, 64], sizes = [1, 32], strides = [1, 1]} : vector<1x128xf32> to vector<1x32xf32>
    %867 = vector.extract_strided_slice %863 {offsets = [0, 96], sizes = [1, 32], strides = [1, 1]} : vector<1x128xf32> to vector<1x32xf32>
    %868 = arith.mulf %865, %853 : vector<1x32xf32>
    %869 = arith.mulf %864, %866 : vector<1x32xf32>
    %870 = arith.addf %868, %869 : vector<1x32xf32>
    %871 = math.tanh %870 : vector<1x32xf32>
    %872 = arith.mulf %867, %871 : vector<1x32xf32>
    %873 = arith.truncf %872 : vector<1x32xf32> to vector<1x32xbf16>
    %cst_67 = arith.constant dense<0.000000e+00> : vector<1x128xf32>
    %874 = tpu.matmul %873, %12, %cst_67 {dimension_numbers = #tpu.dot_dimension_numbers<[1], [0], [0], [1], [0, 0, 1, 1], [], []>} : vector<1x32xbf16>, vector<32x128xbf16>, vector<1x128xf32> -> vector<1x128xf32>
    %875 = vector.extract_strided_slice %20 {offsets = [50, 0], sizes = [1, 128], strides = [1, 1]} : vector<64x128xf32> to vector<1x128xf32>
    %876 = arith.addf %875, %874 : vector<1x128xf32>
    %877 = arith.mulf %8, %876 : vector<1x128xf32>
    %878 = math.tanh %877 : vector<1x128xf32>
    %879 = arith.mulf %8, %878 : vector<1x128xf32>
    %880 = arith.addf %879, %11 : vector<1x128xf32>
    %881 = vector.extract_strided_slice %880 {offsets = [0, 0], sizes = [1, 32], strides = [1, 1]} : vector<1x128xf32> to vector<1x32xf32>
    %882 = vector.extract_strided_slice %880 {offsets = [0, 32], sizes = [1, 32], strides = [1, 1]} : vector<1x128xf32> to vector<1x32xf32>
    %883 = vector.extract_strided_slice %880 {offsets = [0, 64], sizes = [1, 32], strides = [1, 1]} : vector<1x128xf32> to vector<1x32xf32>
    %884 = vector.extract_strided_slice %880 {offsets = [0, 96], sizes = [1, 32], strides = [1, 1]} : vector<1x128xf32> to vector<1x32xf32>
    %885 = arith.mulf %882, %870 : vector<1x32xf32>
    %886 = arith.mulf %881, %883 : vector<1x32xf32>
    %887 = arith.addf %885, %886 : vector<1x32xf32>
    %888 = math.tanh %887 : vector<1x32xf32>
    %889 = arith.mulf %884, %888 : vector<1x32xf32>
    %890 = arith.truncf %889 : vector<1x32xf32> to vector<1x32xbf16>
    %cst_68 = arith.constant dense<0.000000e+00> : vector<1x128xf32>
    %891 = tpu.matmul %890, %12, %cst_68 {dimension_numbers = #tpu.dot_dimension_numbers<[1], [0], [0], [1], [0, 0, 1, 1], [], []>} : vector<1x32xbf16>, vector<32x128xbf16>, vector<1x128xf32> -> vector<1x128xf32>
    %892 = vector.extract_strided_slice %20 {offsets = [51, 0], sizes = [1, 128], strides = [1, 1]} : vector<64x128xf32> to vector<1x128xf32>
    %893 = arith.addf %892, %891 : vector<1x128xf32>
    %894 = arith.mulf %8, %893 : vector<1x128xf32>
    %895 = math.tanh %894 : vector<1x128xf32>
    %896 = arith.mulf %8, %895 : vector<1x128xf32>
    %897 = arith.addf %896, %11 : vector<1x128xf32>
    %898 = vector.extract_strided_slice %897 {offsets = [0, 0], sizes = [1, 32], strides = [1, 1]} : vector<1x128xf32> to vector<1x32xf32>
    %899 = vector.extract_strided_slice %897 {offsets = [0, 32], sizes = [1, 32], strides = [1, 1]} : vector<1x128xf32> to vector<1x32xf32>
    %900 = vector.extract_strided_slice %897 {offsets = [0, 64], sizes = [1, 32], strides = [1, 1]} : vector<1x128xf32> to vector<1x32xf32>
    %901 = vector.extract_strided_slice %897 {offsets = [0, 96], sizes = [1, 32], strides = [1, 1]} : vector<1x128xf32> to vector<1x32xf32>
    %902 = arith.mulf %899, %887 : vector<1x32xf32>
    %903 = arith.mulf %898, %900 : vector<1x32xf32>
    %904 = arith.addf %902, %903 : vector<1x32xf32>
    %905 = math.tanh %904 : vector<1x32xf32>
    %906 = arith.mulf %901, %905 : vector<1x32xf32>
    %907 = arith.truncf %906 : vector<1x32xf32> to vector<1x32xbf16>
    %cst_69 = arith.constant dense<0.000000e+00> : vector<1x128xf32>
    %908 = tpu.matmul %907, %12, %cst_69 {dimension_numbers = #tpu.dot_dimension_numbers<[1], [0], [0], [1], [0, 0, 1, 1], [], []>} : vector<1x32xbf16>, vector<32x128xbf16>, vector<1x128xf32> -> vector<1x128xf32>
    %909 = vector.extract_strided_slice %20 {offsets = [52, 0], sizes = [1, 128], strides = [1, 1]} : vector<64x128xf32> to vector<1x128xf32>
    %910 = arith.addf %909, %908 : vector<1x128xf32>
    %911 = arith.mulf %8, %910 : vector<1x128xf32>
    %912 = math.tanh %911 : vector<1x128xf32>
    %913 = arith.mulf %8, %912 : vector<1x128xf32>
    %914 = arith.addf %913, %11 : vector<1x128xf32>
    %915 = vector.extract_strided_slice %914 {offsets = [0, 0], sizes = [1, 32], strides = [1, 1]} : vector<1x128xf32> to vector<1x32xf32>
    %916 = vector.extract_strided_slice %914 {offsets = [0, 32], sizes = [1, 32], strides = [1, 1]} : vector<1x128xf32> to vector<1x32xf32>
    %917 = vector.extract_strided_slice %914 {offsets = [0, 64], sizes = [1, 32], strides = [1, 1]} : vector<1x128xf32> to vector<1x32xf32>
    %918 = vector.extract_strided_slice %914 {offsets = [0, 96], sizes = [1, 32], strides = [1, 1]} : vector<1x128xf32> to vector<1x32xf32>
    %919 = arith.mulf %916, %904 : vector<1x32xf32>
    %920 = arith.mulf %915, %917 : vector<1x32xf32>
    %921 = arith.addf %919, %920 : vector<1x32xf32>
    %922 = math.tanh %921 : vector<1x32xf32>
    %923 = arith.mulf %918, %922 : vector<1x32xf32>
    %924 = arith.truncf %923 : vector<1x32xf32> to vector<1x32xbf16>
    %cst_70 = arith.constant dense<0.000000e+00> : vector<1x128xf32>
    %925 = tpu.matmul %924, %12, %cst_70 {dimension_numbers = #tpu.dot_dimension_numbers<[1], [0], [0], [1], [0, 0, 1, 1], [], []>} : vector<1x32xbf16>, vector<32x128xbf16>, vector<1x128xf32> -> vector<1x128xf32>
    %926 = vector.extract_strided_slice %20 {offsets = [53, 0], sizes = [1, 128], strides = [1, 1]} : vector<64x128xf32> to vector<1x128xf32>
    %927 = arith.addf %926, %925 : vector<1x128xf32>
    %928 = arith.mulf %8, %927 : vector<1x128xf32>
    %929 = math.tanh %928 : vector<1x128xf32>
    %930 = arith.mulf %8, %929 : vector<1x128xf32>
    %931 = arith.addf %930, %11 : vector<1x128xf32>
    %932 = vector.extract_strided_slice %931 {offsets = [0, 0], sizes = [1, 32], strides = [1, 1]} : vector<1x128xf32> to vector<1x32xf32>
    %933 = vector.extract_strided_slice %931 {offsets = [0, 32], sizes = [1, 32], strides = [1, 1]} : vector<1x128xf32> to vector<1x32xf32>
    %934 = vector.extract_strided_slice %931 {offsets = [0, 64], sizes = [1, 32], strides = [1, 1]} : vector<1x128xf32> to vector<1x32xf32>
    %935 = vector.extract_strided_slice %931 {offsets = [0, 96], sizes = [1, 32], strides = [1, 1]} : vector<1x128xf32> to vector<1x32xf32>
    %936 = arith.mulf %933, %921 : vector<1x32xf32>
    %937 = arith.mulf %932, %934 : vector<1x32xf32>
    %938 = arith.addf %936, %937 : vector<1x32xf32>
    %939 = math.tanh %938 : vector<1x32xf32>
    %940 = arith.mulf %935, %939 : vector<1x32xf32>
    %941 = arith.truncf %940 : vector<1x32xf32> to vector<1x32xbf16>
    %cst_71 = arith.constant dense<0.000000e+00> : vector<1x128xf32>
    %942 = tpu.matmul %941, %12, %cst_71 {dimension_numbers = #tpu.dot_dimension_numbers<[1], [0], [0], [1], [0, 0, 1, 1], [], []>} : vector<1x32xbf16>, vector<32x128xbf16>, vector<1x128xf32> -> vector<1x128xf32>
    %943 = vector.extract_strided_slice %20 {offsets = [54, 0], sizes = [1, 128], strides = [1, 1]} : vector<64x128xf32> to vector<1x128xf32>
    %944 = arith.addf %943, %942 : vector<1x128xf32>
    %945 = arith.mulf %8, %944 : vector<1x128xf32>
    %946 = math.tanh %945 : vector<1x128xf32>
    %947 = arith.mulf %8, %946 : vector<1x128xf32>
    %948 = arith.addf %947, %11 : vector<1x128xf32>
    %949 = vector.extract_strided_slice %948 {offsets = [0, 0], sizes = [1, 32], strides = [1, 1]} : vector<1x128xf32> to vector<1x32xf32>
    %950 = vector.extract_strided_slice %948 {offsets = [0, 32], sizes = [1, 32], strides = [1, 1]} : vector<1x128xf32> to vector<1x32xf32>
    %951 = vector.extract_strided_slice %948 {offsets = [0, 64], sizes = [1, 32], strides = [1, 1]} : vector<1x128xf32> to vector<1x32xf32>
    %952 = vector.extract_strided_slice %948 {offsets = [0, 96], sizes = [1, 32], strides = [1, 1]} : vector<1x128xf32> to vector<1x32xf32>
    %953 = arith.mulf %950, %938 : vector<1x32xf32>
    %954 = arith.mulf %949, %951 : vector<1x32xf32>
    %955 = arith.addf %953, %954 : vector<1x32xf32>
    %956 = math.tanh %955 : vector<1x32xf32>
    %957 = arith.mulf %952, %956 : vector<1x32xf32>
    %958 = arith.truncf %957 : vector<1x32xf32> to vector<1x32xbf16>
    %cst_72 = arith.constant dense<0.000000e+00> : vector<1x128xf32>
    %959 = tpu.matmul %958, %12, %cst_72 {dimension_numbers = #tpu.dot_dimension_numbers<[1], [0], [0], [1], [0, 0, 1, 1], [], []>} : vector<1x32xbf16>, vector<32x128xbf16>, vector<1x128xf32> -> vector<1x128xf32>
    %960 = vector.extract_strided_slice %20 {offsets = [55, 0], sizes = [1, 128], strides = [1, 1]} : vector<64x128xf32> to vector<1x128xf32>
    %961 = arith.addf %960, %959 : vector<1x128xf32>
    %962 = arith.mulf %8, %961 : vector<1x128xf32>
    %963 = math.tanh %962 : vector<1x128xf32>
    %964 = arith.mulf %8, %963 : vector<1x128xf32>
    %965 = arith.addf %964, %11 : vector<1x128xf32>
    %966 = vector.extract_strided_slice %965 {offsets = [0, 0], sizes = [1, 32], strides = [1, 1]} : vector<1x128xf32> to vector<1x32xf32>
    %967 = vector.extract_strided_slice %965 {offsets = [0, 32], sizes = [1, 32], strides = [1, 1]} : vector<1x128xf32> to vector<1x32xf32>
    %968 = vector.extract_strided_slice %965 {offsets = [0, 64], sizes = [1, 32], strides = [1, 1]} : vector<1x128xf32> to vector<1x32xf32>
    %969 = vector.extract_strided_slice %965 {offsets = [0, 96], sizes = [1, 32], strides = [1, 1]} : vector<1x128xf32> to vector<1x32xf32>
    %970 = arith.mulf %967, %955 : vector<1x32xf32>
    %971 = arith.mulf %966, %968 : vector<1x32xf32>
    %972 = arith.addf %970, %971 : vector<1x32xf32>
    %973 = math.tanh %972 : vector<1x32xf32>
    %974 = arith.mulf %969, %973 : vector<1x32xf32>
    %975 = arith.truncf %974 : vector<1x32xf32> to vector<1x32xbf16>
    %cst_73 = arith.constant dense<0.000000e+00> : vector<1x128xf32>
    %976 = tpu.matmul %975, %12, %cst_73 {dimension_numbers = #tpu.dot_dimension_numbers<[1], [0], [0], [1], [0, 0, 1, 1], [], []>} : vector<1x32xbf16>, vector<32x128xbf16>, vector<1x128xf32> -> vector<1x128xf32>
    %977 = vector.extract_strided_slice %20 {offsets = [56, 0], sizes = [1, 128], strides = [1, 1]} : vector<64x128xf32> to vector<1x128xf32>
    %978 = arith.addf %977, %976 : vector<1x128xf32>
    %979 = arith.mulf %8, %978 : vector<1x128xf32>
    %980 = math.tanh %979 : vector<1x128xf32>
    %981 = arith.mulf %8, %980 : vector<1x128xf32>
    %982 = arith.addf %981, %11 : vector<1x128xf32>
    %983 = vector.extract_strided_slice %982 {offsets = [0, 0], sizes = [1, 32], strides = [1, 1]} : vector<1x128xf32> to vector<1x32xf32>
    %984 = vector.extract_strided_slice %982 {offsets = [0, 32], sizes = [1, 32], strides = [1, 1]} : vector<1x128xf32> to vector<1x32xf32>
    %985 = vector.extract_strided_slice %982 {offsets = [0, 64], sizes = [1, 32], strides = [1, 1]} : vector<1x128xf32> to vector<1x32xf32>
    %986 = vector.extract_strided_slice %982 {offsets = [0, 96], sizes = [1, 32], strides = [1, 1]} : vector<1x128xf32> to vector<1x32xf32>
    %987 = arith.mulf %984, %972 : vector<1x32xf32>
    %988 = arith.mulf %983, %985 : vector<1x32xf32>
    %989 = arith.addf %987, %988 : vector<1x32xf32>
    %990 = math.tanh %989 : vector<1x32xf32>
    %991 = arith.mulf %986, %990 : vector<1x32xf32>
    %992 = arith.truncf %991 : vector<1x32xf32> to vector<1x32xbf16>
    %cst_74 = arith.constant dense<0.000000e+00> : vector<1x128xf32>
    %993 = tpu.matmul %992, %12, %cst_74 {dimension_numbers = #tpu.dot_dimension_numbers<[1], [0], [0], [1], [0, 0, 1, 1], [], []>} : vector<1x32xbf16>, vector<32x128xbf16>, vector<1x128xf32> -> vector<1x128xf32>
    %994 = vector.extract_strided_slice %20 {offsets = [57, 0], sizes = [1, 128], strides = [1, 1]} : vector<64x128xf32> to vector<1x128xf32>
    %995 = arith.addf %994, %993 : vector<1x128xf32>
    %996 = arith.mulf %8, %995 : vector<1x128xf32>
    %997 = math.tanh %996 : vector<1x128xf32>
    %998 = arith.mulf %8, %997 : vector<1x128xf32>
    %999 = arith.addf %998, %11 : vector<1x128xf32>
    %1000 = vector.extract_strided_slice %999 {offsets = [0, 0], sizes = [1, 32], strides = [1, 1]} : vector<1x128xf32> to vector<1x32xf32>
    %1001 = vector.extract_strided_slice %999 {offsets = [0, 32], sizes = [1, 32], strides = [1, 1]} : vector<1x128xf32> to vector<1x32xf32>
    %1002 = vector.extract_strided_slice %999 {offsets = [0, 64], sizes = [1, 32], strides = [1, 1]} : vector<1x128xf32> to vector<1x32xf32>
    %1003 = vector.extract_strided_slice %999 {offsets = [0, 96], sizes = [1, 32], strides = [1, 1]} : vector<1x128xf32> to vector<1x32xf32>
    %1004 = arith.mulf %1001, %989 : vector<1x32xf32>
    %1005 = arith.mulf %1000, %1002 : vector<1x32xf32>
    %1006 = arith.addf %1004, %1005 : vector<1x32xf32>
    %1007 = math.tanh %1006 : vector<1x32xf32>
    %1008 = arith.mulf %1003, %1007 : vector<1x32xf32>
    %1009 = arith.truncf %1008 : vector<1x32xf32> to vector<1x32xbf16>
    %cst_75 = arith.constant dense<0.000000e+00> : vector<1x128xf32>
    %1010 = tpu.matmul %1009, %12, %cst_75 {dimension_numbers = #tpu.dot_dimension_numbers<[1], [0], [0], [1], [0, 0, 1, 1], [], []>} : vector<1x32xbf16>, vector<32x128xbf16>, vector<1x128xf32> -> vector<1x128xf32>
    %1011 = vector.extract_strided_slice %20 {offsets = [58, 0], sizes = [1, 128], strides = [1, 1]} : vector<64x128xf32> to vector<1x128xf32>
    %1012 = arith.addf %1011, %1010 : vector<1x128xf32>
    %1013 = arith.mulf %8, %1012 : vector<1x128xf32>
    %1014 = math.tanh %1013 : vector<1x128xf32>
    %1015 = arith.mulf %8, %1014 : vector<1x128xf32>
    %1016 = arith.addf %1015, %11 : vector<1x128xf32>
    %1017 = vector.extract_strided_slice %1016 {offsets = [0, 0], sizes = [1, 32], strides = [1, 1]} : vector<1x128xf32> to vector<1x32xf32>
    %1018 = vector.extract_strided_slice %1016 {offsets = [0, 32], sizes = [1, 32], strides = [1, 1]} : vector<1x128xf32> to vector<1x32xf32>
    %1019 = vector.extract_strided_slice %1016 {offsets = [0, 64], sizes = [1, 32], strides = [1, 1]} : vector<1x128xf32> to vector<1x32xf32>
    %1020 = vector.extract_strided_slice %1016 {offsets = [0, 96], sizes = [1, 32], strides = [1, 1]} : vector<1x128xf32> to vector<1x32xf32>
    %1021 = arith.mulf %1018, %1006 : vector<1x32xf32>
    %1022 = arith.mulf %1017, %1019 : vector<1x32xf32>
    %1023 = arith.addf %1021, %1022 : vector<1x32xf32>
    %1024 = math.tanh %1023 : vector<1x32xf32>
    %1025 = arith.mulf %1020, %1024 : vector<1x32xf32>
    %1026 = arith.truncf %1025 : vector<1x32xf32> to vector<1x32xbf16>
    %cst_76 = arith.constant dense<0.000000e+00> : vector<1x128xf32>
    %1027 = tpu.matmul %1026, %12, %cst_76 {dimension_numbers = #tpu.dot_dimension_numbers<[1], [0], [0], [1], [0, 0, 1, 1], [], []>} : vector<1x32xbf16>, vector<32x128xbf16>, vector<1x128xf32> -> vector<1x128xf32>
    %1028 = vector.extract_strided_slice %20 {offsets = [59, 0], sizes = [1, 128], strides = [1, 1]} : vector<64x128xf32> to vector<1x128xf32>
    %1029 = arith.addf %1028, %1027 : vector<1x128xf32>
    %1030 = arith.mulf %8, %1029 : vector<1x128xf32>
    %1031 = math.tanh %1030 : vector<1x128xf32>
    %1032 = arith.mulf %8, %1031 : vector<1x128xf32>
    %1033 = arith.addf %1032, %11 : vector<1x128xf32>
    %1034 = vector.extract_strided_slice %1033 {offsets = [0, 0], sizes = [1, 32], strides = [1, 1]} : vector<1x128xf32> to vector<1x32xf32>
    %1035 = vector.extract_strided_slice %1033 {offsets = [0, 32], sizes = [1, 32], strides = [1, 1]} : vector<1x128xf32> to vector<1x32xf32>
    %1036 = vector.extract_strided_slice %1033 {offsets = [0, 64], sizes = [1, 32], strides = [1, 1]} : vector<1x128xf32> to vector<1x32xf32>
    %1037 = vector.extract_strided_slice %1033 {offsets = [0, 96], sizes = [1, 32], strides = [1, 1]} : vector<1x128xf32> to vector<1x32xf32>
    %1038 = arith.mulf %1035, %1023 : vector<1x32xf32>
    %1039 = arith.mulf %1034, %1036 : vector<1x32xf32>
    %1040 = arith.addf %1038, %1039 : vector<1x32xf32>
    %1041 = math.tanh %1040 : vector<1x32xf32>
    %1042 = arith.mulf %1037, %1041 : vector<1x32xf32>
    %1043 = arith.truncf %1042 : vector<1x32xf32> to vector<1x32xbf16>
    %cst_77 = arith.constant dense<0.000000e+00> : vector<1x128xf32>
    %1044 = tpu.matmul %1043, %12, %cst_77 {dimension_numbers = #tpu.dot_dimension_numbers<[1], [0], [0], [1], [0, 0, 1, 1], [], []>} : vector<1x32xbf16>, vector<32x128xbf16>, vector<1x128xf32> -> vector<1x128xf32>
    %1045 = vector.extract_strided_slice %20 {offsets = [60, 0], sizes = [1, 128], strides = [1, 1]} : vector<64x128xf32> to vector<1x128xf32>
    %1046 = arith.addf %1045, %1044 : vector<1x128xf32>
    %1047 = arith.mulf %8, %1046 : vector<1x128xf32>
    %1048 = math.tanh %1047 : vector<1x128xf32>
    %1049 = arith.mulf %8, %1048 : vector<1x128xf32>
    %1050 = arith.addf %1049, %11 : vector<1x128xf32>
    %1051 = vector.extract_strided_slice %1050 {offsets = [0, 0], sizes = [1, 32], strides = [1, 1]} : vector<1x128xf32> to vector<1x32xf32>
    %1052 = vector.extract_strided_slice %1050 {offsets = [0, 32], sizes = [1, 32], strides = [1, 1]} : vector<1x128xf32> to vector<1x32xf32>
    %1053 = vector.extract_strided_slice %1050 {offsets = [0, 64], sizes = [1, 32], strides = [1, 1]} : vector<1x128xf32> to vector<1x32xf32>
    %1054 = vector.extract_strided_slice %1050 {offsets = [0, 96], sizes = [1, 32], strides = [1, 1]} : vector<1x128xf32> to vector<1x32xf32>
    %1055 = arith.mulf %1052, %1040 : vector<1x32xf32>
    %1056 = arith.mulf %1051, %1053 : vector<1x32xf32>
    %1057 = arith.addf %1055, %1056 : vector<1x32xf32>
    %1058 = math.tanh %1057 : vector<1x32xf32>
    %1059 = arith.mulf %1054, %1058 : vector<1x32xf32>
    %1060 = arith.truncf %1059 : vector<1x32xf32> to vector<1x32xbf16>
    %cst_78 = arith.constant dense<0.000000e+00> : vector<1x128xf32>
    %1061 = tpu.matmul %1060, %12, %cst_78 {dimension_numbers = #tpu.dot_dimension_numbers<[1], [0], [0], [1], [0, 0, 1, 1], [], []>} : vector<1x32xbf16>, vector<32x128xbf16>, vector<1x128xf32> -> vector<1x128xf32>
    %1062 = vector.extract_strided_slice %20 {offsets = [61, 0], sizes = [1, 128], strides = [1, 1]} : vector<64x128xf32> to vector<1x128xf32>
    %1063 = arith.addf %1062, %1061 : vector<1x128xf32>
    %1064 = arith.mulf %8, %1063 : vector<1x128xf32>
    %1065 = math.tanh %1064 : vector<1x128xf32>
    %1066 = arith.mulf %8, %1065 : vector<1x128xf32>
    %1067 = arith.addf %1066, %11 : vector<1x128xf32>
    %1068 = vector.extract_strided_slice %1067 {offsets = [0, 0], sizes = [1, 32], strides = [1, 1]} : vector<1x128xf32> to vector<1x32xf32>
    %1069 = vector.extract_strided_slice %1067 {offsets = [0, 32], sizes = [1, 32], strides = [1, 1]} : vector<1x128xf32> to vector<1x32xf32>
    %1070 = vector.extract_strided_slice %1067 {offsets = [0, 64], sizes = [1, 32], strides = [1, 1]} : vector<1x128xf32> to vector<1x32xf32>
    %1071 = vector.extract_strided_slice %1067 {offsets = [0, 96], sizes = [1, 32], strides = [1, 1]} : vector<1x128xf32> to vector<1x32xf32>
    %1072 = arith.mulf %1069, %1057 : vector<1x32xf32>
    %1073 = arith.mulf %1068, %1070 : vector<1x32xf32>
    %1074 = arith.addf %1072, %1073 : vector<1x32xf32>
    %1075 = math.tanh %1074 : vector<1x32xf32>
    %1076 = arith.mulf %1071, %1075 : vector<1x32xf32>
    %1077 = arith.truncf %1076 : vector<1x32xf32> to vector<1x32xbf16>
    %cst_79 = arith.constant dense<0.000000e+00> : vector<1x128xf32>
    %1078 = tpu.matmul %1077, %12, %cst_79 {dimension_numbers = #tpu.dot_dimension_numbers<[1], [0], [0], [1], [0, 0, 1, 1], [], []>} : vector<1x32xbf16>, vector<32x128xbf16>, vector<1x128xf32> -> vector<1x128xf32>
    %1079 = vector.extract_strided_slice %20 {offsets = [62, 0], sizes = [1, 128], strides = [1, 1]} : vector<64x128xf32> to vector<1x128xf32>
    %1080 = arith.addf %1079, %1078 : vector<1x128xf32>
    %1081 = arith.mulf %8, %1080 : vector<1x128xf32>
    %1082 = math.tanh %1081 : vector<1x128xf32>
    %1083 = arith.mulf %8, %1082 : vector<1x128xf32>
    %1084 = arith.addf %1083, %11 : vector<1x128xf32>
    %1085 = vector.extract_strided_slice %1084 {offsets = [0, 0], sizes = [1, 32], strides = [1, 1]} : vector<1x128xf32> to vector<1x32xf32>
    %1086 = vector.extract_strided_slice %1084 {offsets = [0, 32], sizes = [1, 32], strides = [1, 1]} : vector<1x128xf32> to vector<1x32xf32>
    %1087 = vector.extract_strided_slice %1084 {offsets = [0, 64], sizes = [1, 32], strides = [1, 1]} : vector<1x128xf32> to vector<1x32xf32>
    %1088 = vector.extract_strided_slice %1084 {offsets = [0, 96], sizes = [1, 32], strides = [1, 1]} : vector<1x128xf32> to vector<1x32xf32>
    %1089 = arith.mulf %1086, %1074 : vector<1x32xf32>
    %1090 = arith.mulf %1085, %1087 : vector<1x32xf32>
    %1091 = arith.addf %1089, %1090 : vector<1x32xf32>
    %1092 = math.tanh %1091 : vector<1x32xf32>
    %1093 = arith.mulf %1088, %1092 : vector<1x32xf32>
    %1094 = arith.truncf %1093 : vector<1x32xf32> to vector<1x32xbf16>
    %cst_80 = arith.constant dense<0.000000e+00> : vector<1x128xf32>
    %1095 = tpu.matmul %1094, %12, %cst_80 {dimension_numbers = #tpu.dot_dimension_numbers<[1], [0], [0], [1], [0, 0, 1, 1], [], []>} : vector<1x32xbf16>, vector<32x128xbf16>, vector<1x128xf32> -> vector<1x128xf32>
    %1096 = vector.extract_strided_slice %20 {offsets = [63, 0], sizes = [1, 128], strides = [1, 1]} : vector<64x128xf32> to vector<1x128xf32>
    %1097 = arith.addf %1096, %1095 : vector<1x128xf32>
    %1098 = arith.mulf %8, %1097 : vector<1x128xf32>
    %1099 = math.tanh %1098 : vector<1x128xf32>
    %1100 = arith.mulf %8, %1099 : vector<1x128xf32>
    %1101 = arith.addf %1100, %11 : vector<1x128xf32>
    %1102 = vector.extract_strided_slice %1101 {offsets = [0, 0], sizes = [1, 32], strides = [1, 1]} : vector<1x128xf32> to vector<1x32xf32>
    %1103 = vector.extract_strided_slice %1101 {offsets = [0, 32], sizes = [1, 32], strides = [1, 1]} : vector<1x128xf32> to vector<1x32xf32>
    %1104 = vector.extract_strided_slice %1101 {offsets = [0, 64], sizes = [1, 32], strides = [1, 1]} : vector<1x128xf32> to vector<1x32xf32>
    %1105 = vector.extract_strided_slice %1101 {offsets = [0, 96], sizes = [1, 32], strides = [1, 1]} : vector<1x128xf32> to vector<1x32xf32>
    %1106 = arith.mulf %1103, %1091 : vector<1x32xf32>
    %1107 = arith.mulf %1102, %1104 : vector<1x32xf32>
    %1108 = arith.addf %1106, %1107 : vector<1x32xf32>
    %1109 = math.tanh %1108 : vector<1x32xf32>
    %1110 = arith.mulf %1105, %1109 : vector<1x32xf32>
    %c0_81 = arith.constant 0 : index
    %c0_82 = arith.constant 0 : index
    %1111 = vector.load %arg5[%c0_81, %c0_82] : memref<128x16xf32, #tpu.memory_space<vmem>>, vector<128x16xf32>
    %c0_83 = arith.constant 0 : index
    %c0_84 = arith.constant 0 : index
    %1112 = vector.load %arg6[%c0_83, %c0_84] : memref<16x128xf32, #tpu.memory_space<vmem>>, vector<16x128xf32>
    %cst_85 = arith.constant dense<0.000000e+00> : vector<128x128xf32>
    %1113 = tpu.matmul %1111, %1112, %cst_85 {dimension_numbers = #tpu.dot_dimension_numbers<[1], [0], [0], [1], [0, 0, 1, 1], [], []>} : vector<128x16xf32>, vector<16x128xf32>, vector<128x128xf32> -> vector<128x128xf32>
    %c0_86 = arith.constant 0 : index
    %c0_87 = arith.constant 0 : index
    %1114 = vector.load %arg7[%c0_86, %c0_87] : memref<1x128xf32, #tpu.memory_space<vmem>>, vector<1x128xf32>
    %1115 = vector.broadcast %1114 : vector<1x128xf32> to vector<128x128xf32>
    %1116 = arith.addf %1113, %1115 : vector<128x128xf32>
    %1117 = arith.truncf %1116 : vector<128x128xf32> to vector<128x128xbf16>
    %1118 = tpu.iota {dimensions = array<i32: 1>} : vector<1x128xi32>
    %1119 = arith.sitofp %1118 : vector<1x128xi32> to vector<1x128xf32>
    %c0_88 = arith.constant 0 : index
    %1120 = memref.load %arg0[%c0_88] : memref<1xi32, #tpu.memory_space<smem>>
    %1121 = vector.broadcast %1120 : i32 to vector<1x128xi32>
    %1122 = arith.cmpi eq, %1118, %1121 : vector<1x128xi32>
    %1123 = arith.extui %1122 : vector<1x128xi1> to vector<1x128xi32>
    %1124 = arith.sitofp %1123 : vector<1x128xi32> to vector<1x128xf32>
    %1125 = arith.truncf %1124 : vector<1x128xf32> to vector<1x128xbf16>
    %cst_89 = arith.constant dense<0.000000e+00> : vector<1x128xf32>
    %1126 = tpu.matmul %1125, %1117, %cst_89 {dimension_numbers = #tpu.dot_dimension_numbers<[1], [0], [0], [1], [0, 0, 1, 1], [], []>} : vector<1x128xbf16>, vector<128x128xbf16>, vector<1x128xf32> -> vector<1x128xf32>
    %1127 = arith.truncf %1110 : vector<1x32xf32> to vector<1x32xbf16>
    %cst_90 = arith.constant dense<0.000000e+00> : vector<1x256xf32>
    %1128 = tpu.matmul %1127, %13, %cst_90 {dimension_numbers = #tpu.dot_dimension_numbers<[1], [0], [0], [1], [0, 0, 1, 1], [], []>} : vector<1x32xbf16>, vector<32x256xbf16>, vector<1x256xf32> -> vector<1x256xf32>
    %1129 = vector.extract_strided_slice %1128 {offsets = [0, 0], sizes = [1, 128], strides = [1, 1]} : vector<1x256xf32> to vector<1x128xf32>
    %cst_91 = arith.constant 0.000000e+00 : f32
    %1130 = vector.broadcast %cst_91 : f32 to vector<1x128xf32>
    %1131 = arith.addf %1126, %1129 : vector<1x128xf32>
    %1132 = arith.mulf %8, %1131 : vector<1x128xf32>
    %1133 = math.tanh %1132 : vector<1x128xf32>
    %1134 = arith.mulf %8, %1133 : vector<1x128xf32>
    %1135 = arith.addf %1134, %11 : vector<1x128xf32>
    %1136 = vector.extract_strided_slice %1135 {offsets = [0, 0], sizes = [1, 32], strides = [1, 1]} : vector<1x128xf32> to vector<1x32xf32>
    %1137 = vector.extract_strided_slice %1135 {offsets = [0, 32], sizes = [1, 32], strides = [1, 1]} : vector<1x128xf32> to vector<1x32xf32>
    %1138 = vector.extract_strided_slice %1135 {offsets = [0, 64], sizes = [1, 32], strides = [1, 1]} : vector<1x128xf32> to vector<1x32xf32>
    %1139 = vector.extract_strided_slice %1135 {offsets = [0, 96], sizes = [1, 32], strides = [1, 1]} : vector<1x128xf32> to vector<1x32xf32>
    %1140 = arith.mulf %1137, %1108 : vector<1x32xf32>
    %1141 = arith.mulf %1136, %1138 : vector<1x32xf32>
    %1142 = arith.addf %1140, %1141 : vector<1x32xf32>
    %1143 = math.tanh %1142 : vector<1x32xf32>
    %1144 = arith.mulf %1139, %1143 : vector<1x32xf32>
    %1145 = arith.truncf %1144 : vector<1x32xf32> to vector<1x32xbf16>
    %cst_92 = arith.constant dense<0.000000e+00> : vector<1x256xf32>
    %1146 = tpu.matmul %1145, %13, %cst_92 {dimension_numbers = #tpu.dot_dimension_numbers<[1], [0], [0], [1], [0, 0, 1, 1], [], []>} : vector<1x32xbf16>, vector<32x256xbf16>, vector<1x256xf32> -> vector<1x256xf32>
    %1147 = vector.extract_strided_slice %1146 {offsets = [0, 0], sizes = [1, 128], strides = [1, 1]} : vector<1x256xf32> to vector<1x128xf32>
    %1148 = vector.extract_strided_slice %1146 {offsets = [0, 128], sizes = [1, 128], strides = [1, 1]} : vector<1x256xf32> to vector<1x128xf32>
    %1149 = arith.addf %1148, %14 : vector<1x128xf32>
    %cst_93 = arith.constant dense<0xFF800000> : vector<1xf32>
    %1150 = vector.multi_reduction <maximumf>, %1149, %cst_93 [1] : vector<1x128xf32> to vector<1xf32>
    %1151 = vector.shape_cast %1150 : vector<1xf32> to vector<1x1xf32>
    %1152 = vector.broadcast %1151 : vector<1x1xf32> to vector<1x128xf32>
    %1153 = arith.cmpf oge, %1149, %1152 : vector<1x128xf32>
    %cst_94 = arith.constant 1.280000e+02 : f32
    %1154 = vector.broadcast %cst_94 : f32 to vector<1x128xf32>
    %1155 = arith.select %1153, %1119, %1154 : vector<1x128xi1>, vector<1x128xf32>
    %cst_95 = arith.constant dense<0x7F800000> : vector<1xf32>
    %1156 = vector.multi_reduction <minimumf>, %1155, %cst_95 [1] : vector<1x128xf32> to vector<1xf32>
    %1157 = vector.shape_cast %1156 : vector<1xf32> to vector<1x1xf32>
    %1158 = vector.broadcast %1157 : vector<1x1xf32> to vector<1x128xf32>
    %1159 = arith.cmpf oeq, %1119, %1158 : vector<1x128xf32>
    %1160 = arith.extui %1159 : vector<1x128xi1> to vector<1x128xi32>
    %1161 = arith.sitofp %1160 : vector<1x128xi32> to vector<1x128xf32>
    %1162 = arith.truncf %1161 : vector<1x128xf32> to vector<1x128xbf16>
    %cst_96 = arith.constant dense<0.000000e+00> : vector<1x128xf32>
    %1163 = tpu.matmul %1162, %1117, %cst_96 {dimension_numbers = #tpu.dot_dimension_numbers<[1], [0], [0], [1], [0, 0, 1, 1], [], []>} : vector<1x128xbf16>, vector<128x128xbf16>, vector<1x128xf32> -> vector<1x128xf32>
    %1164 = arith.addf %1163, %1147 : vector<1x128xf32>
    %1165 = arith.mulf %8, %1164 : vector<1x128xf32>
    %1166 = math.tanh %1165 : vector<1x128xf32>
    %1167 = arith.mulf %8, %1166 : vector<1x128xf32>
    %1168 = arith.addf %1167, %11 : vector<1x128xf32>
    %1169 = vector.extract_strided_slice %1168 {offsets = [0, 0], sizes = [1, 32], strides = [1, 1]} : vector<1x128xf32> to vector<1x32xf32>
    %1170 = vector.extract_strided_slice %1168 {offsets = [0, 32], sizes = [1, 32], strides = [1, 1]} : vector<1x128xf32> to vector<1x32xf32>
    %1171 = vector.extract_strided_slice %1168 {offsets = [0, 64], sizes = [1, 32], strides = [1, 1]} : vector<1x128xf32> to vector<1x32xf32>
    %1172 = vector.extract_strided_slice %1168 {offsets = [0, 96], sizes = [1, 32], strides = [1, 1]} : vector<1x128xf32> to vector<1x32xf32>
    %1173 = arith.mulf %1170, %1142 : vector<1x32xf32>
    %1174 = arith.mulf %1169, %1171 : vector<1x32xf32>
    %1175 = arith.addf %1173, %1174 : vector<1x32xf32>
    %1176 = math.tanh %1175 : vector<1x32xf32>
    %1177 = arith.mulf %1172, %1176 : vector<1x32xf32>
    %1178 = arith.truncf %1177 : vector<1x32xf32> to vector<1x32xbf16>
    %cst_97 = arith.constant dense<0.000000e+00> : vector<1x256xf32>
    %1179 = tpu.matmul %1178, %13, %cst_97 {dimension_numbers = #tpu.dot_dimension_numbers<[1], [0], [0], [1], [0, 0, 1, 1], [], []>} : vector<1x32xbf16>, vector<32x256xbf16>, vector<1x256xf32> -> vector<1x256xf32>
    %1180 = vector.extract_strided_slice %1179 {offsets = [0, 0], sizes = [1, 128], strides = [1, 1]} : vector<1x256xf32> to vector<1x128xf32>
    %1181 = vector.extract_strided_slice %1179 {offsets = [0, 128], sizes = [1, 128], strides = [1, 1]} : vector<1x256xf32> to vector<1x128xf32>
    %1182 = arith.addf %1181, %14 : vector<1x128xf32>
    %cst_98 = arith.constant dense<0xFF800000> : vector<1xf32>
    %1183 = vector.multi_reduction <maximumf>, %1182, %cst_98 [1] : vector<1x128xf32> to vector<1xf32>
    %1184 = vector.shape_cast %1183 : vector<1xf32> to vector<1x1xf32>
    %1185 = vector.broadcast %1184 : vector<1x1xf32> to vector<1x128xf32>
    %1186 = arith.cmpf oge, %1182, %1185 : vector<1x128xf32>
    %cst_99 = arith.constant 1.280000e+02 : f32
    %1187 = vector.broadcast %cst_99 : f32 to vector<1x128xf32>
    %1188 = arith.select %1186, %1119, %1187 : vector<1x128xi1>, vector<1x128xf32>
    %cst_100 = arith.constant dense<0x7F800000> : vector<1xf32>
    %1189 = vector.multi_reduction <minimumf>, %1188, %cst_100 [1] : vector<1x128xf32> to vector<1xf32>
    %1190 = vector.shape_cast %1189 : vector<1xf32> to vector<1x1xf32>
    %1191 = vector.broadcast %1190 : vector<1x1xf32> to vector<1x128xf32>
    %1192 = arith.cmpf oeq, %1119, %1191 : vector<1x128xf32>
    %1193 = arith.extui %1192 : vector<1x128xi1> to vector<1x128xi32>
    %1194 = arith.sitofp %1193 : vector<1x128xi32> to vector<1x128xf32>
    %1195 = arith.truncf %1194 : vector<1x128xf32> to vector<1x128xbf16>
    %cst_101 = arith.constant dense<0.000000e+00> : vector<1x128xf32>
    %1196 = tpu.matmul %1195, %1117, %cst_101 {dimension_numbers = #tpu.dot_dimension_numbers<[1], [0], [0], [1], [0, 0, 1, 1], [], []>} : vector<1x128xbf16>, vector<128x128xbf16>, vector<1x128xf32> -> vector<1x128xf32>
    %1197 = arith.addf %1196, %1180 : vector<1x128xf32>
    %1198 = arith.mulf %8, %1197 : vector<1x128xf32>
    %1199 = math.tanh %1198 : vector<1x128xf32>
    %1200 = arith.mulf %8, %1199 : vector<1x128xf32>
    %1201 = arith.addf %1200, %11 : vector<1x128xf32>
    %1202 = vector.extract_strided_slice %1201 {offsets = [0, 0], sizes = [1, 32], strides = [1, 1]} : vector<1x128xf32> to vector<1x32xf32>
    %1203 = vector.extract_strided_slice %1201 {offsets = [0, 32], sizes = [1, 32], strides = [1, 1]} : vector<1x128xf32> to vector<1x32xf32>
    %1204 = vector.extract_strided_slice %1201 {offsets = [0, 64], sizes = [1, 32], strides = [1, 1]} : vector<1x128xf32> to vector<1x32xf32>
    %1205 = vector.extract_strided_slice %1201 {offsets = [0, 96], sizes = [1, 32], strides = [1, 1]} : vector<1x128xf32> to vector<1x32xf32>
    %1206 = arith.mulf %1203, %1175 : vector<1x32xf32>
    %1207 = arith.mulf %1202, %1204 : vector<1x32xf32>
    %1208 = arith.addf %1206, %1207 : vector<1x32xf32>
    %1209 = math.tanh %1208 : vector<1x32xf32>
    %1210 = arith.mulf %1205, %1209 : vector<1x32xf32>
    %1211 = arith.truncf %1210 : vector<1x32xf32> to vector<1x32xbf16>
    %cst_102 = arith.constant dense<0.000000e+00> : vector<1x256xf32>
    %1212 = tpu.matmul %1211, %13, %cst_102 {dimension_numbers = #tpu.dot_dimension_numbers<[1], [0], [0], [1], [0, 0, 1, 1], [], []>} : vector<1x32xbf16>, vector<32x256xbf16>, vector<1x256xf32> -> vector<1x256xf32>
    %1213 = vector.extract_strided_slice %1212 {offsets = [0, 0], sizes = [1, 128], strides = [1, 1]} : vector<1x256xf32> to vector<1x128xf32>
    %1214 = vector.extract_strided_slice %1212 {offsets = [0, 128], sizes = [1, 128], strides = [1, 1]} : vector<1x256xf32> to vector<1x128xf32>
    %1215 = arith.addf %1214, %14 : vector<1x128xf32>
    %cst_103 = arith.constant dense<0xFF800000> : vector<1xf32>
    %1216 = vector.multi_reduction <maximumf>, %1215, %cst_103 [1] : vector<1x128xf32> to vector<1xf32>
    %1217 = vector.shape_cast %1216 : vector<1xf32> to vector<1x1xf32>
    %1218 = vector.broadcast %1217 : vector<1x1xf32> to vector<1x128xf32>
    %1219 = arith.cmpf oge, %1215, %1218 : vector<1x128xf32>
    %cst_104 = arith.constant 1.280000e+02 : f32
    %1220 = vector.broadcast %cst_104 : f32 to vector<1x128xf32>
    %1221 = arith.select %1219, %1119, %1220 : vector<1x128xi1>, vector<1x128xf32>
    %cst_105 = arith.constant dense<0x7F800000> : vector<1xf32>
    %1222 = vector.multi_reduction <minimumf>, %1221, %cst_105 [1] : vector<1x128xf32> to vector<1xf32>
    %1223 = vector.shape_cast %1222 : vector<1xf32> to vector<1x1xf32>
    %1224 = vector.broadcast %1223 : vector<1x1xf32> to vector<1x128xf32>
    %1225 = arith.cmpf oeq, %1119, %1224 : vector<1x128xf32>
    %1226 = arith.extui %1225 : vector<1x128xi1> to vector<1x128xi32>
    %1227 = arith.sitofp %1226 : vector<1x128xi32> to vector<1x128xf32>
    %1228 = arith.truncf %1227 : vector<1x128xf32> to vector<1x128xbf16>
    %cst_106 = arith.constant dense<0.000000e+00> : vector<1x128xf32>
    %1229 = tpu.matmul %1228, %1117, %cst_106 {dimension_numbers = #tpu.dot_dimension_numbers<[1], [0], [0], [1], [0, 0, 1, 1], [], []>} : vector<1x128xbf16>, vector<128x128xbf16>, vector<1x128xf32> -> vector<1x128xf32>
    %1230 = arith.addf %1229, %1213 : vector<1x128xf32>
    %1231 = arith.mulf %8, %1230 : vector<1x128xf32>
    %1232 = math.tanh %1231 : vector<1x128xf32>
    %1233 = arith.mulf %8, %1232 : vector<1x128xf32>
    %1234 = arith.addf %1233, %11 : vector<1x128xf32>
    %1235 = vector.extract_strided_slice %1234 {offsets = [0, 0], sizes = [1, 32], strides = [1, 1]} : vector<1x128xf32> to vector<1x32xf32>
    %1236 = vector.extract_strided_slice %1234 {offsets = [0, 32], sizes = [1, 32], strides = [1, 1]} : vector<1x128xf32> to vector<1x32xf32>
    %1237 = vector.extract_strided_slice %1234 {offsets = [0, 64], sizes = [1, 32], strides = [1, 1]} : vector<1x128xf32> to vector<1x32xf32>
    %1238 = vector.extract_strided_slice %1234 {offsets = [0, 96], sizes = [1, 32], strides = [1, 1]} : vector<1x128xf32> to vector<1x32xf32>
    %1239 = arith.mulf %1236, %1208 : vector<1x32xf32>
    %1240 = arith.mulf %1235, %1237 : vector<1x32xf32>
    %1241 = arith.addf %1239, %1240 : vector<1x32xf32>
    %1242 = math.tanh %1241 : vector<1x32xf32>
    %1243 = arith.mulf %1238, %1242 : vector<1x32xf32>
    %1244 = arith.truncf %1243 : vector<1x32xf32> to vector<1x32xbf16>
    %cst_107 = arith.constant dense<0.000000e+00> : vector<1x256xf32>
    %1245 = tpu.matmul %1244, %13, %cst_107 {dimension_numbers = #tpu.dot_dimension_numbers<[1], [0], [0], [1], [0, 0, 1, 1], [], []>} : vector<1x32xbf16>, vector<32x256xbf16>, vector<1x256xf32> -> vector<1x256xf32>
    %1246 = vector.extract_strided_slice %1245 {offsets = [0, 0], sizes = [1, 128], strides = [1, 1]} : vector<1x256xf32> to vector<1x128xf32>
    %1247 = vector.extract_strided_slice %1245 {offsets = [0, 128], sizes = [1, 128], strides = [1, 1]} : vector<1x256xf32> to vector<1x128xf32>
    %1248 = arith.addf %1247, %14 : vector<1x128xf32>
    %cst_108 = arith.constant dense<0xFF800000> : vector<1xf32>
    %1249 = vector.multi_reduction <maximumf>, %1248, %cst_108 [1] : vector<1x128xf32> to vector<1xf32>
    %1250 = vector.shape_cast %1249 : vector<1xf32> to vector<1x1xf32>
    %1251 = vector.broadcast %1250 : vector<1x1xf32> to vector<1x128xf32>
    %1252 = arith.cmpf oge, %1248, %1251 : vector<1x128xf32>
    %cst_109 = arith.constant 1.280000e+02 : f32
    %1253 = vector.broadcast %cst_109 : f32 to vector<1x128xf32>
    %1254 = arith.select %1252, %1119, %1253 : vector<1x128xi1>, vector<1x128xf32>
    %cst_110 = arith.constant dense<0x7F800000> : vector<1xf32>
    %1255 = vector.multi_reduction <minimumf>, %1254, %cst_110 [1] : vector<1x128xf32> to vector<1xf32>
    %1256 = vector.shape_cast %1255 : vector<1xf32> to vector<1x1xf32>
    %1257 = vector.broadcast %1256 : vector<1x1xf32> to vector<1x128xf32>
    %1258 = arith.cmpf oeq, %1119, %1257 : vector<1x128xf32>
    %1259 = arith.extui %1258 : vector<1x128xi1> to vector<1x128xi32>
    %1260 = arith.sitofp %1259 : vector<1x128xi32> to vector<1x128xf32>
    %1261 = arith.truncf %1260 : vector<1x128xf32> to vector<1x128xbf16>
    %cst_111 = arith.constant dense<0.000000e+00> : vector<1x128xf32>
    %1262 = tpu.matmul %1261, %1117, %cst_111 {dimension_numbers = #tpu.dot_dimension_numbers<[1], [0], [0], [1], [0, 0, 1, 1], [], []>} : vector<1x128xbf16>, vector<128x128xbf16>, vector<1x128xf32> -> vector<1x128xf32>
    %1263 = arith.addf %1262, %1246 : vector<1x128xf32>
    %1264 = arith.mulf %8, %1263 : vector<1x128xf32>
    %1265 = math.tanh %1264 : vector<1x128xf32>
    %1266 = arith.mulf %8, %1265 : vector<1x128xf32>
    %1267 = arith.addf %1266, %11 : vector<1x128xf32>
    %1268 = vector.extract_strided_slice %1267 {offsets = [0, 0], sizes = [1, 32], strides = [1, 1]} : vector<1x128xf32> to vector<1x32xf32>
    %1269 = vector.extract_strided_slice %1267 {offsets = [0, 32], sizes = [1, 32], strides = [1, 1]} : vector<1x128xf32> to vector<1x32xf32>
    %1270 = vector.extract_strided_slice %1267 {offsets = [0, 64], sizes = [1, 32], strides = [1, 1]} : vector<1x128xf32> to vector<1x32xf32>
    %1271 = vector.extract_strided_slice %1267 {offsets = [0, 96], sizes = [1, 32], strides = [1, 1]} : vector<1x128xf32> to vector<1x32xf32>
    %1272 = arith.mulf %1269, %1241 : vector<1x32xf32>
    %1273 = arith.mulf %1268, %1270 : vector<1x32xf32>
    %1274 = arith.addf %1272, %1273 : vector<1x32xf32>
    %1275 = math.tanh %1274 : vector<1x32xf32>
    %1276 = arith.mulf %1271, %1275 : vector<1x32xf32>
    %1277 = arith.truncf %1276 : vector<1x32xf32> to vector<1x32xbf16>
    %cst_112 = arith.constant dense<0.000000e+00> : vector<1x256xf32>
    %1278 = tpu.matmul %1277, %13, %cst_112 {dimension_numbers = #tpu.dot_dimension_numbers<[1], [0], [0], [1], [0, 0, 1, 1], [], []>} : vector<1x32xbf16>, vector<32x256xbf16>, vector<1x256xf32> -> vector<1x256xf32>
    %1279 = vector.extract_strided_slice %1278 {offsets = [0, 0], sizes = [1, 128], strides = [1, 1]} : vector<1x256xf32> to vector<1x128xf32>
    %1280 = vector.extract_strided_slice %1278 {offsets = [0, 128], sizes = [1, 128], strides = [1, 1]} : vector<1x256xf32> to vector<1x128xf32>
    %1281 = arith.addf %1280, %14 : vector<1x128xf32>
    %cst_113 = arith.constant dense<0xFF800000> : vector<1xf32>
    %1282 = vector.multi_reduction <maximumf>, %1281, %cst_113 [1] : vector<1x128xf32> to vector<1xf32>
    %1283 = vector.shape_cast %1282 : vector<1xf32> to vector<1x1xf32>
    %1284 = vector.broadcast %1283 : vector<1x1xf32> to vector<1x128xf32>
    %1285 = arith.cmpf oge, %1281, %1284 : vector<1x128xf32>
    %cst_114 = arith.constant 1.280000e+02 : f32
    %1286 = vector.broadcast %cst_114 : f32 to vector<1x128xf32>
    %1287 = arith.select %1285, %1119, %1286 : vector<1x128xi1>, vector<1x128xf32>
    %cst_115 = arith.constant dense<0x7F800000> : vector<1xf32>
    %1288 = vector.multi_reduction <minimumf>, %1287, %cst_115 [1] : vector<1x128xf32> to vector<1xf32>
    %1289 = vector.shape_cast %1288 : vector<1xf32> to vector<1x1xf32>
    %1290 = vector.broadcast %1289 : vector<1x1xf32> to vector<1x128xf32>
    %1291 = arith.cmpf oeq, %1119, %1290 : vector<1x128xf32>
    %1292 = arith.extui %1291 : vector<1x128xi1> to vector<1x128xi32>
    %1293 = arith.sitofp %1292 : vector<1x128xi32> to vector<1x128xf32>
    %1294 = arith.truncf %1293 : vector<1x128xf32> to vector<1x128xbf16>
    %cst_116 = arith.constant dense<0.000000e+00> : vector<1x128xf32>
    %1295 = tpu.matmul %1294, %1117, %cst_116 {dimension_numbers = #tpu.dot_dimension_numbers<[1], [0], [0], [1], [0, 0, 1, 1], [], []>} : vector<1x128xbf16>, vector<128x128xbf16>, vector<1x128xf32> -> vector<1x128xf32>
    %1296 = arith.addf %1295, %1279 : vector<1x128xf32>
    %1297 = arith.mulf %8, %1296 : vector<1x128xf32>
    %1298 = math.tanh %1297 : vector<1x128xf32>
    %1299 = arith.mulf %8, %1298 : vector<1x128xf32>
    %1300 = arith.addf %1299, %11 : vector<1x128xf32>
    %1301 = vector.extract_strided_slice %1300 {offsets = [0, 0], sizes = [1, 32], strides = [1, 1]} : vector<1x128xf32> to vector<1x32xf32>
    %1302 = vector.extract_strided_slice %1300 {offsets = [0, 32], sizes = [1, 32], strides = [1, 1]} : vector<1x128xf32> to vector<1x32xf32>
    %1303 = vector.extract_strided_slice %1300 {offsets = [0, 64], sizes = [1, 32], strides = [1, 1]} : vector<1x128xf32> to vector<1x32xf32>
    %1304 = vector.extract_strided_slice %1300 {offsets = [0, 96], sizes = [1, 32], strides = [1, 1]} : vector<1x128xf32> to vector<1x32xf32>
    %1305 = arith.mulf %1302, %1274 : vector<1x32xf32>
    %1306 = arith.mulf %1301, %1303 : vector<1x32xf32>
    %1307 = arith.addf %1305, %1306 : vector<1x32xf32>
    %1308 = math.tanh %1307 : vector<1x32xf32>
    %1309 = arith.mulf %1304, %1308 : vector<1x32xf32>
    %1310 = arith.truncf %1309 : vector<1x32xf32> to vector<1x32xbf16>
    %cst_117 = arith.constant dense<0.000000e+00> : vector<1x256xf32>
    %1311 = tpu.matmul %1310, %13, %cst_117 {dimension_numbers = #tpu.dot_dimension_numbers<[1], [0], [0], [1], [0, 0, 1, 1], [], []>} : vector<1x32xbf16>, vector<32x256xbf16>, vector<1x256xf32> -> vector<1x256xf32>
    %1312 = vector.extract_strided_slice %1311 {offsets = [0, 0], sizes = [1, 128], strides = [1, 1]} : vector<1x256xf32> to vector<1x128xf32>
    %1313 = vector.extract_strided_slice %1311 {offsets = [0, 128], sizes = [1, 128], strides = [1, 1]} : vector<1x256xf32> to vector<1x128xf32>
    %1314 = arith.addf %1313, %14 : vector<1x128xf32>
    %cst_118 = arith.constant dense<0xFF800000> : vector<1xf32>
    %1315 = vector.multi_reduction <maximumf>, %1314, %cst_118 [1] : vector<1x128xf32> to vector<1xf32>
    %1316 = vector.shape_cast %1315 : vector<1xf32> to vector<1x1xf32>
    %1317 = vector.broadcast %1316 : vector<1x1xf32> to vector<1x128xf32>
    %1318 = arith.cmpf oge, %1314, %1317 : vector<1x128xf32>
    %cst_119 = arith.constant 1.280000e+02 : f32
    %1319 = vector.broadcast %cst_119 : f32 to vector<1x128xf32>
    %1320 = arith.select %1318, %1119, %1319 : vector<1x128xi1>, vector<1x128xf32>
    %cst_120 = arith.constant dense<0x7F800000> : vector<1xf32>
    %1321 = vector.multi_reduction <minimumf>, %1320, %cst_120 [1] : vector<1x128xf32> to vector<1xf32>
    %1322 = vector.shape_cast %1321 : vector<1xf32> to vector<1x1xf32>
    %1323 = vector.broadcast %1322 : vector<1x1xf32> to vector<1x128xf32>
    %1324 = arith.cmpf oeq, %1119, %1323 : vector<1x128xf32>
    %1325 = arith.extui %1324 : vector<1x128xi1> to vector<1x128xi32>
    %1326 = arith.sitofp %1325 : vector<1x128xi32> to vector<1x128xf32>
    %1327 = arith.truncf %1326 : vector<1x128xf32> to vector<1x128xbf16>
    %cst_121 = arith.constant dense<0.000000e+00> : vector<1x128xf32>
    %1328 = tpu.matmul %1327, %1117, %cst_121 {dimension_numbers = #tpu.dot_dimension_numbers<[1], [0], [0], [1], [0, 0, 1, 1], [], []>} : vector<1x128xbf16>, vector<128x128xbf16>, vector<1x128xf32> -> vector<1x128xf32>
    %1329 = arith.addf %1328, %1312 : vector<1x128xf32>
    %1330 = arith.mulf %8, %1329 : vector<1x128xf32>
    %1331 = math.tanh %1330 : vector<1x128xf32>
    %1332 = arith.mulf %8, %1331 : vector<1x128xf32>
    %1333 = arith.addf %1332, %11 : vector<1x128xf32>
    %1334 = vector.extract_strided_slice %1333 {offsets = [0, 0], sizes = [1, 32], strides = [1, 1]} : vector<1x128xf32> to vector<1x32xf32>
    %1335 = vector.extract_strided_slice %1333 {offsets = [0, 32], sizes = [1, 32], strides = [1, 1]} : vector<1x128xf32> to vector<1x32xf32>
    %1336 = vector.extract_strided_slice %1333 {offsets = [0, 64], sizes = [1, 32], strides = [1, 1]} : vector<1x128xf32> to vector<1x32xf32>
    %1337 = vector.extract_strided_slice %1333 {offsets = [0, 96], sizes = [1, 32], strides = [1, 1]} : vector<1x128xf32> to vector<1x32xf32>
    %1338 = arith.mulf %1335, %1307 : vector<1x32xf32>
    %1339 = arith.mulf %1334, %1336 : vector<1x32xf32>
    %1340 = arith.addf %1338, %1339 : vector<1x32xf32>
    %1341 = math.tanh %1340 : vector<1x32xf32>
    %1342 = arith.mulf %1337, %1341 : vector<1x32xf32>
    %1343 = arith.truncf %1342 : vector<1x32xf32> to vector<1x32xbf16>
    %cst_122 = arith.constant dense<0.000000e+00> : vector<1x256xf32>
    %1344 = tpu.matmul %1343, %13, %cst_122 {dimension_numbers = #tpu.dot_dimension_numbers<[1], [0], [0], [1], [0, 0, 1, 1], [], []>} : vector<1x32xbf16>, vector<32x256xbf16>, vector<1x256xf32> -> vector<1x256xf32>
    %1345 = vector.extract_strided_slice %1344 {offsets = [0, 128], sizes = [1, 128], strides = [1, 1]} : vector<1x256xf32> to vector<1x128xf32>
    %1346 = arith.addf %1345, %14 : vector<1x128xf32>
    %1347 = tpu.concatenate %1130, %1149, %1182, %1215, %1248, %1281, %1314, %1346 in 0 : vector<1x128xf32>, vector<1x128xf32>, vector<1x128xf32>, vector<1x128xf32>, vector<1x128xf32>, vector<1x128xf32>, vector<1x128xf32>, vector<1x128xf32> -> vector<8x128xf32>
    %c0_123 = arith.constant 0 : index
    %c0_124 = arith.constant 0 : index
    %1348 = vector.load %arg10[%c0_123, %c0_124] : memref<8x128xf32, #tpu.memory_space<vmem>>, vector<8x128xf32>
    tpu.vector_store %arg10[%c0_123, %c0_124], %1347 {strides = array<i32>} : memref<8x128xf32, #tpu.memory_space<vmem>>, vector<8x128xf32>,
    return
  }
}

</mosaic_0001>

<llo_original>
// kernel: encoder_decoder_forward.1
$region0: #{encoder_decoder_forward.1}
  #allocation0 [shape = 'u32[]', space=smem, size = 0x4, offset = 0x4, fixed_abs, tag = 'smem constant byte address 0x4 - core index']
  #allocation1 [shape = 'u32[144,128]{1,0:T(1,128)}', space=vmem, size = 0x12000, scoped, tag = 'internal scratch']
  #allocation2 [shape = 's32[1]{0:T(128)S(6)}', space=smem, size = 0x200, scoped, tag = 'scoped memory for encoder_decoder_forward.1']
  %s0 = inlined_call_operand.<no memory space> [shape: s32[1], index: 0, kind: input, shape index: {}]
  %s1 = inlined_call_operand.vmem [shape: f32[64,8], index: 1, kind: input, shape index: {}]
  %s2 = inlined_call_operand.vmem [shape: f32[8,128], index: 2, kind: input, shape index: {}]
  %s3 = inlined_call_operand.vmem [shape: f32[1,128], index: 3, kind: input, shape index: {}]
  %s4 = inlined_call_operand.vmem [shape: bf16[32,128], index: 4, kind: input, shape index: {}]
  %s5 = inlined_call_operand.vmem [shape: f32[128,16], index: 5, kind: input, shape index: {}]
  %s6 = inlined_call_operand.vmem [shape: f32[16,128], index: 6, kind: input, shape index: {}]
  %s7 = inlined_call_operand.vmem [shape: f32[1,128], index: 7, kind: input, shape index: {}]
  %s8 = inlined_call_operand.vmem [shape: bf16[32,256], index: 8, kind: input, shape index: {}]
  %s9 = inlined_call_operand.vmem [shape: f32[1,128], index: 9, kind: input, shape index: {}]
  %s10 = inlined_call_operand.hbm [shape: f32[8,128], index: 10, kind: output, shape index: {}]
  %s11 = sld [smem:[#allocation0]]
  $region50: #{encoder_decoder_forward.1} parent=0
    _
  %s13 = ssub.s32 1, %s11
  %s14 = scalar_select 0, %s13, %s11
  %15 = sst [smem:[#allocation2]] %s0
  $region1: #{encoder_decoder_forward.1} parent=0
    #allocation3 [shape = 'u8[4096]{0}', space=vmem, size = 0x1000, scoped, tag = 'output window, operand 0, single buffered']
    #allocation4 [shape = 's32[1]{0}', space=sflag, size = 0x4, scoped, tag = 'scoped memory for encoder_decoder_forward.1']
    %16 = vsyncpa [#allocation4], 0
    // Predicated region
    $region2: #{encoder_decoder_forward.1} parent=1 // pred_check
      _
    $region3: #{encoder_decoder_forward.1} parent=1 // pred_check_branch
      %18 = sbr.rel (0) target = $region5
    $region4: #{encoder_decoder_forward.1} parent=1 // pred_region
      _
    $region5: #{encoder_decoder_forward.1} parent=1 // pred_fallthru
      _
    // Predicated region
    $region6: #{encoder_decoder_forward.1} parent=1 // pred_check
      _
    $region7: #{encoder_decoder_forward.1} parent=1 // pred_check_branch
      %20 = sbr.rel (0) target = $region9
    $region8: #{encoder_decoder_forward.1} parent=1 // pred_region
      _
    $region9: #{encoder_decoder_forward.1} parent=1 // pred_fallthru
      _
    // Predicated region
    $region10: #{encoder_decoder_forward.1} parent=1 // pred_check
      _
    $region11: #{encoder_decoder_forward.1} parent=1 // pred_check_branch
      %22 = sbr.rel (0) target = $region13
    $region12: #{encoder_decoder_forward.1} parent=1 // pred_region
      _
    $region13: #{encoder_decoder_forward.1} parent=1 // pred_fallthru
      _
    // Predicated region
    $region14: #{encoder_decoder_forward.1} parent=1 // pred_check
      _
    $region15: #{encoder_decoder_forward.1} parent=1 // pred_check_branch
      %24 = sbr.rel (0) target = $region17
    $region16: #{encoder_decoder_forward.1} parent=1 // pred_region
      _
    $region17: #{encoder_decoder_forward.1} parent=1 // pred_fallthru
      _
    // Predicated region
    $region18: #{encoder_decoder_forward.1} parent=1 // pred_check
      _
    $region19: #{encoder_decoder_forward.1} parent=1 // pred_check_branch
      %26 = sbr.rel (0) target = $region21
    $region20: #{encoder_decoder_forward.1} parent=1 // pred_region
      _
    $region21: #{encoder_decoder_forward.1} parent=1 // pred_fallthru
      _
    // Predicated region
    $region22: #{encoder_decoder_forward.1} parent=1 // pred_check
      _
    $region23: #{encoder_decoder_forward.1} parent=1 // pred_check_branch
      %28 = sbr.rel (0) target = $region25
    $region24: #{encoder_decoder_forward.1} parent=1 // pred_region
      _
    $region25: #{encoder_decoder_forward.1} parent=1 // pred_fallthru
      _
    // Predicated region
    $region26: #{encoder_decoder_forward.1} parent=1 // pred_check
      _
    $region27: #{encoder_decoder_forward.1} parent=1 // pred_check_branch
      %30 = sbr.rel (0) target = $region29
    $region28: #{encoder_decoder_forward.1} parent=1 // pred_region
      _
    $region29: #{encoder_decoder_forward.1} parent=1 // pred_fallthru
      _
    // Predicated region
    $region30: #{encoder_decoder_forward.1} parent=1 // pred_check
      _
    $region31: #{encoder_decoder_forward.1} parent=1 // pred_check_branch
      %32 = sbr.rel (0) target = $region33
    $region32: #{encoder_decoder_forward.1} parent=1 // pred_region
      _
    $region33: #{encoder_decoder_forward.1} parent=1 // pred_fallthru
      _
    // Predicated region
    $region34: #{encoder_decoder_forward.1} parent=1 // pred_check
      _
    $region35: #{encoder_decoder_forward.1} parent=1 // pred_check_branch
      %34 = sbr.rel (0) target = $region37
    $region36: #{encoder_decoder_forward.1} parent=1 // pred_region
      _
    $region37: #{encoder_decoder_forward.1} parent=1 // pred_fallthru
      _
    // Predicated region
    $region38: #{encoder_decoder_forward.1} parent=1 // pred_check
      _
    $region39: #{encoder_decoder_forward.1} parent=1 // pred_check_branch
      %36 = sbr.rel (0) target = $region41
    $region40: #{encoder_decoder_forward.1} parent=1 // pred_region
      _
    $region41: #{encoder_decoder_forward.1} parent=1 // pred_fallthru
      _
    %v38 = vlaneseq
    %v39 = vand.u32 %v38, 127
    %vm40 = vcmp.ge.s32.totalorder %v39, 64
    %vm41 = vcmp.lt.s32.totalorder %v39, 96
    %vm42 = vmand %vm40, %vm41
    %v43 = vsel %vm42, 1.0, 0.5
    %v44 = vsel %vm42, 0.0, 0.5
    %v45 = vld [vmem:[%s4] sm:$0xf]
    %v46 = vld [vmem:[%s4 + $0x4] sm:$0xf]
    %v47 = vld [vmem:[%s4 + $0x8] sm:$0xf]
    %v48 = vld [vmem:[%s4 + $0xc] sm:$0xf]
    %v49 = vld [vmem:[%s8] sm:$0xff]
    %v50 = vld [vmem:[%s8 + $0x8] sm:$0xff]
    %v51 = vld [vmem:[%s8 + $0x10] sm:$0xff]
    %v52 = vld [vmem:[%s8 + $0x18] sm:$0xff]
    %v53 = vld [vmem:[%s9] sm:$0x1]
    %v54 = vld [vmem:[%s1] sm:$0xff]
    %v55 = vld [vmem:[%s1 + $0x8] sm:$0xff]
    %v56 = vld [vmem:[%s1 + $0x10] sm:$0xff]
    %v57 = vld [vmem:[%s1 + $0x18] sm:$0xff]
    %v58 = vld [vmem:[%s1 + $0x20] sm:$0xff]
    %v59 = vld [vmem:[%s1 + $0x28] sm:$0xff]
    %v60 = vld [vmem:[%s1 + $0x30] sm:$0xff]
    %v61 = vld [vmem:[%s1 + $0x38] sm:$0xff]
    %v62 = vld [vmem:[%s2] sm:$0xff]
    %v63 = vld [vmem:[%s3] sm:$0x1]
    %v65 = vlaneseq
    %v66 = vshrl.u32 %v65, 7
    %v67 = vsub.s32 0, %v66
    %v68 = vrot.slane %v63, %v67
    %vm70 = vcmask 64512
    %v72 = vsel %vm70, %v54, 0
    %v75 = vsel %vm70, %v55, 0
    %v78 = vsel %vm70, %v56, 0
    %v81 = vsel %vm70, %v57, 0
    %v84 = vsel %vm70, %v58, 0
    %v87 = vsel %vm70, %v59, 0
    %v90 = vsel %vm70, %v60, 0
    %v93 = vsel %vm70, %v61, 0
    %95 = vmatprep.subr.mxu0 0.0
    %96 = vmatpush1.msra.mxu0 %v62
    %97 = vmatprep.subr.mxu0 0.0
    %98 = vmatpush1.msra.mxu0 0.0
    %99 = vmatprep.subr.mxu0 0.0
    %100 = vmatpush1.msra.mxu0 0.0
    %101 = vmatprep.subr.mxu0 0.0
    %102 = vmatpush1.msra.mxu0 0.0
    %103 = vmatprep.subr.mxu0 0.0
    %104 = vmatpush1.msra.mxu0 0.0
    %105 = vmatprep.subr.mxu0 0.0
    %106 = vmatpush1.msra.mxu0 0.0
    %107 = vmatprep.subr.mxu0 0.0
    %108 = vmatpush1.msra.mxu0 0.0
    %109 = vmatprep.subr.mxu0 0.0
    %110 = vmatpush1.msra.mxu0 0.0
    %111 = vmatprep.subr.mxu0 0.0
    %112 = vmatpush1.msra.mxu0 0.0
    %113 = vmatprep.subr.mxu0 0.0
    %114 = vmatpush1.msra.mxu0 0.0
    %115 = vmatprep.subr.mxu0 0.0
    %116 = vmatpush1.msra.mxu0 0.0
    %117 = vmatprep.subr.mxu0 0.0
    %118 = vmatpush1.msra.mxu0 0.0
    %119 = vmatprep.subr.mxu0 0.0
    %120 = vmatpush1.msra.mxu0 0.0
    %121 = vmatprep.subr.mxu0 0.0
    %122 = vmatpush1.msra.mxu0 0.0
    %123 = vmatprep.subr.mxu0 0.0
    %124 = vmatpush1.msra.mxu0 0.0
    %125 = vmatprep.subr.mxu0 0.0
    %126 = vmatpush1.msra.mxu0 0.0
    %127 = vmatprep.subr.mxu0 0.0
    %128 = vmatpush1.msra.mxu0 0.0
    %129 = vmatprep.subr.mxu0 0.0
    %130 = vmatpush1.msra.mxu0 0.0
    %131 = vmatprep.subr.mxu0 0.0
    %132 = vmatpush1.msra.mxu0 0.0
    %133 = vmatprep.subr.mxu0 0.0
    %134 = vmatpush1.msra.mxu0 0.0
    %135 = vmatprep.subr.mxu0 0.0
    %136 = vmatpush1.msra.mxu0 0.0
    %137 = vmatprep.subr.mxu0 0.0
    %138 = vmatpush1.msra.mxu0 0.0
    %139 = vmatprep.subr.mxu0 0.0
    %140 = vmatpush1.msra.mxu0 0.0
    %141 = vmatprep.subr.mxu0 0.0
    %142 = vmatpush1.msra.mxu0 0.0
    %143 = vmatprep.subr.mxu0 0.0
    %144 = vmatpush1.msra.mxu0 0.0
    %145 = vmatprep.subr.mxu0 0.0
    %146 = vmatpush1.msra.mxu0 0.0
    %147 = vmatprep.subr.mxu0 0.0
    %148 = vmatpush1.msra.mxu0 0.0
    %149 = vmatprep.subr.mxu0 0.0
    %150 = vmatpush1.msra.mxu0 0.0
    %151 = vmatprep.subr.mxu0 0.0
    %152 = vmatpush1.msra.mxu0 0.0
    %153 = vmatprep.subr.mxu0 0.0
    %154 = vmatpush1.msra.mxu0 0.0
    %155 = vmatprep.subr.mxu0 0.0
    %156 = vmatpush1.msra.mxu0 0.0
    %157 = vmatprep.subr.mxu0 0.0
    %158 = vmatpush1.msra.mxu0 0.0
    %159 = vmatprep.mubr.f32.mxu0 0.0
    %160 = vmatmul.mubr.f32.gmra.mrb[0].mxu0 %v72
    %v161 = vpop.f32.mrb[0].mxu0
    %v162 = vadd.f32 %v68, %v161
    %v163 = vpop.f32.mrb[0].mxu0
    %164 = vmatprep.mubr.f32.mxu0 0.0
    %165 = vmatmul.mubr.f32.gmra.mrb[0].mxu0 %v75
    %v166 = vpop.f32.mrb[0].mxu0
    %v167 = vadd.f32 %v68, %v166
    %v168 = vpop.f32.mrb[0].mxu0
    %169 = vmatprep.mubr.f32.mxu0 0.0
    %170 = vmatmul.mubr.f32.gmra.mrb[0].mxu0 %v78
    %v171 = vpop.f32.mrb[0].mxu0
    %v172 = vadd.f32 %v68, %v171
    %v173 = vpop.f32.mrb[0].mxu0
    %174 = vmatprep.mubr.f32.mxu0 0.0
    %175 = vmatmul.mubr.f32.gmra.mrb[0].mxu0 %v81
    %v176 = vpop.f32.mrb[0].mxu0
    %v177 = vadd.f32 %v68, %v176
    %v178 = vpop.f32.mrb[0].mxu0
    %179 = vmatprep.mubr.f32.mxu0 0.0
    %180 = vmatmul.mubr.f32.gmra.mrb[0].mxu0 %v84
    %v181 = vpop.f32.mrb[0].mxu0
    %v182 = vadd.f32 %v68, %v181
    %v183 = vpop.f32.mrb[0].mxu0
    %184 = vmatprep.mubr.f32.mxu0 0.0
    %185 = vmatmul.mubr.f32.gmra.mrb[0].mxu0 %v87
    %v186 = vpop.f32.mrb[0].mxu0
    %v187 = vadd.f32 %v68, %v186
    %v188 = vpop.f32.mrb[0].mxu0
    %189 = vmatprep.mubr.f32.mxu0 0.0
    %190 = vmatmul.mubr.f32.gmra.mrb[0].mxu0 %v90
    %v191 = vpop.f32.mrb[0].mxu0
    %v192 = vadd.f32 %v68, %v191
    %v193 = vpop.f32.mrb[0].mxu0
    %194 = vmatprep.mubr.f32.mxu0 0.0
    %195 = vmatmul.mubr.f32.gmra.mrb[0].mxu0 %v93
    %v196 = vpop.f32.mrb[0].mxu0
    %v197 = vadd.f32 %v68, %v196
    %v198 = vpop.f32.mrb[0].mxu0
    %199 = vdwg.mxu0
    %v204 = vunpack.c.l.b16 %v45
    %v205 = vunpack.c.l.b16 %v46
    %v206 = vunpack.c.l.b16 %v47
    %v207 = vunpack.c.l.b16 %v48
    %v208 = vpack.c.b16 %v205, %v204
    %v209 = vpack.c.b16 %v207, %v206
    %vm212 = vcmask 261120
    %v214 = vsel %vm212, 0, 0
    %216 = vmatprep.subr.bf16.mxu0 0
    %217 = vmatpush1.bf16.msra.mxu0 %v208
    %218 = vmatprep.subr.bf16.mxu0 0
    %219 = vmatpush1.bf16.msra.mxu0 %v209
    %220 = vmatprep.subr.bf16.mxu0 0
    %221 = vmatpush1.bf16.msra.mxu0 0
    %222 = vmatprep.subr.bf16.mxu0 0
    %223 = vmatpush1.bf16.msra.mxu0 0
    %224 = vmatprep.subr.bf16.mxu0 0
    %225 = vmatpush1.bf16.msra.mxu0 0
    %226 = vmatprep.subr.bf16.mxu0 0
    %227 = vmatpush1.bf16.msra.mxu0 0
    %228 = vmatprep.subr.bf16.mxu0 0
    %229 = vmatpush1.bf16.msra.mxu0 0
    %230 = vmatprep.subr.bf16.mxu0 0
    %231 = vmatpush1.bf16.msra.mxu0 0
    %232 = vmatprep.subr.bf16.mxu0 0
    %233 = vmatpush1.bf16.msra.mxu0 0
    %234 = vmatprep.subr.bf16.mxu0 0
    %235 = vmatpush1.bf16.msra.mxu0 0
    %236 = vmatprep.subr.bf16.mxu0 0
    %237 = vmatpush1.bf16.msra.mxu0 0
    %238 = vmatprep.subr.bf16.mxu0 0
    %239 = vmatpush1.bf16.msra.mxu0 0
    %240 = vmatprep.subr.bf16.mxu0 0
    %241 = vmatpush1.bf16.msra.mxu0 0
    %242 = vmatprep.subr.bf16.mxu0 0
    %243 = vmatpush1.bf16.msra.mxu0 0
    %244 = vmatprep.subr.bf16.mxu0 0
    %245 = vmatpush1.bf16.msra.mxu0 0
    %246 = vmatprep.subr.bf16.mxu0 0
    %247 = vmatpush1.bf16.msra.mxu0 0
    %248 = vmatprep.mubr.bf16.mxu0 0
    %249 = vmatmul.mubr.bf16.gmra.mrb[0].mxu0 %v214
    %v250 = vpop.f32.mrb[0].mxu0
    %v251 = vadd.f32 0.0, %v250
    %v252 = vpop.f32.mrb[0].mxu0
    %v253 = vpop.f32.mrb[0].mxu0
    %v254 = vpop.f32.mrb[0].mxu0
    %255 = vdwg.mxu0
    %v256 = vadd.f32 %v162, %v251
    %v257 = vmul.f32 %v43, %v256
    %v258 = vtanh.pop %v257
    %v259 = vmul.f32 %v43, %v258
    %v260 = vadd.f32 %v259, %v44
    %v261 = vmul.f32 %v260, 0.0
    %263 = vrot.lane.b32.xlu0 %v260, 64
    %v264 = vpop.permute.xlu0 %263
    %v266 = vmul.f32 %v260, %v264
    %268 = vrot.lane.b32.xlu0 %v266, 32
    %v269 = vpop.permute.xlu0 %268
    %v271 = vadd.f32 %v261, %v269
    %v272 = vtanh.pop %v271
    %274 = vrot.lane.b32.xlu0 %v272, 64
    %v275 = vpop.permute.xlu0 %274
    %v277 = vmul.f32 %v260, %v275
    %v278 = vpack.c.bf16 %v277, %v277
    %280 = vrot.lane.b32.xlu0 %v278, 32
    %v281 = vpop.permute.xlu0 %280
    %v283 = vsel %vm212, %v281, 0
    %285 = vmatprep.subr.bf16.mxu0 0
    %286 = vmatpush1.bf16.msra.mxu0 %v208
    %287 = vmatprep.subr.bf16.mxu0 0
    %288 = vmatpush1.bf16.msra.mxu0 %v209
    %289 = vmatprep.subr.bf16.mxu0 0
    %290 = vmatpush1.bf16.msra.mxu0 0
    %291 = vmatprep.subr.bf16.mxu0 0
    %292 = vmatpush1.bf16.msra.mxu0 0
    %293 = vmatprep.subr.bf16.mxu0 0
    %294 = vmatpush1.bf16.msra.mxu0 0
    %295 = vmatprep.subr.bf16.mxu0 0
    %296 = vmatpush1.bf16.msra.mxu0 0
    %297 = vmatprep.subr.bf16.mxu0 0
    %298 = vmatpush1.bf16.msra.mxu0 0
    %299 = vmatprep.subr.bf16.mxu0 0
    %300 = vmatpush1.bf16.msra.mxu0 0
    %301 = vmatprep.subr.bf16.mxu0 0
    %302 = vmatpush1.bf16.msra.mxu0 0
    %303 = vmatprep.subr.bf16.mxu0 0
    %304 = vmatpush1.bf16.msra.mxu0 0
    %305 = vmatprep.subr.bf16.mxu0 0
    %306 = vmatpush1.bf16.msra.mxu0 0
    %307 = vmatprep.subr.bf16.mxu0 0
    %308 = vmatpush1.bf16.msra.mxu0 0
    %309 = vmatprep.subr.bf16.mxu0 0
    %310 = vmatpush1.bf16.msra.mxu0 0
    %311 = vmatprep.subr.bf16.mxu0 0
    %312 = vmatpush1.bf16.msra.mxu0 0
    %313 = vmatprep.subr.bf16.mxu0 0
    %314 = vmatpush1.bf16.msra.mxu0 0
    %315 = vmatprep.subr.bf16.mxu0 0
    %316 = vmatpush1.bf16.msra.mxu0 0
    %317 = vmatprep.mubr.bf16.mxu0 0
    %318 = vmatmul.mubr.bf16.gmra.mrb[0].mxu0 %v283
    %v319 = vpop.f32.mrb[0].mxu0
    %v320 = vadd.f32 0.0, %v319
    %v321 = vpop.f32.mrb[0].mxu0
    %v322 = vpop.f32.mrb[0].mxu0
    %v323 = vpop.f32.mrb[0].mxu0
    %324 = vdwg.mxu0
    %v326 = vrot.slane %v320, 7
    %v328 = vadd.f32 %v162, %v326
    %v329 = vmul.f32 %v43, %v328
    %v330 = vtanh.pop %v329
    %v331 = vmul.f32 %v43, %v330
    %v332 = vadd.f32 %v331, %v44
    %v334 = vrot.slane %v271, 7
    %v336 = vmul.f32 %v332, %v334
    %338 = vrot.lane.b32.xlu0 %v332, 64
    %v339 = vpop.permute.xlu0 %338
    %v341 = vmul.f32 %v332, %v339
    %343 = vrot.lane.b32.xlu0 %v341, 32
    %v344 = vpop.permute.xlu0 %343
    %v346 = vadd.f32 %v336, %v344
    %v347 = vtanh.pop %v346
    %349 = vrot.lane.b32.xlu0 %v347, 64
    %v350 = vpop.permute.xlu0 %349
    %v352 = vmul.f32 %v332, %v350
    %v353 = vpack.c.bf16 %v352, %v352
    %v355 = vshrl.u32 %v353, 16
    %357 = vrot.lane.b32.xlu0 %v355, 32
    %v358 = vpop.permute.xlu0 %357
    %v360 = vsel %vm212, %v358, 0
    %362 = vmatprep.subr.bf16.mxu0 0
    %363 = vmatpush1.bf16.msra.mxu0 %v208
    %364 = vmatprep.subr.bf16.mxu0 0
    %365 = vmatpush1.bf16.msra.mxu0 %v209
    %366 = vmatprep.subr.bf16.mxu0 0
    %367 = vmatpush1.bf16.msra.mxu0 0
    %368 = vmatprep.subr.bf16.mxu0 0
    %369 = vmatpush1.bf16.msra.mxu0 0
    %370 = vmatprep.subr.bf16.mxu0 0
    %371 = vmatpush1.bf16.msra.mxu0 0
    %372 = vmatprep.subr.bf16.mxu0 0
    %373 = vmatpush1.bf16.msra.mxu0 0
    %374 = vmatprep.subr.bf16.mxu0 0
    %375 = vmatpush1.bf16.msra.mxu0 0
    %376 = vmatprep.subr.bf16.mxu0 0
    %377 = vmatpush1.bf16.msra.mxu0 0
    %378 = vmatprep.subr.bf16.mxu0 0
    %379 = vmatpush1.bf16.msra.mxu0 0
    %380 = vmatprep.subr.bf16.mxu0 0
    %381 = vmatpush1.bf16.msra.mxu0 0
    %382 = vmatprep.subr.bf16.mxu0 0
    %383 = vmatpush1.bf16.msra.mxu0 0
    %384 = vmatprep.subr.bf16.mxu0 0
    %385 = vmatpush1.bf16.msra.mxu0 0
    %386 = vmatprep.subr.bf16.mxu0 0
    %387 = vmatpush1.bf16.msra.mxu0 0
    %388 = vmatprep.subr.bf16.mxu0 0
    %389 = vmatpush1.bf16.msra.mxu0 0
    %390 = vmatprep.subr.bf16.mxu0 0
    %391 = vmatpush1.bf16.msra.mxu0 0
    %392 = vmatprep.subr.bf16.mxu0 0
    %393 = vmatpush1.bf16.msra.mxu0 0
    %394 = vmatprep.mubr.bf16.mxu0 0
    %395 = vmatmul.mubr.bf16.gmra.mrb[0].mxu0 %v360
    %v396 = vpop.f32.mrb[0].mxu0
    %v397 = vadd.f32 0.0, %v396
    %v398 = vpop.f32.mrb[0].mxu0
    %v399 = vpop.f32.mrb[0].mxu0
    %v400 = vpop.f32.mrb[0].mxu0
    %401 = vdwg.mxu0
    %v403 = vrot.slane %v397, 6
    %v405 = vadd.f32 %v162, %v403
    %v406 = vmul.f32 %v43, %v405
    %v407 = vtanh.pop %v406
    %v408 = vmul.f32 %v43, %v407
    %v409 = vadd.f32 %v408, %v44
    %v411 = vrot.slane %v346, 7
    %v413 = vmul.f32 %v409, %v411
    %415 = vrot.lane.b32.xlu0 %v409, 64
    %v416 = vpop.permute.xlu0 %415
    %v418 = vmul.f32 %v409, %v416
    %420 = vrot.lane.b32.xlu0 %v418, 32
    %v421 = vpop.permute.xlu0 %420
    %v423 = vadd.f32 %v413, %v421
    %v424 = vtanh.pop %v423
    %426 = vrot.lane.b32.xlu0 %v424, 64
    %v427 = vpop.permute.xlu0 %426
    %v429 = vmul.f32 %v409, %v427
    %v430 = vpack.c.bf16 %v429, %v429
    %v432 = vrot.slane %v430, 1
    %433 = vrot.lane.b32.xlu0 %v432, 32
    %v434 = vpop.permute.xlu0 %433
    %v436 = vsel %vm212, %v434, 0
    %438 = vmatprep.subr.bf16.mxu0 0
    %439 = vmatpush1.bf16.msra.mxu0 %v208
    %440 = vmatprep.subr.bf16.mxu0 0
    %441 = vmatpush1.bf16.msra.mxu0 %v209
    %442 = vmatprep.subr.bf16.mxu0 0
    %443 = vmatpush1.bf16.msra.mxu0 0
    %444 = vmatprep.subr.bf16.mxu0 0
    %445 = vmatpush1.bf16.msra.mxu0 0
    %446 = vmatprep.subr.bf16.mxu0 0
    %447 = vmatpush1.bf16.msra.mxu0 0
    %448 = vmatprep.subr.bf16.mxu0 0
    %449 = vmatpush1.bf16.msra.mxu0 0
    %450 = vmatprep.subr.bf16.mxu0 0
    %451 = vmatpush1.bf16.msra.mxu0 0
    %452 = vmatprep.subr.bf16.mxu0 0
    %453 = vmatpush1.bf16.msra.mxu0 0
    %454 = vmatprep.subr.bf16.mxu0 0
    %455 = vmatpush1.bf16.msra.mxu0 0
    %456 = vmatprep.subr.bf16.mxu0 0
    %457 = vmatpush1.bf16.msra.mxu0 0
    %458 = vmatprep.subr.bf16.mxu0 0
    %459 = vmatpush1.bf16.msra.mxu0 0
    %460 = vmatprep.subr.bf16.mxu0 0
    %461 = vmatpush1.bf16.msra.mxu0 0
    %462 = vmatprep.subr.bf16.mxu0 0
    %463 = vmatpush1.bf16.msra.mxu0 0
    %464 = vmatprep.subr.bf16.mxu0 0
    %465 = vmatpush1.bf16.msra.mxu0 0
    %466 = vmatprep.subr.bf16.mxu0 0
    %467 = vmatpush1.bf16.msra.mxu0 0
    %468 = vmatprep.subr.bf16.mxu0 0
    %469 = vmatpush1.bf16.msra.mxu0 0
    %470 = vmatprep.mubr.bf16.mxu0 0
    %471 = vmatmul.mubr.bf16.gmra.mrb[0].mxu0 %v436
    %v472 = vpop.f32.mrb[0].mxu0
    %v473 = vadd.f32 0.0, %v472
    %v474 = vpop.f32.mrb[0].mxu0
    %v475 = vpop.f32.mrb[0].mxu0
    %v476 = vpop.f32.mrb[0].mxu0
    %477 = vdwg.mxu0
    %v479 = vrot.slane %v473, 5
    %v481 = vadd.f32 %v162, %v479
    %v482 = vmul.f32 %v43, %v481
    %v483 = vtanh.pop %v482
    %v484 = vmul.f32 %v43, %v483
    %v485 = vadd.f32 %v484, %v44
    %v487 = vrot.slane %v423, 7
    %v489 = vmul.f32 %v485, %v487
    %491 = vrot.lane.b32.xlu0 %v485, 64
    %v492 = vpop.permute.xlu0 %491
    %v494 = vmul.f32 %v485, %v492
    %496 = vrot.lane.b32.xlu0 %v494, 32
    %v497 = vpop.permute.xlu0 %496
    %v499 = vadd.f32 %v489, %v497
    %v500 = vtanh.pop %v499
    %502 = vrot.lane.b32.xlu0 %v500, 64
    %v503 = vpop.permute.xlu0 %502
    %v505 = vmul.f32 %v485, %v503
    %v506 = vpack.c.bf16 %v505, %v505
    %v508 = vshrl.u32 %v506, 16
    %v510 = vrot.slane %v508, 1
    %511 = vrot.lane.b32.xlu0 %v510, 32
    %v512 = vpop.permute.xlu0 %511
    %v514 = vsel %vm212, %v512, 0
    %516 = vmatprep.subr.bf16.mxu0 0
    %517 = vmatpush1.bf16.msra.mxu0 %v208
    %518 = vmatprep.subr.bf16.mxu0 0
    %519 = vmatpush1.bf16.msra.mxu0 %v209
    %520 = vmatprep.subr.bf16.mxu0 0
    %521 = vmatpush1.bf16.msra.mxu0 0
    %522 = vmatprep.subr.bf16.mxu0 0
    %523 = vmatpush1.bf16.msra.mxu0 0
    %524 = vmatprep.subr.bf16.mxu0 0
    %525 = vmatpush1.bf16.msra.mxu0 0
    %526 = vmatprep.subr.bf16.mxu0 0
    %527 = vmatpush1.bf16.msra.mxu0 0
    %528 = vmatprep.subr.bf16.mxu0 0
    %529 = vmatpush1.bf16.msra.mxu0 0
    %530 = vmatprep.subr.bf16.mxu0 0
    %531 = vmatpush1.bf16.msra.mxu0 0
    %532 = vmatprep.subr.bf16.mxu0 0
    %533 = vmatpush1.bf16.msra.mxu0 0
    %534 = vmatprep.subr.bf16.mxu0 0
    %535 = vmatpush1.bf16.msra.mxu0 0
    %536 = vmatprep.subr.bf16.mxu0 0
    %537 = vmatpush1.bf16.msra.mxu0 0
    %538 = vmatprep.subr.bf16.mxu0 0
    %539 = vmatpush1.bf16.msra.mxu0 0
    %540 = vmatprep.subr.bf16.mxu0 0
    %541 = vmatpush1.bf16.msra.mxu0 0
    %542 = vmatprep.subr.bf16.mxu0 0
    %543 = vmatpush1.bf16.msra.mxu0 0
    %544 = vmatprep.subr.bf16.mxu0 0
    %545 = vmatpush1.bf16.msra.mxu0 0
    %546 = vmatprep.subr.bf16.mxu0 0
    %547 = vmatpush1.bf16.msra.mxu0 0
    %548 = vmatprep.mubr.bf16.mxu0 0
    %549 = vmatmul.mubr.bf16.gmra.mrb[0].mxu0 %v514
    %v550 = vpop.f32.mrb[0].mxu0
    %v551 = vadd.f32 0.0, %v550
    %v552 = vpop.f32.mrb[0].mxu0
    %v553 = vpop.f32.mrb[0].mxu0
    %v554 = vpop.f32.mrb[0].mxu0
    %555 = vdwg.mxu0
    %v557 = vrot.slane %v551, 4
    %v559 = vadd.f32 %v162, %v557
    %v560 = vmul.f32 %v43, %v559
    %v561 = vtanh.pop %v560
    %v562 = vmul.f32 %v43, %v561
    %v563 = vadd.f32 %v562, %v44
    %v565 = vrot.slane %v499, 7
    %v567 = vmul.f32 %v563, %v565
    %569 = vrot.lane.b32.xlu0 %v563, 64
    %v570 = vpop.permute.xlu0 %569
    %v572 = vmul.f32 %v563, %v570
    %574 = vrot.lane.b32.xlu0 %v572, 32
    %v575 = vpop.permute.xlu0 %574
    %v577 = vadd.f32 %v567, %v575
    %v578 = vtanh.pop %v577
    %580 = vrot.lane.b32.xlu0 %v578, 64
    %v581 = vpop.permute.xlu0 %580
    %v583 = vmul.f32 %v563, %v581
    %v584 = vpack.c.bf16 %v583, %v583
    %v586 = vrot.slane %v584, 2
    %587 = vrot.lane.b32.xlu0 %v586, 32
    %v588 = vpop.permute.xlu0 %587
    %v590 = vsel %vm212, %v588, 0
    %592 = vmatprep.subr.bf16.mxu0 0
    %593 = vmatpush1.bf16.msra.mxu0 %v208
    %594 = vmatprep.subr.bf16.mxu0 0
    %595 = vmatpush1.bf16.msra.mxu0 %v209
    %596 = vmatprep.subr.bf16.mxu0 0
    %597 = vmatpush1.bf16.msra.mxu0 0
    %598 = vmatprep.subr.bf16.mxu0 0
    %599 = vmatpush1.bf16.msra.mxu0 0
    %600 = vmatprep.subr.bf16.mxu0 0
    %601 = vmatpush1.bf16.msra.mxu0 0
    %602 = vmatprep.subr.bf16.mxu0 0
    %603 = vmatpush1.bf16.msra.mxu0 0
    %604 = vmatprep.subr.bf16.mxu0 0
    %605 = vmatpush1.bf16.msra.mxu0 0
    %606 = vmatprep.subr.bf16.mxu0 0
    %607 = vmatpush1.bf16.msra.mxu0 0
    %608 = vmatprep.subr.bf16.mxu0 0
    %609 = vmatpush1.bf16.msra.mxu0 0
    %610 = vmatprep.subr.bf16.mxu0 0
    %611 = vmatpush1.bf16.msra.mxu0 0
    %612 = vmatprep.subr.bf16.mxu0 0
    %613 = vmatpush1.bf16.msra.mxu0 0
    %614 = vmatprep.subr.bf16.mxu0 0
    %615 = vmatpush1.bf16.msra.mxu0 0
    %616 = vmatprep.subr.bf16.mxu0 0
    %617 = vmatpush1.bf16.msra.mxu0 0
    %618 = vmatprep.subr.bf16.mxu0 0
    %619 = vmatpush1.bf16.msra.mxu0 0
    %620 = vmatprep.subr.bf16.mxu0 0
    %621 = vmatpush1.bf16.msra.mxu0 0
    %622 = vmatprep.subr.bf16.mxu0 0
    %623 = vmatpush1.bf16.msra.mxu0 0
    %624 = vmatprep.mubr.bf16.mxu0 0
    %625 = vmatmul.mubr.bf16.gmra.mrb[0].mxu0 %v590
    %v626 = vpop.f32.mrb[0].mxu0
    %v627 = vadd.f32 0.0, %v626
    %v628 = vpop.f32.mrb[0].mxu0
    %v629 = vpop.f32.mrb[0].mxu0
    %v630 = vpop.f32.mrb[0].mxu0
    %631 = vdwg.mxu0
    %v633 = vrot.slane %v627, 3
    %v635 = vadd.f32 %v162, %v633
    %v636 = vmul.f32 %v43, %v635
    %v637 = vtanh.pop %v636
    %v638 = vmul.f32 %v43, %v637
    %v639 = vadd.f32 %v638, %v44
    %v641 = vrot.slane %v577, 7
    %v643 = vmul.f32 %v639, %v641
    %645 = vrot.lane.b32.xlu0 %v639, 64
    %v646 = vpop.permute.xlu0 %645
    %v648 = vmul.f32 %v639, %v646
    %650 = vrot.lane.b32.xlu0 %v648, 32
    %v651 = vpop.permute.xlu0 %650
    %v653 = vadd.f32 %v643, %v651
    %v654 = vtanh.pop %v653
    %656 = vrot.lane.b32.xlu0 %v654, 64
    %v657 = vpop.permute.xlu0 %656
    %v659 = vmul.f32 %v639, %v657
    %v660 = vpack.c.bf16 %v659, %v659
    %v662 = vshrl.u32 %v660, 16
    %v664 = vrot.slane %v662, 2
    %665 = vrot.lane.b32.xlu0 %v664, 32
    %v666 = vpop.permute.xlu0 %665
    %v668 = vsel %vm212, %v666, 0
    %670 = vmatprep.subr.bf16.mxu0 0
    %671 = vmatpush1.bf16.msra.mxu0 %v208
    %672 = vmatprep.subr.bf16.mxu0 0
    %673 = vmatpush1.bf16.msra.mxu0 %v209
    %674 = vmatprep.subr.bf16.mxu0 0
    %675 = vmatpush1.bf16.msra.mxu0 0
    %676 = vmatprep.subr.bf16.mxu0 0
    %677 = vmatpush1.bf16.msra.mxu0 0
    %678 = vmatprep.subr.bf16.mxu0 0
    %679 = vmatpush1.bf16.msra.mxu0 0
    %680 = vmatprep.subr.bf16.mxu0 0
    %681 = vmatpush1.bf16.msra.mxu0 0
    %682 = vmatprep.subr.bf16.mxu0 0
    %683 = vmatpush1.bf16.msra.mxu0 0
    %684 = vmatprep.subr.bf16.mxu0 0
    %685 = vmatpush1.bf16.msra.mxu0 0
    %686 = vmatprep.subr.bf16.mxu0 0
    %687 = vmatpush1.bf16.msra.mxu0 0
    %688 = vmatprep.subr.bf16.mxu0 0
    %689 = vmatpush1.bf16.msra.mxu0 0
    %690 = vmatprep.subr.bf16.mxu0 0
    %691 = vmatpush1.bf16.msra.mxu0 0
    %692 = vmatprep.subr.bf16.mxu0 0
    %693 = vmatpush1.bf16.msra.mxu0 0
    %694 = vmatprep.subr.bf16.mxu0 0
    %695 = vmatpush1.bf16.msra.mxu0 0
    %696 = vmatprep.subr.bf16.mxu0 0
    %697 = vmatpush1.bf16.msra.mxu0 0
    %698 = vmatprep.subr.bf16.mxu0 0
    %699 = vmatpush1.bf16.msra.mxu0 0
    %700 = vmatprep.subr.bf16.mxu0 0
    %701 = vmatpush1.bf16.msra.mxu0 0
    %702 = vmatprep.mubr.bf16.mxu0 0
    %703 = vmatmul.mubr.bf16.gmra.mrb[0].mxu0 %v668
    %v704 = vpop.f32.mrb[0].mxu0
    %v705 = vadd.f32 0.0, %v704
    %v706 = vpop.f32.mrb[0].mxu0
    %v707 = vpop.f32.mrb[0].mxu0
    %v708 = vpop.f32.mrb[0].mxu0
    %709 = vdwg.mxu0
    %v711 = vrot.slane %v705, 2
    %v713 = vadd.f32 %v162, %v711
    %v714 = vmul.f32 %v43, %v713
    %v715 = vtanh.pop %v714
    %v716 = vmul.f32 %v43, %v715
    %v717 = vadd.f32 %v716, %v44
    %v719 = vrot.slane %v653, 7
    %v721 = vmul.f32 %v717, %v719
    %723 = vrot.lane.b32.xlu0 %v717, 64
    %v724 = vpop.permute.xlu0 %723
    %v726 = vmul.f32 %v717, %v724
    %728 = vrot.lane.b32.xlu0 %v726, 32
    %v729 = vpop.permute.xlu0 %728
    %v731 = vadd.f32 %v721, %v729
    %v732 = vtanh.pop %v731
    %734 = vrot.lane.b32.xlu0 %v732, 64
    %v735 = vpop.permute.xlu0 %734
    %v737 = vmul.f32 %v717, %v735
    %v738 = vpack.c.bf16 %v737, %v737
    %v740 = vrot.slane %v738, 3
    %741 = vrot.lane.b32.xlu0 %v740, 32
    %v742 = vpop.permute.xlu0 %741
    %v744 = vsel %vm212, %v742, 0
    %746 = vmatprep.subr.bf16.mxu0 0
    %747 = vmatpush1.bf16.msra.mxu0 %v208
    %748 = vmatprep.subr.bf16.mxu0 0
    %749 = vmatpush1.bf16.msra.mxu0 %v209
    %750 = vmatprep.subr.bf16.mxu0 0
    %751 = vmatpush1.bf16.msra.mxu0 0
    %752 = vmatprep.subr.bf16.mxu0 0
    %753 = vmatpush1.bf16.msra.mxu0 0
    %754 = vmatprep.subr.bf16.mxu0 0
    %755 = vmatpush1.bf16.msra.mxu0 0
    %756 = vmatprep.subr.bf16.mxu0 0
    %757 = vmatpush1.bf16.msra.mxu0 0
    %758 = vmatprep.subr.bf16.mxu0 0
    %759 = vmatpush1.bf16.msra.mxu0 0
    %760 = vmatprep.subr.bf16.mxu0 0
    %761 = vmatpush1.bf16.msra.mxu0 0
    %762 = vmatprep.subr.bf16.mxu0 0
    %763 = vmatpush1.bf16.msra.mxu0 0
    %764 = vmatprep.subr.bf16.mxu0 0
    %765 = vmatpush1.bf16.msra.mxu0 0
    %766 = vmatprep.subr.bf16.mxu0 0
    %767 = vmatpush1.bf16.msra.mxu0 0
    %768 = vmatprep.subr.bf16.mxu0 0
    %769 = vmatpush1.bf16.msra.mxu0 0
    %770 = vmatprep.subr.bf16.mxu0 0
    %771 = vmatpush1.bf16.msra.mxu0 0
    %772 = vmatprep.subr.bf16.mxu0 0
    %773 = vmatpush1.bf16.msra.mxu0 0
    %774 = vmatprep.subr.bf16.mxu0 0
    %775 = vmatpush1.bf16.msra.mxu0 0
    %776 = vmatprep.subr.bf16.mxu0 0
    %777 = vmatpush1.bf16.msra.mxu0 0
    %778 = vmatprep.mubr.bf16.mxu0 0
    %779 = vmatmul.mubr.bf16.gmra.mrb[0].mxu0 %v744
    %v780 = vpop.f32.mrb[0].mxu0
    %v781 = vadd.f32 0.0, %v780
    %v782 = vpop.f32.mrb[0].mxu0
    %v783 = vpop.f32.mrb[0].mxu0
    %v784 = vpop.f32.mrb[0].mxu0
    %785 = vdwg.mxu0
    %v787 = vrot.slane %v781, 1
    %v789 = vadd.f32 %v162, %v787
    %v790 = vmul.f32 %v43, %v789
    %v791 = vtanh.pop %v790
    %v792 = vmul.f32 %v43, %v791
    %v793 = vadd.f32 %v792, %v44
    %v795 = vrot.slane %v731, 7
    %v797 = vmul.f32 %v793, %v795
    %799 = vrot.lane.b32.xlu0 %v793, 64
    %v800 = vpop.permute.xlu0 %799
    %v802 = vmul.f32 %v793, %v800
    %804 = vrot.lane.b32.xlu0 %v802, 32
    %v805 = vpop.permute.xlu0 %804
    %v807 = vadd.f32 %v797, %v805
    %v808 = vtanh.pop %v807
    %810 = vrot.lane.b32.xlu0 %v808, 64
    %v811 = vpop.permute.xlu0 %810
    %v813 = vmul.f32 %v793, %v811
    %v814 = vpack.c.bf16 %v813, %v813
    %v816 = vshrl.u32 %v814, 16
    %v818 = vrot.slane %v816, 3
    %819 = vrot.lane.b32.xlu0 %v818, 32
    %v820 = vpop.permute.xlu0 %819
    %v822 = vsel %vm212, %v820, 0
    %824 = vmatprep.subr.bf16.mxu0 0
    %825 = vmatpush1.bf16.msra.mxu0 %v208
    %826 = vmatprep.subr.bf16.mxu0 0
    %827 = vmatpush1.bf16.msra.mxu0 %v209
    %828 = vmatprep.subr.bf16.mxu0 0
    %829 = vmatpush1.bf16.msra.mxu0 0
    %830 = vmatprep.subr.bf16.mxu0 0
    %831 = vmatpush1.bf16.msra.mxu0 0
    %832 = vmatprep.subr.bf16.mxu0 0
    %833 = vmatpush1.bf16.msra.mxu0 0
    %834 = vmatprep.subr.bf16.mxu0 0
    %835 = vmatpush1.bf16.msra.mxu0 0
    %836 = vmatprep.subr.bf16.mxu0 0
    %837 = vmatpush1.bf16.msra.mxu0 0
    %838 = vmatprep.subr.bf16.mxu0 0
    %839 = vmatpush1.bf16.msra.mxu0 0
    %840 = vmatprep.subr.bf16.mxu0 0
    %841 = vmatpush1.bf16.msra.mxu0 0
    %842 = vmatprep.subr.bf16.mxu0 0
    %843 = vmatpush1.bf16.msra.mxu0 0
    %844 = vmatprep.subr.bf16.mxu0 0
    %845 = vmatpush1.bf16.msra.mxu0 0
    %846 = vmatprep.subr.bf16.mxu0 0
    %847 = vmatpush1.bf16.msra.mxu0 0
    %848 = vmatprep.subr.bf16.mxu0 0
    %849 = vmatpush1.bf16.msra.mxu0 0
    %850 = vmatprep.subr.bf16.mxu0 0
    %851 = vmatpush1.bf16.msra.mxu0 0
    %852 = vmatprep.subr.bf16.mxu0 0
    %853 = vmatpush1.bf16.msra.mxu0 0
    %854 = vmatprep.subr.bf16.mxu0 0
    %855 = vmatpush1.bf16.msra.mxu0 0
    %856 = vmatprep.mubr.bf16.mxu0 0
    %857 = vmatmul.mubr.bf16.gmra.mrb[0].mxu0 %v822
    %v858 = vpop.f32.mrb[0].mxu0
    %v859 = vadd.f32 0.0, %v858
    %v860 = vpop.f32.mrb[0].mxu0
    %v861 = vpop.f32.mrb[0].mxu0
    %v862 = vpop.f32.mrb[0].mxu0
    %863 = vdwg.mxu0
    %v864 = vadd.f32 %v167, %v859
    %v865 = vmul.f32 %v43, %v864
    %v866 = vtanh.pop %v865
    %v867 = vmul.f32 %v43, %v866
    %v868 = vadd.f32 %v867, %v44
    %v870 = vrot.slane %v807, 7
    %v872 = vmul.f32 %v868, %v870
    %874 = vrot.lane.b32.xlu0 %v868, 64
    %v875 = vpop.permute.xlu0 %874
    %v877 = vmul.f32 %v868, %v875
    %879 = vrot.lane.b32.xlu0 %v877, 32
    %v880 = vpop.permute.xlu0 %879
    %v882 = vadd.f32 %v872, %v880
    %v883 = vtanh.pop %v882
    %885 = vrot.lane.b32.xlu0 %v883, 64
    %v886 = vpop.permute.xlu0 %885
    %v888 = vmul.f32 %v868, %v886
    %v889 = vpack.c.bf16 %v888, %v888
    %891 = vrot.lane.b32.xlu0 %v889, 32
    %v892 = vpop.permute.xlu0 %891
    %v894 = vsel %vm212, %v892, 0
    %896 = vmatprep.subr.bf16.mxu0 0
    %897 = vmatpush1.bf16.msra.mxu0 %v208
    %898 = vmatprep.subr.bf16.mxu0 0
    %899 = vmatpush1.bf16.msra.mxu0 %v209
    %900 = vmatprep.subr.bf16.mxu0 0
    %901 = vmatpush1.bf16.msra.mxu0 0
    %902 = vmatprep.subr.bf16.mxu0 0
    %903 = vmatpush1.bf16.msra.mxu0 0
    %904 = vmatprep.subr.bf16.mxu0 0
    %905 = vmatpush1.bf16.msra.mxu0 0
    %906 = vmatprep.subr.bf16.mxu0 0
    %907 = vmatpush1.bf16.msra.mxu0 0
    %908 = vmatprep.subr.bf16.mxu0 0
    %909 = vmatpush1.bf16.msra.mxu0 0
    %910 = vmatprep.subr.bf16.mxu0 0
    %911 = vmatpush1.bf16.msra.mxu0 0
    %912 = vmatprep.subr.bf16.mxu0 0
    %913 = vmatpush1.bf16.msra.mxu0 0
    %914 = vmatprep.subr.bf16.mxu0 0
    %915 = vmatpush1.bf16.msra.mxu0 0
    %916 = vmatprep.subr.bf16.mxu0 0
    %917 = vmatpush1.bf16.msra.mxu0 0
    %918 = vmatprep.subr.bf16.mxu0 0
    %919 = vmatpush1.bf16.msra.mxu0 0
    %920 = vmatprep.subr.bf16.mxu0 0
    %921 = vmatpush1.bf16.msra.mxu0 0
    %922 = vmatprep.subr.bf16.mxu0 0
    %923 = vmatpush1.bf16.msra.mxu0 0
    %924 = vmatprep.subr.bf16.mxu0 0
    %925 = vmatpush1.bf16.msra.mxu0 0
    %926 = vmatprep.subr.bf16.mxu0 0
    %927 = vmatpush1.bf16.msra.mxu0 0
    %928 = vmatprep.mubr.bf16.mxu0 0
    %929 = vmatmul.mubr.bf16.gmra.mrb[0].mxu0 %v894
    %v930 = vpop.f32.mrb[0].mxu0
    %v931 = vadd.f32 0.0, %v930
    %v932 = vpop.f32.mrb[0].mxu0
    %v933 = vpop.f32.mrb[0].mxu0
    %v934 = vpop.f32.mrb[0].mxu0
    %935 = vdwg.mxu0
    %v937 = vrot.slane %v931, 7
    %v939 = vadd.f32 %v167, %v937
    %v940 = vmul.f32 %v43, %v939
    %v941 = vtanh.pop %v940
    %v942 = vmul.f32 %v43, %v941
    %v943 = vadd.f32 %v942, %v44
    %v945 = vrot.slane %v882, 7
    %v947 = vmul.f32 %v943, %v945
    %949 = vrot.lane.b32.xlu0 %v943, 64
    %v950 = vpop.permute.xlu0 %949
    %v952 = vmul.f32 %v943, %v950
    %954 = vrot.lane.b32.xlu0 %v952, 32
    %v955 = vpop.permute.xlu0 %954
    %v957 = vadd.f32 %v947, %v955
    %v958 = vtanh.pop %v957
    %960 = vrot.lane.b32.xlu0 %v958, 64
    %v961 = vpop.permute.xlu0 %960
    %v963 = vmul.f32 %v943, %v961
    %v964 = vpack.c.bf16 %v963, %v963
    %v966 = vshrl.u32 %v964, 16
    %968 = vrot.lane.b32.xlu0 %v966, 32
    %v969 = vpop.permute.xlu0 %968
    %v971 = vsel %vm212, %v969, 0
    %973 = vmatprep.subr.bf16.mxu0 0
    %974 = vmatpush1.bf16.msra.mxu0 %v208
    %975 = vmatprep.subr.bf16.mxu0 0
    %976 = vmatpush1.bf16.msra.mxu0 %v209
    %977 = vmatprep.subr.bf16.mxu0 0
    %978 = vmatpush1.bf16.msra.mxu0 0
    %979 = vmatprep.subr.bf16.mxu0 0
    %980 = vmatpush1.bf16.msra.mxu0 0
    %981 = vmatprep.subr.bf16.mxu0 0
    %982 = vmatpush1.bf16.msra.mxu0 0
    %983 = vmatprep.subr.bf16.mxu0 0
    %984 = vmatpush1.bf16.msra.mxu0 0
    %985 = vmatprep.subr.bf16.mxu0 0
    %986 = vmatpush1.bf16.msra.mxu0 0
    %987 = vmatprep.subr.bf16.mxu0 0
    %988 = vmatpush1.bf16.msra.mxu0 0
    %989 = vmatprep.subr.bf16.mxu0 0
    %990 = vmatpush1.bf16.msra.mxu0 0
    %991 = vmatprep.subr.bf16.mxu0 0
    %992 = vmatpush1.bf16.msra.mxu0 0
    %993 = vmatprep.subr.bf16.mxu0 0
    %994 = vmatpush1.bf16.msra.mxu0 0
    %995 = vmatprep.subr.bf16.mxu0 0
    %996 = vmatpush1.bf16.msra.mxu0 0
    %997 = vmatprep.subr.bf16.mxu0 0
    %998 = vmatpush1.bf16.msra.mxu0 0
    %999 = vmatprep.subr.bf16.mxu0 0
    %1000 = vmatpush1.bf16.msra.mxu0 0
    %1001 = vmatprep.subr.bf16.mxu0 0
    %1002 = vmatpush1.bf16.msra.mxu0 0
    %1003 = vmatprep.subr.bf16.mxu0 0
    %1004 = vmatpush1.bf16.msra.mxu0 0
    %1005 = vmatprep.mubr.bf16.mxu0 0
    %1006 = vmatmul.mubr.bf16.gmra.mrb[0].mxu0 %v971
    %v1007 = vpop.f32.mrb[0].mxu0
    %v1008 = vadd.f32 0.0, %v1007
    %v1009 = vpop.f32.mrb[0].mxu0
    %v1010 = vpop.f32.mrb[0].mxu0
    %v1011 = vpop.f32.mrb[0].mxu0
    %1012 = vdwg.mxu0
    %v1014 = vrot.slane %v1008, 6
    %v1016 = vadd.f32 %v167, %v1014
    %v1017 = vmul.f32 %v43, %v1016
    %v1018 = vtanh.pop %v1017
    %v1019 = vmul.f32 %v43, %v1018
    %v1020 = vadd.f32 %v1019, %v44
    %v1022 = vrot.slane %v957, 7
    %v1024 = vmul.f32 %v1020, %v1022
    %1026 = vrot.lane.b32.xlu0 %v1020, 64
    %v1027 = vpop.permute.xlu0 %1026
    %v1029 = vmul.f32 %v1020, %v1027
    %1031 = vrot.lane.b32.xlu0 %v1029, 32
    %v1032 = vpop.permute.xlu0 %1031
    %v1034 = vadd.f32 %v1024, %v1032
    %v1035 = vtanh.pop %v1034
    %1037 = vrot.lane.b32.xlu0 %v1035, 64
    %v1038 = vpop.permute.xlu0 %1037
    %v1040 = vmul.f32 %v1020, %v1038
    %v1041 = vpack.c.bf16 %v1040, %v1040
    %v1043 = vrot.slane %v1041, 1
    %1044 = vrot.lane.b32.xlu0 %v1043, 32
    %v1045 = vpop.permute.xlu0 %1044
    %v1047 = vsel %vm212, %v1045, 0
    %1049 = vmatprep.subr.bf16.mxu0 0
    %1050 = vmatpush1.bf16.msra.mxu0 %v208
    %1051 = vmatprep.subr.bf16.mxu0 0
    %1052 = vmatpush1.bf16.msra.mxu0 %v209
    %1053 = vmatprep.subr.bf16.mxu0 0
    %1054 = vmatpush1.bf16.msra.mxu0 0
    %1055 = vmatprep.subr.bf16.mxu0 0
    %1056 = vmatpush1.bf16.msra.mxu0 0
    %1057 = vmatprep.subr.bf16.mxu0 0
    %1058 = vmatpush1.bf16.msra.mxu0 0
    %1059 = vmatprep.subr.bf16.mxu0 0
    %1060 = vmatpush1.bf16.msra.mxu0 0
    %1061 = vmatprep.subr.bf16.mxu0 0
    %1062 = vmatpush1.bf16.msra.mxu0 0
    %1063 = vmatprep.subr.bf16.mxu0 0
    %1064 = vmatpush1.bf16.msra.mxu0 0
    %1065 = vmatprep.subr.bf16.mxu0 0
    %1066 = vmatpush1.bf16.msra.mxu0 0
    %1067 = vmatprep.subr.bf16.mxu0 0
    %1068 = vmatpush1.bf16.msra.mxu0 0
    %1069 = vmatprep.subr.bf16.mxu0 0
    %1070 = vmatpush1.bf16.msra.mxu0 0
    %1071 = vmatprep.subr.bf16.mxu0 0
    %1072 = vmatpush1.bf16.msra.mxu0 0
    %1073 = vmatprep.subr.bf16.mxu0 0
    %1074 = vmatpush1.bf16.msra.mxu0 0
    %1075 = vmatprep.subr.bf16.mxu0 0
    %1076 = vmatpush1.bf16.msra.mxu0 0
    %1077 = vmatprep.subr.bf16.mxu0 0
    %1078 = vmatpush1.bf16.msra.mxu0 0
    %1079 = vmatprep.subr.bf16.mxu0 0
    %1080 = vmatpush1.bf16.msra.mxu0 0
    %1081 = vmatprep.mubr.bf16.mxu0 0
    %1082 = vmatmul.mubr.bf16.gmra.mrb[0].mxu0 %v1047
    %v1083 = vpop.f32.mrb[0].mxu0
    %v1084 = vadd.f32 0.0, %v1083
    %v1085 = vpop.f32.mrb[0].mxu0
    %v1086 = vpop.f32.mrb[0].mxu0
    %v1087 = vpop.f32.mrb[0].mxu0
    %1088 = vdwg.mxu0
    %v1090 = vrot.slane %v1084, 5
    %v1092 = vadd.f32 %v167, %v1090
    %v1093 = vmul.f32 %v43, %v1092
    %v1094 = vtanh.pop %v1093
    %v1095 = vmul.f32 %v43, %v1094
    %v1096 = vadd.f32 %v1095, %v44
    %v1098 = vrot.slane %v1034, 7
    %v1100 = vmul.f32 %v1096, %v1098
    %1102 = vrot.lane.b32.xlu0 %v1096, 64
    %v1103 = vpop.permute.xlu0 %1102
    %v1105 = vmul.f32 %v1096, %v1103
    %1107 = vrot.lane.b32.xlu0 %v1105, 32
    %v1108 = vpop.permute.xlu0 %1107
    %v1110 = vadd.f32 %v1100, %v1108
    %v1111 = vtanh.pop %v1110
    %1113 = vrot.lane.b32.xlu0 %v1111, 64
    %v1114 = vpop.permute.xlu0 %1113
    %v1116 = vmul.f32 %v1096, %v1114
    %v1117 = vpack.c.bf16 %v1116, %v1116
    %v1119 = vshrl.u32 %v1117, 16
    %v1121 = vrot.slane %v1119, 1
    %1122 = vrot.lane.b32.xlu0 %v1121, 32
    %v1123 = vpop.permute.xlu0 %1122
    %v1125 = vsel %vm212, %v1123, 0
    %1127 = vmatprep.subr.bf16.mxu0 0
    %1128 = vmatpush1.bf16.msra.mxu0 %v208
    %1129 = vmatprep.subr.bf16.mxu0 0
    %1130 = vmatpush1.bf16.msra.mxu0 %v209
    %1131 = vmatprep.subr.bf16.mxu0 0
    %1132 = vmatpush1.bf16.msra.mxu0 0
    %1133 = vmatprep.subr.bf16.mxu0 0
    %1134 = vmatpush1.bf16.msra.mxu0 0
    %1135 = vmatprep.subr.bf16.mxu0 0
    %1136 = vmatpush1.bf16.msra.mxu0 0
    %1137 = vmatprep.subr.bf16.mxu0 0
    %1138 = vmatpush1.bf16.msra.mxu0 0
    %1139 = vmatprep.subr.bf16.mxu0 0
    %1140 = vmatpush1.bf16.msra.mxu0 0
    %1141 = vmatprep.subr.bf16.mxu0 0
    %1142 = vmatpush1.bf16.msra.mxu0 0
    %1143 = vmatprep.subr.bf16.mxu0 0
    %1144 = vmatpush1.bf16.msra.mxu0 0
    %1145 = vmatprep.subr.bf16.mxu0 0
    %1146 = vmatpush1.bf16.msra.mxu0 0
    %1147 = vmatprep.subr.bf16.mxu0 0
    %1148 = vmatpush1.bf16.msra.mxu0 0
    %1149 = vmatprep.subr.bf16.mxu0 0
    %1150 = vmatpush1.bf16.msra.mxu0 0
    %1151 = vmatprep.subr.bf16.mxu0 0
    %1152 = vmatpush1.bf16.msra.mxu0 0
    %1153 = vmatprep.subr.bf16.mxu0 0
    %1154 = vmatpush1.bf16.msra.mxu0 0
    %1155 = vmatprep.subr.bf16.mxu0 0
    %1156 = vmatpush1.bf16.msra.mxu0 0
    %1157 = vmatprep.subr.bf16.mxu0 0
    %1158 = vmatpush1.bf16.msra.mxu0 0
    %1159 = vmatprep.mubr.bf16.mxu0 0
    %1160 = vmatmul.mubr.bf16.gmra.mrb[0].mxu0 %v1125
    %v1161 = vpop.f32.mrb[0].mxu0
    %v1162 = vadd.f32 0.0, %v1161
    %v1163 = vpop.f32.mrb[0].mxu0
    %v1164 = vpop.f32.mrb[0].mxu0
    %v1165 = vpop.f32.mrb[0].mxu0
    %1166 = vdwg.mxu0
    %v1168 = vrot.slane %v1162, 4
    %v1170 = vadd.f32 %v167, %v1168
    %v1171 = vmul.f32 %v43, %v1170
    %v1172 = vtanh.pop %v1171
    %v1173 = vmul.f32 %v43, %v1172
    %v1174 = vadd.f32 %v1173, %v44
    %v1176 = vrot.slane %v1110, 7
    %v1178 = vmul.f32 %v1174, %v1176
    %1180 = vrot.lane.b32.xlu0 %v1174, 64
    %v1181 = vpop.permute.xlu0 %1180
    %v1183 = vmul.f32 %v1174, %v1181
    %1185 = vrot.lane.b32.xlu0 %v1183, 32
    %v1186 = vpop.permute.xlu0 %1185
    %v1188 = vadd.f32 %v1178, %v1186
    %v1189 = vtanh.pop %v1188
    %1191 = vrot.lane.b32.xlu0 %v1189, 64
    %v1192 = vpop.permute.xlu0 %1191
    %v1194 = vmul.f32 %v1174, %v1192
    %v1195 = vpack.c.bf16 %v1194, %v1194
    %v1197 = vrot.slane %v1195, 2
    %1198 = vrot.lane.b32.xlu0 %v1197, 32
    %v1199 = vpop.permute.xlu0 %1198
    %v1201 = vsel %vm212, %v1199, 0
    %1203 = vmatprep.subr.bf16.mxu0 0
    %1204 = vmatpush1.bf16.msra.mxu0 %v208
    %1205 = vmatprep.subr.bf16.mxu0 0
    %1206 = vmatpush1.bf16.msra.mxu0 %v209
    %1207 = vmatprep.subr.bf16.mxu0 0
    %1208 = vmatpush1.bf16.msra.mxu0 0
    %1209 = vmatprep.subr.bf16.mxu0 0
    %1210 = vmatpush1.bf16.msra.mxu0 0
    %1211 = vmatprep.subr.bf16.mxu0 0
    %1212 = vmatpush1.bf16.msra.mxu0 0
    %1213 = vmatprep.subr.bf16.mxu0 0
    %1214 = vmatpush1.bf16.msra.mxu0 0
    %1215 = vmatprep.subr.bf16.mxu0 0
    %1216 = vmatpush1.bf16.msra.mxu0 0
    %1217 = vmatprep.subr.bf16.mxu0 0
    %1218 = vmatpush1.bf16.msra.mxu0 0
    %1219 = vmatprep.subr.bf16.mxu0 0
    %1220 = vmatpush1.bf16.msra.mxu0 0
    %1221 = vmatprep.subr.bf16.mxu0 0
    %1222 = vmatpush1.bf16.msra.mxu0 0
    %1223 = vmatprep.subr.bf16.mxu0 0
    %1224 = vmatpush1.bf16.msra.mxu0 0
    %1225 = vmatprep.subr.bf16.mxu0 0
    %1226 = vmatpush1.bf16.msra.mxu0 0
    %1227 = vmatprep.subr.bf16.mxu0 0
    %1228 = vmatpush1.bf16.msra.mxu0 0
    %1229 = vmatprep.subr.bf16.mxu0 0
    %1230 = vmatpush1.bf16.msra.mxu0 0
    %1231 = vmatprep.subr.bf16.mxu0 0
    %1232 = vmatpush1.bf16.msra.mxu0 0
    %1233 = vmatprep.subr.bf16.mxu0 0
    %1234 = vmatpush1.bf16.msra.mxu0 0
    %1235 = vmatprep.mubr.bf16.mxu0 0
    %1236 = vmatmul.mubr.bf16.gmra.mrb[0].mxu0 %v1201
    %v1237 = vpop.f32.mrb[0].mxu0
    %v1238 = vadd.f32 0.0, %v1237
    %v1239 = vpop.f32.mrb[0].mxu0
    %v1240 = vpop.f32.mrb[0].mxu0
    %v1241 = vpop.f32.mrb[0].mxu0
    %1242 = vdwg.mxu0
    %v1244 = vrot.slane %v1238, 3
    %v1246 = vadd.f32 %v167, %v1244
    %v1247 = vmul.f32 %v43, %v1246
    %v1248 = vtanh.pop %v1247
    %v1249 = vmul.f32 %v43, %v1248
    %v1250 = vadd.f32 %v1249, %v44
    %v1252 = vrot.slane %v1188, 7
    %v1254 = vmul.f32 %v1250, %v1252
    %1256 = vrot.lane.b32.xlu0 %v1250, 64
    %v1257 = vpop.permute.xlu0 %1256
    %v1259 = vmul.f32 %v1250, %v1257
    %1261 = vrot.lane.b32.xlu0 %v1259, 32
    %v1262 = vpop.permute.xlu0 %1261
    %v1264 = vadd.f32 %v1254, %v1262
    %v1265 = vtanh.pop %v1264
    %1267 = vrot.lane.b32.xlu0 %v1265, 64
    %v1268 = vpop.permute.xlu0 %1267
    %v1270 = vmul.f32 %v1250, %v1268
    %v1271 = vpack.c.bf16 %v1270, %v1270
    %v1273 = vshrl.u32 %v1271, 16
    %v1275 = vrot.slane %v1273, 2
    %1276 = vrot.lane.b32.xlu0 %v1275, 32
    %v1277 = vpop.permute.xlu0 %1276
    %v1279 = vsel %vm212, %v1277, 0
    %1281 = vmatprep.subr.bf16.mxu0 0
    %1282 = vmatpush1.bf16.msra.mxu0 %v208
    %1283 = vmatprep.subr.bf16.mxu0 0
    %1284 = vmatpush1.bf16.msra.mxu0 %v209
    %1285 = vmatprep.subr.bf16.mxu0 0
    %1286 = vmatpush1.bf16.msra.mxu0 0
    %1287 = vmatprep.subr.bf16.mxu0 0
    %1288 = vmatpush1.bf16.msra.mxu0 0
    %1289 = vmatprep.subr.bf16.mxu0 0
    %1290 = vmatpush1.bf16.msra.mxu0 0
    %1291 = vmatprep.subr.bf16.mxu0 0
    %1292 = vmatpush1.bf16.msra.mxu0 0
    %1293 = vmatprep.subr.bf16.mxu0 0
    %1294 = vmatpush1.bf16.msra.mxu0 0
    %1295 = vmatprep.subr.bf16.mxu0 0
    %1296 = vmatpush1.bf16.msra.mxu0 0
    %1297 = vmatprep.subr.bf16.mxu0 0
    %1298 = vmatpush1.bf16.msra.mxu0 0
    %1299 = vmatprep.subr.bf16.mxu0 0
    %1300 = vmatpush1.bf16.msra.mxu0 0
    %1301 = vmatprep.subr.bf16.mxu0 0
    %1302 = vmatpush1.bf16.msra.mxu0 0
    %1303 = vmatprep.subr.bf16.mxu0 0
    %1304 = vmatpush1.bf16.msra.mxu0 0
    %1305 = vmatprep.subr.bf16.mxu0 0
    %1306 = vmatpush1.bf16.msra.mxu0 0
    %1307 = vmatprep.subr.bf16.mxu0 0
    %1308 = vmatpush1.bf16.msra.mxu0 0
    %1309 = vmatprep.subr.bf16.mxu0 0
    %1310 = vmatpush1.bf16.msra.mxu0 0
    %1311 = vmatprep.subr.bf16.mxu0 0
    %1312 = vmatpush1.bf16.msra.mxu0 0
    %1313 = vmatprep.mubr.bf16.mxu0 0
    %1314 = vmatmul.mubr.bf16.gmra.mrb[0].mxu0 %v1279
    %v1315 = vpop.f32.mrb[0].mxu0
    %v1316 = vadd.f32 0.0, %v1315
    %v1317 = vpop.f32.mrb[0].mxu0
    %v1318 = vpop.f32.mrb[0].mxu0
    %v1319 = vpop.f32.mrb[0].mxu0
    %1320 = vdwg.mxu0
    %v1322 = vrot.slane %v1316, 2
    %v1324 = vadd.f32 %v167, %v1322
    %v1325 = vmul.f32 %v43, %v1324
    %v1326 = vtanh.pop %v1325
    %v1327 = vmul.f32 %v43, %v1326
    %v1328 = vadd.f32 %v1327, %v44
    %v1330 = vrot.slane %v1264, 7
    %v1332 = vmul.f32 %v1328, %v1330
    %1334 = vrot.lane.b32.xlu0 %v1328, 64
    %v1335 = vpop.permute.xlu0 %1334
    %v1337 = vmul.f32 %v1328, %v1335
    %1339 = vrot.lane.b32.xlu0 %v1337, 32
    %v1340 = vpop.permute.xlu0 %1339
    %v1342 = vadd.f32 %v1332, %v1340
    %v1343 = vtanh.pop %v1342
    %1345 = vrot.lane.b32.xlu0 %v1343, 64
    %v1346 = vpop.permute.xlu0 %1345
    %v1348 = vmul.f32 %v1328, %v1346
    %v1349 = vpack.c.bf16 %v1348, %v1348
    %v1351 = vrot.slane %v1349, 3
    %1352 = vrot.lane.b32.xlu0 %v1351, 32
    %v1353 = vpop.permute.xlu0 %1352
    %v1355 = vsel %vm212, %v1353, 0
    %1357 = vmatprep.subr.bf16.mxu0 0
    %1358 = vmatpush1.bf16.msra.mxu0 %v208
    %1359 = vmatprep.subr.bf16.mxu0 0
    %1360 = vmatpush1.bf16.msra.mxu0 %v209
    %1361 = vmatprep.subr.bf16.mxu0 0
    %1362 = vmatpush1.bf16.msra.mxu0 0
    %1363 = vmatprep.subr.bf16.mxu0 0
    %1364 = vmatpush1.bf16.msra.mxu0 0
    %1365 = vmatprep.subr.bf16.mxu0 0
    %1366 = vmatpush1.bf16.msra.mxu0 0
    %1367 = vmatprep.subr.bf16.mxu0 0
    %1368 = vmatpush1.bf16.msra.mxu0 0
    %1369 = vmatprep.subr.bf16.mxu0 0
    %1370 = vmatpush1.bf16.msra.mxu0 0
    %1371 = vmatprep.subr.bf16.mxu0 0
    %1372 = vmatpush1.bf16.msra.mxu0 0
    %1373 = vmatprep.subr.bf16.mxu0 0
    %1374 = vmatpush1.bf16.msra.mxu0 0
    %1375 = vmatprep.subr.bf16.mxu0 0
    %1376 = vmatpush1.bf16.msra.mxu0 0
    %1377 = vmatprep.subr.bf16.mxu0 0
    %1378 = vmatpush1.bf16.msra.mxu0 0
    %1379 = vmatprep.subr.bf16.mxu0 0
    %1380 = vmatpush1.bf16.msra.mxu0 0
    %1381 = vmatprep.subr.bf16.mxu0 0
    %1382 = vmatpush1.bf16.msra.mxu0 0
    %1383 = vmatprep.subr.bf16.mxu0 0
    %1384 = vmatpush1.bf16.msra.mxu0 0
    %1385 = vmatprep.subr.bf16.mxu0 0
    %1386 = vmatpush1.bf16.msra.mxu0 0
    %1387 = vmatprep.subr.bf16.mxu0 0
    %1388 = vmatpush1.bf16.msra.mxu0 0
    %1389 = vmatprep.mubr.bf16.mxu0 0
    %1390 = vmatmul.mubr.bf16.gmra.mrb[0].mxu0 %v1355
    %v1391 = vpop.f32.mrb[0].mxu0
    %v1392 = vadd.f32 0.0, %v1391
    %v1393 = vpop.f32.mrb[0].mxu0
    %v1394 = vpop.f32.mrb[0].mxu0
    %v1395 = vpop.f32.mrb[0].mxu0
    %1396 = vdwg.mxu0
    %v1398 = vrot.slane %v1392, 1
    %v1400 = vadd.f32 %v167, %v1398
    %v1401 = vmul.f32 %v43, %v1400
    %v1402 = vtanh.pop %v1401
    %v1403 = vmul.f32 %v43, %v1402
    %v1404 = vadd.f32 %v1403, %v44
    %v1406 = vrot.slane %v1342, 7
    %v1408 = vmul.f32 %v1404, %v1406
    %1410 = vrot.lane.b32.xlu0 %v1404, 64
    %v1411 = vpop.permute.xlu0 %1410
    %v1413 = vmul.f32 %v1404, %v1411
    %1415 = vrot.lane.b32.xlu0 %v1413, 32
    %v1416 = vpop.permute.xlu0 %1415
    %v1418 = vadd.f32 %v1408, %v1416
    %v1419 = vtanh.pop %v1418
    %1421 = vrot.lane.b32.xlu0 %v1419, 64
    %v1422 = vpop.permute.xlu0 %1421
    %v1424 = vmul.f32 %v1404, %v1422
    %v1425 = vpack.c.bf16 %v1424, %v1424
    %v1427 = vshrl.u32 %v1425, 16
    %v1429 = vrot.slane %v1427, 3
    %1430 = vrot.lane.b32.xlu0 %v1429, 32
    %v1431 = vpop.permute.xlu0 %1430
    %v1433 = vsel %vm212, %v1431, 0
    %1435 = vmatprep.subr.bf16.mxu0 0
    %1436 = vmatpush1.bf16.msra.mxu0 %v208
    %1437 = vmatprep.subr.bf16.mxu0 0
    %1438 = vmatpush1.bf16.msra.mxu0 %v209
    %1439 = vmatprep.subr.bf16.mxu0 0
    %1440 = vmatpush1.bf16.msra.mxu0 0
    %1441 = vmatprep.subr.bf16.mxu0 0
    %1442 = vmatpush1.bf16.msra.mxu0 0
    %1443 = vmatprep.subr.bf16.mxu0 0
    %1444 = vmatpush1.bf16.msra.mxu0 0
    %1445 = vmatprep.subr.bf16.mxu0 0
    %1446 = vmatpush1.bf16.msra.mxu0 0
    %1447 = vmatprep.subr.bf16.mxu0 0
    %1448 = vmatpush1.bf16.msra.mxu0 0
    %1449 = vmatprep.subr.bf16.mxu0 0
    %1450 = vmatpush1.bf16.msra.mxu0 0
    %1451 = vmatprep.subr.bf16.mxu0 0
    %1452 = vmatpush1.bf16.msra.mxu0 0
    %1453 = vmatprep.subr.bf16.mxu0 0
    %1454 = vmatpush1.bf16.msra.mxu0 0
    %1455 = vmatprep.subr.bf16.mxu0 0
    %1456 = vmatpush1.bf16.msra.mxu0 0
    %1457 = vmatprep.subr.bf16.mxu0 0
    %1458 = vmatpush1.bf16.msra.mxu0 0
    %1459 = vmatprep.subr.bf16.mxu0 0
    %1460 = vmatpush1.bf16.msra.mxu0 0
    %1461 = vmatprep.subr.bf16.mxu0 0
    %1462 = vmatpush1.bf16.msra.mxu0 0
    %1463 = vmatprep.subr.bf16.mxu0 0
    %1464 = vmatpush1.bf16.msra.mxu0 0
    %1465 = vmatprep.subr.bf16.mxu0 0
    %1466 = vmatpush1.bf16.msra.mxu0 0
    %1467 = vmatprep.mubr.bf16.mxu0 0
    %1468 = vmatmul.mubr.bf16.gmra.mrb[0].mxu0 %v1433
    %v1469 = vpop.f32.mrb[0].mxu0
    %v1470 = vadd.f32 0.0, %v1469
    %v1471 = vpop.f32.mrb[0].mxu0
    %v1472 = vpop.f32.mrb[0].mxu0
    %v1473 = vpop.f32.mrb[0].mxu0
    %1474 = vdwg.mxu0
    %v1475 = vadd.f32 %v172, %v1470
    %v1476 = vmul.f32 %v43, %v1475
    %v1477 = vtanh.pop %v1476
    %v1478 = vmul.f32 %v43, %v1477
    %v1479 = vadd.f32 %v1478, %v44
    %v1481 = vrot.slane %v1418, 7
    %v1483 = vmul.f32 %v1479, %v1481
    %1485 = vrot.lane.b32.xlu0 %v1479, 64
    %v1486 = vpop.permute.xlu0 %1485
    %v1488 = vmul.f32 %v1479, %v1486
    %1490 = vrot.lane.b32.xlu0 %v1488, 32
    %v1491 = vpop.permute.xlu0 %1490
    %v1493 = vadd.f32 %v1483, %v1491
    %v1494 = vtanh.pop %v1493
    %1496 = vrot.lane.b32.xlu0 %v1494, 64
    %v1497 = vpop.permute.xlu0 %1496
    %v1499 = vmul.f32 %v1479, %v1497
    %v1500 = vpack.c.bf16 %v1499, %v1499
    %1502 = vrot.lane.b32.xlu0 %v1500, 32
    %v1503 = vpop.permute.xlu0 %1502
    %v1505 = vsel %vm212, %v1503, 0
    %1507 = vmatprep.subr.bf16.mxu0 0
    %1508 = vmatpush1.bf16.msra.mxu0 %v208
    %1509 = vmatprep.subr.bf16.mxu0 0
    %1510 = vmatpush1.bf16.msra.mxu0 %v209
    %1511 = vmatprep.subr.bf16.mxu0 0
    %1512 = vmatpush1.bf16.msra.mxu0 0
    %1513 = vmatprep.subr.bf16.mxu0 0
    %1514 = vmatpush1.bf16.msra.mxu0 0
    %1515 = vmatprep.subr.bf16.mxu0 0
    %1516 = vmatpush1.bf16.msra.mxu0 0
    %1517 = vmatprep.subr.bf16.mxu0 0
    %1518 = vmatpush1.bf16.msra.mxu0 0
    %1519 = vmatprep.subr.bf16.mxu0 0
    %1520 = vmatpush1.bf16.msra.mxu0 0
    %1521 = vmatprep.subr.bf16.mxu0 0
    %1522 = vmatpush1.bf16.msra.mxu0 0
    %1523 = vmatprep.subr.bf16.mxu0 0
    %1524 = vmatpush1.bf16.msra.mxu0 0
    %1525 = vmatprep.subr.bf16.mxu0 0
    %1526 = vmatpush1.bf16.msra.mxu0 0
    %1527 = vmatprep.subr.bf16.mxu0 0
    %1528 = vmatpush1.bf16.msra.mxu0 0
    %1529 = vmatprep.subr.bf16.mxu0 0
    %1530 = vmatpush1.bf16.msra.mxu0 0
    %1531 = vmatprep.subr.bf16.mxu0 0
    %1532 = vmatpush1.bf16.msra.mxu0 0
    %1533 = vmatprep.subr.bf16.mxu0 0
    %1534 = vmatpush1.bf16.msra.mxu0 0
    %1535 = vmatprep.subr.bf16.mxu0 0
    %1536 = vmatpush1.bf16.msra.mxu0 0
    %1537 = vmatprep.subr.bf16.mxu0 0
    %1538 = vmatpush1.bf16.msra.mxu0 0
    %1539 = vmatprep.mubr.bf16.mxu0 0
    %1540 = vmatmul.mubr.bf16.gmra.mrb[0].mxu0 %v1505
    %v1541 = vpop.f32.mrb[0].mxu0
    %v1542 = vadd.f32 0.0, %v1541
    %v1543 = vpop.f32.mrb[0].mxu0
    %v1544 = vpop.f32.mrb[0].mxu0
    %v1545 = vpop.f32.mrb[0].mxu0
    %1546 = vdwg.mxu0
    %v1548 = vrot.slane %v1542, 7
    %v1550 = vadd.f32 %v172, %v1548
    %v1551 = vmul.f32 %v43, %v1550
    %v1552 = vtanh.pop %v1551
    %v1553 = vmul.f32 %v43, %v1552
    %v1554 = vadd.f32 %v1553, %v44
    %v1556 = vrot.slane %v1493, 7
    %v1558 = vmul.f32 %v1554, %v1556
    %1560 = vrot.lane.b32.xlu0 %v1554, 64
    %v1561 = vpop.permute.xlu0 %1560
    %v1563 = vmul.f32 %v1554, %v1561
    %1565 = vrot.lane.b32.xlu0 %v1563, 32
    %v1566 = vpop.permute.xlu0 %1565
    %v1568 = vadd.f32 %v1558, %v1566
    %v1569 = vtanh.pop %v1568
    %1571 = vrot.lane.b32.xlu0 %v1569, 64
    %v1572 = vpop.permute.xlu0 %1571
    %v1574 = vmul.f32 %v1554, %v1572
    %v1575 = vpack.c.bf16 %v1574, %v1574
    %v1577 = vshrl.u32 %v1575, 16
    %1579 = vrot.lane.b32.xlu0 %v1577, 32
    %v1580 = vpop.permute.xlu0 %1579
    %v1582 = vsel %vm212, %v1580, 0
    %1584 = vmatprep.subr.bf16.mxu0 0
    %1585 = vmatpush1.bf16.msra.mxu0 %v208
    %1586 = vmatprep.subr.bf16.mxu0 0
    %1587 = vmatpush1.bf16.msra.mxu0 %v209
    %1588 = vmatprep.subr.bf16.mxu0 0
    %1589 = vmatpush1.bf16.msra.mxu0 0
    %1590 = vmatprep.subr.bf16.mxu0 0
    %1591 = vmatpush1.bf16.msra.mxu0 0
    %1592 = vmatprep.subr.bf16.mxu0 0
    %1593 = vmatpush1.bf16.msra.mxu0 0
    %1594 = vmatprep.subr.bf16.mxu0 0
    %1595 = vmatpush1.bf16.msra.mxu0 0
    %1596 = vmatprep.subr.bf16.mxu0 0
    %1597 = vmatpush1.bf16.msra.mxu0 0
    %1598 = vmatprep.subr.bf16.mxu0 0
    %1599 = vmatpush1.bf16.msra.mxu0 0
    %1600 = vmatprep.subr.bf16.mxu0 0
    %1601 = vmatpush1.bf16.msra.mxu0 0
    %1602 = vmatprep.subr.bf16.mxu0 0
    %1603 = vmatpush1.bf16.msra.mxu0 0
    %1604 = vmatprep.subr.bf16.mxu0 0
    %1605 = vmatpush1.bf16.msra.mxu0 0
    %1606 = vmatprep.subr.bf16.mxu0 0
    %1607 = vmatpush1.bf16.msra.mxu0 0
    %1608 = vmatprep.subr.bf16.mxu0 0
    %1609 = vmatpush1.bf16.msra.mxu0 0
    %1610 = vmatprep.subr.bf16.mxu0 0
    %1611 = vmatpush1.bf16.msra.mxu0 0
    %1612 = vmatprep.subr.bf16.mxu0 0
    %1613 = vmatpush1.bf16.msra.mxu0 0
    %1614 = vmatprep.subr.bf16.mxu0 0
    %1615 = vmatpush1.bf16.msra.mxu0 0
    %1616 = vmatprep.mubr.bf16.mxu0 0
    %1617 = vmatmul.mubr.bf16.gmra.mrb[0].mxu0 %v1582
    %v1618 = vpop.f32.mrb[0].mxu0
    %v1619 = vadd.f32 0.0, %v1618
    %v1620 = vpop.f32.mrb[0].mxu0
    %v1621 = vpop.f32.mrb[0].mxu0
    %v1622 = vpop.f32.mrb[0].mxu0
    %1623 = vdwg.mxu0
    %v1625 = vrot.slane %v1619, 6
    %v1627 = vadd.f32 %v172, %v1625
    %v1628 = vmul.f32 %v43, %v1627
    %v1629 = vtanh.pop %v1628
    %v1630 = vmul.f32 %v43, %v1629
    %v1631 = vadd.f32 %v1630, %v44
    %v1633 = vrot.slane %v1568, 7
    %v1635 = vmul.f32 %v1631, %v1633
    %1637 = vrot.lane.b32.xlu0 %v1631, 64
    %v1638 = vpop.permute.xlu0 %1637
    %v1640 = vmul.f32 %v1631, %v1638
    %1642 = vrot.lane.b32.xlu0 %v1640, 32
    %v1643 = vpop.permute.xlu0 %1642
    %v1645 = vadd.f32 %v1635, %v1643
    %v1646 = vtanh.pop %v1645
    %1648 = vrot.lane.b32.xlu0 %v1646, 64
    %v1649 = vpop.permute.xlu0 %1648
    %v1651 = vmul.f32 %v1631, %v1649
    %v1652 = vpack.c.bf16 %v1651, %v1651
    %v1654 = vrot.slane %v1652, 1
    %1655 = vrot.lane.b32.xlu0 %v1654, 32
    %v1656 = vpop.permute.xlu0 %1655
    %v1658 = vsel %vm212, %v1656, 0
    %1660 = vmatprep.subr.bf16.mxu0 0
    %1661 = vmatpush1.bf16.msra.mxu0 %v208
    %1662 = vmatprep.subr.bf16.mxu0 0
    %1663 = vmatpush1.bf16.msra.mxu0 %v209
    %1664 = vmatprep.subr.bf16.mxu0 0
    %1665 = vmatpush1.bf16.msra.mxu0 0
    %1666 = vmatprep.subr.bf16.mxu0 0
    %1667 = vmatpush1.bf16.msra.mxu0 0
    %1668 = vmatprep.subr.bf16.mxu0 0
    %1669 = vmatpush1.bf16.msra.mxu0 0
    %1670 = vmatprep.subr.bf16.mxu0 0
    %1671 = vmatpush1.bf16.msra.mxu0 0
    %1672 = vmatprep.subr.bf16.mxu0 0
    %1673 = vmatpush1.bf16.msra.mxu0 0
    %1674 = vmatprep.subr.bf16.mxu0 0
    %1675 = vmatpush1.bf16.msra.mxu0 0
    %1676 = vmatprep.subr.bf16.mxu0 0
    %1677 = vmatpush1.bf16.msra.mxu0 0
    %1678 = vmatprep.subr.bf16.mxu0 0
    %1679 = vmatpush1.bf16.msra.mxu0 0
    %1680 = vmatprep.subr.bf16.mxu0 0
    %1681 = vmatpush1.bf16.msra.mxu0 0
    %1682 = vmatprep.subr.bf16.mxu0 0
    %1683 = vmatpush1.bf16.msra.mxu0 0
    %1684 = vmatprep.subr.bf16.mxu0 0
    %1685 = vmatpush1.bf16.msra.mxu0 0
    %1686 = vmatprep.subr.bf16.mxu0 0
    %1687 = vmatpush1.bf16.msra.mxu0 0
    %1688 = vmatprep.subr.bf16.mxu0 0
    %1689 = vmatpush1.bf16.msra.mxu0 0
    %1690 = vmatprep.subr.bf16.mxu0 0
    %1691 = vmatpush1.bf16.msra.mxu0 0
    %1692 = vmatprep.mubr.bf16.mxu0 0
    %1693 = vmatmul.mubr.bf16.gmra.mrb[0].mxu0 %v1658
    %v1694 = vpop.f32.mrb[0].mxu0
    %v1695 = vadd.f32 0.0, %v1694
    %v1696 = vpop.f32.mrb[0].mxu0
    %v1697 = vpop.f32.mrb[0].mxu0
    %v1698 = vpop.f32.mrb[0].mxu0
    %1699 = vdwg.mxu0
    %v1701 = vrot.slane %v1695, 5
    %v1703 = vadd.f32 %v172, %v1701
    %v1704 = vmul.f32 %v43, %v1703
    %v1705 = vtanh.pop %v1704
    %v1706 = vmul.f32 %v43, %v1705
    %v1707 = vadd.f32 %v1706, %v44
    %v1709 = vrot.slane %v1645, 7
    %v1711 = vmul.f32 %v1707, %v1709
    %1713 = vrot.lane.b32.xlu0 %v1707, 64
    %v1714 = vpop.permute.xlu0 %1713
    %v1716 = vmul.f32 %v1707, %v1714
    %1718 = vrot.lane.b32.xlu0 %v1716, 32
    %v1719 = vpop.permute.xlu0 %1718
    %v1721 = vadd.f32 %v1711, %v1719
    %v1722 = vtanh.pop %v1721
    %1724 = vrot.lane.b32.xlu0 %v1722, 64
    %v1725 = vpop.permute.xlu0 %1724
    %v1727 = vmul.f32 %v1707, %v1725
    %v1728 = vpack.c.bf16 %v1727, %v1727
    %v1730 = vshrl.u32 %v1728, 16
    %v1732 = vrot.slane %v1730, 1
    %1733 = vrot.lane.b32.xlu0 %v1732, 32
    %v1734 = vpop.permute.xlu0 %1733
    %v1736 = vsel %vm212, %v1734, 0
    %1738 = vmatprep.subr.bf16.mxu0 0
    %1739 = vmatpush1.bf16.msra.mxu0 %v208
    %1740 = vmatprep.subr.bf16.mxu0 0
    %1741 = vmatpush1.bf16.msra.mxu0 %v209
    %1742 = vmatprep.subr.bf16.mxu0 0
    %1743 = vmatpush1.bf16.msra.mxu0 0
    %1744 = vmatprep.subr.bf16.mxu0 0
    %1745 = vmatpush1.bf16.msra.mxu0 0
    %1746 = vmatprep.subr.bf16.mxu0 0
    %1747 = vmatpush1.bf16.msra.mxu0 0
    %1748 = vmatprep.subr.bf16.mxu0 0
    %1749 = vmatpush1.bf16.msra.mxu0 0
    %1750 = vmatprep.subr.bf16.mxu0 0
    %1751 = vmatpush1.bf16.msra.mxu0 0
    %1752 = vmatprep.subr.bf16.mxu0 0
    %1753 = vmatpush1.bf16.msra.mxu0 0
    %1754 = vmatprep.subr.bf16.mxu0 0
    %1755 = vmatpush1.bf16.msra.mxu0 0
    %1756 = vmatprep.subr.bf16.mxu0 0
    %1757 = vmatpush1.bf16.msra.mxu0 0
    %1758 = vmatprep.subr.bf16.mxu0 0
    %1759 = vmatpush1.bf16.msra.mxu0 0
    %1760 = vmatprep.subr.bf16.mxu0 0
    %1761 = vmatpush1.bf16.msra.mxu0 0
    %1762 = vmatprep.subr.bf16.mxu0 0
    %1763 = vmatpush1.bf16.msra.mxu0 0
    %1764 = vmatprep.subr.bf16.mxu0 0
    %1765 = vmatpush1.bf16.msra.mxu0 0
    %1766 = vmatprep.subr.bf16.mxu0 0
    %1767 = vmatpush1.bf16.msra.mxu0 0
    %1768 = vmatprep.subr.bf16.mxu0 0
    %1769 = vmatpush1.bf16.msra.mxu0 0
    %1770 = vmatprep.mubr.bf16.mxu0 0
    %1771 = vmatmul.mubr.bf16.gmra.mrb[0].mxu0 %v1736
    %v1772 = vpop.f32.mrb[0].mxu0
    %v1773 = vadd.f32 0.0, %v1772
    %v1774 = vpop.f32.mrb[0].mxu0
    %v1775 = vpop.f32.mrb[0].mxu0
    %v1776 = vpop.f32.mrb[0].mxu0
    %1777 = vdwg.mxu0
    %v1779 = vrot.slane %v1773, 4
    %v1781 = vadd.f32 %v172, %v1779
    %v1782 = vmul.f32 %v43, %v1781
    %v1783 = vtanh.pop %v1782
    %v1784 = vmul.f32 %v43, %v1783
    %v1785 = vadd.f32 %v1784, %v44
    %v1787 = vrot.slane %v1721, 7
    %v1789 = vmul.f32 %v1785, %v1787
    %1791 = vrot.lane.b32.xlu0 %v1785, 64
    %v1792 = vpop.permute.xlu0 %1791
    %v1794 = vmul.f32 %v1785, %v1792
    %1796 = vrot.lane.b32.xlu0 %v1794, 32
    %v1797 = vpop.permute.xlu0 %1796
    %v1799 = vadd.f32 %v1789, %v1797
    %v1800 = vtanh.pop %v1799
    %1802 = vrot.lane.b32.xlu0 %v1800, 64
    %v1803 = vpop.permute.xlu0 %1802
    %v1805 = vmul.f32 %v1785, %v1803
    %v1806 = vpack.c.bf16 %v1805, %v1805
    %v1808 = vrot.slane %v1806, 2
    %1809 = vrot.lane.b32.xlu0 %v1808, 32
    %v1810 = vpop.permute.xlu0 %1809
    %v1812 = vsel %vm212, %v1810, 0
    %1814 = vmatprep.subr.bf16.mxu0 0
    %1815 = vmatpush1.bf16.msra.mxu0 %v208
    %1816 = vmatprep.subr.bf16.mxu0 0
    %1817 = vmatpush1.bf16.msra.mxu0 %v209
    %1818 = vmatprep.subr.bf16.mxu0 0
    %1819 = vmatpush1.bf16.msra.mxu0 0
    %1820 = vmatprep.subr.bf16.mxu0 0
    %1821 = vmatpush1.bf16.msra.mxu0 0
    %1822 = vmatprep.subr.bf16.mxu0 0
    %1823 = vmatpush1.bf16.msra.mxu0 0
    %1824 = vmatprep.subr.bf16.mxu0 0
    %1825 = vmatpush1.bf16.msra.mxu0 0
    %1826 = vmatprep.subr.bf16.mxu0 0
    %1827 = vmatpush1.bf16.msra.mxu0 0
    %1828 = vmatprep.subr.bf16.mxu0 0
    %1829 = vmatpush1.bf16.msra.mxu0 0
    %1830 = vmatprep.subr.bf16.mxu0 0
    %1831 = vmatpush1.bf16.msra.mxu0 0
    %1832 = vmatprep.subr.bf16.mxu0 0
    %1833 = vmatpush1.bf16.msra.mxu0 0
    %1834 = vmatprep.subr.bf16.mxu0 0
    %1835 = vmatpush1.bf16.msra.mxu0 0
    %1836 = vmatprep.subr.bf16.mxu0 0
    %1837 = vmatpush1.bf16.msra.mxu0 0
    %1838 = vmatprep.subr.bf16.mxu0 0
    %1839 = vmatpush1.bf16.msra.mxu0 0
    %1840 = vmatprep.subr.bf16.mxu0 0
    %1841 = vmatpush1.bf16.msra.mxu0 0
    %1842 = vmatprep.subr.bf16.mxu0 0
    %1843 = vmatpush1.bf16.msra.mxu0 0
    %1844 = vmatprep.subr.bf16.mxu0 0
    %1845 = vmatpush1.bf16.msra.mxu0 0
    %1846 = vmatprep.mubr.bf16.mxu0 0
    %1847 = vmatmul.mubr.bf16.gmra.mrb[0].mxu0 %v1812
    %v1848 = vpop.f32.mrb[0].mxu0
    %v1849 = vadd.f32 0.0, %v1848
    %v1850 = vpop.f32.mrb[0].mxu0
    %v1851 = vpop.f32.mrb[0].mxu0
    %v1852 = vpop.f32.mrb[0].mxu0
    %1853 = vdwg.mxu0
    %v1855 = vrot.slane %v1849, 3
    %v1857 = vadd.f32 %v172, %v1855
    %v1858 = vmul.f32 %v43, %v1857
    %v1859 = vtanh.pop %v1858
    %v1860 = vmul.f32 %v43, %v1859
    %v1861 = vadd.f32 %v1860, %v44
    %v1863 = vrot.slane %v1799, 7
    %v1865 = vmul.f32 %v1861, %v1863
    %1867 = vrot.lane.b32.xlu0 %v1861, 64
    %v1868 = vpop.permute.xlu0 %1867
    %v1870 = vmul.f32 %v1861, %v1868
    %1872 = vrot.lane.b32.xlu0 %v1870, 32
    %v1873 = vpop.permute.xlu0 %1872
    %v1875 = vadd.f32 %v1865, %v1873
    %v1876 = vtanh.pop %v1875
    %1878 = vrot.lane.b32.xlu0 %v1876, 64
    %v1879 = vpop.permute.xlu0 %1878
    %v1881 = vmul.f32 %v1861, %v1879
    %v1882 = vpack.c.bf16 %v1881, %v1881
    %v1884 = vshrl.u32 %v1882, 16
    %v1886 = vrot.slane %v1884, 2
    %1887 = vrot.lane.b32.xlu0 %v1886, 32
    %v1888 = vpop.permute.xlu0 %1887
    %v1890 = vsel %vm212, %v1888, 0
    %1892 = vmatprep.subr.bf16.mxu0 0
    %1893 = vmatpush1.bf16.msra.mxu0 %v208
    %1894 = vmatprep.subr.bf16.mxu0 0
    %1895 = vmatpush1.bf16.msra.mxu0 %v209
    %1896 = vmatprep.subr.bf16.mxu0 0
    %1897 = vmatpush1.bf16.msra.mxu0 0
    %1898 = vmatprep.subr.bf16.mxu0 0
    %1899 = vmatpush1.bf16.msra.mxu0 0
    %1900 = vmatprep.subr.bf16.mxu0 0
    %1901 = vmatpush1.bf16.msra.mxu0 0
    %1902 = vmatprep.subr.bf16.mxu0 0
    %1903 = vmatpush1.bf16.msra.mxu0 0
    %1904 = vmatprep.subr.bf16.mxu0 0
    %1905 = vmatpush1.bf16.msra.mxu0 0
    %1906 = vmatprep.subr.bf16.mxu0 0
    %1907 = vmatpush1.bf16.msra.mxu0 0
    %1908 = vmatprep.subr.bf16.mxu0 0
    %1909 = vmatpush1.bf16.msra.mxu0 0
    %1910 = vmatprep.subr.bf16.mxu0 0
    %1911 = vmatpush1.bf16.msra.mxu0 0
    %1912 = vmatprep.subr.bf16.mxu0 0
    %1913 = vmatpush1.bf16.msra.mxu0 0
    %1914 = vmatprep.subr.bf16.mxu0 0
    %1915 = vmatpush1.bf16.msra.mxu0 0
    %1916 = vmatprep.subr.bf16.mxu0 0
    %1917 = vmatpush1.bf16.msra.mxu0 0
    %1918 = vmatprep.subr.bf16.mxu0 0
    %1919 = vmatpush1.bf16.msra.mxu0 0
    %1920 = vmatprep.subr.bf16.mxu0 0
    %1921 = vmatpush1.bf16.msra.mxu0 0
    %1922 = vmatprep.subr.bf16.mxu0 0
    %1923 = vmatpush1.bf16.msra.mxu0 0
    %1924 = vmatprep.mubr.bf16.mxu0 0
    %1925 = vmatmul.mubr.bf16.gmra.mrb[0].mxu0 %v1890
    %v1926 = vpop.f32.mrb[0].mxu0
    %v1927 = vadd.f32 0.0, %v1926
    %v1928 = vpop.f32.mrb[0].mxu0
    %v1929 = vpop.f32.mrb[0].mxu0
    %v1930 = vpop.f32.mrb[0].mxu0
    %1931 = vdwg.mxu0
    %v1933 = vrot.slane %v1927, 2
    %v1935 = vadd.f32 %v172, %v1933
    %v1936 = vmul.f32 %v43, %v1935
    %v1937 = vtanh.pop %v1936
    %v1938 = vmul.f32 %v43, %v1937
    %v1939 = vadd.f32 %v1938, %v44
    %v1941 = vrot.slane %v1875, 7
    %v1943 = vmul.f32 %v1939, %v1941
    %1945 = vrot.lane.b32.xlu0 %v1939, 64
    %v1946 = vpop.permute.xlu0 %1945
    %v1948 = vmul.f32 %v1939, %v1946
    %1950 = vrot.lane.b32.xlu0 %v1948, 32
    %v1951 = vpop.permute.xlu0 %1950
    %v1953 = vadd.f32 %v1943, %v1951
    %v1954 = vtanh.pop %v1953
    %1956 = vrot.lane.b32.xlu0 %v1954, 64
    %v1957 = vpop.permute.xlu0 %1956
    %v1959 = vmul.f32 %v1939, %v1957
    %v1960 = vpack.c.bf16 %v1959, %v1959
    %v1962 = vrot.slane %v1960, 3
    %1963 = vrot.lane.b32.xlu0 %v1962, 32
    %v1964 = vpop.permute.xlu0 %1963
    %v1966 = vsel %vm212, %v1964, 0
    %1968 = vmatprep.subr.bf16.mxu0 0
    %1969 = vmatpush1.bf16.msra.mxu0 %v208
    %1970 = vmatprep.subr.bf16.mxu0 0
    %1971 = vmatpush1.bf16.msra.mxu0 %v209
    %1972 = vmatprep.subr.bf16.mxu0 0
    %1973 = vmatpush1.bf16.msra.mxu0 0
    %1974 = vmatprep.subr.bf16.mxu0 0
    %1975 = vmatpush1.bf16.msra.mxu0 0
    %1976 = vmatprep.subr.bf16.mxu0 0
    %1977 = vmatpush1.bf16.msra.mxu0 0
    %1978 = vmatprep.subr.bf16.mxu0 0
    %1979 = vmatpush1.bf16.msra.mxu0 0
    %1980 = vmatprep.subr.bf16.mxu0 0
    %1981 = vmatpush1.bf16.msra.mxu0 0
    %1982 = vmatprep.subr.bf16.mxu0 0
    %1983 = vmatpush1.bf16.msra.mxu0 0
    %1984 = vmatprep.subr.bf16.mxu0 0
    %1985 = vmatpush1.bf16.msra.mxu0 0
    %1986 = vmatprep.subr.bf16.mxu0 0
    %1987 = vmatpush1.bf16.msra.mxu0 0
    %1988 = vmatprep.subr.bf16.mxu0 0
    %1989 = vmatpush1.bf16.msra.mxu0 0
    %1990 = vmatprep.subr.bf16.mxu0 0
    %1991 = vmatpush1.bf16.msra.mxu0 0
    %1992 = vmatprep.subr.bf16.mxu0 0
    %1993 = vmatpush1.bf16.msra.mxu0 0
    %1994 = vmatprep.subr.bf16.mxu0 0
    %1995 = vmatpush1.bf16.msra.mxu0 0
    %1996 = vmatprep.subr.bf16.mxu0 0
    %1997 = vmatpush1.bf16.msra.mxu0 0
    %1998 = vmatprep.subr.bf16.mxu0 0
    %1999 = vmatpush1.bf16.msra.mxu0 0
    %2000 = vmatprep.mubr.bf16.mxu0 0
    %2001 = vmatmul.mubr.bf16.gmra.mrb[0].mxu0 %v1966
    %v2002 = vpop.f32.mrb[0].mxu0
    %v2003 = vadd.f32 0.0, %v2002
    %v2004 = vpop.f32.mrb[0].mxu0
    %v2005 = vpop.f32.mrb[0].mxu0
    %v2006 = vpop.f32.mrb[0].mxu0
    %2007 = vdwg.mxu0
    %v2009 = vrot.slane %v2003, 1
    %v2011 = vadd.f32 %v172, %v2009
    %v2012 = vmul.f32 %v43, %v2011
    %v2013 = vtanh.pop %v2012
    %v2014 = vmul.f32 %v43, %v2013
    %v2015 = vadd.f32 %v2014, %v44
    %v2017 = vrot.slane %v1953, 7
    %v2019 = vmul.f32 %v2015, %v2017
    %2021 = vrot.lane.b32.xlu0 %v2015, 64
    %v2022 = vpop.permute.xlu0 %2021
    %v2024 = vmul.f32 %v2015, %v2022
    %2026 = vrot.lane.b32.xlu0 %v2024, 32
    %v2027 = vpop.permute.xlu0 %2026
    %v2029 = vadd.f32 %v2019, %v2027
    %v2030 = vtanh.pop %v2029
    %2032 = vrot.lane.b32.xlu0 %v2030, 64
    %v2033 = vpop.permute.xlu0 %2032
    %v2035 = vmul.f32 %v2015, %v2033
    %v2036 = vpack.c.bf16 %v2035, %v2035
    %v2038 = vshrl.u32 %v2036, 16
    %v2040 = vrot.slane %v2038, 3
    %2041 = vrot.lane.b32.xlu0 %v2040, 32
    %v2042 = vpop.permute.xlu0 %2041
    %v2044 = vsel %vm212, %v2042, 0
    %2046 = vmatprep.subr.bf16.mxu0 0
    %2047 = vmatpush1.bf16.msra.mxu0 %v208
    %2048 = vmatprep.subr.bf16.mxu0 0
    %2049 = vmatpush1.bf16.msra.mxu0 %v209
    %2050 = vmatprep.subr.bf16.mxu0 0
    %2051 = vmatpush1.bf16.msra.mxu0 0
    %2052 = vmatprep.subr.bf16.mxu0 0
    %2053 = vmatpush1.bf16.msra.mxu0 0
    %2054 = vmatprep.subr.bf16.mxu0 0
    %2055 = vmatpush1.bf16.msra.mxu0 0
    %2056 = vmatprep.subr.bf16.mxu0 0
    %2057 = vmatpush1.bf16.msra.mxu0 0
    %2058 = vmatprep.subr.bf16.mxu0 0
    %2059 = vmatpush1.bf16.msra.mxu0 0
    %2060 = vmatprep.subr.bf16.mxu0 0
    %2061 = vmatpush1.bf16.msra.mxu0 0
    %2062 = vmatprep.subr.bf16.mxu0 0
    %2063 = vmatpush1.bf16.msra.mxu0 0
    %2064 = vmatprep.subr.bf16.mxu0 0
    %2065 = vmatpush1.bf16.msra.mxu0 0
    %2066 = vmatprep.subr.bf16.mxu0 0
    %2067 = vmatpush1.bf16.msra.mxu0 0
    %2068 = vmatprep.subr.bf16.mxu0 0
    %2069 = vmatpush1.bf16.msra.mxu0 0
    %2070 = vmatprep.subr.bf16.mxu0 0
    %2071 = vmatpush1.bf16.msra.mxu0 0
    %2072 = vmatprep.subr.bf16.mxu0 0
    %2073 = vmatpush1.bf16.msra.mxu0 0
    %2074 = vmatprep.subr.bf16.mxu0 0
    %2075 = vmatpush1.bf16.msra.mxu0 0
    %2076 = vmatprep.subr.bf16.mxu0 0
    %2077 = vmatpush1.bf16.msra.mxu0 0
    %2078 = vmatprep.mubr.bf16.mxu0 0
    %2079 = vmatmul.mubr.bf16.gmra.mrb[0].mxu0 %v2044
    %v2080 = vpop.f32.mrb[0].mxu0
    %v2081 = vadd.f32 0.0, %v2080
    %v2082 = vpop.f32.mrb[0].mxu0
    %v2083 = vpop.f32.mrb[0].mxu0
    %v2084 = vpop.f32.mrb[0].mxu0
    %2085 = vdwg.mxu0
    %v2086 = vadd.f32 %v177, %v2081
    %v2087 = vmul.f32 %v43, %v2086
    %v2088 = vtanh.pop %v2087
    %v2089 = vmul.f32 %v43, %v2088
    %v2090 = vadd.f32 %v2089, %v44
    %v2092 = vrot.slane %v2029, 7
    %v2094 = vmul.f32 %v2090, %v2092
    %2096 = vrot.lane.b32.xlu0 %v2090, 64
    %v2097 = vpop.permute.xlu0 %2096
    %v2099 = vmul.f32 %v2090, %v2097
    %2101 = vrot.lane.b32.xlu0 %v2099, 32
    %v2102 = vpop.permute.xlu0 %2101
    %v2104 = vadd.f32 %v2094, %v2102
    %v2105 = vtanh.pop %v2104
    %2107 = vrot.lane.b32.xlu0 %v2105, 64
    %v2108 = vpop.permute.xlu0 %2107
    %v2110 = vmul.f32 %v2090, %v2108
    %v2111 = vpack.c.bf16 %v2110, %v2110
    %2113 = vrot.lane.b32.xlu0 %v2111, 32
    %v2114 = vpop.permute.xlu0 %2113
    %v2116 = vsel %vm212, %v2114, 0
    %2118 = vmatprep.subr.bf16.mxu0 0
    %2119 = vmatpush1.bf16.msra.mxu0 %v208
    %2120 = vmatprep.subr.bf16.mxu0 0
    %2121 = vmatpush1.bf16.msra.mxu0 %v209
    %2122 = vmatprep.subr.bf16.mxu0 0
    %2123 = vmatpush1.bf16.msra.mxu0 0
    %2124 = vmatprep.subr.bf16.mxu0 0
    %2125 = vmatpush1.bf16.msra.mxu0 0
    %2126 = vmatprep.subr.bf16.mxu0 0
    %2127 = vmatpush1.bf16.msra.mxu0 0
    %2128 = vmatprep.subr.bf16.mxu0 0
    %2129 = vmatpush1.bf16.msra.mxu0 0
    %2130 = vmatprep.subr.bf16.mxu0 0
    %2131 = vmatpush1.bf16.msra.mxu0 0
    %2132 = vmatprep.subr.bf16.mxu0 0
    %2133 = vmatpush1.bf16.msra.mxu0 0
    %2134 = vmatprep.subr.bf16.mxu0 0
    %2135 = vmatpush1.bf16.msra.mxu0 0
    %2136 = vmatprep.subr.bf16.mxu0 0
    %2137 = vmatpush1.bf16.msra.mxu0 0
    %2138 = vmatprep.subr.bf16.mxu0 0
    %2139 = vmatpush1.bf16.msra.mxu0 0
    %2140 = vmatprep.subr.bf16.mxu0 0
    %2141 = vmatpush1.bf16.msra.mxu0 0
    %2142 = vmatprep.subr.bf16.mxu0 0
    %2143 = vmatpush1.bf16.msra.mxu0 0
    %2144 = vmatprep.subr.bf16.mxu0 0
    %2145 = vmatpush1.bf16.msra.mxu0 0
    %2146 = vmatprep.subr.bf16.mxu0 0
    %2147 = vmatpush1.bf16.msra.mxu0 0
    %2148 = vmatprep.subr.bf16.mxu0 0
    %2149 = vmatpush1.bf16.msra.mxu0 0
    %2150 = vmatprep.mubr.bf16.mxu0 0
    %2151 = vmatmul.mubr.bf16.gmra.mrb[0].mxu0 %v2116
    %v2152 = vpop.f32.mrb[0].mxu0
    %v2153 = vadd.f32 0.0, %v2152
    %v2154 = vpop.f32.mrb[0].mxu0
    %v2155 = vpop.f32.mrb[0].mxu0
    %v2156 = vpop.f32.mrb[0].mxu0
    %2157 = vdwg.mxu0
    %v2159 = vrot.slane %v2153, 7
    %v2161 = vadd.f32 %v177, %v2159
    %v2162 = vmul.f32 %v43, %v2161
    %v2163 = vtanh.pop %v2162
    %v2164 = vmul.f32 %v43, %v2163
    %v2165 = vadd.f32 %v2164, %v44
    %v2167 = vrot.slane %v2104, 7
    %v2169 = vmul.f32 %v2165, %v2167
    %2171 = vrot.lane.b32.xlu0 %v2165, 64
    %v2172 = vpop.permute.xlu0 %2171
    %v2174 = vmul.f32 %v2165, %v2172
    %2176 = vrot.lane.b32.xlu0 %v2174, 32
    %v2177 = vpop.permute.xlu0 %2176
    %v2179 = vadd.f32 %v2169, %v2177
    %v2180 = vtanh.pop %v2179
    %2182 = vrot.lane.b32.xlu0 %v2180, 64
    %v2183 = vpop.permute.xlu0 %2182
    %v2185 = vmul.f32 %v2165, %v2183
    %v2186 = vpack.c.bf16 %v2185, %v2185
    %v2188 = vshrl.u32 %v2186, 16
    %2190 = vrot.lane.b32.xlu0 %v2188, 32
    %v2191 = vpop.permute.xlu0 %2190
    %v2193 = vsel %vm212, %v2191, 0
    %2195 = vmatprep.subr.bf16.mxu0 0
    %2196 = vmatpush1.bf16.msra.mxu0 %v208
    %2197 = vmatprep.subr.bf16.mxu0 0
    %2198 = vmatpush1.bf16.msra.mxu0 %v209
    %2199 = vmatprep.subr.bf16.mxu0 0
    %2200 = vmatpush1.bf16.msra.mxu0 0
    %2201 = vmatprep.subr.bf16.mxu0 0
    %2202 = vmatpush1.bf16.msra.mxu0 0
    %2203 = vmatprep.subr.bf16.mxu0 0
    %2204 = vmatpush1.bf16.msra.mxu0 0
    %2205 = vmatprep.subr.bf16.mxu0 0
    %2206 = vmatpush1.bf16.msra.mxu0 0
    %2207 = vmatprep.subr.bf16.mxu0 0
    %2208 = vmatpush1.bf16.msra.mxu0 0
    %2209 = vmatprep.subr.bf16.mxu0 0
    %2210 = vmatpush1.bf16.msra.mxu0 0
    %2211 = vmatprep.subr.bf16.mxu0 0
    %2212 = vmatpush1.bf16.msra.mxu0 0
    %2213 = vmatprep.subr.bf16.mxu0 0
    %2214 = vmatpush1.bf16.msra.mxu0 0
    %2215 = vmatprep.subr.bf16.mxu0 0
    %2216 = vmatpush1.bf16.msra.mxu0 0
    %2217 = vmatprep.subr.bf16.mxu0 0
    %2218 = vmatpush1.bf16.msra.mxu0 0
    %2219 = vmatprep.subr.bf16.mxu0 0
    %2220 = vmatpush1.bf16.msra.mxu0 0
    %2221 = vmatprep.subr.bf16.mxu0 0
    %2222 = vmatpush1.bf16.msra.mxu0 0
    %2223 = vmatprep.subr.bf16.mxu0 0
    %2224 = vmatpush1.bf16.msra.mxu0 0
    %2225 = vmatprep.subr.bf16.mxu0 0
    %2226 = vmatpush1.bf16.msra.mxu0 0
    %2227 = vmatprep.mubr.bf16.mxu0 0
    %2228 = vmatmul.mubr.bf16.gmra.mrb[0].mxu0 %v2193
    %v2229 = vpop.f32.mrb[0].mxu0
    %v2230 = vadd.f32 0.0, %v2229
    %v2231 = vpop.f32.mrb[0].mxu0
    %v2232 = vpop.f32.mrb[0].mxu0
    %v2233 = vpop.f32.mrb[0].mxu0
    %2234 = vdwg.mxu0
    %v2236 = vrot.slane %v2230, 6
    %v2238 = vadd.f32 %v177, %v2236
    %v2239 = vmul.f32 %v43, %v2238
    %v2240 = vtanh.pop %v2239
    %v2241 = vmul.f32 %v43, %v2240
    %v2242 = vadd.f32 %v2241, %v44
    %v2244 = vrot.slane %v2179, 7
    %v2246 = vmul.f32 %v2242, %v2244
    %2248 = vrot.lane.b32.xlu0 %v2242, 64
    %v2249 = vpop.permute.xlu0 %2248
    %v2251 = vmul.f32 %v2242, %v2249
    %2253 = vrot.lane.b32.xlu0 %v2251, 32
    %v2254 = vpop.permute.xlu0 %2253
    %v2256 = vadd.f32 %v2246, %v2254
    %v2257 = vtanh.pop %v2256
    %2259 = vrot.lane.b32.xlu0 %v2257, 64
    %v2260 = vpop.permute.xlu0 %2259
    %v2262 = vmul.f32 %v2242, %v2260
    %v2263 = vpack.c.bf16 %v2262, %v2262
    %v2265 = vrot.slane %v2263, 1
    %2266 = vrot.lane.b32.xlu0 %v2265, 32
    %v2267 = vpop.permute.xlu0 %2266
    %v2269 = vsel %vm212, %v2267, 0
    %2271 = vmatprep.subr.bf16.mxu0 0
    %2272 = vmatpush1.bf16.msra.mxu0 %v208
    %2273 = vmatprep.subr.bf16.mxu0 0
    %2274 = vmatpush1.bf16.msra.mxu0 %v209
    %2275 = vmatprep.subr.bf16.mxu0 0
    %2276 = vmatpush1.bf16.msra.mxu0 0
    %2277 = vmatprep.subr.bf16.mxu0 0
    %2278 = vmatpush1.bf16.msra.mxu0 0
    %2279 = vmatprep.subr.bf16.mxu0 0
    %2280 = vmatpush1.bf16.msra.mxu0 0
    %2281 = vmatprep.subr.bf16.mxu0 0
    %2282 = vmatpush1.bf16.msra.mxu0 0
    %2283 = vmatprep.subr.bf16.mxu0 0
    %2284 = vmatpush1.bf16.msra.mxu0 0
    %2285 = vmatprep.subr.bf16.mxu0 0
    %2286 = vmatpush1.bf16.msra.mxu0 0
    %2287 = vmatprep.subr.bf16.mxu0 0
    %2288 = vmatpush1.bf16.msra.mxu0 0
    %2289 = vmatprep.subr.bf16.mxu0 0
    %2290 = vmatpush1.bf16.msra.mxu0 0
    %2291 = vmatprep.subr.bf16.mxu0 0
    %2292 = vmatpush1.bf16.msra.mxu0 0
    %2293 = vmatprep.subr.bf16.mxu0 0
    %2294 = vmatpush1.bf16.msra.mxu0 0
    %2295 = vmatprep.subr.bf16.mxu0 0
    %2296 = vmatpush1.bf16.msra.mxu0 0
    %2297 = vmatprep.subr.bf16.mxu0 0
    %2298 = vmatpush1.bf16.msra.mxu0 0
    %2299 = vmatprep.subr.bf16.mxu0 0
    %2300 = vmatpush1.bf16.msra.mxu0 0
    %2301 = vmatprep.subr.bf16.mxu0 0
    %2302 = vmatpush1.bf16.msra.mxu0 0
    %2303 = vmatprep.mubr.bf16.mxu0 0
    %2304 = vmatmul.mubr.bf16.gmra.mrb[0].mxu0 %v2269
    %v2305 = vpop.f32.mrb[0].mxu0
    %v2306 = vadd.f32 0.0, %v2305
    %v2307 = vpop.f32.mrb[0].mxu0
    %v2308 = vpop.f32.mrb[0].mxu0
    %v2309 = vpop.f32.mrb[0].mxu0
    %2310 = vdwg.mxu0
    %v2312 = vrot.slane %v2306, 5
    %v2314 = vadd.f32 %v177, %v2312
    %v2315 = vmul.f32 %v43, %v2314
    %v2316 = vtanh.pop %v2315
    %v2317 = vmul.f32 %v43, %v2316
    %v2318 = vadd.f32 %v2317, %v44
    %v2320 = vrot.slane %v2256, 7
    %v2322 = vmul.f32 %v2318, %v2320
    %2324 = vrot.lane.b32.xlu0 %v2318, 64
    %v2325 = vpop.permute.xlu0 %2324
    %v2327 = vmul.f32 %v2318, %v2325
    %2329 = vrot.lane.b32.xlu0 %v2327, 32
    %v2330 = vpop.permute.xlu0 %2329
    %v2332 = vadd.f32 %v2322, %v2330
    %v2333 = vtanh.pop %v2332
    %2335 = vrot.lane.b32.xlu0 %v2333, 64
    %v2336 = vpop.permute.xlu0 %2335
    %v2338 = vmul.f32 %v2318, %v2336
    %v2339 = vpack.c.bf16 %v2338, %v2338
    %v2341 = vshrl.u32 %v2339, 16
    %v2343 = vrot.slane %v2341, 1
    %2344 = vrot.lane.b32.xlu0 %v2343, 32
    %v2345 = vpop.permute.xlu0 %2344
    %v2347 = vsel %vm212, %v2345, 0
    %2349 = vmatprep.subr.bf16.mxu0 0
    %2350 = vmatpush1.bf16.msra.mxu0 %v208
    %2351 = vmatprep.subr.bf16.mxu0 0
    %2352 = vmatpush1.bf16.msra.mxu0 %v209
    %2353 = vmatprep.subr.bf16.mxu0 0
    %2354 = vmatpush1.bf16.msra.mxu0 0
    %2355 = vmatprep.subr.bf16.mxu0 0
    %2356 = vmatpush1.bf16.msra.mxu0 0
    %2357 = vmatprep.subr.bf16.mxu0 0
    %2358 = vmatpush1.bf16.msra.mxu0 0
    %2359 = vmatprep.subr.bf16.mxu0 0
    %2360 = vmatpush1.bf16.msra.mxu0 0
    %2361 = vmatprep.subr.bf16.mxu0 0
    %2362 = vmatpush1.bf16.msra.mxu0 0
    %2363 = vmatprep.subr.bf16.mxu0 0
    %2364 = vmatpush1.bf16.msra.mxu0 0
    %2365 = vmatprep.subr.bf16.mxu0 0
    %2366 = vmatpush1.bf16.msra.mxu0 0
    %2367 = vmatprep.subr.bf16.mxu0 0
    %2368 = vmatpush1.bf16.msra.mxu0 0
    %2369 = vmatprep.subr.bf16.mxu0 0
    %2370 = vmatpush1.bf16.msra.mxu0 0
    %2371 = vmatprep.subr.bf16.mxu0 0
    %2372 = vmatpush1.bf16.msra.mxu0 0
    %2373 = vmatprep.subr.bf16.mxu0 0
    %2374 = vmatpush1.bf16.msra.mxu0 0
    %2375 = vmatprep.subr.bf16.mxu0 0
    %2376 = vmatpush1.bf16.msra.mxu0 0
    %2377 = vmatprep.subr.bf16.mxu0 0
    %2378 = vmatpush1.bf16.msra.mxu0 0
    %2379 = vmatprep.subr.bf16.mxu0 0
    %2380 = vmatpush1.bf16.msra.mxu0 0
    %2381 = vmatprep.mubr.bf16.mxu0 0
    %2382 = vmatmul.mubr.bf16.gmra.mrb[0].mxu0 %v2347
    %v2383 = vpop.f32.mrb[0].mxu0
    %v2384 = vadd.f32 0.0, %v2383
    %v2385 = vpop.f32.mrb[0].mxu0
    %v2386 = vpop.f32.mrb[0].mxu0
    %v2387 = vpop.f32.mrb[0].mxu0
    %2388 = vdwg.mxu0
    %v2390 = vrot.slane %v2384, 4
    %v2392 = vadd.f32 %v177, %v2390
    %v2393 = vmul.f32 %v43, %v2392
    %v2394 = vtanh.pop %v2393
    %v2395 = vmul.f32 %v43, %v2394
    %v2396 = vadd.f32 %v2395, %v44
    %v2398 = vrot.slane %v2332, 7
    %v2400 = vmul.f32 %v2396, %v2398
    %2402 = vrot.lane.b32.xlu0 %v2396, 64
    %v2403 = vpop.permute.xlu0 %2402
    %v2405 = vmul.f32 %v2396, %v2403
    %2407 = vrot.lane.b32.xlu0 %v2405, 32
    %v2408 = vpop.permute.xlu0 %2407
    %v2410 = vadd.f32 %v2400, %v2408
    %v2411 = vtanh.pop %v2410
    %2413 = vrot.lane.b32.xlu0 %v2411, 64
    %v2414 = vpop.permute.xlu0 %2413
    %v2416 = vmul.f32 %v2396, %v2414
    %v2417 = vpack.c.bf16 %v2416, %v2416
    %v2419 = vrot.slane %v2417, 2
    %2420 = vrot.lane.b32.xlu0 %v2419, 32
    %v2421 = vpop.permute.xlu0 %2420
    %v2423 = vsel %vm212, %v2421, 0
    %2425 = vmatprep.subr.bf16.mxu0 0
    %2426 = vmatpush1.bf16.msra.mxu0 %v208
    %2427 = vmatprep.subr.bf16.mxu0 0
    %2428 = vmatpush1.bf16.msra.mxu0 %v209
    %2429 = vmatprep.subr.bf16.mxu0 0
    %2430 = vmatpush1.bf16.msra.mxu0 0
    %2431 = vmatprep.subr.bf16.mxu0 0
    %2432 = vmatpush1.bf16.msra.mxu0 0
    %2433 = vmatprep.subr.bf16.mxu0 0
    %2434 = vmatpush1.bf16.msra.mxu0 0
    %2435 = vmatprep.subr.bf16.mxu0 0
    %2436 = vmatpush1.bf16.msra.mxu0 0
    %2437 = vmatprep.subr.bf16.mxu0 0
    %2438 = vmatpush1.bf16.msra.mxu0 0
    %2439 = vmatprep.subr.bf16.mxu0 0
    %2440 = vmatpush1.bf16.msra.mxu0 0
    %2441 = vmatprep.subr.bf16.mxu0 0
    %2442 = vmatpush1.bf16.msra.mxu0 0
    %2443 = vmatprep.subr.bf16.mxu0 0
    %2444 = vmatpush1.bf16.msra.mxu0 0
    %2445 = vmatprep.subr.bf16.mxu0 0
    %2446 = vmatpush1.bf16.msra.mxu0 0
    %2447 = vmatprep.subr.bf16.mxu0 0
    %2448 = vmatpush1.bf16.msra.mxu0 0
    %2449 = vmatprep.subr.bf16.mxu0 0
    %2450 = vmatpush1.bf16.msra.mxu0 0
    %2451 = vmatprep.subr.bf16.mxu0 0
    %2452 = vmatpush1.bf16.msra.mxu0 0
    %2453 = vmatprep.subr.bf16.mxu0 0
    %2454 = vmatpush1.bf16.msra.mxu0 0
    %2455 = vmatprep.subr.bf16.mxu0 0
    %2456 = vmatpush1.bf16.msra.mxu0 0
    %2457 = vmatprep.mubr.bf16.mxu0 0
    %2458 = vmatmul.mubr.bf16.gmra.mrb[0].mxu0 %v2423
    %v2459 = vpop.f32.mrb[0].mxu0
    %v2460 = vadd.f32 0.0, %v2459
    %v2461 = vpop.f32.mrb[0].mxu0
    %v2462 = vpop.f32.mrb[0].mxu0
    %v2463 = vpop.f32.mrb[0].mxu0
    %2464 = vdwg.mxu0
    %v2466 = vrot.slane %v2460, 3
    %v2468 = vadd.f32 %v177, %v2466
    %v2469 = vmul.f32 %v43, %v2468
    %v2470 = vtanh.pop %v2469
    %v2471 = vmul.f32 %v43, %v2470
    %v2472 = vadd.f32 %v2471, %v44
    %v2474 = vrot.slane %v2410, 7
    %v2476 = vmul.f32 %v2472, %v2474
    %2478 = vrot.lane.b32.xlu0 %v2472, 64
    %v2479 = vpop.permute.xlu0 %2478
    %v2481 = vmul.f32 %v2472, %v2479
    %2483 = vrot.lane.b32.xlu0 %v2481, 32
    %v2484 = vpop.permute.xlu0 %2483
    %v2486 = vadd.f32 %v2476, %v2484
    %v2487 = vtanh.pop %v2486
    %2489 = vrot.lane.b32.xlu0 %v2487, 64
    %v2490 = vpop.permute.xlu0 %2489
    %v2492 = vmul.f32 %v2472, %v2490
    %v2493 = vpack.c.bf16 %v2492, %v2492
    %v2495 = vshrl.u32 %v2493, 16
    %v2497 = vrot.slane %v2495, 2
    %2498 = vrot.lane.b32.xlu0 %v2497, 32
    %v2499 = vpop.permute.xlu0 %2498
    %v2501 = vsel %vm212, %v2499, 0
    %2503 = vmatprep.subr.bf16.mxu0 0
    %2504 = vmatpush1.bf16.msra.mxu0 %v208
    %2505 = vmatprep.subr.bf16.mxu0 0
    %2506 = vmatpush1.bf16.msra.mxu0 %v209
    %2507 = vmatprep.subr.bf16.mxu0 0
    %2508 = vmatpush1.bf16.msra.mxu0 0
    %2509 = vmatprep.subr.bf16.mxu0 0
    %2510 = vmatpush1.bf16.msra.mxu0 0
    %2511 = vmatprep.subr.bf16.mxu0 0
    %2512 = vmatpush1.bf16.msra.mxu0 0
    %2513 = vmatprep.subr.bf16.mxu0 0
    %2514 = vmatpush1.bf16.msra.mxu0 0
    %2515 = vmatprep.subr.bf16.mxu0 0
    %2516 = vmatpush1.bf16.msra.mxu0 0
    %2517 = vmatprep.subr.bf16.mxu0 0
    %2518 = vmatpush1.bf16.msra.mxu0 0
    %2519 = vmatprep.subr.bf16.mxu0 0
    %2520 = vmatpush1.bf16.msra.mxu0 0
    %2521 = vmatprep.subr.bf16.mxu0 0
    %2522 = vmatpush1.bf16.msra.mxu0 0
    %2523 = vmatprep.subr.bf16.mxu0 0
    %2524 = vmatpush1.bf16.msra.mxu0 0
    %2525 = vmatprep.subr.bf16.mxu0 0
    %2526 = vmatpush1.bf16.msra.mxu0 0
    %2527 = vmatprep.subr.bf16.mxu0 0
    %2528 = vmatpush1.bf16.msra.mxu0 0
    %2529 = vmatprep.subr.bf16.mxu0 0
    %2530 = vmatpush1.bf16.msra.mxu0 0
    %2531 = vmatprep.subr.bf16.mxu0 0
    %2532 = vmatpush1.bf16.msra.mxu0 0
    %2533 = vmatprep.subr.bf16.mxu0 0
    %2534 = vmatpush1.bf16.msra.mxu0 0
    %2535 = vmatprep.mubr.bf16.mxu0 0
    %2536 = vmatmul.mubr.bf16.gmra.mrb[0].mxu0 %v2501
    %v2537 = vpop.f32.mrb[0].mxu0
    %v2538 = vadd.f32 0.0, %v2537
    %v2539 = vpop.f32.mrb[0].mxu0
    %v2540 = vpop.f32.mrb[0].mxu0
    %v2541 = vpop.f32.mrb[0].mxu0
    %2542 = vdwg.mxu0
    %v2544 = vrot.slane %v2538, 2
    %v2546 = vadd.f32 %v177, %v2544
    %v2547 = vmul.f32 %v43, %v2546
    %v2548 = vtanh.pop %v2547
    %v2549 = vmul.f32 %v43, %v2548
    %v2550 = vadd.f32 %v2549, %v44
    %v2552 = vrot.slane %v2486, 7
    %v2554 = vmul.f32 %v2550, %v2552
    %2556 = vrot.lane.b32.xlu0 %v2550, 64
    %v2557 = vpop.permute.xlu0 %2556
    %v2559 = vmul.f32 %v2550, %v2557
    %2561 = vrot.lane.b32.xlu0 %v2559, 32
    %v2562 = vpop.permute.xlu0 %2561
    %v2564 = vadd.f32 %v2554, %v2562
    %v2565 = vtanh.pop %v2564
    %2567 = vrot.lane.b32.xlu0 %v2565, 64
    %v2568 = vpop.permute.xlu0 %2567
    %v2570 = vmul.f32 %v2550, %v2568
    %v2571 = vpack.c.bf16 %v2570, %v2570
    %v2573 = vrot.slane %v2571, 3
    %2574 = vrot.lane.b32.xlu0 %v2573, 32
    %v2575 = vpop.permute.xlu0 %2574
    %v2577 = vsel %vm212, %v2575, 0
    %2579 = vmatprep.subr.bf16.mxu0 0
    %2580 = vmatpush1.bf16.msra.mxu0 %v208
    %2581 = vmatprep.subr.bf16.mxu0 0
    %2582 = vmatpush1.bf16.msra.mxu0 %v209
    %2583 = vmatprep.subr.bf16.mxu0 0
    %2584 = vmatpush1.bf16.msra.mxu0 0
    %2585 = vmatprep.subr.bf16.mxu0 0
    %2586 = vmatpush1.bf16.msra.mxu0 0
    %2587 = vmatprep.subr.bf16.mxu0 0
    %2588 = vmatpush1.bf16.msra.mxu0 0
    %2589 = vmatprep.subr.bf16.mxu0 0
    %2590 = vmatpush1.bf16.msra.mxu0 0
    %2591 = vmatprep.subr.bf16.mxu0 0
    %2592 = vmatpush1.bf16.msra.mxu0 0
    %2593 = vmatprep.subr.bf16.mxu0 0
    %2594 = vmatpush1.bf16.msra.mxu0 0
    %2595 = vmatprep.subr.bf16.mxu0 0
    %2596 = vmatpush1.bf16.msra.mxu0 0
    %2597 = vmatprep.subr.bf16.mxu0 0
    %2598 = vmatpush1.bf16.msra.mxu0 0
    %2599 = vmatprep.subr.bf16.mxu0 0
    %2600 = vmatpush1.bf16.msra.mxu0 0
    %2601 = vmatprep.subr.bf16.mxu0 0
    %2602 = vmatpush1.bf16.msra.mxu0 0
    %2603 = vmatprep.subr.bf16.mxu0 0
    %2604 = vmatpush1.bf16.msra.mxu0 0
    %2605 = vmatprep.subr.bf16.mxu0 0
    %2606 = vmatpush1.bf16.msra.mxu0 0
    %2607 = vmatprep.subr.bf16.mxu0 0
    %2608 = vmatpush1.bf16.msra.mxu0 0
    %2609 = vmatprep.subr.bf16.mxu0 0
    %2610 = vmatpush1.bf16.msra.mxu0 0
    %2611 = vmatprep.mubr.bf16.mxu0 0
    %2612 = vmatmul.mubr.bf16.gmra.mrb[0].mxu0 %v2577
    %v2613 = vpop.f32.mrb[0].mxu0
    %v2614 = vadd.f32 0.0, %v2613
    %v2615 = vpop.f32.mrb[0].mxu0
    %v2616 = vpop.f32.mrb[0].mxu0
    %v2617 = vpop.f32.mrb[0].mxu0
    %2618 = vdwg.mxu0
    %v2620 = vrot.slane %v2614, 1
    %v2622 = vadd.f32 %v177, %v2620
    %v2623 = vmul.f32 %v43, %v2622
    %v2624 = vtanh.pop %v2623
    %v2625 = vmul.f32 %v43, %v2624
    %v2626 = vadd.f32 %v2625, %v44
    %v2628 = vrot.slane %v2564, 7
    %v2630 = vmul.f32 %v2626, %v2628
    %2632 = vrot.lane.b32.xlu0 %v2626, 64
    %v2633 = vpop.permute.xlu0 %2632
    %v2635 = vmul.f32 %v2626, %v2633
    %2637 = vrot.lane.b32.xlu0 %v2635, 32
    %v2638 = vpop.permute.xlu0 %2637
    %v2640 = vadd.f32 %v2630, %v2638
    %v2641 = vtanh.pop %v2640
    %2643 = vrot.lane.b32.xlu0 %v2641, 64
    %v2644 = vpop.permute.xlu0 %2643
    %v2646 = vmul.f32 %v2626, %v2644
    %v2647 = vpack.c.bf16 %v2646, %v2646
    %v2649 = vshrl.u32 %v2647, 16
    %v2651 = vrot.slane %v2649, 3
    %2652 = vrot.lane.b32.xlu0 %v2651, 32
    %v2653 = vpop.permute.xlu0 %2652
    %v2655 = vsel %vm212, %v2653, 0
    %2657 = vmatprep.subr.bf16.mxu0 0
    %2658 = vmatpush1.bf16.msra.mxu0 %v208
    %2659 = vmatprep.subr.bf16.mxu0 0
    %2660 = vmatpush1.bf16.msra.mxu0 %v209
    %2661 = vmatprep.subr.bf16.mxu0 0
    %2662 = vmatpush1.bf16.msra.mxu0 0
    %2663 = vmatprep.subr.bf16.mxu0 0
    %2664 = vmatpush1.bf16.msra.mxu0 0
    %2665 = vmatprep.subr.bf16.mxu0 0
    %2666 = vmatpush1.bf16.msra.mxu0 0
    %2667 = vmatprep.subr.bf16.mxu0 0
    %2668 = vmatpush1.bf16.msra.mxu0 0
    %2669 = vmatprep.subr.bf16.mxu0 0
    %2670 = vmatpush1.bf16.msra.mxu0 0
    %2671 = vmatprep.subr.bf16.mxu0 0
    %2672 = vmatpush1.bf16.msra.mxu0 0
    %2673 = vmatprep.subr.bf16.mxu0 0
    %2674 = vmatpush1.bf16.msra.mxu0 0
    %2675 = vmatprep.subr.bf16.mxu0 0
    %2676 = vmatpush1.bf16.msra.mxu0 0
    %2677 = vmatprep.subr.bf16.mxu0 0
    %2678 = vmatpush1.bf16.msra.mxu0 0
    %2679 = vmatprep.subr.bf16.mxu0 0
    %2680 = vmatpush1.bf16.msra.mxu0 0
    %2681 = vmatprep.subr.bf16.mxu0 0
    %2682 = vmatpush1.bf16.msra.mxu0 0
    %2683 = vmatprep.subr.bf16.mxu0 0
    %2684 = vmatpush1.bf16.msra.mxu0 0
    %2685 = vmatprep.subr.bf16.mxu0 0
    %2686 = vmatpush1.bf16.msra.mxu0 0
    %2687 = vmatprep.subr.bf16.mxu0 0
    %2688 = vmatpush1.bf16.msra.mxu0 0
    %2689 = vmatprep.mubr.bf16.mxu0 0
    %2690 = vmatmul.mubr.bf16.gmra.mrb[0].mxu0 %v2655
    %v2691 = vpop.f32.mrb[0].mxu0
    %v2692 = vadd.f32 0.0, %v2691
    %v2693 = vpop.f32.mrb[0].mxu0
    %v2694 = vpop.f32.mrb[0].mxu0
    %v2695 = vpop.f32.mrb[0].mxu0
    %2696 = vdwg.mxu0
    %v2697 = vadd.f32 %v182, %v2692
    %v2698 = vmul.f32 %v43, %v2697
    %v2699 = vtanh.pop %v2698
    %v2700 = vmul.f32 %v43, %v2699
    %v2701 = vadd.f32 %v2700, %v44
    %v2703 = vrot.slane %v2640, 7
    %v2705 = vmul.f32 %v2701, %v2703
    %2707 = vrot.lane.b32.xlu0 %v2701, 64
    %v2708 = vpop.permute.xlu0 %2707
    %v2710 = vmul.f32 %v2701, %v2708
    %2712 = vrot.lane.b32.xlu0 %v2710, 32
    %v2713 = vpop.permute.xlu0 %2712
    %v2715 = vadd.f32 %v2705, %v2713
    %v2716 = vtanh.pop %v2715
    %2718 = vrot.lane.b32.xlu0 %v2716, 64
    %v2719 = vpop.permute.xlu0 %2718
    %v2721 = vmul.f32 %v2701, %v2719
    %v2722 = vpack.c.bf16 %v2721, %v2721
    %2724 = vrot.lane.b32.xlu0 %v2722, 32
    %v2725 = vpop.permute.xlu0 %2724
    %v2727 = vsel %vm212, %v2725, 0
    %2729 = vmatprep.subr.bf16.mxu0 0
    %2730 = vmatpush1.bf16.msra.mxu0 %v208
    %2731 = vmatprep.subr.bf16.mxu0 0
    %2732 = vmatpush1.bf16.msra.mxu0 %v209
    %2733 = vmatprep.subr.bf16.mxu0 0
    %2734 = vmatpush1.bf16.msra.mxu0 0
    %2735 = vmatprep.subr.bf16.mxu0 0
    %2736 = vmatpush1.bf16.msra.mxu0 0
    %2737 = vmatprep.subr.bf16.mxu0 0
    %2738 = vmatpush1.bf16.msra.mxu0 0
    %2739 = vmatprep.subr.bf16.mxu0 0
    %2740 = vmatpush1.bf16.msra.mxu0 0
    %2741 = vmatprep.subr.bf16.mxu0 0
    %2742 = vmatpush1.bf16.msra.mxu0 0
    %2743 = vmatprep.subr.bf16.mxu0 0
    %2744 = vmatpush1.bf16.msra.mxu0 0
    %2745 = vmatprep.subr.bf16.mxu0 0
    %2746 = vmatpush1.bf16.msra.mxu0 0
    %2747 = vmatprep.subr.bf16.mxu0 0
    %2748 = vmatpush1.bf16.msra.mxu0 0
    %2749 = vmatprep.subr.bf16.mxu0 0
    %2750 = vmatpush1.bf16.msra.mxu0 0
    %2751 = vmatprep.subr.bf16.mxu0 0
    %2752 = vmatpush1.bf16.msra.mxu0 0
    %2753 = vmatprep.subr.bf16.mxu0 0
    %2754 = vmatpush1.bf16.msra.mxu0 0
    %2755 = vmatprep.subr.bf16.mxu0 0
    %2756 = vmatpush1.bf16.msra.mxu0 0
    %2757 = vmatprep.subr.bf16.mxu0 0
    %2758 = vmatpush1.bf16.msra.mxu0 0
    %2759 = vmatprep.subr.bf16.mxu0 0
    %2760 = vmatpush1.bf16.msra.mxu0 0
    %2761 = vmatprep.mubr.bf16.mxu0 0
    %2762 = vmatmul.mubr.bf16.gmra.mrb[0].mxu0 %v2727
    %v2763 = vpop.f32.mrb[0].mxu0
    %v2764 = vadd.f32 0.0, %v2763
    %v2765 = vpop.f32.mrb[0].mxu0
    %v2766 = vpop.f32.mrb[0].mxu0
    %v2767 = vpop.f32.mrb[0].mxu0
    %2768 = vdwg.mxu0
    %v2770 = vrot.slane %v2764, 7
    %v2772 = vadd.f32 %v182, %v2770
    %v2773 = vmul.f32 %v43, %v2772
    %v2774 = vtanh.pop %v2773
    %v2775 = vmul.f32 %v43, %v2774
    %v2776 = vadd.f32 %v2775, %v44
    %v2778 = vrot.slane %v2715, 7
    %v2780 = vmul.f32 %v2776, %v2778
    %2782 = vrot.lane.b32.xlu0 %v2776, 64
    %v2783 = vpop.permute.xlu0 %2782
    %v2785 = vmul.f32 %v2776, %v2783
    %2787 = vrot.lane.b32.xlu0 %v2785, 32
    %v2788 = vpop.permute.xlu0 %2787
    %v2790 = vadd.f32 %v2780, %v2788
    %v2791 = vtanh.pop %v2790
    %2793 = vrot.lane.b32.xlu0 %v2791, 64
    %v2794 = vpop.permute.xlu0 %2793
    %v2796 = vmul.f32 %v2776, %v2794
    %v2797 = vpack.c.bf16 %v2796, %v2796
    %v2799 = vshrl.u32 %v2797, 16
    %2801 = vrot.lane.b32.xlu0 %v2799, 32
    %v2802 = vpop.permute.xlu0 %2801
    %v2804 = vsel %vm212, %v2802, 0
    %2806 = vmatprep.subr.bf16.mxu0 0
    %2807 = vmatpush1.bf16.msra.mxu0 %v208
    %2808 = vmatprep.subr.bf16.mxu0 0
    %2809 = vmatpush1.bf16.msra.mxu0 %v209
    %2810 = vmatprep.subr.bf16.mxu0 0
    %2811 = vmatpush1.bf16.msra.mxu0 0
    %2812 = vmatprep.subr.bf16.mxu0 0
    %2813 = vmatpush1.bf16.msra.mxu0 0
    %2814 = vmatprep.subr.bf16.mxu0 0
    %2815 = vmatpush1.bf16.msra.mxu0 0
    %2816 = vmatprep.subr.bf16.mxu0 0
    %2817 = vmatpush1.bf16.msra.mxu0 0
    %2818 = vmatprep.subr.bf16.mxu0 0
    %2819 = vmatpush1.bf16.msra.mxu0 0
    %2820 = vmatprep.subr.bf16.mxu0 0
    %2821 = vmatpush1.bf16.msra.mxu0 0
    %2822 = vmatprep.subr.bf16.mxu0 0
    %2823 = vmatpush1.bf16.msra.mxu0 0
    %2824 = vmatprep.subr.bf16.mxu0 0
    %2825 = vmatpush1.bf16.msra.mxu0 0
    %2826 = vmatprep.subr.bf16.mxu0 0
    %2827 = vmatpush1.bf16.msra.mxu0 0
    %2828 = vmatprep.subr.bf16.mxu0 0
    %2829 = vmatpush1.bf16.msra.mxu0 0
    %2830 = vmatprep.subr.bf16.mxu0 0
    %2831 = vmatpush1.bf16.msra.mxu0 0
    %2832 = vmatprep.subr.bf16.mxu0 0
    %2833 = vmatpush1.bf16.msra.mxu0 0
    %2834 = vmatprep.subr.bf16.mxu0 0
    %2835 = vmatpush1.bf16.msra.mxu0 0
    %2836 = vmatprep.subr.bf16.mxu0 0
    %2837 = vmatpush1.bf16.msra.mxu0 0
    %2838 = vmatprep.mubr.bf16.mxu0 0
    %2839 = vmatmul.mubr.bf16.gmra.mrb[0].mxu0 %v2804
    %v2840 = vpop.f32.mrb[0].mxu0
    %v2841 = vadd.f32 0.0, %v2840
    %v2842 = vpop.f32.mrb[0].mxu0
    %v2843 = vpop.f32.mrb[0].mxu0
    %v2844 = vpop.f32.mrb[0].mxu0
    %2845 = vdwg.mxu0
    %v2847 = vrot.slane %v2841, 6
    %v2849 = vadd.f32 %v182, %v2847
    %v2850 = vmul.f32 %v43, %v2849
    %v2851 = vtanh.pop %v2850
    %v2852 = vmul.f32 %v43, %v2851
    %v2853 = vadd.f32 %v2852, %v44
    %v2855 = vrot.slane %v2790, 7
    %v2857 = vmul.f32 %v2853, %v2855
    %2859 = vrot.lane.b32.xlu0 %v2853, 64
    %v2860 = vpop.permute.xlu0 %2859
    %v2862 = vmul.f32 %v2853, %v2860
    %2864 = vrot.lane.b32.xlu0 %v2862, 32
    %v2865 = vpop.permute.xlu0 %2864
    %v2867 = vadd.f32 %v2857, %v2865
    %v2868 = vtanh.pop %v2867
    %2870 = vrot.lane.b32.xlu0 %v2868, 64
    %v2871 = vpop.permute.xlu0 %2870
    %v2873 = vmul.f32 %v2853, %v2871
    %v2874 = vpack.c.bf16 %v2873, %v2873
    %v2876 = vrot.slane %v2874, 1
    %2877 = vrot.lane.b32.xlu0 %v2876, 32
    %v2878 = vpop.permute.xlu0 %2877
    %v2880 = vsel %vm212, %v2878, 0
    %2882 = vmatprep.subr.bf16.mxu0 0
    %2883 = vmatpush1.bf16.msra.mxu0 %v208
    %2884 = vmatprep.subr.bf16.mxu0 0
    %2885 = vmatpush1.bf16.msra.mxu0 %v209
    %2886 = vmatprep.subr.bf16.mxu0 0
    %2887 = vmatpush1.bf16.msra.mxu0 0
    %2888 = vmatprep.subr.bf16.mxu0 0
    %2889 = vmatpush1.bf16.msra.mxu0 0
    %2890 = vmatprep.subr.bf16.mxu0 0
    %2891 = vmatpush1.bf16.msra.mxu0 0
    %2892 = vmatprep.subr.bf16.mxu0 0
    %2893 = vmatpush1.bf16.msra.mxu0 0
    %2894 = vmatprep.subr.bf16.mxu0 0
    %2895 = vmatpush1.bf16.msra.mxu0 0
    %2896 = vmatprep.subr.bf16.mxu0 0
    %2897 = vmatpush1.bf16.msra.mxu0 0
    %2898 = vmatprep.subr.bf16.mxu0 0
    %2899 = vmatpush1.bf16.msra.mxu0 0
    %2900 = vmatprep.subr.bf16.mxu0 0
    %2901 = vmatpush1.bf16.msra.mxu0 0
    %2902 = vmatprep.subr.bf16.mxu0 0
    %2903 = vmatpush1.bf16.msra.mxu0 0
    %2904 = vmatprep.subr.bf16.mxu0 0
    %2905 = vmatpush1.bf16.msra.mxu0 0
    %2906 = vmatprep.subr.bf16.mxu0 0
    %2907 = vmatpush1.bf16.msra.mxu0 0
    %2908 = vmatprep.subr.bf16.mxu0 0
    %2909 = vmatpush1.bf16.msra.mxu0 0
    %2910 = vmatprep.subr.bf16.mxu0 0
    %2911 = vmatpush1.bf16.msra.mxu0 0
    %2912 = vmatprep.subr.bf16.mxu0 0
    %2913 = vmatpush1.bf16.msra.mxu0 0
    %2914 = vmatprep.mubr.bf16.mxu0 0
    %2915 = vmatmul.mubr.bf16.gmra.mrb[0].mxu0 %v2880
    %v2916 = vpop.f32.mrb[0].mxu0
    %v2917 = vadd.f32 0.0, %v2916
    %v2918 = vpop.f32.mrb[0].mxu0
    %v2919 = vpop.f32.mrb[0].mxu0
    %v2920 = vpop.f32.mrb[0].mxu0
    %2921 = vdwg.mxu0
    %v2923 = vrot.slane %v2917, 5
    %v2925 = vadd.f32 %v182, %v2923
    %v2926 = vmul.f32 %v43, %v2925
    %v2927 = vtanh.pop %v2926
    %v2928 = vmul.f32 %v43, %v2927
    %v2929 = vadd.f32 %v2928, %v44
    %v2931 = vrot.slane %v2867, 7
    %v2933 = vmul.f32 %v2929, %v2931
    %2935 = vrot.lane.b32.xlu0 %v2929, 64
    %v2936 = vpop.permute.xlu0 %2935
    %v2938 = vmul.f32 %v2929, %v2936
    %2940 = vrot.lane.b32.xlu0 %v2938, 32
    %v2941 = vpop.permute.xlu0 %2940
    %v2943 = vadd.f32 %v2933, %v2941
    %v2944 = vtanh.pop %v2943
    %2946 = vrot.lane.b32.xlu0 %v2944, 64
    %v2947 = vpop.permute.xlu0 %2946
    %v2949 = vmul.f32 %v2929, %v2947
    %v2950 = vpack.c.bf16 %v2949, %v2949
    %v2952 = vshrl.u32 %v2950, 16
    %v2954 = vrot.slane %v2952, 1
    %2955 = vrot.lane.b32.xlu0 %v2954, 32
    %v2956 = vpop.permute.xlu0 %2955
    %v2958 = vsel %vm212, %v2956, 0
    %2960 = vmatprep.subr.bf16.mxu0 0
    %2961 = vmatpush1.bf16.msra.mxu0 %v208
    %2962 = vmatprep.subr.bf16.mxu0 0
    %2963 = vmatpush1.bf16.msra.mxu0 %v209
    %2964 = vmatprep.subr.bf16.mxu0 0
    %2965 = vmatpush1.bf16.msra.mxu0 0
    %2966 = vmatprep.subr.bf16.mxu0 0
    %2967 = vmatpush1.bf16.msra.mxu0 0
    %2968 = vmatprep.subr.bf16.mxu0 0
    %2969 = vmatpush1.bf16.msra.mxu0 0
    %2970 = vmatprep.subr.bf16.mxu0 0
    %2971 = vmatpush1.bf16.msra.mxu0 0
    %2972 = vmatprep.subr.bf16.mxu0 0
    %2973 = vmatpush1.bf16.msra.mxu0 0
    %2974 = vmatprep.subr.bf16.mxu0 0
    %2975 = vmatpush1.bf16.msra.mxu0 0
    %2976 = vmatprep.subr.bf16.mxu0 0
    %2977 = vmatpush1.bf16.msra.mxu0 0
    %2978 = vmatprep.subr.bf16.mxu0 0
    %2979 = vmatpush1.bf16.msra.mxu0 0
    %2980 = vmatprep.subr.bf16.mxu0 0
    %2981 = vmatpush1.bf16.msra.mxu0 0
    %2982 = vmatprep.subr.bf16.mxu0 0
    %2983 = vmatpush1.bf16.msra.mxu0 0
    %2984 = vmatprep.subr.bf16.mxu0 0
    %2985 = vmatpush1.bf16.msra.mxu0 0
    %2986 = vmatprep.subr.bf16.mxu0 0
    %2987 = vmatpush1.bf16.msra.mxu0 0
    %2988 = vmatprep.subr.bf16.mxu0 0
    %2989 = vmatpush1.bf16.msra.mxu0 0
    %2990 = vmatprep.subr.bf16.mxu0 0
    %2991 = vmatpush1.bf16.msra.mxu0 0
    %2992 = vmatprep.mubr.bf16.mxu0 0
    %2993 = vmatmul.mubr.bf16.gmra.mrb[0].mxu0 %v2958
    %v2994 = vpop.f32.mrb[0].mxu0
    %v2995 = vadd.f32 0.0, %v2994
    %v2996 = vpop.f32.mrb[0].mxu0
    %v2997 = vpop.f32.mrb[0].mxu0
    %v2998 = vpop.f32.mrb[0].mxu0
    %2999 = vdwg.mxu0
    %v3001 = vrot.slane %v2995, 4
    %v3003 = vadd.f32 %v182, %v3001
    %v3004 = vmul.f32 %v43, %v3003
    %v3005 = vtanh.pop %v3004
    %v3006 = vmul.f32 %v43, %v3005
    %v3007 = vadd.f32 %v3006, %v44
    %v3009 = vrot.slane %v2943, 7
    %v3011 = vmul.f32 %v3007, %v3009
    %3013 = vrot.lane.b32.xlu0 %v3007, 64
    %v3014 = vpop.permute.xlu0 %3013
    %v3016 = vmul.f32 %v3007, %v3014
    %3018 = vrot.lane.b32.xlu0 %v3016, 32
    %v3019 = vpop.permute.xlu0 %3018
    %v3021 = vadd.f32 %v3011, %v3019
    %v3022 = vtanh.pop %v3021
    %3024 = vrot.lane.b32.xlu0 %v3022, 64
    %v3025 = vpop.permute.xlu0 %3024
    %v3027 = vmul.f32 %v3007, %v3025
    %v3028 = vpack.c.bf16 %v3027, %v3027
    %v3030 = vrot.slane %v3028, 2
    %3031 = vrot.lane.b32.xlu0 %v3030, 32
    %v3032 = vpop.permute.xlu0 %3031
    %v3034 = vsel %vm212, %v3032, 0
    %3036 = vmatprep.subr.bf16.mxu0 0
    %3037 = vmatpush1.bf16.msra.mxu0 %v208
    %3038 = vmatprep.subr.bf16.mxu0 0
    %3039 = vmatpush1.bf16.msra.mxu0 %v209
    %3040 = vmatprep.subr.bf16.mxu0 0
    %3041 = vmatpush1.bf16.msra.mxu0 0
    %3042 = vmatprep.subr.bf16.mxu0 0
    %3043 = vmatpush1.bf16.msra.mxu0 0
    %3044 = vmatprep.subr.bf16.mxu0 0
    %3045 = vmatpush1.bf16.msra.mxu0 0
    %3046 = vmatprep.subr.bf16.mxu0 0
    %3047 = vmatpush1.bf16.msra.mxu0 0
    %3048 = vmatprep.subr.bf16.mxu0 0
    %3049 = vmatpush1.bf16.msra.mxu0 0
    %3050 = vmatprep.subr.bf16.mxu0 0
    %3051 = vmatpush1.bf16.msra.mxu0 0
    %3052 = vmatprep.subr.bf16.mxu0 0
    %3053 = vmatpush1.bf16.msra.mxu0 0
    %3054 = vmatprep.subr.bf16.mxu0 0
    %3055 = vmatpush1.bf16.msra.mxu0 0
    %3056 = vmatprep.subr.bf16.mxu0 0
    %3057 = vmatpush1.bf16.msra.mxu0 0
    %3058 = vmatprep.subr.bf16.mxu0 0
    %3059 = vmatpush1.bf16.msra.mxu0 0
    %3060 = vmatprep.subr.bf16.mxu0 0
    %3061 = vmatpush1.bf16.msra.mxu0 0
    %3062 = vmatprep.subr.bf16.mxu0 0
    %3063 = vmatpush1.bf16.msra.mxu0 0
    %3064 = vmatprep.subr.bf16.mxu0 0
    %3065 = vmatpush1.bf16.msra.mxu0 0
    %3066 = vmatprep.subr.bf16.mxu0 0
    %3067 = vmatpush1.bf16.msra.mxu0 0
    %3068 = vmatprep.mubr.bf16.mxu0 0
    %3069 = vmatmul.mubr.bf16.gmra.mrb[0].mxu0 %v3034
    %v3070 = vpop.f32.mrb[0].mxu0
    %v3071 = vadd.f32 0.0, %v3070
    %v3072 = vpop.f32.mrb[0].mxu0
    %v3073 = vpop.f32.mrb[0].mxu0
    %v3074 = vpop.f32.mrb[0].mxu0
    %3075 = vdwg.mxu0
    %v3077 = vrot.slane %v3071, 3
    %v3079 = vadd.f32 %v182, %v3077
    %v3080 = vmul.f32 %v43, %v3079
    %v3081 = vtanh.pop %v3080
    %v3082 = vmul.f32 %v43, %v3081
    %v3083 = vadd.f32 %v3082, %v44
    %v3085 = vrot.slane %v3021, 7
    %v3087 = vmul.f32 %v3083, %v3085
    %3089 = vrot.lane.b32.xlu0 %v3083, 64
    %v3090 = vpop.permute.xlu0 %3089
    %v3092 = vmul.f32 %v3083, %v3090
    %3094 = vrot.lane.b32.xlu0 %v3092, 32
    %v3095 = vpop.permute.xlu0 %3094
    %v3097 = vadd.f32 %v3087, %v3095
    %v3098 = vtanh.pop %v3097
    %3100 = vrot.lane.b32.xlu0 %v3098, 64
    %v3101 = vpop.permute.xlu0 %3100
    %v3103 = vmul.f32 %v3083, %v3101
    %v3104 = vpack.c.bf16 %v3103, %v3103
    %v3106 = vshrl.u32 %v3104, 16
    %v3108 = vrot.slane %v3106, 2
    %3109 = vrot.lane.b32.xlu0 %v3108, 32
    %v3110 = vpop.permute.xlu0 %3109
    %v3112 = vsel %vm212, %v3110, 0
    %3114 = vmatprep.subr.bf16.mxu0 0
    %3115 = vmatpush1.bf16.msra.mxu0 %v208
    %3116 = vmatprep.subr.bf16.mxu0 0
    %3117 = vmatpush1.bf16.msra.mxu0 %v209
    %3118 = vmatprep.subr.bf16.mxu0 0
    %3119 = vmatpush1.bf16.msra.mxu0 0
    %3120 = vmatprep.subr.bf16.mxu0 0
    %3121 = vmatpush1.bf16.msra.mxu0 0
    %3122 = vmatprep.subr.bf16.mxu0 0
    %3123 = vmatpush1.bf16.msra.mxu0 0
    %3124 = vmatprep.subr.bf16.mxu0 0
    %3125 = vmatpush1.bf16.msra.mxu0 0
    %3126 = vmatprep.subr.bf16.mxu0 0
    %3127 = vmatpush1.bf16.msra.mxu0 0
    %3128 = vmatprep.subr.bf16.mxu0 0
    %3129 = vmatpush1.bf16.msra.mxu0 0
    %3130 = vmatprep.subr.bf16.mxu0 0
    %3131 = vmatpush1.bf16.msra.mxu0 0
    %3132 = vmatprep.subr.bf16.mxu0 0
    %3133 = vmatpush1.bf16.msra.mxu0 0
    %3134 = vmatprep.subr.bf16.mxu0 0
    %3135 = vmatpush1.bf16.msra.mxu0 0
    %3136 = vmatprep.subr.bf16.mxu0 0
    %3137 = vmatpush1.bf16.msra.mxu0 0
    %3138 = vmatprep.subr.bf16.mxu0 0
    %3139 = vmatpush1.bf16.msra.mxu0 0
    %3140 = vmatprep.subr.bf16.mxu0 0
    %3141 = vmatpush1.bf16.msra.mxu0 0
    %3142 = vmatprep.subr.bf16.mxu0 0
    %3143 = vmatpush1.bf16.msra.mxu0 0
    %3144 = vmatprep.subr.bf16.mxu0 0
    %3145 = vmatpush1.bf16.msra.mxu0 0
    %3146 = vmatprep.mubr.bf16.mxu0 0
    %3147 = vmatmul.mubr.bf16.gmra.mrb[0].mxu0 %v3112
    %v3148 = vpop.f32.mrb[0].mxu0
    %v3149 = vadd.f32 0.0, %v3148
    %v3150 = vpop.f32.mrb[0].mxu0
    %v3151 = vpop.f32.mrb[0].mxu0
    %v3152 = vpop.f32.mrb[0].mxu0
    %3153 = vdwg.mxu0
    %v3155 = vrot.slane %v3149, 2
    %v3157 = vadd.f32 %v182, %v3155
    %v3158 = vmul.f32 %v43, %v3157
    %v3159 = vtanh.pop %v3158
    %v3160 = vmul.f32 %v43, %v3159
    %v3161 = vadd.f32 %v3160, %v44
    %v3163 = vrot.slane %v3097, 7
    %v3165 = vmul.f32 %v3161, %v3163
    %3167 = vrot.lane.b32.xlu0 %v3161, 64
    %v3168 = vpop.permute.xlu0 %3167
    %v3170 = vmul.f32 %v3161, %v3168
    %3172 = vrot.lane.b32.xlu0 %v3170, 32
    %v3173 = vpop.permute.xlu0 %3172
    %v3175 = vadd.f32 %v3165, %v3173
    %v3176 = vtanh.pop %v3175
    %3178 = vrot.lane.b32.xlu0 %v3176, 64
    %v3179 = vpop.permute.xlu0 %3178
    %v3181 = vmul.f32 %v3161, %v3179
    %v3182 = vpack.c.bf16 %v3181, %v3181
    %v3184 = vrot.slane %v3182, 3
    %3185 = vrot.lane.b32.xlu0 %v3184, 32
    %v3186 = vpop.permute.xlu0 %3185
    %v3188 = vsel %vm212, %v3186, 0
    %3190 = vmatprep.subr.bf16.mxu0 0
    %3191 = vmatpush1.bf16.msra.mxu0 %v208
    %3192 = vmatprep.subr.bf16.mxu0 0
    %3193 = vmatpush1.bf16.msra.mxu0 %v209
    %3194 = vmatprep.subr.bf16.mxu0 0
    %3195 = vmatpush1.bf16.msra.mxu0 0
    %3196 = vmatprep.subr.bf16.mxu0 0
    %3197 = vmatpush1.bf16.msra.mxu0 0
    %3198 = vmatprep.subr.bf16.mxu0 0
    %3199 = vmatpush1.bf16.msra.mxu0 0
    %3200 = vmatprep.subr.bf16.mxu0 0
    %3201 = vmatpush1.bf16.msra.mxu0 0
    %3202 = vmatprep.subr.bf16.mxu0 0
    %3203 = vmatpush1.bf16.msra.mxu0 0
    %3204 = vmatprep.subr.bf16.mxu0 0
    %3205 = vmatpush1.bf16.msra.mxu0 0
    %3206 = vmatprep.subr.bf16.mxu0 0
    %3207 = vmatpush1.bf16.msra.mxu0 0
    %3208 = vmatprep.subr.bf16.mxu0 0
    %3209 = vmatpush1.bf16.msra.mxu0 0
    %3210 = vmatprep.subr.bf16.mxu0 0
    %3211 = vmatpush1.bf16.msra.mxu0 0
    %3212 = vmatprep.subr.bf16.mxu0 0
    %3213 = vmatpush1.bf16.msra.mxu0 0
    %3214 = vmatprep.subr.bf16.mxu0 0
    %3215 = vmatpush1.bf16.msra.mxu0 0
    %3216 = vmatprep.subr.bf16.mxu0 0
    %3217 = vmatpush1.bf16.msra.mxu0 0
    %3218 = vmatprep.subr.bf16.mxu0 0
    %3219 = vmatpush1.bf16.msra.mxu0 0
    %3220 = vmatprep.subr.bf16.mxu0 0
    %3221 = vmatpush1.bf16.msra.mxu0 0
    %3222 = vmatprep.mubr.bf16.mxu0 0
    %3223 = vmatmul.mubr.bf16.gmra.mrb[0].mxu0 %v3188
    %v3224 = vpop.f32.mrb[0].mxu0
    %v3225 = vadd.f32 0.0, %v3224
    %v3226 = vpop.f32.mrb[0].mxu0
    %v3227 = vpop.f32.mrb[0].mxu0
    %v3228 = vpop.f32.mrb[0].mxu0
    %3229 = vdwg.mxu0
    %v3231 = vrot.slane %v3225, 1
    %v3233 = vadd.f32 %v182, %v3231
    %v3234 = vmul.f32 %v43, %v3233
    %v3235 = vtanh.pop %v3234
    %v3236 = vmul.f32 %v43, %v3235
    %v3237 = vadd.f32 %v3236, %v44
    %v3239 = vrot.slane %v3175, 7
    %v3241 = vmul.f32 %v3237, %v3239
    %3243 = vrot.lane.b32.xlu0 %v3237, 64
    %v3244 = vpop.permute.xlu0 %3243
    %v3246 = vmul.f32 %v3237, %v3244
    %3248 = vrot.lane.b32.xlu0 %v3246, 32
    %v3249 = vpop.permute.xlu0 %3248
    %v3251 = vadd.f32 %v3241, %v3249
    %v3252 = vtanh.pop %v3251
    %3254 = vrot.lane.b32.xlu0 %v3252, 64
    %v3255 = vpop.permute.xlu0 %3254
    %v3257 = vmul.f32 %v3237, %v3255
    %v3258 = vpack.c.bf16 %v3257, %v3257
    %v3260 = vshrl.u32 %v3258, 16
    %v3262 = vrot.slane %v3260, 3
    %3263 = vrot.lane.b32.xlu0 %v3262, 32
    %v3264 = vpop.permute.xlu0 %3263
    %v3266 = vsel %vm212, %v3264, 0
    %3268 = vmatprep.subr.bf16.mxu0 0
    %3269 = vmatpush1.bf16.msra.mxu0 %v208
    %3270 = vmatprep.subr.bf16.mxu0 0
    %3271 = vmatpush1.bf16.msra.mxu0 %v209
    %3272 = vmatprep.subr.bf16.mxu0 0
    %3273 = vmatpush1.bf16.msra.mxu0 0
    %3274 = vmatprep.subr.bf16.mxu0 0
    %3275 = vmatpush1.bf16.msra.mxu0 0
    %3276 = vmatprep.subr.bf16.mxu0 0
    %3277 = vmatpush1.bf16.msra.mxu0 0
    %3278 = vmatprep.subr.bf16.mxu0 0
    %3279 = vmatpush1.bf16.msra.mxu0 0
    %3280 = vmatprep.subr.bf16.mxu0 0
    %3281 = vmatpush1.bf16.msra.mxu0 0
    %3282 = vmatprep.subr.bf16.mxu0 0
    %3283 = vmatpush1.bf16.msra.mxu0 0
    %3284 = vmatprep.subr.bf16.mxu0 0
    %3285 = vmatpush1.bf16.msra.mxu0 0
    %3286 = vmatprep.subr.bf16.mxu0 0
    %3287 = vmatpush1.bf16.msra.mxu0 0
    %3288 = vmatprep.subr.bf16.mxu0 0
    %3289 = vmatpush1.bf16.msra.mxu0 0
    %3290 = vmatprep.subr.bf16.mxu0 0
    %3291 = vmatpush1.bf16.msra.mxu0 0
    %3292 = vmatprep.subr.bf16.mxu0 0
    %3293 = vmatpush1.bf16.msra.mxu0 0
    %3294 = vmatprep.subr.bf16.mxu0 0
    %3295 = vmatpush1.bf16.msra.mxu0 0
    %3296 = vmatprep.subr.bf16.mxu0 0
    %3297 = vmatpush1.bf16.msra.mxu0 0
    %3298 = vmatprep.subr.bf16.mxu0 0
    %3299 = vmatpush1.bf16.msra.mxu0 0
    %3300 = vmatprep.mubr.bf16.mxu0 0
    %3301 = vmatmul.mubr.bf16.gmra.mrb[0].mxu0 %v3266
    %v3302 = vpop.f32.mrb[0].mxu0
    %v3303 = vadd.f32 0.0, %v3302
    %v3304 = vpop.f32.mrb[0].mxu0
    %v3305 = vpop.f32.mrb[0].mxu0
    %v3306 = vpop.f32.mrb[0].mxu0
    %3307 = vdwg.mxu0
    %v3308 = vadd.f32 %v187, %v3303
    %v3309 = vmul.f32 %v43, %v3308
    %v3310 = vtanh.pop %v3309
    %v3311 = vmul.f32 %v43, %v3310
    %v3312 = vadd.f32 %v3311, %v44
    %v3314 = vrot.slane %v3251, 7
    %v3316 = vmul.f32 %v3312, %v3314
    %3318 = vrot.lane.b32.xlu0 %v3312, 64
    %v3319 = vpop.permute.xlu0 %3318
    %v3321 = vmul.f32 %v3312, %v3319
    %3323 = vrot.lane.b32.xlu0 %v3321, 32
    %v3324 = vpop.permute.xlu0 %3323
    %v3326 = vadd.f32 %v3316, %v3324
    %v3327 = vtanh.pop %v3326
    %3329 = vrot.lane.b32.xlu0 %v3327, 64
    %v3330 = vpop.permute.xlu0 %3329
    %v3332 = vmul.f32 %v3312, %v3330
    %v3333 = vpack.c.bf16 %v3332, %v3332
    %3335 = vrot.lane.b32.xlu0 %v3333, 32
    %v3336 = vpop.permute.xlu0 %3335
    %v3338 = vsel %vm212, %v3336, 0
    %3340 = vmatprep.subr.bf16.mxu0 0
    %3341 = vmatpush1.bf16.msra.mxu0 %v208
    %3342 = vmatprep.subr.bf16.mxu0 0
    %3343 = vmatpush1.bf16.msra.mxu0 %v209
    %3344 = vmatprep.subr.bf16.mxu0 0
    %3345 = vmatpush1.bf16.msra.mxu0 0
    %3346 = vmatprep.subr.bf16.mxu0 0
    %3347 = vmatpush1.bf16.msra.mxu0 0
    %3348 = vmatprep.subr.bf16.mxu0 0
    %3349 = vmatpush1.bf16.msra.mxu0 0
    %3350 = vmatprep.subr.bf16.mxu0 0
    %3351 = vmatpush1.bf16.msra.mxu0 0
    %3352 = vmatprep.subr.bf16.mxu0 0
    %3353 = vmatpush1.bf16.msra.mxu0 0
    %3354 = vmatprep.subr.bf16.mxu0 0
    %3355 = vmatpush1.bf16.msra.mxu0 0
    %3356 = vmatprep.subr.bf16.mxu0 0
    %3357 = vmatpush1.bf16.msra.mxu0 0
    %3358 = vmatprep.subr.bf16.mxu0 0
    %3359 = vmatpush1.bf16.msra.mxu0 0
    %3360 = vmatprep.subr.bf16.mxu0 0
    %3361 = vmatpush1.bf16.msra.mxu0 0
    %3362 = vmatprep.subr.bf16.mxu0 0
    %3363 = vmatpush1.bf16.msra.mxu0 0
    %3364 = vmatprep.subr.bf16.mxu0 0
    %3365 = vmatpush1.bf16.msra.mxu0 0
    %3366 = vmatprep.subr.bf16.mxu0 0
    %3367 = vmatpush1.bf16.msra.mxu0 0
    %3368 = vmatprep.subr.bf16.mxu0 0
    %3369 = vmatpush1.bf16.msra.mxu0 0
    %3370 = vmatprep.subr.bf16.mxu0 0
    %3371 = vmatpush1.bf16.msra.mxu0 0
    %3372 = vmatprep.mubr.bf16.mxu0 0
    %3373 = vmatmul.mubr.bf16.gmra.mrb[0].mxu0 %v3338
    %v3374 = vpop.f32.mrb[0].mxu0
    %v3375 = vadd.f32 0.0, %v3374
    %v3376 = vpop.f32.mrb[0].mxu0
    %v3377 = vpop.f32.mrb[0].mxu0
    %v3378 = vpop.f32.mrb[0].mxu0
    %3379 = vdwg.mxu0
    %v3381 = vrot.slane %v3375, 7
    %v3383 = vadd.f32 %v187, %v3381
    %v3384 = vmul.f32 %v43, %v3383
    %v3385 = vtanh.pop %v3384
    %v3386 = vmul.f32 %v43, %v3385
    %v3387 = vadd.f32 %v3386, %v44
    %v3389 = vrot.slane %v3326, 7
    %v3391 = vmul.f32 %v3387, %v3389
    %3393 = vrot.lane.b32.xlu0 %v3387, 64
    %v3394 = vpop.permute.xlu0 %3393
    %v3396 = vmul.f32 %v3387, %v3394
    %3398 = vrot.lane.b32.xlu0 %v3396, 32
    %v3399 = vpop.permute.xlu0 %3398
    %v3401 = vadd.f32 %v3391, %v3399
    %v3402 = vtanh.pop %v3401
    %3404 = vrot.lane.b32.xlu0 %v3402, 64
    %v3405 = vpop.permute.xlu0 %3404
    %v3407 = vmul.f32 %v3387, %v3405
    %v3408 = vpack.c.bf16 %v3407, %v3407
    %v3410 = vshrl.u32 %v3408, 16
    %3412 = vrot.lane.b32.xlu0 %v3410, 32
    %v3413 = vpop.permute.xlu0 %3412
    %v3415 = vsel %vm212, %v3413, 0
    %3417 = vmatprep.subr.bf16.mxu0 0
    %3418 = vmatpush1.bf16.msra.mxu0 %v208
    %3419 = vmatprep.subr.bf16.mxu0 0
    %3420 = vmatpush1.bf16.msra.mxu0 %v209
    %3421 = vmatprep.subr.bf16.mxu0 0
    %3422 = vmatpush1.bf16.msra.mxu0 0
    %3423 = vmatprep.subr.bf16.mxu0 0
    %3424 = vmatpush1.bf16.msra.mxu0 0
    %3425 = vmatprep.subr.bf16.mxu0 0
    %3426 = vmatpush1.bf16.msra.mxu0 0
    %3427 = vmatprep.subr.bf16.mxu0 0
    %3428 = vmatpush1.bf16.msra.mxu0 0
    %3429 = vmatprep.subr.bf16.mxu0 0
    %3430 = vmatpush1.bf16.msra.mxu0 0
    %3431 = vmatprep.subr.bf16.mxu0 0
    %3432 = vmatpush1.bf16.msra.mxu0 0
    %3433 = vmatprep.subr.bf16.mxu0 0
    %3434 = vmatpush1.bf16.msra.mxu0 0
    %3435 = vmatprep.subr.bf16.mxu0 0
    %3436 = vmatpush1.bf16.msra.mxu0 0
    %3437 = vmatprep.subr.bf16.mxu0 0
    %3438 = vmatpush1.bf16.msra.mxu0 0
    %3439 = vmatprep.subr.bf16.mxu0 0
    %3440 = vmatpush1.bf16.msra.mxu0 0
    %3441 = vmatprep.subr.bf16.mxu0 0
    %3442 = vmatpush1.bf16.msra.mxu0 0
    %3443 = vmatprep.subr.bf16.mxu0 0
    %3444 = vmatpush1.bf16.msra.mxu0 0
    %3445 = vmatprep.subr.bf16.mxu0 0
    %3446 = vmatpush1.bf16.msra.mxu0 0
    %3447 = vmatprep.subr.bf16.mxu0 0
    %3448 = vmatpush1.bf16.msra.mxu0 0
    %3449 = vmatprep.mubr.bf16.mxu0 0
    %3450 = vmatmul.mubr.bf16.gmra.mrb[0].mxu0 %v3415
    %v3451 = vpop.f32.mrb[0].mxu0
    %v3452 = vadd.f32 0.0, %v3451
    %v3453 = vpop.f32.mrb[0].mxu0
    %v3454 = vpop.f32.mrb[0].mxu0
    %v3455 = vpop.f32.mrb[0].mxu0
    %3456 = vdwg.mxu0
    %v3458 = vrot.slane %v3452, 6
    %v3460 = vadd.f32 %v187, %v3458
    %v3461 = vmul.f32 %v43, %v3460
    %v3462 = vtanh.pop %v3461
    %v3463 = vmul.f32 %v43, %v3462
    %v3464 = vadd.f32 %v3463, %v44
    %v3466 = vrot.slane %v3401, 7
    %v3468 = vmul.f32 %v3464, %v3466
    %3470 = vrot.lane.b32.xlu0 %v3464, 64
    %v3471 = vpop.permute.xlu0 %3470
    %v3473 = vmul.f32 %v3464, %v3471
    %3475 = vrot.lane.b32.xlu0 %v3473, 32
    %v3476 = vpop.permute.xlu0 %3475
    %v3478 = vadd.f32 %v3468, %v3476
    %v3479 = vtanh.pop %v3478
    %3481 = vrot.lane.b32.xlu0 %v3479, 64
    %v3482 = vpop.permute.xlu0 %3481
    %v3484 = vmul.f32 %v3464, %v3482
    %v3485 = vpack.c.bf16 %v3484, %v3484
    %v3487 = vrot.slane %v3485, 1
    %3488 = vrot.lane.b32.xlu0 %v3487, 32
    %v3489 = vpop.permute.xlu0 %3488
    %v3491 = vsel %vm212, %v3489, 0
    %3493 = vmatprep.subr.bf16.mxu0 0
    %3494 = vmatpush1.bf16.msra.mxu0 %v208
    %3495 = vmatprep.subr.bf16.mxu0 0
    %3496 = vmatpush1.bf16.msra.mxu0 %v209
    %3497 = vmatprep.subr.bf16.mxu0 0
    %3498 = vmatpush1.bf16.msra.mxu0 0
    %3499 = vmatprep.subr.bf16.mxu0 0
    %3500 = vmatpush1.bf16.msra.mxu0 0
    %3501 = vmatprep.subr.bf16.mxu0 0
    %3502 = vmatpush1.bf16.msra.mxu0 0
    %3503 = vmatprep.subr.bf16.mxu0 0
    %3504 = vmatpush1.bf16.msra.mxu0 0
    %3505 = vmatprep.subr.bf16.mxu0 0
    %3506 = vmatpush1.bf16.msra.mxu0 0
    %3507 = vmatprep.subr.bf16.mxu0 0
    %3508 = vmatpush1.bf16.msra.mxu0 0
    %3509 = vmatprep.subr.bf16.mxu0 0
    %3510 = vmatpush1.bf16.msra.mxu0 0
    %3511 = vmatprep.subr.bf16.mxu0 0
    %3512 = vmatpush1.bf16.msra.mxu0 0
    %3513 = vmatprep.subr.bf16.mxu0 0
    %3514 = vmatpush1.bf16.msra.mxu0 0
    %3515 = vmatprep.subr.bf16.mxu0 0
    %3516 = vmatpush1.bf16.msra.mxu0 0
    %3517 = vmatprep.subr.bf16.mxu0 0
    %3518 = vmatpush1.bf16.msra.mxu0 0
    %3519 = vmatprep.subr.bf16.mxu0 0
    %3520 = vmatpush1.bf16.msra.mxu0 0
    %3521 = vmatprep.subr.bf16.mxu0 0
    %3522 = vmatpush1.bf16.msra.mxu0 0
    %3523 = vmatprep.subr.bf16.mxu0 0
    %3524 = vmatpush1.bf16.msra.mxu0 0
    %3525 = vmatprep.mubr.bf16.mxu0 0
    %3526 = vmatmul.mubr.bf16.gmra.mrb[0].mxu0 %v3491
    %v3527 = vpop.f32.mrb[0].mxu0
    %v3528 = vadd.f32 0.0, %v3527
    %v3529 = vpop.f32.mrb[0].mxu0
    %v3530 = vpop.f32.mrb[0].mxu0
    %v3531 = vpop.f32.mrb[0].mxu0
    %3532 = vdwg.mxu0
    %v3534 = vrot.slane %v3528, 5
    %v3536 = vadd.f32 %v187, %v3534
    %v3537 = vmul.f32 %v43, %v3536
    %v3538 = vtanh.pop %v3537
    %v3539 = vmul.f32 %v43, %v3538
    %v3540 = vadd.f32 %v3539, %v44
    %v3542 = vrot.slane %v3478, 7
    %v3544 = vmul.f32 %v3540, %v3542
    %3546 = vrot.lane.b32.xlu0 %v3540, 64
    %v3547 = vpop.permute.xlu0 %3546
    %v3549 = vmul.f32 %v3540, %v3547
    %3551 = vrot.lane.b32.xlu0 %v3549, 32
    %v3552 = vpop.permute.xlu0 %3551
    %v3554 = vadd.f32 %v3544, %v3552
    %v3555 = vtanh.pop %v3554
    %3557 = vrot.lane.b32.xlu0 %v3555, 64
    %v3558 = vpop.permute.xlu0 %3557
    %v3560 = vmul.f32 %v3540, %v3558
    %v3561 = vpack.c.bf16 %v3560, %v3560
    %v3563 = vshrl.u32 %v3561, 16
    %v3565 = vrot.slane %v3563, 1
    %3566 = vrot.lane.b32.xlu0 %v3565, 32
    %v3567 = vpop.permute.xlu0 %3566
    %v3569 = vsel %vm212, %v3567, 0
    %3571 = vmatprep.subr.bf16.mxu0 0
    %3572 = vmatpush1.bf16.msra.mxu0 %v208
    %3573 = vmatprep.subr.bf16.mxu0 0
    %3574 = vmatpush1.bf16.msra.mxu0 %v209
    %3575 = vmatprep.subr.bf16.mxu0 0
    %3576 = vmatpush1.bf16.msra.mxu0 0
    %3577 = vmatprep.subr.bf16.mxu0 0
    %3578 = vmatpush1.bf16.msra.mxu0 0
    %3579 = vmatprep.subr.bf16.mxu0 0
    %3580 = vmatpush1.bf16.msra.mxu0 0
    %3581 = vmatprep.subr.bf16.mxu0 0
    %3582 = vmatpush1.bf16.msra.mxu0 0
    %3583 = vmatprep.subr.bf16.mxu0 0
    %3584 = vmatpush1.bf16.msra.mxu0 0
    %3585 = vmatprep.subr.bf16.mxu0 0
    %3586 = vmatpush1.bf16.msra.mxu0 0
    %3587 = vmatprep.subr.bf16.mxu0 0
    %3588 = vmatpush1.bf16.msra.mxu0 0
    %3589 = vmatprep.subr.bf16.mxu0 0
    %3590 = vmatpush1.bf16.msra.mxu0 0
    %3591 = vmatprep.subr.bf16.mxu0 0
    %3592 = vmatpush1.bf16.msra.mxu0 0
    %3593 = vmatprep.subr.bf16.mxu0 0
    %3594 = vmatpush1.bf16.msra.mxu0 0
    %3595 = vmatprep.subr.bf16.mxu0 0
    %3596 = vmatpush1.bf16.msra.mxu0 0
    %3597 = vmatprep.subr.bf16.mxu0 0
    %3598 = vmatpush1.bf16.msra.mxu0 0
    %3599 = vmatprep.subr.bf16.mxu0 0
    %3600 = vmatpush1.bf16.msra.mxu0 0
    %3601 = vmatprep.subr.bf16.mxu0 0
    %3602 = vmatpush1.bf16.msra.mxu0 0
    %3603 = vmatprep.mubr.bf16.mxu0 0
    %3604 = vmatmul.mubr.bf16.gmra.mrb[0].mxu0 %v3569
    %v3605 = vpop.f32.mrb[0].mxu0
    %v3606 = vadd.f32 0.0, %v3605
    %v3607 = vpop.f32.mrb[0].mxu0
    %v3608 = vpop.f32.mrb[0].mxu0
    %v3609 = vpop.f32.mrb[0].mxu0
    %3610 = vdwg.mxu0
    %v3612 = vrot.slane %v3606, 4
    %v3614 = vadd.f32 %v187, %v3612
    %v3615 = vmul.f32 %v43, %v3614
    %v3616 = vtanh.pop %v3615
    %v3617 = vmul.f32 %v43, %v3616
    %v3618 = vadd.f32 %v3617, %v44
    %v3620 = vrot.slane %v3554, 7
    %v3622 = vmul.f32 %v3618, %v3620
    %3624 = vrot.lane.b32.xlu0 %v3618, 64
    %v3625 = vpop.permute.xlu0 %3624
    %v3627 = vmul.f32 %v3618, %v3625
    %3629 = vrot.lane.b32.xlu0 %v3627, 32
    %v3630 = vpop.permute.xlu0 %3629
    %v3632 = vadd.f32 %v3622, %v3630
    %v3633 = vtanh.pop %v3632
    %3635 = vrot.lane.b32.xlu0 %v3633, 64
    %v3636 = vpop.permute.xlu0 %3635
    %v3638 = vmul.f32 %v3618, %v3636
    %v3639 = vpack.c.bf16 %v3638, %v3638
    %v3641 = vrot.slane %v3639, 2
    %3642 = vrot.lane.b32.xlu0 %v3641, 32
    %v3643 = vpop.permute.xlu0 %3642
    %v3645 = vsel %vm212, %v3643, 0
    %3647 = vmatprep.subr.bf16.mxu0 0
    %3648 = vmatpush1.bf16.msra.mxu0 %v208
    %3649 = vmatprep.subr.bf16.mxu0 0
    %3650 = vmatpush1.bf16.msra.mxu0 %v209
    %3651 = vmatprep.subr.bf16.mxu0 0
    %3652 = vmatpush1.bf16.msra.mxu0 0
    %3653 = vmatprep.subr.bf16.mxu0 0
    %3654 = vmatpush1.bf16.msra.mxu0 0
    %3655 = vmatprep.subr.bf16.mxu0 0
    %3656 = vmatpush1.bf16.msra.mxu0 0
    %3657 = vmatprep.subr.bf16.mxu0 0
    %3658 = vmatpush1.bf16.msra.mxu0 0
    %3659 = vmatprep.subr.bf16.mxu0 0
    %3660 = vmatpush1.bf16.msra.mxu0 0
    %3661 = vmatprep.subr.bf16.mxu0 0
    %3662 = vmatpush1.bf16.msra.mxu0 0
    %3663 = vmatprep.subr.bf16.mxu0 0
    %3664 = vmatpush1.bf16.msra.mxu0 0
    %3665 = vmatprep.subr.bf16.mxu0 0
    %3666 = vmatpush1.bf16.msra.mxu0 0
    %3667 = vmatprep.subr.bf16.mxu0 0
    %3668 = vmatpush1.bf16.msra.mxu0 0
    %3669 = vmatprep.subr.bf16.mxu0 0
    %3670 = vmatpush1.bf16.msra.mxu0 0
    %3671 = vmatprep.subr.bf16.mxu0 0
    %3672 = vmatpush1.bf16.msra.mxu0 0
    %3673 = vmatprep.subr.bf16.mxu0 0
    %3674 = vmatpush1.bf16.msra.mxu0 0
    %3675 = vmatprep.subr.bf16.mxu0 0
    %3676 = vmatpush1.bf16.msra.mxu0 0
    %3677 = vmatprep.subr.bf16.mxu0 0
    %3678 = vmatpush1.bf16.msra.mxu0 0
    %3679 = vmatprep.mubr.bf16.mxu0 0
    %3680 = vmatmul.mubr.bf16.gmra.mrb[0].mxu0 %v3645
    %v3681 = vpop.f32.mrb[0].mxu0
    %v3682 = vadd.f32 0.0, %v3681
    %v3683 = vpop.f32.mrb[0].mxu0
    %v3684 = vpop.f32.mrb[0].mxu0
    %v3685 = vpop.f32.mrb[0].mxu0
    %3686 = vdwg.mxu0
    %v3688 = vrot.slane %v3682, 3
    %v3690 = vadd.f32 %v187, %v3688
    %v3691 = vmul.f32 %v43, %v3690
    %v3692 = vtanh.pop %v3691
    %v3693 = vmul.f32 %v43, %v3692
    %v3694 = vadd.f32 %v3693, %v44
    %v3696 = vrot.slane %v3632, 7
    %v3698 = vmul.f32 %v3694, %v3696
    %3700 = vrot.lane.b32.xlu0 %v3694, 64
    %v3701 = vpop.permute.xlu0 %3700
    %v3703 = vmul.f32 %v3694, %v3701
    %3705 = vrot.lane.b32.xlu0 %v3703, 32
    %v3706 = vpop.permute.xlu0 %3705
    %v3708 = vadd.f32 %v3698, %v3706
    %v3709 = vtanh.pop %v3708
    %3711 = vrot.lane.b32.xlu0 %v3709, 64
    %v3712 = vpop.permute.xlu0 %3711
    %v3714 = vmul.f32 %v3694, %v3712
    %v3715 = vpack.c.bf16 %v3714, %v3714
    %v3717 = vshrl.u32 %v3715, 16
    %v3719 = vrot.slane %v3717, 2
    %3720 = vrot.lane.b32.xlu0 %v3719, 32
    %v3721 = vpop.permute.xlu0 %3720
    %v3723 = vsel %vm212, %v3721, 0
    %3725 = vmatprep.subr.bf16.mxu0 0
    %3726 = vmatpush1.bf16.msra.mxu0 %v208
    %3727 = vmatprep.subr.bf16.mxu0 0
    %3728 = vmatpush1.bf16.msra.mxu0 %v209
    %3729 = vmatprep.subr.bf16.mxu0 0
    %3730 = vmatpush1.bf16.msra.mxu0 0
    %3731 = vmatprep.subr.bf16.mxu0 0
    %3732 = vmatpush1.bf16.msra.mxu0 0
    %3733 = vmatprep.subr.bf16.mxu0 0
    %3734 = vmatpush1.bf16.msra.mxu0 0
    %3735 = vmatprep.subr.bf16.mxu0 0
    %3736 = vmatpush1.bf16.msra.mxu0 0
    %3737 = vmatprep.subr.bf16.mxu0 0
    %3738 = vmatpush1.bf16.msra.mxu0 0
    %3739 = vmatprep.subr.bf16.mxu0 0
    %3740 = vmatpush1.bf16.msra.mxu0 0
    %3741 = vmatprep.subr.bf16.mxu0 0
    %3742 = vmatpush1.bf16.msra.mxu0 0
    %3743 = vmatprep.subr.bf16.mxu0 0
    %3744 = vmatpush1.bf16.msra.mxu0 0
    %3745 = vmatprep.subr.bf16.mxu0 0
    %3746 = vmatpush1.bf16.msra.mxu0 0
    %3747 = vmatprep.subr.bf16.mxu0 0
    %3748 = vmatpush1.bf16.msra.mxu0 0
    %3749 = vmatprep.subr.bf16.mxu0 0
    %3750 = vmatpush1.bf16.msra.mxu0 0
    %3751 = vmatprep.subr.bf16.mxu0 0
    %3752 = vmatpush1.bf16.msra.mxu0 0
    %3753 = vmatprep.subr.bf16.mxu0 0
    %3754 = vmatpush1.bf16.msra.mxu0 0
    %3755 = vmatprep.subr.bf16.mxu0 0
    %3756 = vmatpush1.bf16.msra.mxu0 0
    %3757 = vmatprep.mubr.bf16.mxu0 0
    %3758 = vmatmul.mubr.bf16.gmra.mrb[0].mxu0 %v3723
    %v3759 = vpop.f32.mrb[0].mxu0
    %v3760 = vadd.f32 0.0, %v3759
    %v3761 = vpop.f32.mrb[0].mxu0
    %v3762 = vpop.f32.mrb[0].mxu0
    %v3763 = vpop.f32.mrb[0].mxu0
    %3764 = vdwg.mxu0
    %v3766 = vrot.slane %v3760, 2
    %v3768 = vadd.f32 %v187, %v3766
    %v3769 = vmul.f32 %v43, %v3768
    %v3770 = vtanh.pop %v3769
    %v3771 = vmul.f32 %v43, %v3770
    %v3772 = vadd.f32 %v3771, %v44
    %v3774 = vrot.slane %v3708, 7
    %v3776 = vmul.f32 %v3772, %v3774
    %3778 = vrot.lane.b32.xlu0 %v3772, 64
    %v3779 = vpop.permute.xlu0 %3778
    %v3781 = vmul.f32 %v3772, %v3779
    %3783 = vrot.lane.b32.xlu0 %v3781, 32
    %v3784 = vpop.permute.xlu0 %3783
    %v3786 = vadd.f32 %v3776, %v3784
    %v3787 = vtanh.pop %v3786
    %3789 = vrot.lane.b32.xlu0 %v3787, 64
    %v3790 = vpop.permute.xlu0 %3789
    %v3792 = vmul.f32 %v3772, %v3790
    %v3793 = vpack.c.bf16 %v3792, %v3792
    %v3795 = vrot.slane %v3793, 3
    %3796 = vrot.lane.b32.xlu0 %v3795, 32
    %v3797 = vpop.permute.xlu0 %3796
    %v3799 = vsel %vm212, %v3797, 0
    %3801 = vmatprep.subr.bf16.mxu0 0
    %3802 = vmatpush1.bf16.msra.mxu0 %v208
    %3803 = vmatprep.subr.bf16.mxu0 0
    %3804 = vmatpush1.bf16.msra.mxu0 %v209
    %3805 = vmatprep.subr.bf16.mxu0 0
    %3806 = vmatpush1.bf16.msra.mxu0 0
    %3807 = vmatprep.subr.bf16.mxu0 0
    %3808 = vmatpush1.bf16.msra.mxu0 0
    %3809 = vmatprep.subr.bf16.mxu0 0
    %3810 = vmatpush1.bf16.msra.mxu0 0
    %3811 = vmatprep.subr.bf16.mxu0 0
    %3812 = vmatpush1.bf16.msra.mxu0 0
    %3813 = vmatprep.subr.bf16.mxu0 0
    %3814 = vmatpush1.bf16.msra.mxu0 0
    %3815 = vmatprep.subr.bf16.mxu0 0
    %3816 = vmatpush1.bf16.msra.mxu0 0
    %3817 = vmatprep.subr.bf16.mxu0 0
    %3818 = vmatpush1.bf16.msra.mxu0 0
    %3819 = vmatprep.subr.bf16.mxu0 0
    %3820 = vmatpush1.bf16.msra.mxu0 0
    %3821 = vmatprep.subr.bf16.mxu0 0
    %3822 = vmatpush1.bf16.msra.mxu0 0
    %3823 = vmatprep.subr.bf16.mxu0 0
    %3824 = vmatpush1.bf16.msra.mxu0 0
    %3825 = vmatprep.subr.bf16.mxu0 0
    %3826 = vmatpush1.bf16.msra.mxu0 0
    %3827 = vmatprep.subr.bf16.mxu0 0
    %3828 = vmatpush1.bf16.msra.mxu0 0
    %3829 = vmatprep.subr.bf16.mxu0 0
    %3830 = vmatpush1.bf16.msra.mxu0 0
    %3831 = vmatprep.subr.bf16.mxu0 0
    %3832 = vmatpush1.bf16.msra.mxu0 0
    %3833 = vmatprep.mubr.bf16.mxu0 0
    %3834 = vmatmul.mubr.bf16.gmra.mrb[0].mxu0 %v3799
    %v3835 = vpop.f32.mrb[0].mxu0
    %v3836 = vadd.f32 0.0, %v3835
    %v3837 = vpop.f32.mrb[0].mxu0
    %v3838 = vpop.f32.mrb[0].mxu0
    %v3839 = vpop.f32.mrb[0].mxu0
    %3840 = vdwg.mxu0
    %v3842 = vrot.slane %v3836, 1
    %v3844 = vadd.f32 %v187, %v3842
    %v3845 = vmul.f32 %v43, %v3844
    %v3846 = vtanh.pop %v3845
    %v3847 = vmul.f32 %v43, %v3846
    %v3848 = vadd.f32 %v3847, %v44
    %v3850 = vrot.slane %v3786, 7
    %v3852 = vmul.f32 %v3848, %v3850
    %3854 = vrot.lane.b32.xlu0 %v3848, 64
    %v3855 = vpop.permute.xlu0 %3854
    %v3857 = vmul.f32 %v3848, %v3855
    %3859 = vrot.lane.b32.xlu0 %v3857, 32
    %v3860 = vpop.permute.xlu0 %3859
    %v3862 = vadd.f32 %v3852, %v3860
    %v3863 = vtanh.pop %v3862
    %3865 = vrot.lane.b32.xlu0 %v3863, 64
    %v3866 = vpop.permute.xlu0 %3865
    %v3868 = vmul.f32 %v3848, %v3866
    %v3869 = vpack.c.bf16 %v3868, %v3868
    %v3871 = vshrl.u32 %v3869, 16
    %v3873 = vrot.slane %v3871, 3
    %3874 = vrot.lane.b32.xlu0 %v3873, 32
    %v3875 = vpop.permute.xlu0 %3874
    %v3877 = vsel %vm212, %v3875, 0
    %3879 = vmatprep.subr.bf16.mxu0 0
    %3880 = vmatpush1.bf16.msra.mxu0 %v208
    %3881 = vmatprep.subr.bf16.mxu0 0
    %3882 = vmatpush1.bf16.msra.mxu0 %v209
    %3883 = vmatprep.subr.bf16.mxu0 0
    %3884 = vmatpush1.bf16.msra.mxu0 0
    %3885 = vmatprep.subr.bf16.mxu0 0
    %3886 = vmatpush1.bf16.msra.mxu0 0
    %3887 = vmatprep.subr.bf16.mxu0 0
    %3888 = vmatpush1.bf16.msra.mxu0 0
    %3889 = vmatprep.subr.bf16.mxu0 0
    %3890 = vmatpush1.bf16.msra.mxu0 0
    %3891 = vmatprep.subr.bf16.mxu0 0
    %3892 = vmatpush1.bf16.msra.mxu0 0
    %3893 = vmatprep.subr.bf16.mxu0 0
    %3894 = vmatpush1.bf16.msra.mxu0 0
    %3895 = vmatprep.subr.bf16.mxu0 0
    %3896 = vmatpush1.bf16.msra.mxu0 0
    %3897 = vmatprep.subr.bf16.mxu0 0
    %3898 = vmatpush1.bf16.msra.mxu0 0
    %3899 = vmatprep.subr.bf16.mxu0 0
    %3900 = vmatpush1.bf16.msra.mxu0 0
    %3901 = vmatprep.subr.bf16.mxu0 0
    %3902 = vmatpush1.bf16.msra.mxu0 0
    %3903 = vmatprep.subr.bf16.mxu0 0
    %3904 = vmatpush1.bf16.msra.mxu0 0
    %3905 = vmatprep.subr.bf16.mxu0 0
    %3906 = vmatpush1.bf16.msra.mxu0 0
    %3907 = vmatprep.subr.bf16.mxu0 0
    %3908 = vmatpush1.bf16.msra.mxu0 0
    %3909 = vmatprep.subr.bf16.mxu0 0
    %3910 = vmatpush1.bf16.msra.mxu0 0
    %3911 = vmatprep.mubr.bf16.mxu0 0
    %3912 = vmatmul.mubr.bf16.gmra.mrb[0].mxu0 %v3877
    %v3913 = vpop.f32.mrb[0].mxu0
    %v3914 = vadd.f32 0.0, %v3913
    %v3915 = vpop.f32.mrb[0].mxu0
    %v3916 = vpop.f32.mrb[0].mxu0
    %v3917 = vpop.f32.mrb[0].mxu0
    %3918 = vdwg.mxu0
    %v3919 = vadd.f32 %v192, %v3914
    %v3920 = vmul.f32 %v43, %v3919
    %v3921 = vtanh.pop %v3920
    %v3922 = vmul.f32 %v43, %v3921
    %v3923 = vadd.f32 %v3922, %v44
    %v3925 = vrot.slane %v3862, 7
    %v3927 = vmul.f32 %v3923, %v3925
    %3929 = vrot.lane.b32.xlu0 %v3923, 64
    %v3930 = vpop.permute.xlu0 %3929
    %v3932 = vmul.f32 %v3923, %v3930
    %3934 = vrot.lane.b32.xlu0 %v3932, 32
    %v3935 = vpop.permute.xlu0 %3934
    %v3937 = vadd.f32 %v3927, %v3935
    %v3938 = vtanh.pop %v3937
    %3940 = vrot.lane.b32.xlu0 %v3938, 64
    %v3941 = vpop.permute.xlu0 %3940
    %v3943 = vmul.f32 %v3923, %v3941
    %v3944 = vpack.c.bf16 %v3943, %v3943
    %3946 = vrot.lane.b32.xlu0 %v3944, 32
    %v3947 = vpop.permute.xlu0 %3946
    %v3949 = vsel %vm212, %v3947, 0
    %3951 = vmatprep.subr.bf16.mxu0 0
    %3952 = vmatpush1.bf16.msra.mxu0 %v208
    %3953 = vmatprep.subr.bf16.mxu0 0
    %3954 = vmatpush1.bf16.msra.mxu0 %v209
    %3955 = vmatprep.subr.bf16.mxu0 0
    %3956 = vmatpush1.bf16.msra.mxu0 0
    %3957 = vmatprep.subr.bf16.mxu0 0
    %3958 = vmatpush1.bf16.msra.mxu0 0
    %3959 = vmatprep.subr.bf16.mxu0 0
    %3960 = vmatpush1.bf16.msra.mxu0 0
    %3961 = vmatprep.subr.bf16.mxu0 0
    %3962 = vmatpush1.bf16.msra.mxu0 0
    %3963 = vmatprep.subr.bf16.mxu0 0
    %3964 = vmatpush1.bf16.msra.mxu0 0
    %3965 = vmatprep.subr.bf16.mxu0 0
    %3966 = vmatpush1.bf16.msra.mxu0 0
    %3967 = vmatprep.subr.bf16.mxu0 0
    %3968 = vmatpush1.bf16.msra.mxu0 0
    %3969 = vmatprep.subr.bf16.mxu0 0
    %3970 = vmatpush1.bf16.msra.mxu0 0
    %3971 = vmatprep.subr.bf16.mxu0 0
    %3972 = vmatpush1.bf16.msra.mxu0 0
    %3973 = vmatprep.subr.bf16.mxu0 0
    %3974 = vmatpush1.bf16.msra.mxu0 0
    %3975 = vmatprep.subr.bf16.mxu0 0
    %3976 = vmatpush1.bf16.msra.mxu0 0
    %3977 = vmatprep.subr.bf16.mxu0 0
    %3978 = vmatpush1.bf16.msra.mxu0 0
    %3979 = vmatprep.subr.bf16.mxu0 0
    %3980 = vmatpush1.bf16.msra.mxu0 0
    %3981 = vmatprep.subr.bf16.mxu0 0
    %3982 = vmatpush1.bf16.msra.mxu0 0
    %3983 = vmatprep.mubr.bf16.mxu0 0
    %3984 = vmatmul.mubr.bf16.gmra.mrb[0].mxu0 %v3949
    %v3985 = vpop.f32.mrb[0].mxu0
    %v3986 = vadd.f32 0.0, %v3985
    %v3987 = vpop.f32.mrb[0].mxu0
    %v3988 = vpop.f32.mrb[0].mxu0
    %v3989 = vpop.f32.mrb[0].mxu0
    %3990 = vdwg.mxu0
    %v3992 = vrot.slane %v3986, 7
    %v3994 = vadd.f32 %v192, %v3992
    %v3995 = vmul.f32 %v43, %v3994
    %v3996 = vtanh.pop %v3995
    %v3997 = vmul.f32 %v43, %v3996
    %v3998 = vadd.f32 %v3997, %v44
    %v4000 = vrot.slane %v3937, 7
    %v4002 = vmul.f32 %v3998, %v4000
    %4004 = vrot.lane.b32.xlu0 %v3998, 64
    %v4005 = vpop.permute.xlu0 %4004
    %v4007 = vmul.f32 %v3998, %v4005
    %4009 = vrot.lane.b32.xlu0 %v4007, 32
    %v4010 = vpop.permute.xlu0 %4009
    %v4012 = vadd.f32 %v4002, %v4010
    %v4013 = vtanh.pop %v4012
    %4015 = vrot.lane.b32.xlu0 %v4013, 64
    %v4016 = vpop.permute.xlu0 %4015
    %v4018 = vmul.f32 %v3998, %v4016
    %v4019 = vpack.c.bf16 %v4018, %v4018
    %v4021 = vshrl.u32 %v4019, 16
    %4023 = vrot.lane.b32.xlu0 %v4021, 32
    %v4024 = vpop.permute.xlu0 %4023
    %v4026 = vsel %vm212, %v4024, 0
    %4028 = vmatprep.subr.bf16.mxu0 0
    %4029 = vmatpush1.bf16.msra.mxu0 %v208
    %4030 = vmatprep.subr.bf16.mxu0 0
    %4031 = vmatpush1.bf16.msra.mxu0 %v209
    %4032 = vmatprep.subr.bf16.mxu0 0
    %4033 = vmatpush1.bf16.msra.mxu0 0
    %4034 = vmatprep.subr.bf16.mxu0 0
    %4035 = vmatpush1.bf16.msra.mxu0 0
    %4036 = vmatprep.subr.bf16.mxu0 0
    %4037 = vmatpush1.bf16.msra.mxu0 0
    %4038 = vmatprep.subr.bf16.mxu0 0
    %4039 = vmatpush1.bf16.msra.mxu0 0
    %4040 = vmatprep.subr.bf16.mxu0 0
    %4041 = vmatpush1.bf16.msra.mxu0 0
    %4042 = vmatprep.subr.bf16.mxu0 0
    %4043 = vmatpush1.bf16.msra.mxu0 0
    %4044 = vmatprep.subr.bf16.mxu0 0
    %4045 = vmatpush1.bf16.msra.mxu0 0
    %4046 = vmatprep.subr.bf16.mxu0 0
    %4047 = vmatpush1.bf16.msra.mxu0 0
    %4048 = vmatprep.subr.bf16.mxu0 0
    %4049 = vmatpush1.bf16.msra.mxu0 0
    %4050 = vmatprep.subr.bf16.mxu0 0
    %4051 = vmatpush1.bf16.msra.mxu0 0
    %4052 = vmatprep.subr.bf16.mxu0 0
    %4053 = vmatpush1.bf16.msra.mxu0 0
    %4054 = vmatprep.subr.bf16.mxu0 0
    %4055 = vmatpush1.bf16.msra.mxu0 0
    %4056 = vmatprep.subr.bf16.mxu0 0
    %4057 = vmatpush1.bf16.msra.mxu0 0
    %4058 = vmatprep.subr.bf16.mxu0 0
    %4059 = vmatpush1.bf16.msra.mxu0 0
    %4060 = vmatprep.mubr.bf16.mxu0 0
    %4061 = vmatmul.mubr.bf16.gmra.mrb[0].mxu0 %v4026
    %v4062 = vpop.f32.mrb[0].mxu0
    %v4063 = vadd.f32 0.0, %v4062
    %v4064 = vpop.f32.mrb[0].mxu0
    %v4065 = vpop.f32.mrb[0].mxu0
    %v4066 = vpop.f32.mrb[0].mxu0
    %4067 = vdwg.mxu0
    %v4069 = vrot.slane %v4063, 6
    %v4071 = vadd.f32 %v192, %v4069
    %v4072 = vmul.f32 %v43, %v4071
    %v4073 = vtanh.pop %v4072
    %v4074 = vmul.f32 %v43, %v4073
    %v4075 = vadd.f32 %v4074, %v44
    %v4077 = vrot.slane %v4012, 7
    %v4079 = vmul.f32 %v4075, %v4077
    %4081 = vrot.lane.b32.xlu0 %v4075, 64
    %v4082 = vpop.permute.xlu0 %4081
    %v4084 = vmul.f32 %v4075, %v4082
    %4086 = vrot.lane.b32.xlu0 %v4084, 32
    %v4087 = vpop.permute.xlu0 %4086
    %v4089 = vadd.f32 %v4079, %v4087
    %v4090 = vtanh.pop %v4089
    %4092 = vrot.lane.b32.xlu0 %v4090, 64
    %v4093 = vpop.permute.xlu0 %4092
    %v4095 = vmul.f32 %v4075, %v4093
    %v4096 = vpack.c.bf16 %v4095, %v4095
    %v4098 = vrot.slane %v4096, 1
    %4099 = vrot.lane.b32.xlu0 %v4098, 32
    %v4100 = vpop.permute.xlu0 %4099
    %v4102 = vsel %vm212, %v4100, 0
    %4104 = vmatprep.subr.bf16.mxu0 0
    %4105 = vmatpush1.bf16.msra.mxu0 %v208
    %4106 = vmatprep.subr.bf16.mxu0 0
    %4107 = vmatpush1.bf16.msra.mxu0 %v209
    %4108 = vmatprep.subr.bf16.mxu0 0
    %4109 = vmatpush1.bf16.msra.mxu0 0
    %4110 = vmatprep.subr.bf16.mxu0 0
    %4111 = vmatpush1.bf16.msra.mxu0 0
    %4112 = vmatprep.subr.bf16.mxu0 0
    %4113 = vmatpush1.bf16.msra.mxu0 0
    %4114 = vmatprep.subr.bf16.mxu0 0
    %4115 = vmatpush1.bf16.msra.mxu0 0
    %4116 = vmatprep.subr.bf16.mxu0 0
    %4117 = vmatpush1.bf16.msra.mxu0 0
    %4118 = vmatprep.subr.bf16.mxu0 0
    %4119 = vmatpush1.bf16.msra.mxu0 0
    %4120 = vmatprep.subr.bf16.mxu0 0
    %4121 = vmatpush1.bf16.msra.mxu0 0
    %4122 = vmatprep.subr.bf16.mxu0 0
    %4123 = vmatpush1.bf16.msra.mxu0 0
    %4124 = vmatprep.subr.bf16.mxu0 0
    %4125 = vmatpush1.bf16.msra.mxu0 0
    %4126 = vmatprep.subr.bf16.mxu0 0
    %4127 = vmatpush1.bf16.msra.mxu0 0
    %4128 = vmatprep.subr.bf16.mxu0 0
    %4129 = vmatpush1.bf16.msra.mxu0 0
    %4130 = vmatprep.subr.bf16.mxu0 0
    %4131 = vmatpush1.bf16.msra.mxu0 0
    %4132 = vmatprep.subr.bf16.mxu0 0
    %4133 = vmatpush1.bf16.msra.mxu0 0
    %4134 = vmatprep.subr.bf16.mxu0 0
    %4135 = vmatpush1.bf16.msra.mxu0 0
    %4136 = vmatprep.mubr.bf16.mxu0 0
    %4137 = vmatmul.mubr.bf16.gmra.mrb[0].mxu0 %v4102
    %v4138 = vpop.f32.mrb[0].mxu0
    %v4139 = vadd.f32 0.0, %v4138
    %v4140 = vpop.f32.mrb[0].mxu0
    %v4141 = vpop.f32.mrb[0].mxu0
    %v4142 = vpop.f32.mrb[0].mxu0
    %4143 = vdwg.mxu0
    %v4145 = vrot.slane %v4139, 5
    %v4147 = vadd.f32 %v192, %v4145
    %v4148 = vmul.f32 %v43, %v4147
    %v4149 = vtanh.pop %v4148
    %v4150 = vmul.f32 %v43, %v4149
    %v4151 = vadd.f32 %v4150, %v44
    %v4153 = vrot.slane %v4089, 7
    %v4155 = vmul.f32 %v4151, %v4153
    %4157 = vrot.lane.b32.xlu0 %v4151, 64
    %v4158 = vpop.permute.xlu0 %4157
    %v4160 = vmul.f32 %v4151, %v4158
    %4162 = vrot.lane.b32.xlu0 %v4160, 32
    %v4163 = vpop.permute.xlu0 %4162
    %v4165 = vadd.f32 %v4155, %v4163
    %v4166 = vtanh.pop %v4165
    %4168 = vrot.lane.b32.xlu0 %v4166, 64
    %v4169 = vpop.permute.xlu0 %4168
    %v4171 = vmul.f32 %v4151, %v4169
    %v4172 = vpack.c.bf16 %v4171, %v4171
    %v4174 = vshrl.u32 %v4172, 16
    %v4176 = vrot.slane %v4174, 1
    %4177 = vrot.lane.b32.xlu0 %v4176, 32
    %v4178 = vpop.permute.xlu0 %4177
    %v4180 = vsel %vm212, %v4178, 0
    %4182 = vmatprep.subr.bf16.mxu0 0
    %4183 = vmatpush1.bf16.msra.mxu0 %v208
    %4184 = vmatprep.subr.bf16.mxu0 0
    %4185 = vmatpush1.bf16.msra.mxu0 %v209
    %4186 = vmatprep.subr.bf16.mxu0 0
    %4187 = vmatpush1.bf16.msra.mxu0 0
    %4188 = vmatprep.subr.bf16.mxu0 0
    %4189 = vmatpush1.bf16.msra.mxu0 0
    %4190 = vmatprep.subr.bf16.mxu0 0
    %4191 = vmatpush1.bf16.msra.mxu0 0
    %4192 = vmatprep.subr.bf16.mxu0 0
    %4193 = vmatpush1.bf16.msra.mxu0 0
    %4194 = vmatprep.subr.bf16.mxu0 0
    %4195 = vmatpush1.bf16.msra.mxu0 0
    %4196 = vmatprep.subr.bf16.mxu0 0
    %4197 = vmatpush1.bf16.msra.mxu0 0
    %4198 = vmatprep.subr.bf16.mxu0 0
    %4199 = vmatpush1.bf16.msra.mxu0 0
    %4200 = vmatprep.subr.bf16.mxu0 0
    %4201 = vmatpush1.bf16.msra.mxu0 0
    %4202 = vmatprep.subr.bf16.mxu0 0
    %4203 = vmatpush1.bf16.msra.mxu0 0
    %4204 = vmatprep.subr.bf16.mxu0 0
    %4205 = vmatpush1.bf16.msra.mxu0 0
    %4206 = vmatprep.subr.bf16.mxu0 0
    %4207 = vmatpush1.bf16.msra.mxu0 0
    %4208 = vmatprep.subr.bf16.mxu0 0
    %4209 = vmatpush1.bf16.msra.mxu0 0
    %4210 = vmatprep.subr.bf16.mxu0 0
    %4211 = vmatpush1.bf16.msra.mxu0 0
    %4212 = vmatprep.subr.bf16.mxu0 0
    %4213 = vmatpush1.bf16.msra.mxu0 0
    %4214 = vmatprep.mubr.bf16.mxu0 0
    %4215 = vmatmul.mubr.bf16.gmra.mrb[0].mxu0 %v4180
    %v4216 = vpop.f32.mrb[0].mxu0
    %v4217 = vadd.f32 0.0, %v4216
    %v4218 = vpop.f32.mrb[0].mxu0
    %v4219 = vpop.f32.mrb[0].mxu0
    %v4220 = vpop.f32.mrb[0].mxu0
    %4221 = vdwg.mxu0
    %v4223 = vrot.slane %v4217, 4
    %v4225 = vadd.f32 %v192, %v4223
    %v4226 = vmul.f32 %v43, %v4225
    %v4227 = vtanh.pop %v4226
    %v4228 = vmul.f32 %v43, %v4227
    %v4229 = vadd.f32 %v4228, %v44
    %v4231 = vrot.slane %v4165, 7
    %v4233 = vmul.f32 %v4229, %v4231
    %4235 = vrot.lane.b32.xlu0 %v4229, 64
    %v4236 = vpop.permute.xlu0 %4235
    %v4238 = vmul.f32 %v4229, %v4236
    %4240 = vrot.lane.b32.xlu0 %v4238, 32
    %v4241 = vpop.permute.xlu0 %4240
    %v4243 = vadd.f32 %v4233, %v4241
    %v4244 = vtanh.pop %v4243
    %4246 = vrot.lane.b32.xlu0 %v4244, 64
    %v4247 = vpop.permute.xlu0 %4246
    %v4249 = vmul.f32 %v4229, %v4247
    %v4250 = vpack.c.bf16 %v4249, %v4249
    %v4252 = vrot.slane %v4250, 2
    %4253 = vrot.lane.b32.xlu0 %v4252, 32
    %v4254 = vpop.permute.xlu0 %4253
    %v4256 = vsel %vm212, %v4254, 0
    %4258 = vmatprep.subr.bf16.mxu0 0
    %4259 = vmatpush1.bf16.msra.mxu0 %v208
    %4260 = vmatprep.subr.bf16.mxu0 0
    %4261 = vmatpush1.bf16.msra.mxu0 %v209
    %4262 = vmatprep.subr.bf16.mxu0 0
    %4263 = vmatpush1.bf16.msra.mxu0 0
    %4264 = vmatprep.subr.bf16.mxu0 0
    %4265 = vmatpush1.bf16.msra.mxu0 0
    %4266 = vmatprep.subr.bf16.mxu0 0
    %4267 = vmatpush1.bf16.msra.mxu0 0
    %4268 = vmatprep.subr.bf16.mxu0 0
    %4269 = vmatpush1.bf16.msra.mxu0 0
    %4270 = vmatprep.subr.bf16.mxu0 0
    %4271 = vmatpush1.bf16.msra.mxu0 0
    %4272 = vmatprep.subr.bf16.mxu0 0
    %4273 = vmatpush1.bf16.msra.mxu0 0
    %4274 = vmatprep.subr.bf16.mxu0 0
    %4275 = vmatpush1.bf16.msra.mxu0 0
    %4276 = vmatprep.subr.bf16.mxu0 0
    %4277 = vmatpush1.bf16.msra.mxu0 0
    %4278 = vmatprep.subr.bf16.mxu0 0
    %4279 = vmatpush1.bf16.msra.mxu0 0
    %4280 = vmatprep.subr.bf16.mxu0 0
    %4281 = vmatpush1.bf16.msra.mxu0 0
    %4282 = vmatprep.subr.bf16.mxu0 0
    %4283 = vmatpush1.bf16.msra.mxu0 0
    %4284 = vmatprep.subr.bf16.mxu0 0
    %4285 = vmatpush1.bf16.msra.mxu0 0
    %4286 = vmatprep.subr.bf16.mxu0 0
    %4287 = vmatpush1.bf16.msra.mxu0 0
    %4288 = vmatprep.subr.bf16.mxu0 0
    %4289 = vmatpush1.bf16.msra.mxu0 0
    %4290 = vmatprep.mubr.bf16.mxu0 0
    %4291 = vmatmul.mubr.bf16.gmra.mrb[0].mxu0 %v4256
    %v4292 = vpop.f32.mrb[0].mxu0
    %v4293 = vadd.f32 0.0, %v4292
    %v4294 = vpop.f32.mrb[0].mxu0
    %v4295 = vpop.f32.mrb[0].mxu0
    %v4296 = vpop.f32.mrb[0].mxu0
    %4297 = vdwg.mxu0
    %v4299 = vrot.slane %v4293, 3
    %v4301 = vadd.f32 %v192, %v4299
    %v4302 = vmul.f32 %v43, %v4301
    %v4303 = vtanh.pop %v4302
    %v4304 = vmul.f32 %v43, %v4303
    %v4305 = vadd.f32 %v4304, %v44
    %v4307 = vrot.slane %v4243, 7
    %v4309 = vmul.f32 %v4305, %v4307
    %4311 = vrot.lane.b32.xlu0 %v4305, 64
    %v4312 = vpop.permute.xlu0 %4311
    %v4314 = vmul.f32 %v4305, %v4312
    %4316 = vrot.lane.b32.xlu0 %v4314, 32
    %v4317 = vpop.permute.xlu0 %4316
    %v4319 = vadd.f32 %v4309, %v4317
    %v4320 = vtanh.pop %v4319
    %4322 = vrot.lane.b32.xlu0 %v4320, 64
    %v4323 = vpop.permute.xlu0 %4322
    %v4325 = vmul.f32 %v4305, %v4323
    %v4326 = vpack.c.bf16 %v4325, %v4325
    %v4328 = vshrl.u32 %v4326, 16
    %v4330 = vrot.slane %v4328, 2
    %4331 = vrot.lane.b32.xlu0 %v4330, 32
    %v4332 = vpop.permute.xlu0 %4331
    %v4334 = vsel %vm212, %v4332, 0
    %4336 = vmatprep.subr.bf16.mxu0 0
    %4337 = vmatpush1.bf16.msra.mxu0 %v208
    %4338 = vmatprep.subr.bf16.mxu0 0
    %4339 = vmatpush1.bf16.msra.mxu0 %v209
    %4340 = vmatprep.subr.bf16.mxu0 0
    %4341 = vmatpush1.bf16.msra.mxu0 0
    %4342 = vmatprep.subr.bf16.mxu0 0
    %4343 = vmatpush1.bf16.msra.mxu0 0
    %4344 = vmatprep.subr.bf16.mxu0 0
    %4345 = vmatpush1.bf16.msra.mxu0 0
    %4346 = vmatprep.subr.bf16.mxu0 0
    %4347 = vmatpush1.bf16.msra.mxu0 0
    %4348 = vmatprep.subr.bf16.mxu0 0
    %4349 = vmatpush1.bf16.msra.mxu0 0
    %4350 = vmatprep.subr.bf16.mxu0 0
    %4351 = vmatpush1.bf16.msra.mxu0 0
    %4352 = vmatprep.subr.bf16.mxu0 0
    %4353 = vmatpush1.bf16.msra.mxu0 0
    %4354 = vmatprep.subr.bf16.mxu0 0
    %4355 = vmatpush1.bf16.msra.mxu0 0
    %4356 = vmatprep.subr.bf16.mxu0 0
    %4357 = vmatpush1.bf16.msra.mxu0 0
    %4358 = vmatprep.subr.bf16.mxu0 0
    %4359 = vmatpush1.bf16.msra.mxu0 0
    %4360 = vmatprep.subr.bf16.mxu0 0
    %4361 = vmatpush1.bf16.msra.mxu0 0
    %4362 = vmatprep.subr.bf16.mxu0 0
    %4363 = vmatpush1.bf16.msra.mxu0 0
    %4364 = vmatprep.subr.bf16.mxu0 0
    %4365 = vmatpush1.bf16.msra.mxu0 0
    %4366 = vmatprep.subr.bf16.mxu0 0
    %4367 = vmatpush1.bf16.msra.mxu0 0
    %4368 = vmatprep.mubr.bf16.mxu0 0
    %4369 = vmatmul.mubr.bf16.gmra.mrb[0].mxu0 %v4334
    %v4370 = vpop.f32.mrb[0].mxu0
    %v4371 = vadd.f32 0.0, %v4370
    %v4372 = vpop.f32.mrb[0].mxu0
    %v4373 = vpop.f32.mrb[0].mxu0
    %v4374 = vpop.f32.mrb[0].mxu0
    %4375 = vdwg.mxu0
    %v4377 = vrot.slane %v4371, 2
    %v4379 = vadd.f32 %v192, %v4377
    %v4380 = vmul.f32 %v43, %v4379
    %v4381 = vtanh.pop %v4380
    %v4382 = vmul.f32 %v43, %v4381
    %v4383 = vadd.f32 %v4382, %v44
    %v4385 = vrot.slane %v4319, 7
    %v4387 = vmul.f32 %v4383, %v4385
    %4389 = vrot.lane.b32.xlu0 %v4383, 64
    %v4390 = vpop.permute.xlu0 %4389
    %v4392 = vmul.f32 %v4383, %v4390
    %4394 = vrot.lane.b32.xlu0 %v4392, 32
    %v4395 = vpop.permute.xlu0 %4394
    %v4397 = vadd.f32 %v4387, %v4395
    %v4398 = vtanh.pop %v4397
    %4400 = vrot.lane.b32.xlu0 %v4398, 64
    %v4401 = vpop.permute.xlu0 %4400
    %v4403 = vmul.f32 %v4383, %v4401
    %v4404 = vpack.c.bf16 %v4403, %v4403
    %v4406 = vrot.slane %v4404, 3
    %4407 = vrot.lane.b32.xlu0 %v4406, 32
    %v4408 = vpop.permute.xlu0 %4407
    %v4410 = vsel %vm212, %v4408, 0
    %4412 = vmatprep.subr.bf16.mxu0 0
    %4413 = vmatpush1.bf16.msra.mxu0 %v208
    %4414 = vmatprep.subr.bf16.mxu0 0
    %4415 = vmatpush1.bf16.msra.mxu0 %v209
    %4416 = vmatprep.subr.bf16.mxu0 0
    %4417 = vmatpush1.bf16.msra.mxu0 0
    %4418 = vmatprep.subr.bf16.mxu0 0
    %4419 = vmatpush1.bf16.msra.mxu0 0
    %4420 = vmatprep.subr.bf16.mxu0 0
    %4421 = vmatpush1.bf16.msra.mxu0 0
    %4422 = vmatprep.subr.bf16.mxu0 0
    %4423 = vmatpush1.bf16.msra.mxu0 0
    %4424 = vmatprep.subr.bf16.mxu0 0
    %4425 = vmatpush1.bf16.msra.mxu0 0
    %4426 = vmatprep.subr.bf16.mxu0 0
    %4427 = vmatpush1.bf16.msra.mxu0 0
    %4428 = vmatprep.subr.bf16.mxu0 0
    %4429 = vmatpush1.bf16.msra.mxu0 0
    %4430 = vmatprep.subr.bf16.mxu0 0
    %4431 = vmatpush1.bf16.msra.mxu0 0
    %4432 = vmatprep.subr.bf16.mxu0 0
    %4433 = vmatpush1.bf16.msra.mxu0 0
    %4434 = vmatprep.subr.bf16.mxu0 0
    %4435 = vmatpush1.bf16.msra.mxu0 0
    %4436 = vmatprep.subr.bf16.mxu0 0
    %4437 = vmatpush1.bf16.msra.mxu0 0
    %4438 = vmatprep.subr.bf16.mxu0 0
    %4439 = vmatpush1.bf16.msra.mxu0 0
    %4440 = vmatprep.subr.bf16.mxu0 0
    %4441 = vmatpush1.bf16.msra.mxu0 0
    %4442 = vmatprep.subr.bf16.mxu0 0
    %4443 = vmatpush1.bf16.msra.mxu0 0
    %4444 = vmatprep.mubr.bf16.mxu0 0
    %4445 = vmatmul.mubr.bf16.gmra.mrb[0].mxu0 %v4410
    %v4446 = vpop.f32.mrb[0].mxu0
    %v4447 = vadd.f32 0.0, %v4446
    %v4448 = vpop.f32.mrb[0].mxu0
    %v4449 = vpop.f32.mrb[0].mxu0
    %v4450 = vpop.f32.mrb[0].mxu0
    %4451 = vdwg.mxu0
    %v4453 = vrot.slane %v4447, 1
    %v4455 = vadd.f32 %v192, %v4453
    %v4456 = vmul.f32 %v43, %v4455
    %v4457 = vtanh.pop %v4456
    %v4458 = vmul.f32 %v43, %v4457
    %v4459 = vadd.f32 %v4458, %v44
    %v4461 = vrot.slane %v4397, 7
    %v4463 = vmul.f32 %v4459, %v4461
    %4465 = vrot.lane.b32.xlu0 %v4459, 64
    %v4466 = vpop.permute.xlu0 %4465
    %v4468 = vmul.f32 %v4459, %v4466
    %4470 = vrot.lane.b32.xlu0 %v4468, 32
    %v4471 = vpop.permute.xlu0 %4470
    %v4473 = vadd.f32 %v4463, %v4471
    %v4474 = vtanh.pop %v4473
    %4476 = vrot.lane.b32.xlu0 %v4474, 64
    %v4477 = vpop.permute.xlu0 %4476
    %v4479 = vmul.f32 %v4459, %v4477
    %v4480 = vpack.c.bf16 %v4479, %v4479
    %v4482 = vshrl.u32 %v4480, 16
    %v4484 = vrot.slane %v4482, 3
    %4485 = vrot.lane.b32.xlu0 %v4484, 32
    %v4486 = vpop.permute.xlu0 %4485
    %v4488 = vsel %vm212, %v4486, 0
    %4490 = vmatprep.subr.bf16.mxu0 0
    %4491 = vmatpush1.bf16.msra.mxu0 %v208
    %4492 = vmatprep.subr.bf16.mxu0 0
    %4493 = vmatpush1.bf16.msra.mxu0 %v209
    %4494 = vmatprep.subr.bf16.mxu0 0
    %4495 = vmatpush1.bf16.msra.mxu0 0
    %4496 = vmatprep.subr.bf16.mxu0 0
    %4497 = vmatpush1.bf16.msra.mxu0 0
    %4498 = vmatprep.subr.bf16.mxu0 0
    %4499 = vmatpush1.bf16.msra.mxu0 0
    %4500 = vmatprep.subr.bf16.mxu0 0
    %4501 = vmatpush1.bf16.msra.mxu0 0
    %4502 = vmatprep.subr.bf16.mxu0 0
    %4503 = vmatpush1.bf16.msra.mxu0 0
    %4504 = vmatprep.subr.bf16.mxu0 0
    %4505 = vmatpush1.bf16.msra.mxu0 0
    %4506 = vmatprep.subr.bf16.mxu0 0
    %4507 = vmatpush1.bf16.msra.mxu0 0
    %4508 = vmatprep.subr.bf16.mxu0 0
    %4509 = vmatpush1.bf16.msra.mxu0 0
    %4510 = vmatprep.subr.bf16.mxu0 0
    %4511 = vmatpush1.bf16.msra.mxu0 0
    %4512 = vmatprep.subr.bf16.mxu0 0
    %4513 = vmatpush1.bf16.msra.mxu0 0
    %4514 = vmatprep.subr.bf16.mxu0 0
    %4515 = vmatpush1.bf16.msra.mxu0 0
    %4516 = vmatprep.subr.bf16.mxu0 0
    %4517 = vmatpush1.bf16.msra.mxu0 0
    %4518 = vmatprep.subr.bf16.mxu0 0
    %4519 = vmatpush1.bf16.msra.mxu0 0
    %4520 = vmatprep.subr.bf16.mxu0 0
    %4521 = vmatpush1.bf16.msra.mxu0 0
    %4522 = vmatprep.mubr.bf16.mxu0 0
    %4523 = vmatmul.mubr.bf16.gmra.mrb[0].mxu0 %v4488
    %v4524 = vpop.f32.mrb[0].mxu0
    %v4525 = vadd.f32 0.0, %v4524
    %v4526 = vpop.f32.mrb[0].mxu0
    %v4527 = vpop.f32.mrb[0].mxu0
    %v4528 = vpop.f32.mrb[0].mxu0
    %4529 = vdwg.mxu0
    %v4530 = vadd.f32 %v197, %v4525
    %v4531 = vmul.f32 %v43, %v4530
    %v4532 = vtanh.pop %v4531
    %v4533 = vmul.f32 %v43, %v4532
    %v4534 = vadd.f32 %v4533, %v44
    %v4536 = vrot.slane %v4473, 7
    %v4538 = vmul.f32 %v4534, %v4536
    %4540 = vrot.lane.b32.xlu0 %v4534, 64
    %v4541 = vpop.permute.xlu0 %4540
    %v4543 = vmul.f32 %v4534, %v4541
    %4545 = vrot.lane.b32.xlu0 %v4543, 32
    %v4546 = vpop.permute.xlu0 %4545
    %v4548 = vadd.f32 %v4538, %v4546
    %v4549 = vtanh.pop %v4548
    %4551 = vrot.lane.b32.xlu0 %v4549, 64
    %v4552 = vpop.permute.xlu0 %4551
    %v4554 = vmul.f32 %v4534, %v4552
    %v4555 = vpack.c.bf16 %v4554, %v4554
    %4557 = vrot.lane.b32.xlu0 %v4555, 32
    %v4558 = vpop.permute.xlu0 %4557
    %v4560 = vsel %vm212, %v4558, 0
    %4562 = vmatprep.subr.bf16.mxu0 0
    %4563 = vmatpush1.bf16.msra.mxu0 %v208
    %4564 = vmatprep.subr.bf16.mxu0 0
    %4565 = vmatpush1.bf16.msra.mxu0 %v209
    %4566 = vmatprep.subr.bf16.mxu0 0
    %4567 = vmatpush1.bf16.msra.mxu0 0
    %4568 = vmatprep.subr.bf16.mxu0 0
    %4569 = vmatpush1.bf16.msra.mxu0 0
    %4570 = vmatprep.subr.bf16.mxu0 0
    %4571 = vmatpush1.bf16.msra.mxu0 0
    %4572 = vmatprep.subr.bf16.mxu0 0
    %4573 = vmatpush1.bf16.msra.mxu0 0
    %4574 = vmatprep.subr.bf16.mxu0 0
    %4575 = vmatpush1.bf16.msra.mxu0 0
    %4576 = vmatprep.subr.bf16.mxu0 0
    %4577 = vmatpush1.bf16.msra.mxu0 0
    %4578 = vmatprep.subr.bf16.mxu0 0
    %4579 = vmatpush1.bf16.msra.mxu0 0
    %4580 = vmatprep.subr.bf16.mxu0 0
    %4581 = vmatpush1.bf16.msra.mxu0 0
    %4582 = vmatprep.subr.bf16.mxu0 0
    %4583 = vmatpush1.bf16.msra.mxu0 0
    %4584 = vmatprep.subr.bf16.mxu0 0
    %4585 = vmatpush1.bf16.msra.mxu0 0
    %4586 = vmatprep.subr.bf16.mxu0 0
    %4587 = vmatpush1.bf16.msra.mxu0 0
    %4588 = vmatprep.subr.bf16.mxu0 0
    %4589 = vmatpush1.bf16.msra.mxu0 0
    %4590 = vmatprep.subr.bf16.mxu0 0
    %4591 = vmatpush1.bf16.msra.mxu0 0
    %4592 = vmatprep.subr.bf16.mxu0 0
    %4593 = vmatpush1.bf16.msra.mxu0 0
    %4594 = vmatprep.mubr.bf16.mxu0 0
    %4595 = vmatmul.mubr.bf16.gmra.mrb[0].mxu0 %v4560
    %v4596 = vpop.f32.mrb[0].mxu0
    %v4597 = vadd.f32 0.0, %v4596
    %v4598 = vpop.f32.mrb[0].mxu0
    %v4599 = vpop.f32.mrb[0].mxu0
    %v4600 = vpop.f32.mrb[0].mxu0
    %4601 = vdwg.mxu0
    %v4603 = vrot.slane %v4597, 7
    %v4605 = vadd.f32 %v197, %v4603
    %v4606 = vmul.f32 %v43, %v4605
    %v4607 = vtanh.pop %v4606
    %v4608 = vmul.f32 %v43, %v4607
    %v4609 = vadd.f32 %v4608, %v44
    %v4611 = vrot.slane %v4548, 7
    %v4613 = vmul.f32 %v4609, %v4611
    %4615 = vrot.lane.b32.xlu0 %v4609, 64
    %v4616 = vpop.permute.xlu0 %4615
    %v4618 = vmul.f32 %v4609, %v4616
    %4620 = vrot.lane.b32.xlu0 %v4618, 32
    %v4621 = vpop.permute.xlu0 %4620
    %v4623 = vadd.f32 %v4613, %v4621
    %v4624 = vtanh.pop %v4623
    %4626 = vrot.lane.b32.xlu0 %v4624, 64
    %v4627 = vpop.permute.xlu0 %4626
    %v4629 = vmul.f32 %v4609, %v4627
    %v4630 = vpack.c.bf16 %v4629, %v4629
    %v4632 = vshrl.u32 %v4630, 16
    %4634 = vrot.lane.b32.xlu0 %v4632, 32
    %v4635 = vpop.permute.xlu0 %4634
    %v4637 = vsel %vm212, %v4635, 0
    %4639 = vmatprep.subr.bf16.mxu0 0
    %4640 = vmatpush1.bf16.msra.mxu0 %v208
    %4641 = vmatprep.subr.bf16.mxu0 0
    %4642 = vmatpush1.bf16.msra.mxu0 %v209
    %4643 = vmatprep.subr.bf16.mxu0 0
    %4644 = vmatpush1.bf16.msra.mxu0 0
    %4645 = vmatprep.subr.bf16.mxu0 0
    %4646 = vmatpush1.bf16.msra.mxu0 0
    %4647 = vmatprep.subr.bf16.mxu0 0
    %4648 = vmatpush1.bf16.msra.mxu0 0
    %4649 = vmatprep.subr.bf16.mxu0 0
    %4650 = vmatpush1.bf16.msra.mxu0 0
    %4651 = vmatprep.subr.bf16.mxu0 0
    %4652 = vmatpush1.bf16.msra.mxu0 0
    %4653 = vmatprep.subr.bf16.mxu0 0
    %4654 = vmatpush1.bf16.msra.mxu0 0
    %4655 = vmatprep.subr.bf16.mxu0 0
    %4656 = vmatpush1.bf16.msra.mxu0 0
    %4657 = vmatprep.subr.bf16.mxu0 0
    %4658 = vmatpush1.bf16.msra.mxu0 0
    %4659 = vmatprep.subr.bf16.mxu0 0
    %4660 = vmatpush1.bf16.msra.mxu0 0
    %4661 = vmatprep.subr.bf16.mxu0 0
    %4662 = vmatpush1.bf16.msra.mxu0 0
    %4663 = vmatprep.subr.bf16.mxu0 0
    %4664 = vmatpush1.bf16.msra.mxu0 0
    %4665 = vmatprep.subr.bf16.mxu0 0
    %4666 = vmatpush1.bf16.msra.mxu0 0
    %4667 = vmatprep.subr.bf16.mxu0 0
    %4668 = vmatpush1.bf16.msra.mxu0 0
    %4669 = vmatprep.subr.bf16.mxu0 0
    %4670 = vmatpush1.bf16.msra.mxu0 0
    %4671 = vmatprep.mubr.bf16.mxu0 0
    %4672 = vmatmul.mubr.bf16.gmra.mrb[0].mxu0 %v4637
    %v4673 = vpop.f32.mrb[0].mxu0
    %v4674 = vadd.f32 0.0, %v4673
    %v4675 = vpop.f32.mrb[0].mxu0
    %v4676 = vpop.f32.mrb[0].mxu0
    %v4677 = vpop.f32.mrb[0].mxu0
    %4678 = vdwg.mxu0
    %v4680 = vrot.slane %v4674, 6
    %v4682 = vadd.f32 %v197, %v4680
    %v4683 = vmul.f32 %v43, %v4682
    %v4684 = vtanh.pop %v4683
    %v4685 = vmul.f32 %v43, %v4684
    %v4686 = vadd.f32 %v4685, %v44
    %v4688 = vrot.slane %v4623, 7
    %v4690 = vmul.f32 %v4686, %v4688
    %4692 = vrot.lane.b32.xlu0 %v4686, 64
    %v4693 = vpop.permute.xlu0 %4692
    %v4695 = vmul.f32 %v4686, %v4693
    %4697 = vrot.lane.b32.xlu0 %v4695, 32
    %v4698 = vpop.permute.xlu0 %4697
    %v4700 = vadd.f32 %v4690, %v4698
    %v4701 = vtanh.pop %v4700
    %4703 = vrot.lane.b32.xlu0 %v4701, 64
    %v4704 = vpop.permute.xlu0 %4703
    %v4706 = vmul.f32 %v4686, %v4704
    %v4707 = vpack.c.bf16 %v4706, %v4706
    %v4709 = vrot.slane %v4707, 1
    %4710 = vrot.lane.b32.xlu0 %v4709, 32
    %v4711 = vpop.permute.xlu0 %4710
    %v4713 = vsel %vm212, %v4711, 0
    %4715 = vmatprep.subr.bf16.mxu0 0
    %4716 = vmatpush1.bf16.msra.mxu0 %v208
    %4717 = vmatprep.subr.bf16.mxu0 0
    %4718 = vmatpush1.bf16.msra.mxu0 %v209
    %4719 = vmatprep.subr.bf16.mxu0 0
    %4720 = vmatpush1.bf16.msra.mxu0 0
    %4721 = vmatprep.subr.bf16.mxu0 0
    %4722 = vmatpush1.bf16.msra.mxu0 0
    %4723 = vmatprep.subr.bf16.mxu0 0
    %4724 = vmatpush1.bf16.msra.mxu0 0
    %4725 = vmatprep.subr.bf16.mxu0 0
    %4726 = vmatpush1.bf16.msra.mxu0 0
    %4727 = vmatprep.subr.bf16.mxu0 0
    %4728 = vmatpush1.bf16.msra.mxu0 0
    %4729 = vmatprep.subr.bf16.mxu0 0
    %4730 = vmatpush1.bf16.msra.mxu0 0
    %4731 = vmatprep.subr.bf16.mxu0 0
    %4732 = vmatpush1.bf16.msra.mxu0 0
    %4733 = vmatprep.subr.bf16.mxu0 0
    %4734 = vmatpush1.bf16.msra.mxu0 0
    %4735 = vmatprep.subr.bf16.mxu0 0
    %4736 = vmatpush1.bf16.msra.mxu0 0
    %4737 = vmatprep.subr.bf16.mxu0 0
    %4738 = vmatpush1.bf16.msra.mxu0 0
    %4739 = vmatprep.subr.bf16.mxu0 0
    %4740 = vmatpush1.bf16.msra.mxu0 0
    %4741 = vmatprep.subr.bf16.mxu0 0
    %4742 = vmatpush1.bf16.msra.mxu0 0
    %4743 = vmatprep.subr.bf16.mxu0 0
    %4744 = vmatpush1.bf16.msra.mxu0 0
    %4745 = vmatprep.subr.bf16.mxu0 0
    %4746 = vmatpush1.bf16.msra.mxu0 0
    %4747 = vmatprep.mubr.bf16.mxu0 0
    %4748 = vmatmul.mubr.bf16.gmra.mrb[0].mxu0 %v4713
    %v4749 = vpop.f32.mrb[0].mxu0
    %v4750 = vadd.f32 0.0, %v4749
    %v4751 = vpop.f32.mrb[0].mxu0
    %v4752 = vpop.f32.mrb[0].mxu0
    %v4753 = vpop.f32.mrb[0].mxu0
    %4754 = vdwg.mxu0
    %v4756 = vrot.slane %v4750, 5
    %v4758 = vadd.f32 %v197, %v4756
    %v4759 = vmul.f32 %v43, %v4758
    %v4760 = vtanh.pop %v4759
    %v4761 = vmul.f32 %v43, %v4760
    %v4762 = vadd.f32 %v4761, %v44
    %v4764 = vrot.slane %v4700, 7
    %v4766 = vmul.f32 %v4762, %v4764
    %4768 = vrot.lane.b32.xlu0 %v4762, 64
    %v4769 = vpop.permute.xlu0 %4768
    %v4771 = vmul.f32 %v4762, %v4769
    %4773 = vrot.lane.b32.xlu0 %v4771, 32
    %v4774 = vpop.permute.xlu0 %4773
    %v4776 = vadd.f32 %v4766, %v4774
    %v4777 = vtanh.pop %v4776
    %4779 = vrot.lane.b32.xlu0 %v4777, 64
    %v4780 = vpop.permute.xlu0 %4779
    %v4782 = vmul.f32 %v4762, %v4780
    %v4783 = vpack.c.bf16 %v4782, %v4782
    %v4785 = vshrl.u32 %v4783, 16
    %v4787 = vrot.slane %v4785, 1
    %4788 = vrot.lane.b32.xlu0 %v4787, 32
    %v4789 = vpop.permute.xlu0 %4788
    %v4791 = vsel %vm212, %v4789, 0
    %4793 = vmatprep.subr.bf16.mxu0 0
    %4794 = vmatpush1.bf16.msra.mxu0 %v208
    %4795 = vmatprep.subr.bf16.mxu0 0
    %4796 = vmatpush1.bf16.msra.mxu0 %v209
    %4797 = vmatprep.subr.bf16.mxu0 0
    %4798 = vmatpush1.bf16.msra.mxu0 0
    %4799 = vmatprep.subr.bf16.mxu0 0
    %4800 = vmatpush1.bf16.msra.mxu0 0
    %4801 = vmatprep.subr.bf16.mxu0 0
    %4802 = vmatpush1.bf16.msra.mxu0 0
    %4803 = vmatprep.subr.bf16.mxu0 0
    %4804 = vmatpush1.bf16.msra.mxu0 0
    %4805 = vmatprep.subr.bf16.mxu0 0
    %4806 = vmatpush1.bf16.msra.mxu0 0
    %4807 = vmatprep.subr.bf16.mxu0 0
    %4808 = vmatpush1.bf16.msra.mxu0 0
    %4809 = vmatprep.subr.bf16.mxu0 0
    %4810 = vmatpush1.bf16.msra.mxu0 0
    %4811 = vmatprep.subr.bf16.mxu0 0
    %4812 = vmatpush1.bf16.msra.mxu0 0
    %4813 = vmatprep.subr.bf16.mxu0 0
    %4814 = vmatpush1.bf16.msra.mxu0 0
    %4815 = vmatprep.subr.bf16.mxu0 0
    %4816 = vmatpush1.bf16.msra.mxu0 0
    %4817 = vmatprep.subr.bf16.mxu0 0
    %4818 = vmatpush1.bf16.msra.mxu0 0
    %4819 = vmatprep.subr.bf16.mxu0 0
    %4820 = vmatpush1.bf16.msra.mxu0 0
    %4821 = vmatprep.subr.bf16.mxu0 0
    %4822 = vmatpush1.bf16.msra.mxu0 0
    %4823 = vmatprep.subr.bf16.mxu0 0
    %4824 = vmatpush1.bf16.msra.mxu0 0
    %4825 = vmatprep.mubr.bf16.mxu0 0
    %4826 = vmatmul.mubr.bf16.gmra.mrb[0].mxu0 %v4791
    %v4827 = vpop.f32.mrb[0].mxu0
    %v4828 = vadd.f32 0.0, %v4827
    %v4829 = vpop.f32.mrb[0].mxu0
    %v4830 = vpop.f32.mrb[0].mxu0
    %v4831 = vpop.f32.mrb[0].mxu0
    %4832 = vdwg.mxu0
    %v4834 = vrot.slane %v4828, 4
    %v4836 = vadd.f32 %v197, %v4834
    %v4837 = vmul.f32 %v43, %v4836
    %v4838 = vtanh.pop %v4837
    %v4839 = vmul.f32 %v43, %v4838
    %v4840 = vadd.f32 %v4839, %v44
    %v4842 = vrot.slane %v4776, 7
    %v4844 = vmul.f32 %v4840, %v4842
    %4846 = vrot.lane.b32.xlu0 %v4840, 64
    %v4847 = vpop.permute.xlu0 %4846
    %v4849 = vmul.f32 %v4840, %v4847
    %4851 = vrot.lane.b32.xlu0 %v4849, 32
    %v4852 = vpop.permute.xlu0 %4851
    %v4854 = vadd.f32 %v4844, %v4852
    %v4855 = vtanh.pop %v4854
    %4857 = vrot.lane.b32.xlu0 %v4855, 64
    %v4858 = vpop.permute.xlu0 %4857
    %v4860 = vmul.f32 %v4840, %v4858
    %v4861 = vpack.c.bf16 %v4860, %v4860
    %v4863 = vrot.slane %v4861, 2
    %4864 = vrot.lane.b32.xlu0 %v4863, 32
    %v4865 = vpop.permute.xlu0 %4864
    %v4867 = vsel %vm212, %v4865, 0
    %4869 = vmatprep.subr.bf16.mxu0 0
    %4870 = vmatpush1.bf16.msra.mxu0 %v208
    %4871 = vmatprep.subr.bf16.mxu0 0
    %4872 = vmatpush1.bf16.msra.mxu0 %v209
    %4873 = vmatprep.subr.bf16.mxu0 0
    %4874 = vmatpush1.bf16.msra.mxu0 0
    %4875 = vmatprep.subr.bf16.mxu0 0
    %4876 = vmatpush1.bf16.msra.mxu0 0
    %4877 = vmatprep.subr.bf16.mxu0 0
    %4878 = vmatpush1.bf16.msra.mxu0 0
    %4879 = vmatprep.subr.bf16.mxu0 0
    %4880 = vmatpush1.bf16.msra.mxu0 0
    %4881 = vmatprep.subr.bf16.mxu0 0
    %4882 = vmatpush1.bf16.msra.mxu0 0
    %4883 = vmatprep.subr.bf16.mxu0 0
    %4884 = vmatpush1.bf16.msra.mxu0 0
    %4885 = vmatprep.subr.bf16.mxu0 0
    %4886 = vmatpush1.bf16.msra.mxu0 0
    %4887 = vmatprep.subr.bf16.mxu0 0
    %4888 = vmatpush1.bf16.msra.mxu0 0
    %4889 = vmatprep.subr.bf16.mxu0 0
    %4890 = vmatpush1.bf16.msra.mxu0 0
    %4891 = vmatprep.subr.bf16.mxu0 0
    %4892 = vmatpush1.bf16.msra.mxu0 0
    %4893 = vmatprep.subr.bf16.mxu0 0
    %4894 = vmatpush1.bf16.msra.mxu0 0
    %4895 = vmatprep.subr.bf16.mxu0 0
    %4896 = vmatpush1.bf16.msra.mxu0 0
    %4897 = vmatprep.subr.bf16.mxu0 0
    %4898 = vmatpush1.bf16.msra.mxu0 0
    %4899 = vmatprep.subr.bf16.mxu0 0
    %4900 = vmatpush1.bf16.msra.mxu0 0
    %4901 = vmatprep.mubr.bf16.mxu0 0
    %4902 = vmatmul.mubr.bf16.gmra.mrb[0].mxu0 %v4867
    %v4903 = vpop.f32.mrb[0].mxu0
    %v4904 = vadd.f32 0.0, %v4903
    %v4905 = vpop.f32.mrb[0].mxu0
    %v4906 = vpop.f32.mrb[0].mxu0
    %v4907 = vpop.f32.mrb[0].mxu0
    %4908 = vdwg.mxu0
    %v4910 = vrot.slane %v4904, 3
    %v4912 = vadd.f32 %v197, %v4910
    %v4913 = vmul.f32 %v43, %v4912
    %v4914 = vtanh.pop %v4913
    %v4915 = vmul.f32 %v43, %v4914
    %v4916 = vadd.f32 %v4915, %v44
    %v4918 = vrot.slane %v4854, 7
    %v4920 = vmul.f32 %v4916, %v4918
    %4922 = vrot.lane.b32.xlu0 %v4916, 64
    %v4923 = vpop.permute.xlu0 %4922
    %v4925 = vmul.f32 %v4916, %v4923
    %4927 = vrot.lane.b32.xlu0 %v4925, 32
    %v4928 = vpop.permute.xlu0 %4927
    %v4930 = vadd.f32 %v4920, %v4928
    %v4931 = vtanh.pop %v4930
    %4933 = vrot.lane.b32.xlu0 %v4931, 64
    %v4934 = vpop.permute.xlu0 %4933
    %v4936 = vmul.f32 %v4916, %v4934
    %v4937 = vpack.c.bf16 %v4936, %v4936
    %v4939 = vshrl.u32 %v4937, 16
    %v4941 = vrot.slane %v4939, 2
    %4942 = vrot.lane.b32.xlu0 %v4941, 32
    %v4943 = vpop.permute.xlu0 %4942
    %v4945 = vsel %vm212, %v4943, 0
    %4947 = vmatprep.subr.bf16.mxu0 0
    %4948 = vmatpush1.bf16.msra.mxu0 %v208
    %4949 = vmatprep.subr.bf16.mxu0 0
    %4950 = vmatpush1.bf16.msra.mxu0 %v209
    %4951 = vmatprep.subr.bf16.mxu0 0
    %4952 = vmatpush1.bf16.msra.mxu0 0
    %4953 = vmatprep.subr.bf16.mxu0 0
    %4954 = vmatpush1.bf16.msra.mxu0 0
    %4955 = vmatprep.subr.bf16.mxu0 0
    %4956 = vmatpush1.bf16.msra.mxu0 0
    %4957 = vmatprep.subr.bf16.mxu0 0
    %4958 = vmatpush1.bf16.msra.mxu0 0
    %4959 = vmatprep.subr.bf16.mxu0 0
    %4960 = vmatpush1.bf16.msra.mxu0 0
    %4961 = vmatprep.subr.bf16.mxu0 0
    %4962 = vmatpush1.bf16.msra.mxu0 0
    %4963 = vmatprep.subr.bf16.mxu0 0
    %4964 = vmatpush1.bf16.msra.mxu0 0
    %4965 = vmatprep.subr.bf16.mxu0 0
    %4966 = vmatpush1.bf16.msra.mxu0 0
    %4967 = vmatprep.subr.bf16.mxu0 0
    %4968 = vmatpush1.bf16.msra.mxu0 0
    %4969 = vmatprep.subr.bf16.mxu0 0
    %4970 = vmatpush1.bf16.msra.mxu0 0
    %4971 = vmatprep.subr.bf16.mxu0 0
    %4972 = vmatpush1.bf16.msra.mxu0 0
    %4973 = vmatprep.subr.bf16.mxu0 0
    %4974 = vmatpush1.bf16.msra.mxu0 0
    %4975 = vmatprep.subr.bf16.mxu0 0
    %4976 = vmatpush1.bf16.msra.mxu0 0
    %4977 = vmatprep.subr.bf16.mxu0 0
    %4978 = vmatpush1.bf16.msra.mxu0 0
    %4979 = vmatprep.mubr.bf16.mxu0 0
    %4980 = vmatmul.mubr.bf16.gmra.mrb[0].mxu0 %v4945
    %v4981 = vpop.f32.mrb[0].mxu0
    %v4982 = vadd.f32 0.0, %v4981
    %v4983 = vpop.f32.mrb[0].mxu0
    %v4984 = vpop.f32.mrb[0].mxu0
    %v4985 = vpop.f32.mrb[0].mxu0
    %4986 = vdwg.mxu0
    %v4988 = vrot.slane %v4982, 2
    %v4990 = vadd.f32 %v197, %v4988
    %v4991 = vmul.f32 %v43, %v4990
    %v4992 = vtanh.pop %v4991
    %v4993 = vmul.f32 %v43, %v4992
    %v4994 = vadd.f32 %v4993, %v44
    %v4996 = vrot.slane %v4930, 7
    %v4998 = vmul.f32 %v4994, %v4996
    %5000 = vrot.lane.b32.xlu0 %v4994, 64
    %v5001 = vpop.permute.xlu0 %5000
    %v5003 = vmul.f32 %v4994, %v5001
    %5005 = vrot.lane.b32.xlu0 %v5003, 32
    %v5006 = vpop.permute.xlu0 %5005
    %v5008 = vadd.f32 %v4998, %v5006
    %v5009 = vtanh.pop %v5008
    %5011 = vrot.lane.b32.xlu0 %v5009, 64
    %v5012 = vpop.permute.xlu0 %5011
    %v5014 = vmul.f32 %v4994, %v5012
    %v5015 = vpack.c.bf16 %v5014, %v5014
    %v5017 = vrot.slane %v5015, 3
    %5018 = vrot.lane.b32.xlu0 %v5017, 32
    %v5019 = vpop.permute.xlu0 %5018
    %v5021 = vsel %vm212, %v5019, 0
    %5023 = vmatprep.subr.bf16.mxu0 0
    %5024 = vmatpush1.bf16.msra.mxu0 %v208
    %5025 = vmatprep.subr.bf16.mxu0 0
    %5026 = vmatpush1.bf16.msra.mxu0 %v209
    %5027 = vmatprep.subr.bf16.mxu0 0
    %5028 = vmatpush1.bf16.msra.mxu0 0
    %5029 = vmatprep.subr.bf16.mxu0 0
    %5030 = vmatpush1.bf16.msra.mxu0 0
    %5031 = vmatprep.subr.bf16.mxu0 0
    %5032 = vmatpush1.bf16.msra.mxu0 0
    %5033 = vmatprep.subr.bf16.mxu0 0
    %5034 = vmatpush1.bf16.msra.mxu0 0
    %5035 = vmatprep.subr.bf16.mxu0 0
    %5036 = vmatpush1.bf16.msra.mxu0 0
    %5037 = vmatprep.subr.bf16.mxu0 0
    %5038 = vmatpush1.bf16.msra.mxu0 0
    %5039 = vmatprep.subr.bf16.mxu0 0
    %5040 = vmatpush1.bf16.msra.mxu0 0
    %5041 = vmatprep.subr.bf16.mxu0 0
    %5042 = vmatpush1.bf16.msra.mxu0 0
    %5043 = vmatprep.subr.bf16.mxu0 0
    %5044 = vmatpush1.bf16.msra.mxu0 0
    %5045 = vmatprep.subr.bf16.mxu0 0
    %5046 = vmatpush1.bf16.msra.mxu0 0
    %5047 = vmatprep.subr.bf16.mxu0 0
    %5048 = vmatpush1.bf16.msra.mxu0 0
    %5049 = vmatprep.subr.bf16.mxu0 0
    %5050 = vmatpush1.bf16.msra.mxu0 0
    %5051 = vmatprep.subr.bf16.mxu0 0
    %5052 = vmatpush1.bf16.msra.mxu0 0
    %5053 = vmatprep.subr.bf16.mxu0 0
    %5054 = vmatpush1.bf16.msra.mxu0 0
    %5055 = vmatprep.mubr.bf16.mxu0 0
    %5056 = vmatmul.mubr.bf16.gmra.mrb[0].mxu0 %v5021
    %v5057 = vpop.f32.mrb[0].mxu0
    %v5058 = vadd.f32 0.0, %v5057
    %v5059 = vpop.f32.mrb[0].mxu0
    %v5060 = vpop.f32.mrb[0].mxu0
    %v5061 = vpop.f32.mrb[0].mxu0
    %5062 = vdwg.mxu0
    %v5064 = vrot.slane %v5058, 1
    %v5066 = vadd.f32 %v197, %v5064
    %v5067 = vmul.f32 %v43, %v5066
    %v5068 = vtanh.pop %v5067
    %v5069 = vmul.f32 %v43, %v5068
    %v5070 = vadd.f32 %v5069, %v44
    %v5072 = vrot.slane %v5008, 7
    %v5074 = vmul.f32 %v5070, %v5072
    %5076 = vrot.lane.b32.xlu0 %v5070, 64
    %v5077 = vpop.permute.xlu0 %5076
    %v5079 = vmul.f32 %v5070, %v5077
    %5081 = vrot.lane.b32.xlu0 %v5079, 32
    %v5082 = vpop.permute.xlu0 %5081
    %v5084 = vadd.f32 %v5074, %v5082
    %v5085 = vtanh.pop %v5084
    %5087 = vrot.lane.b32.xlu0 %v5085, 64
    %v5088 = vpop.permute.xlu0 %5087
    %v5090 = vmul.f32 %v5070, %v5088
    %v5091 = vld [vmem:[%s5] sm:$0xff]
    %v5092 = vld [vmem:[%s5 + $0x8] sm:$0xff]
    %v5093 = vld [vmem:[%s5 + $0x10] sm:$0xff]
    %v5094 = vld [vmem:[%s5 + $0x18] sm:$0xff]
    %v5095 = vld [vmem:[%s5 + $0x20] sm:$0xff]
    %v5096 = vld [vmem:[%s5 + $0x28] sm:$0xff]
    %v5097 = vld [vmem:[%s5 + $0x30] sm:$0xff]
    %v5098 = vld [vmem:[%s5 + $0x38] sm:$0xff]
    %v5099 = vld [vmem:[%s5 + $0x40] sm:$0xff]
    %v5100 = vld [vmem:[%s5 + $0x48] sm:$0xff]
    %v5101 = vld [vmem:[%s5 + $0x50] sm:$0xff]
    %v5102 = vld [vmem:[%s5 + $0x58] sm:$0xff]
    %v5103 = vld [vmem:[%s5 + $0x60] sm:$0xff]
    %v5104 = vld [vmem:[%s5 + $0x68] sm:$0xff]
    %v5105 = vld [vmem:[%s5 + $0x70] sm:$0xff]
    %v5106 = vld [vmem:[%s5 + $0x78] sm:$0xff]
    %v5107 = vld [vmem:[%s6] sm:$0xff]
    %v5108 = vld [vmem:[%s6 + $0x8] sm:$0xff]
    %v5109 = vld [vmem:[%s7] sm:$0x1]
    %v5111 = vlaneseq
    %v5112 = vshrl.u32 %v5111, 7
    %v5113 = vsub.s32 0, %v5112
    %v5114 = vrot.slane %v5109, %v5113
    %vm5116 = vcmask 130048
    %v5118 = vsel %vm5116, %v5091, 0
    %v5121 = vsel %vm5116, %v5092, 0
    %v5124 = vsel %vm5116, %v5093, 0
    %v5127 = vsel %vm5116, %v5094, 0
    %v5130 = vsel %vm5116, %v5095, 0
    %v5133 = vsel %vm5116, %v5096, 0
    %v5136 = vsel %vm5116, %v5097, 0
    %v5139 = vsel %vm5116, %v5098, 0
    %v5142 = vsel %vm5116, %v5099, 0
    %v5145 = vsel %vm5116, %v5100, 0
    %v5148 = vsel %vm5116, %v5101, 0
    %v5151 = vsel %vm5116, %v5102, 0
    %v5154 = vsel %vm5116, %v5103, 0
    %v5157 = vsel %vm5116, %v5104, 0
    %v5160 = vsel %vm5116, %v5105, 0
    %v5163 = vsel %vm5116, %v5106, 0
    %5165 = vmatprep.subr.mxu0 0.0
    %5166 = vmatpush1.msra.mxu0 %v5107
    %5167 = vmatprep.subr.mxu0 0.0
    %5168 = vmatpush1.msra.mxu0 %v5108
    %5169 = vmatprep.subr.mxu0 0.0
    %5170 = vmatpush1.msra.mxu0 0.0
    %5171 = vmatprep.subr.mxu0 0.0
    %5172 = vmatpush1.msra.mxu0 0.0
    %5173 = vmatprep.subr.mxu0 0.0
    %5174 = vmatpush1.msra.mxu0 0.0
    %5175 = vmatprep.subr.mxu0 0.0
    %5176 = vmatpush1.msra.mxu0 0.0
    %5177 = vmatprep.subr.mxu0 0.0
    %5178 = vmatpush1.msra.mxu0 0.0
    %5179 = vmatprep.subr.mxu0 0.0
    %5180 = vmatpush1.msra.mxu0 0.0
    %5181 = vmatprep.subr.mxu0 0.0
    %5182 = vmatpush1.msra.mxu0 0.0
    %5183 = vmatprep.subr.mxu0 0.0
    %5184 = vmatpush1.msra.mxu0 0.0
    %5185 = vmatprep.subr.mxu0 0.0
    %5186 = vmatpush1.msra.mxu0 0.0
    %5187 = vmatprep.subr.mxu0 0.0
    %5188 = vmatpush1.msra.mxu0 0.0
    %5189 = vmatprep.subr.mxu0 0.0
    %5190 = vmatpush1.msra.mxu0 0.0
    %5191 = vmatprep.subr.mxu0 0.0
    %5192 = vmatpush1.msra.mxu0 0.0
    %5193 = vmatprep.subr.mxu0 0.0
    %5194 = vmatpush1.msra.mxu0 0.0
    %5195 = vmatprep.subr.mxu0 0.0
    %5196 = vmatpush1.msra.mxu0 0.0
    %5197 = vmatprep.subr.mxu0 0.0
    %5198 = vmatpush1.msra.mxu0 0.0
    %5199 = vmatprep.subr.mxu0 0.0
    %5200 = vmatpush1.msra.mxu0 0.0
    %5201 = vmatprep.subr.mxu0 0.0
    %5202 = vmatpush1.msra.mxu0 0.0
    %5203 = vmatprep.subr.mxu0 0.0
    %5204 = vmatpush1.msra.mxu0 0.0
    %5205 = vmatprep.subr.mxu0 0.0
    %5206 = vmatpush1.msra.mxu0 0.0
    %5207 = vmatprep.subr.mxu0 0.0
    %5208 = vmatpush1.msra.mxu0 0.0
    %5209 = vmatprep.subr.mxu0 0.0
    %5210 = vmatpush1.msra.mxu0 0.0
    %5211 = vmatprep.subr.mxu0 0.0
    %5212 = vmatpush1.msra.mxu0 0.0
    %5213 = vmatprep.subr.mxu0 0.0
    %5214 = vmatpush1.msra.mxu0 0.0
    %5215 = vmatprep.subr.mxu0 0.0
    %5216 = vmatpush1.msra.mxu0 0.0
    %5217 = vmatprep.subr.mxu0 0.0
    %5218 = vmatpush1.msra.mxu0 0.0
    %5219 = vmatprep.subr.mxu0 0.0
    %5220 = vmatpush1.msra.mxu0 0.0
    %5221 = vmatprep.subr.mxu0 0.0
    %5222 = vmatpush1.msra.mxu0 0.0
    %5223 = vmatprep.subr.mxu0 0.0
    %5224 = vmatpush1.msra.mxu0 0.0
    %5225 = vmatprep.subr.mxu0 0.0
    %5226 = vmatpush1.msra.mxu0 0.0
    %5227 = vmatprep.subr.mxu0 0.0
    %5228 = vmatpush1.msra.mxu0 0.0
    %5229 = vmatprep.mubr.f32.mxu0 0.0
    %5230 = vmatmul.mubr.f32.gmra.mrb[0].mxu0 %v5118
    %v5231 = vpop.f32.mrb[0].mxu0
    %v5232 = vadd.f32 %v5114, %v5231
    %v5233 = vpop.f32.mrb[0].mxu0
    %5234 = vmatprep.mubr.f32.mxu0 0.0
    %5235 = vmatmul.mubr.f32.gmra.mrb[0].mxu0 %v5121
    %v5236 = vpop.f32.mrb[0].mxu0
    %v5237 = vadd.f32 %v5114, %v5236
    %v5238 = vpop.f32.mrb[0].mxu0
    %5239 = vmatprep.mubr.f32.mxu0 0.0
    %5240 = vmatmul.mubr.f32.gmra.mrb[0].mxu0 %v5124
    %v5241 = vpop.f32.mrb[0].mxu0
    %v5242 = vadd.f32 %v5114, %v5241
    %v5243 = vpop.f32.mrb[0].mxu0
    %5244 = vmatprep.mubr.f32.mxu0 0.0
    %5245 = vmatmul.mubr.f32.gmra.mrb[0].mxu0 %v5127
    %v5246 = vpop.f32.mrb[0].mxu0
    %v5247 = vadd.f32 %v5114, %v5246
    %v5248 = vpop.f32.mrb[0].mxu0
    %5249 = vmatprep.mubr.f32.mxu0 0.0
    %5250 = vmatmul.mubr.f32.gmra.mrb[0].mxu0 %v5130
    %v5251 = vpop.f32.mrb[0].mxu0
    %v5252 = vadd.f32 %v5114, %v5251
    %v5253 = vpop.f32.mrb[0].mxu0
    %5254 = vmatprep.mubr.f32.mxu0 0.0
    %5255 = vmatmul.mubr.f32.gmra.mrb[0].mxu0 %v5133
    %v5256 = vpop.f32.mrb[0].mxu0
    %v5257 = vadd.f32 %v5114, %v5256
    %v5258 = vpop.f32.mrb[0].mxu0
    %5259 = vmatprep.mubr.f32.mxu0 0.0
    %5260 = vmatmul.mubr.f32.gmra.mrb[0].mxu0 %v5136
    %v5261 = vpop.f32.mrb[0].mxu0
    %v5262 = vadd.f32 %v5114, %v5261
    %v5263 = vpop.f32.mrb[0].mxu0
    %5264 = vmatprep.mubr.f32.mxu0 0.0
    %5265 = vmatmul.mubr.f32.gmra.mrb[0].mxu0 %v5139
    %v5266 = vpop.f32.mrb[0].mxu0
    %v5267 = vadd.f32 %v5114, %v5266
    %v5268 = vpop.f32.mrb[0].mxu0
    %5269 = vmatprep.mubr.f32.mxu0 0.0
    %5270 = vmatmul.mubr.f32.gmra.mrb[0].mxu0 %v5142
    %v5271 = vpop.f32.mrb[0].mxu0
    %v5272 = vadd.f32 %v5114, %v5271
    %v5273 = vpop.f32.mrb[0].mxu0
    %5274 = vmatprep.mubr.f32.mxu0 0.0
    %5275 = vmatmul.mubr.f32.gmra.mrb[0].mxu0 %v5145
    %v5276 = vpop.f32.mrb[0].mxu0
    %v5277 = vadd.f32 %v5114, %v5276
    %v5278 = vpop.f32.mrb[0].mxu0
    %5279 = vmatprep.mubr.f32.mxu0 0.0
    %5280 = vmatmul.mubr.f32.gmra.mrb[0].mxu0 %v5148
    %v5281 = vpop.f32.mrb[0].mxu0
    %v5282 = vadd.f32 %v5114, %v5281
    %v5283 = vpop.f32.mrb[0].mxu0
    %5284 = vmatprep.mubr.f32.mxu0 0.0
    %5285 = vmatmul.mubr.f32.gmra.mrb[0].mxu0 %v5151
    %v5286 = vpop.f32.mrb[0].mxu0
    %v5287 = vadd.f32 %v5114, %v5286
    %v5288 = vpop.f32.mrb[0].mxu0
    %5289 = vmatprep.mubr.f32.mxu0 0.0
    %5290 = vmatmul.mubr.f32.gmra.mrb[0].mxu0 %v5154
    %v5291 = vpop.f32.mrb[0].mxu0
    %v5292 = vadd.f32 %v5114, %v5291
    %v5293 = vpop.f32.mrb[0].mxu0
    %5294 = vmatprep.mubr.f32.mxu0 0.0
    %5295 = vmatmul.mubr.f32.gmra.mrb[0].mxu0 %v5157
    %v5296 = vpop.f32.mrb[0].mxu0
    %v5297 = vadd.f32 %v5114, %v5296
    %v5298 = vpop.f32.mrb[0].mxu0
    %5299 = vmatprep.mubr.f32.mxu0 0.0
    %5300 = vmatmul.mubr.f32.gmra.mrb[0].mxu0 %v5160
    %v5301 = vpop.f32.mrb[0].mxu0
    %v5302 = vadd.f32 %v5114, %v5301
    %v5303 = vpop.f32.mrb[0].mxu0
    %5304 = vmatprep.mubr.f32.mxu0 0.0
    %5305 = vmatmul.mubr.f32.gmra.mrb[0].mxu0 %v5163
    %v5306 = vpop.f32.mrb[0].mxu0
    %v5307 = vadd.f32 %v5114, %v5306
    %v5308 = vpop.f32.mrb[0].mxu0
    %5309 = vdwg.mxu0
    %v5310 = vpack.c.bf16 %v5237, %v5232
    %v5311 = vpack.c.bf16 %v5247, %v5242
    %v5312 = vpack.c.bf16 %v5257, %v5252
    %v5313 = vpack.c.bf16 %v5267, %v5262
    %v5314 = vpack.c.bf16 %v5277, %v5272
    %v5315 = vpack.c.bf16 %v5287, %v5282
    %v5316 = vpack.c.bf16 %v5297, %v5292
    %v5317 = vpack.c.bf16 %v5307, %v5302
    %v5318 = vcvt.s32.f32 %v39
    %s5319 = sld [smem:[#allocation2]]
    %v5320 = vstv %s5319
    %vm5321 = vcmp.eq.s32.totalorder %v39, %v5320
    %v5322 = vsel %vm5321, 1, 0
    %v5323 = vcvt.s32.f32 %v5322
    %v5324 = vpack.c.bf16 %v5323, %v5323
    %v5325 = vpack.c.bf16 %v5090, %v5090
    %v5327 = vshrl.u32 %v5325, 16
    %v5329 = vrot.slane %v5327, 3
    %5330 = vrot.lane.b32.xlu0 %v5329, 32
    %v5331 = vpop.permute.xlu0 %5330
    %v5336 = vunpack.c.l.b16 %v49
    %v5337 = vunpack.c.h.b16 %v49
    %v5338 = vunpack.c.l.b16 %v50
    %v5339 = vunpack.c.h.b16 %v50
    %v5340 = vunpack.c.l.b16 %v51
    %v5341 = vunpack.c.h.b16 %v51
    %v5342 = vunpack.c.l.b16 %v52
    %v5343 = vunpack.c.h.b16 %v52
    %v5344 = vpack.c.b16 %v5338, %v5336
    %v5345 = vpack.c.b16 %v5339, %v5337
    %v5346 = vpack.c.b16 %v5342, %v5340
    %v5347 = vpack.c.b16 %v5343, %v5341
    %v5353 = vsel %vm212, %v5331, 0
    %5355 = vmatprep.subr.bf16.mxu0 %v5345
    %5356 = vmatpush1.bf16.msra.mxu0 %v5344
    %5357 = vmatprep.subr.bf16.mxu0 %v5347
    %5358 = vmatpush1.bf16.msra.mxu0 %v5346
    %5359 = vmatprep.subr.bf16.mxu0 0
    %5360 = vmatpush1.bf16.msra.mxu0 0
    %5361 = vmatprep.subr.bf16.mxu0 0
    %5362 = vmatpush1.bf16.msra.mxu0 0
    %5363 = vmatprep.subr.bf16.mxu0 0
    %5364 = vmatpush1.bf16.msra.mxu0 0
    %5365 = vmatprep.subr.bf16.mxu0 0
    %5366 = vmatpush1.bf16.msra.mxu0 0
    %5367 = vmatprep.subr.bf16.mxu0 0
    %5368 = vmatpush1.bf16.msra.mxu0 0
    %5369 = vmatprep.subr.bf16.mxu0 0
    %5370 = vmatpush1.bf16.msra.mxu0 0
    %5371 = vmatprep.subr.bf16.mxu0 0
    %5372 = vmatpush1.bf16.msra.mxu0 0
    %5373 = vmatprep.subr.bf16.mxu0 0
    %5374 = vmatpush1.bf16.msra.mxu0 0
    %5375 = vmatprep.subr.bf16.mxu0 0
    %5376 = vmatpush1.bf16.msra.mxu0 0
    %5377 = vmatprep.subr.bf16.mxu0 0
    %5378 = vmatpush1.bf16.msra.mxu0 0
    %5379 = vmatprep.subr.bf16.mxu0 0
    %5380 = vmatpush1.bf16.msra.mxu0 0
    %5381 = vmatprep.subr.bf16.mxu0 0
    %5382 = vmatpush1.bf16.msra.mxu0 0
    %5383 = vmatprep.subr.bf16.mxu0 0
    %5384 = vmatpush1.bf16.msra.mxu0 0
    %5385 = vmatprep.subr.bf16.mxu0 0
    %5386 = vmatpush1.bf16.msra.mxu0 0
    %5387 = vmatprep.mubr.bf16.mxu0 0
    %5388 = vmatmul.mubr.bf16.gmra.mrb[0].mxu0 %v5353
    %v5389 = vpop.f32.mrb[0].mxu0
    %v5390 = vadd.f32 0.0, %v5389
    %v5391 = vpop.f32.mrb[0].mxu0
    %v5392 = vpop.f32.mrb[0].mxu0
    %v5393 = vpop.f32.mrb[0].mxu0
    %5394 = vdwg.mxu0
    %5395 = vmatprep.subr.bf16.mxu0 0
    %5396 = vmatpush1.bf16.msra.mxu0 %v5310
    %5397 = vmatprep.subr.bf16.mxu0 0
    %5398 = vmatpush1.bf16.msra.mxu0 %v5311
    %5399 = vmatprep.subr.bf16.mxu0 0
    %5400 = vmatpush1.bf16.msra.mxu0 %v5312
    %5401 = vmatprep.subr.bf16.mxu0 0
    %5402 = vmatpush1.bf16.msra.mxu0 %v5313
    %5403 = vmatprep.subr.bf16.mxu0 0
    %5404 = vmatpush1.bf16.msra.mxu0 %v5314
    %5405 = vmatprep.subr.bf16.mxu0 0
    %5406 = vmatpush1.bf16.msra.mxu0 %v5315
    %5407 = vmatprep.subr.bf16.mxu0 0
    %5408 = vmatpush1.bf16.msra.mxu0 %v5316
    %5409 = vmatprep.subr.bf16.mxu0 0
    %5410 = vmatpush1.bf16.msra.mxu0 %v5317
    %5411 = vmatprep.subr.bf16.mxu0 0
    %5412 = vmatpush1.bf16.msra.mxu0 0
    %5413 = vmatprep.subr.bf16.mxu0 0
    %5414 = vmatpush1.bf16.msra.mxu0 0
    %5415 = vmatprep.subr.bf16.mxu0 0
    %5416 = vmatpush1.bf16.msra.mxu0 0
    %5417 = vmatprep.subr.bf16.mxu0 0
    %5418 = vmatpush1.bf16.msra.mxu0 0
    %5419 = vmatprep.subr.bf16.mxu0 0
    %5420 = vmatpush1.bf16.msra.mxu0 0
    %5421 = vmatprep.subr.bf16.mxu0 0
    %5422 = vmatpush1.bf16.msra.mxu0 0
    %5423 = vmatprep.subr.bf16.mxu0 0
    %5424 = vmatpush1.bf16.msra.mxu0 0
    %5425 = vmatprep.subr.bf16.mxu0 0
    %5426 = vmatpush1.bf16.msra.mxu0 0
    %5427 = vmatprep.mubr.bf16.mxu0 0
    %5428 = vmatmul.mubr.bf16.gmra.mrb[0].mxu0 %v5324
    %v5429 = vpop.f32.mrb[0].mxu0
    %v5430 = vadd.f32 %v5390, %v5429
    %v5431 = vpop.f32.mrb[0].mxu0
    %v5432 = vpop.f32.mrb[0].mxu0
    %v5433 = vpop.f32.mrb[0].mxu0
    %5434 = vdwg.mxu0
    %v5435 = vmul.f32 %v43, %v5430
    %v5436 = vtanh.pop %v5435
    %v5437 = vmul.f32 %v43, %v5436
    %v5438 = vadd.f32 %v5437, %v44
    %v5440 = vrot.slane %v5084, 7
    %v5442 = vmul.f32 %v5438, %v5440
    %5444 = vrot.lane.b32.xlu0 %v5438, 64
    %v5445 = vpop.permute.xlu0 %5444
    %v5447 = vmul.f32 %v5438, %v5445
    %5449 = vrot.lane.b32.xlu0 %v5447, 32
    %v5450 = vpop.permute.xlu0 %5449
    %v5452 = vadd.f32 %v5442, %v5450
    %v5453 = vtanh.pop %v5452
    %5455 = vrot.lane.b32.xlu0 %v5453, 64
    %v5456 = vpop.permute.xlu0 %5455
    %v5458 = vmul.f32 %v5438, %v5456
    %v5459 = vpack.c.bf16 %v5458, %v5458
    %5461 = vrot.lane.b32.xlu0 %v5459, 32
    %v5462 = vpop.permute.xlu0 %5461
    %v5464 = vsel %vm212, %v5462, 0
    %5466 = vmatprep.subr.bf16.mxu0 %v5345
    %5467 = vmatpush1.bf16.msra.mxu0 %v5344
    %5468 = vmatprep.subr.bf16.mxu0 %v5347
    %5469 = vmatpush1.bf16.msra.mxu0 %v5346
    %5470 = vmatprep.subr.bf16.mxu0 0
    %5471 = vmatpush1.bf16.msra.mxu0 0
    %5472 = vmatprep.subr.bf16.mxu0 0
    %5473 = vmatpush1.bf16.msra.mxu0 0
    %5474 = vmatprep.subr.bf16.mxu0 0
    %5475 = vmatpush1.bf16.msra.mxu0 0
    %5476 = vmatprep.subr.bf16.mxu0 0
    %5477 = vmatpush1.bf16.msra.mxu0 0
    %5478 = vmatprep.subr.bf16.mxu0 0
    %5479 = vmatpush1.bf16.msra.mxu0 0
    %5480 = vmatprep.subr.bf16.mxu0 0
    %5481 = vmatpush1.bf16.msra.mxu0 0
    %5482 = vmatprep.subr.bf16.mxu0 0
    %5483 = vmatpush1.bf16.msra.mxu0 0
    %5484 = vmatprep.subr.bf16.mxu0 0
    %5485 = vmatpush1.bf16.msra.mxu0 0
    %5486 = vmatprep.subr.bf16.mxu0 0
    %5487 = vmatpush1.bf16.msra.mxu0 0
    %5488 = vmatprep.subr.bf16.mxu0 0
    %5489 = vmatpush1.bf16.msra.mxu0 0
    %5490 = vmatprep.subr.bf16.mxu0 0
    %5491 = vmatpush1.bf16.msra.mxu0 0
    %5492 = vmatprep.subr.bf16.mxu0 0
    %5493 = vmatpush1.bf16.msra.mxu0 0
    %5494 = vmatprep.subr.bf16.mxu0 0
    %5495 = vmatpush1.bf16.msra.mxu0 0
    %5496 = vmatprep.subr.bf16.mxu0 0
    %5497 = vmatpush1.bf16.msra.mxu0 0
    %5498 = vmatprep.mubr.bf16.mxu0 0
    %5499 = vmatmul.mubr.bf16.gmra.mrb[0].mxu0 %v5464
    %v5500 = vpop.f32.mrb[0].mxu0
    %v5501 = vadd.f32 0.0, %v5500
    %v5502 = vpop.f32.mrb[0].mxu0
    %v5503 = vadd.f32 0.0, %v5502
    %v5504 = vpop.f32.mrb[0].mxu0
    %v5505 = vpop.f32.mrb[0].mxu0
    %5506 = vdwg.mxu0
    %v5507 = vadd.f32 %v5503, %v53
    %vm5508 = vcmask 1040384
    %v5509 = vsel %vm5508, %v5507, -inf
    %5510 = vmax.xlane.f32.xlu0 %v5509
    %v5511 = vpop.xlane.xlu0 %5510
    %vm5512 = vcmp.ge.f32.partialorder %v5507, %v5511
    %v5513 = vsel %vm5512, %v5318, 128.0
    %v5514 = vsel %vm5508, %v5513, inf
    %5515 = vmin.xlane.f32.xlu0 %v5514
    %v5516 = vpop.xlane.xlu0 %5515
    %vm5517 = vcmp.eq.f32.partialorder %v5318, %v5516
    %v5518 = vsel %vm5517, 1, 0
    %v5519 = vcvt.s32.f32 %v5518
    %v5520 = vpack.c.bf16 %v5519, %v5519
    %5521 = vmatprep.subr.bf16.mxu0 0
    %5522 = vmatpush1.bf16.msra.mxu0 %v5310
    %5523 = vmatprep.subr.bf16.mxu0 0
    %5524 = vmatpush1.bf16.msra.mxu0 %v5311
    %5525 = vmatprep.subr.bf16.mxu0 0
    %5526 = vmatpush1.bf16.msra.mxu0 %v5312
    %5527 = vmatprep.subr.bf16.mxu0 0
    %5528 = vmatpush1.bf16.msra.mxu0 %v5313
    %5529 = vmatprep.subr.bf16.mxu0 0
    %5530 = vmatpush1.bf16.msra.mxu0 %v5314
    %5531 = vmatprep.subr.bf16.mxu0 0
    %5532 = vmatpush1.bf16.msra.mxu0 %v5315
    %5533 = vmatprep.subr.bf16.mxu0 0
    %5534 = vmatpush1.bf16.msra.mxu0 %v5316
    %5535 = vmatprep.subr.bf16.mxu0 0
    %5536 = vmatpush1.bf16.msra.mxu0 %v5317
    %5537 = vmatprep.subr.bf16.mxu0 0
    %5538 = vmatpush1.bf16.msra.mxu0 0
    %5539 = vmatprep.subr.bf16.mxu0 0
    %5540 = vmatpush1.bf16.msra.mxu0 0
    %5541 = vmatprep.subr.bf16.mxu0 0
    %5542 = vmatpush1.bf16.msra.mxu0 0
    %5543 = vmatprep.subr.bf16.mxu0 0
    %5544 = vmatpush1.bf16.msra.mxu0 0
    %5545 = vmatprep.subr.bf16.mxu0 0
    %5546 = vmatpush1.bf16.msra.mxu0 0
    %5547 = vmatprep.subr.bf16.mxu0 0
    %5548 = vmatpush1.bf16.msra.mxu0 0
    %5549 = vmatprep.subr.bf16.mxu0 0
    %5550 = vmatpush1.bf16.msra.mxu0 0
    %5551 = vmatprep.subr.bf16.mxu0 0
    %5552 = vmatpush1.bf16.msra.mxu0 0
    %5553 = vmatprep.mubr.bf16.mxu0 0
    %5554 = vmatmul.mubr.bf16.gmra.mrb[0].mxu0 %v5520
    %v5555 = vpop.f32.mrb[0].mxu0
    %v5556 = vadd.f32 %v5501, %v5555
    %v5557 = vpop.f32.mrb[0].mxu0
    %v5558 = vpop.f32.mrb[0].mxu0
    %v5559 = vpop.f32.mrb[0].mxu0
    %5560 = vdwg.mxu0
    %v5561 = vmul.f32 %v43, %v5556
    %v5562 = vtanh.pop %v5561
    %v5563 = vmul.f32 %v43, %v5562
    %v5564 = vadd.f32 %v5563, %v44
    %v5565 = vmul.f32 %v5564, %v5452
    %5567 = vrot.lane.b32.xlu0 %v5564, 64
    %v5568 = vpop.permute.xlu0 %5567
    %v5570 = vmul.f32 %v5564, %v5568
    %5572 = vrot.lane.b32.xlu0 %v5570, 32
    %v5573 = vpop.permute.xlu0 %5572
    %v5575 = vadd.f32 %v5565, %v5573
    %v5576 = vtanh.pop %v5575
    %5578 = vrot.lane.b32.xlu0 %v5576, 64
    %v5579 = vpop.permute.xlu0 %5578
    %v5581 = vmul.f32 %v5564, %v5579
    %v5582 = vpack.c.bf16 %v5581, %v5581
    %5584 = vrot.lane.b32.xlu0 %v5582, 32
    %v5585 = vpop.permute.xlu0 %5584
    %v5587 = vsel %vm212, %v5585, 0
    %5589 = vmatprep.subr.bf16.mxu0 %v5345
    %5590 = vmatpush1.bf16.msra.mxu0 %v5344
    %5591 = vmatprep.subr.bf16.mxu0 %v5347
    %5592 = vmatpush1.bf16.msra.mxu0 %v5346
    %5593 = vmatprep.subr.bf16.mxu0 0
    %5594 = vmatpush1.bf16.msra.mxu0 0
    %5595 = vmatprep.subr.bf16.mxu0 0
    %5596 = vmatpush1.bf16.msra.mxu0 0
    %5597 = vmatprep.subr.bf16.mxu0 0
    %5598 = vmatpush1.bf16.msra.mxu0 0
    %5599 = vmatprep.subr.bf16.mxu0 0
    %5600 = vmatpush1.bf16.msra.mxu0 0
    %5601 = vmatprep.subr.bf16.mxu0 0
    %5602 = vmatpush1.bf16.msra.mxu0 0
    %5603 = vmatprep.subr.bf16.mxu0 0
    %5604 = vmatpush1.bf16.msra.mxu0 0
    %5605 = vmatprep.subr.bf16.mxu0 0
    %5606 = vmatpush1.bf16.msra.mxu0 0
    %5607 = vmatprep.subr.bf16.mxu0 0
    %5608 = vmatpush1.bf16.msra.mxu0 0
    %5609 = vmatprep.subr.bf16.mxu0 0
    %5610 = vmatpush1.bf16.msra.mxu0 0
    %5611 = vmatprep.subr.bf16.mxu0 0
    %5612 = vmatpush1.bf16.msra.mxu0 0
    %5613 = vmatprep.subr.bf16.mxu0 0
    %5614 = vmatpush1.bf16.msra.mxu0 0
    %5615 = vmatprep.subr.bf16.mxu0 0
    %5616 = vmatpush1.bf16.msra.mxu0 0
    %5617 = vmatprep.subr.bf16.mxu0 0
    %5618 = vmatpush1.bf16.msra.mxu0 0
    %5619 = vmatprep.subr.bf16.mxu0 0
    %5620 = vmatpush1.bf16.msra.mxu0 0
    %5621 = vmatprep.mubr.bf16.mxu0 0
    %5622 = vmatmul.mubr.bf16.gmra.mrb[0].mxu0 %v5587
    %v5623 = vpop.f32.mrb[0].mxu0
    %v5624 = vadd.f32 0.0, %v5623
    %v5625 = vpop.f32.mrb[0].mxu0
    %v5626 = vadd.f32 0.0, %v5625
    %v5627 = vpop.f32.mrb[0].mxu0
    %v5628 = vpop.f32.mrb[0].mxu0
    %5629 = vdwg.mxu0
    %v5630 = vadd.f32 %v5626, %v53
    %v5631 = vsel %vm5508, %v5630, -inf
    %5632 = vmax.xlane.f32.xlu0 %v5631
    %v5633 = vpop.xlane.xlu0 %5632
    %vm5634 = vcmp.ge.f32.partialorder %v5630, %v5633
    %v5635 = vsel %vm5634, %v5318, 128.0
    %v5636 = vsel %vm5508, %v5635, inf
    %5637 = vmin.xlane.f32.xlu0 %v5636
    %v5638 = vpop.xlane.xlu0 %5637
    %vm5639 = vcmp.eq.f32.partialorder %v5318, %v5638
    %v5640 = vsel %vm5639, 1, 0
    %v5641 = vcvt.s32.f32 %v5640
    %v5642 = vpack.c.bf16 %v5641, %v5641
    %5643 = vmatprep.subr.bf16.mxu0 0
    %5644 = vmatpush1.bf16.msra.mxu0 %v5310
    %5645 = vmatprep.subr.bf16.mxu0 0
    %5646 = vmatpush1.bf16.msra.mxu0 %v5311
    %5647 = vmatprep.subr.bf16.mxu0 0
    %5648 = vmatpush1.bf16.msra.mxu0 %v5312
    %5649 = vmatprep.subr.bf16.mxu0 0
    %5650 = vmatpush1.bf16.msra.mxu0 %v5313
    %5651 = vmatprep.subr.bf16.mxu0 0
    %5652 = vmatpush1.bf16.msra.mxu0 %v5314
    %5653 = vmatprep.subr.bf16.mxu0 0
    %5654 = vmatpush1.bf16.msra.mxu0 %v5315
    %5655 = vmatprep.subr.bf16.mxu0 0
    %5656 = vmatpush1.bf16.msra.mxu0 %v5316
    %5657 = vmatprep.subr.bf16.mxu0 0
    %5658 = vmatpush1.bf16.msra.mxu0 %v5317
    %5659 = vmatprep.subr.bf16.mxu0 0
    %5660 = vmatpush1.bf16.msra.mxu0 0
    %5661 = vmatprep.subr.bf16.mxu0 0
    %5662 = vmatpush1.bf16.msra.mxu0 0
    %5663 = vmatprep.subr.bf16.mxu0 0
    %5664 = vmatpush1.bf16.msra.mxu0 0
    %5665 = vmatprep.subr.bf16.mxu0 0
    %5666 = vmatpush1.bf16.msra.mxu0 0
    %5667 = vmatprep.subr.bf16.mxu0 0
    %5668 = vmatpush1.bf16.msra.mxu0 0
    %5669 = vmatprep.subr.bf16.mxu0 0
    %5670 = vmatpush1.bf16.msra.mxu0 0
    %5671 = vmatprep.subr.bf16.mxu0 0
    %5672 = vmatpush1.bf16.msra.mxu0 0
    %5673 = vmatprep.subr.bf16.mxu0 0
    %5674 = vmatpush1.bf16.msra.mxu0 0
    %5675 = vmatprep.mubr.bf16.mxu0 0
    %5676 = vmatmul.mubr.bf16.gmra.mrb[0].mxu0 %v5642
    %v5677 = vpop.f32.mrb[0].mxu0
    %v5678 = vadd.f32 %v5624, %v5677
    %v5679 = vpop.f32.mrb[0].mxu0
    %v5680 = vpop.f32.mrb[0].mxu0
    %v5681 = vpop.f32.mrb[0].mxu0
    %5682 = vdwg.mxu0
    %v5683 = vmul.f32 %v43, %v5678
    %v5684 = vtanh.pop %v5683
    %v5685 = vmul.f32 %v43, %v5684
    %v5686 = vadd.f32 %v5685, %v44
    %v5687 = vmul.f32 %v5686, %v5575
    %5689 = vrot.lane.b32.xlu0 %v5686, 64
    %v5690 = vpop.permute.xlu0 %5689
    %v5692 = vmul.f32 %v5686, %v5690
    %5694 = vrot.lane.b32.xlu0 %v5692, 32
    %v5695 = vpop.permute.xlu0 %5694
    %v5697 = vadd.f32 %v5687, %v5695
    %v5698 = vtanh.pop %v5697
    %5700 = vrot.lane.b32.xlu0 %v5698, 64
    %v5701 = vpop.permute.xlu0 %5700
    %v5703 = vmul.f32 %v5686, %v5701
    %v5704 = vpack.c.bf16 %v5703, %v5703
    %5706 = vrot.lane.b32.xlu0 %v5704, 32
    %v5707 = vpop.permute.xlu0 %5706
    %v5709 = vsel %vm212, %v5707, 0
    %5711 = vmatprep.subr.bf16.mxu0 %v5345
    %5712 = vmatpush1.bf16.msra.mxu0 %v5344
    %5713 = vmatprep.subr.bf16.mxu0 %v5347
    %5714 = vmatpush1.bf16.msra.mxu0 %v5346
    %5715 = vmatprep.subr.bf16.mxu0 0
    %5716 = vmatpush1.bf16.msra.mxu0 0
    %5717 = vmatprep.subr.bf16.mxu0 0
    %5718 = vmatpush1.bf16.msra.mxu0 0
    %5719 = vmatprep.subr.bf16.mxu0 0
    %5720 = vmatpush1.bf16.msra.mxu0 0
    %5721 = vmatprep.subr.bf16.mxu0 0
    %5722 = vmatpush1.bf16.msra.mxu0 0
    %5723 = vmatprep.subr.bf16.mxu0 0
    %5724 = vmatpush1.bf16.msra.mxu0 0
    %5725 = vmatprep.subr.bf16.mxu0 0
    %5726 = vmatpush1.bf16.msra.mxu0 0
    %5727 = vmatprep.subr.bf16.mxu0 0
    %5728 = vmatpush1.bf16.msra.mxu0 0
    %5729 = vmatprep.subr.bf16.mxu0 0
    %5730 = vmatpush1.bf16.msra.mxu0 0
    %5731 = vmatprep.subr.bf16.mxu0 0
    %5732 = vmatpush1.bf16.msra.mxu0 0
    %5733 = vmatprep.subr.bf16.mxu0 0
    %5734 = vmatpush1.bf16.msra.mxu0 0
    %5735 = vmatprep.subr.bf16.mxu0 0
    %5736 = vmatpush1.bf16.msra.mxu0 0
    %5737 = vmatprep.subr.bf16.mxu0 0
    %5738 = vmatpush1.bf16.msra.mxu0 0
    %5739 = vmatprep.subr.bf16.mxu0 0
    %5740 = vmatpush1.bf16.msra.mxu0 0
    %5741 = vmatprep.subr.bf16.mxu0 0
    %5742 = vmatpush1.bf16.msra.mxu0 0
    %5743 = vmatprep.mubr.bf16.mxu0 0
    %5744 = vmatmul.mubr.bf16.gmra.mrb[0].mxu0 %v5709
    %v5745 = vpop.f32.mrb[0].mxu0
    %v5746 = vadd.f32 0.0, %v5745
    %v5747 = vpop.f32.mrb[0].mxu0
    %v5748 = vadd.f32 0.0, %v5747
    %v5749 = vpop.f32.mrb[0].mxu0
    %v5750 = vpop.f32.mrb[0].mxu0
    %5751 = vdwg.mxu0
    %v5752 = vadd.f32 %v5748, %v53
    %v5753 = vsel %vm5508, %v5752, -inf
    %5754 = vmax.xlane.f32.xlu0 %v5753
    %v5755 = vpop.xlane.xlu0 %5754
    %vm5756 = vcmp.ge.f32.partialorder %v5752, %v5755
    %v5757 = vsel %vm5756, %v5318, 128.0
    %v5758 = vsel %vm5508, %v5757, inf
    %5759 = vmin.xlane.f32.xlu0 %v5758
    %v5760 = vpop.xlane.xlu0 %5759
    %vm5761 = vcmp.eq.f32.partialorder %v5318, %v5760
    %v5762 = vsel %vm5761, 1, 0
    %v5763 = vcvt.s32.f32 %v5762
    %v5764 = vpack.c.bf16 %v5763, %v5763
    %5765 = vmatprep.subr.bf16.mxu0 0
    %5766 = vmatpush1.bf16.msra.mxu0 %v5310
    %5767 = vmatprep.subr.bf16.mxu0 0
    %5768 = vmatpush1.bf16.msra.mxu0 %v5311
    %5769 = vmatprep.subr.bf16.mxu0 0
    %5770 = vmatpush1.bf16.msra.mxu0 %v5312
    %5771 = vmatprep.subr.bf16.mxu0 0
    %5772 = vmatpush1.bf16.msra.mxu0 %v5313
    %5773 = vmatprep.subr.bf16.mxu0 0
    %5774 = vmatpush1.bf16.msra.mxu0 %v5314
    %5775 = vmatprep.subr.bf16.mxu0 0
    %5776 = vmatpush1.bf16.msra.mxu0 %v5315
    %5777 = vmatprep.subr.bf16.mxu0 0
    %5778 = vmatpush1.bf16.msra.mxu0 %v5316
    %5779 = vmatprep.subr.bf16.mxu0 0
    %5780 = vmatpush1.bf16.msra.mxu0 %v5317
    %5781 = vmatprep.subr.bf16.mxu0 0
    %5782 = vmatpush1.bf16.msra.mxu0 0
    %5783 = vmatprep.subr.bf16.mxu0 0
    %5784 = vmatpush1.bf16.msra.mxu0 0
    %5785 = vmatprep.subr.bf16.mxu0 0
    %5786 = vmatpush1.bf16.msra.mxu0 0
    %5787 = vmatprep.subr.bf16.mxu0 0
    %5788 = vmatpush1.bf16.msra.mxu0 0
    %5789 = vmatprep.subr.bf16.mxu0 0
    %5790 = vmatpush1.bf16.msra.mxu0 0
    %5791 = vmatprep.subr.bf16.mxu0 0
    %5792 = vmatpush1.bf16.msra.mxu0 0
    %5793 = vmatprep.subr.bf16.mxu0 0
    %5794 = vmatpush1.bf16.msra.mxu0 0
    %5795 = vmatprep.subr.bf16.mxu0 0
    %5796 = vmatpush1.bf16.msra.mxu0 0
    %5797 = vmatprep.mubr.bf16.mxu0 0
    %5798 = vmatmul.mubr.bf16.gmra.mrb[0].mxu0 %v5764
    %v5799 = vpop.f32.mrb[0].mxu0
    %v5800 = vadd.f32 %v5746, %v5799
    %v5801 = vpop.f32.mrb[0].mxu0
    %v5802 = vpop.f32.mrb[0].mxu0
    %v5803 = vpop.f32.mrb[0].mxu0
    %5804 = vdwg.mxu0
    %v5805 = vmul.f32 %v43, %v5800
    %v5806 = vtanh.pop %v5805
    %v5807 = vmul.f32 %v43, %v5806
    %v5808 = vadd.f32 %v5807, %v44
    %v5809 = vmul.f32 %v5808, %v5697
    %5811 = vrot.lane.b32.xlu0 %v5808, 64
    %v5812 = vpop.permute.xlu0 %5811
    %v5814 = vmul.f32 %v5808, %v5812
    %5816 = vrot.lane.b32.xlu0 %v5814, 32
    %v5817 = vpop.permute.xlu0 %5816
    %v5819 = vadd.f32 %v5809, %v5817
    %v5820 = vtanh.pop %v5819
    %5822 = vrot.lane.b32.xlu0 %v5820, 64
    %v5823 = vpop.permute.xlu0 %5822
    %v5825 = vmul.f32 %v5808, %v5823
    %v5826 = vpack.c.bf16 %v5825, %v5825
    %5828 = vrot.lane.b32.xlu0 %v5826, 32
    %v5829 = vpop.permute.xlu0 %5828
    %v5831 = vsel %vm212, %v5829, 0
    %5833 = vmatprep.subr.bf16.mxu0 %v5345
    %5834 = vmatpush1.bf16.msra.mxu0 %v5344
    %5835 = vmatprep.subr.bf16.mxu0 %v5347
    %5836 = vmatpush1.bf16.msra.mxu0 %v5346
    %5837 = vmatprep.subr.bf16.mxu0 0
    %5838 = vmatpush1.bf16.msra.mxu0 0
    %5839 = vmatprep.subr.bf16.mxu0 0
    %5840 = vmatpush1.bf16.msra.mxu0 0
    %5841 = vmatprep.subr.bf16.mxu0 0
    %5842 = vmatpush1.bf16.msra.mxu0 0
    %5843 = vmatprep.subr.bf16.mxu0 0
    %5844 = vmatpush1.bf16.msra.mxu0 0
    %5845 = vmatprep.subr.bf16.mxu0 0
    %5846 = vmatpush1.bf16.msra.mxu0 0
    %5847 = vmatprep.subr.bf16.mxu0 0
    %5848 = vmatpush1.bf16.msra.mxu0 0
    %5849 = vmatprep.subr.bf16.mxu0 0
    %5850 = vmatpush1.bf16.msra.mxu0 0
    %5851 = vmatprep.subr.bf16.mxu0 0
    %5852 = vmatpush1.bf16.msra.mxu0 0
    %5853 = vmatprep.subr.bf16.mxu0 0
    %5854 = vmatpush1.bf16.msra.mxu0 0
    %5855 = vmatprep.subr.bf16.mxu0 0
    %5856 = vmatpush1.bf16.msra.mxu0 0
    %5857 = vmatprep.subr.bf16.mxu0 0
    %5858 = vmatpush1.bf16.msra.mxu0 0
    %5859 = vmatprep.subr.bf16.mxu0 0
    %5860 = vmatpush1.bf16.msra.mxu0 0
    %5861 = vmatprep.subr.bf16.mxu0 0
    %5862 = vmatpush1.bf16.msra.mxu0 0
    %5863 = vmatprep.subr.bf16.mxu0 0
    %5864 = vmatpush1.bf16.msra.mxu0 0
    %5865 = vmatprep.mubr.bf16.mxu0 0
    %5866 = vmatmul.mubr.bf16.gmra.mrb[0].mxu0 %v5831
    %v5867 = vpop.f32.mrb[0].mxu0
    %v5868 = vadd.f32 0.0, %v5867
    %v5869 = vpop.f32.mrb[0].mxu0
    %v5870 = vadd.f32 0.0, %v5869
    %v5871 = vpop.f32.mrb[0].mxu0
    %v5872 = vpop.f32.mrb[0].mxu0
    %5873 = vdwg.mxu0
    %v5874 = vadd.f32 %v5870, %v53
    %v5875 = vsel %vm5508, %v5874, -inf
    %5876 = vmax.xlane.f32.xlu0 %v5875
    %v5877 = vpop.xlane.xlu0 %5876
    %vm5878 = vcmp.ge.f32.partialorder %v5874, %v5877
    %v5879 = vsel %vm5878, %v5318, 128.0
    %v5880 = vsel %vm5508, %v5879, inf
    %5881 = vmin.xlane.f32.xlu0 %v5880
    %v5882 = vpop.xlane.xlu0 %5881
    %vm5883 = vcmp.eq.f32.partialorder %v5318, %v5882
    %v5884 = vsel %vm5883, 1, 0
    %v5885 = vcvt.s32.f32 %v5884
    %v5886 = vpack.c.bf16 %v5885, %v5885
    %5887 = vmatprep.subr.bf16.mxu0 0
    %5888 = vmatpush1.bf16.msra.mxu0 %v5310
    %5889 = vmatprep.subr.bf16.mxu0 0
    %5890 = vmatpush1.bf16.msra.mxu0 %v5311
    %5891 = vmatprep.subr.bf16.mxu0 0
    %5892 = vmatpush1.bf16.msra.mxu0 %v5312
    %5893 = vmatprep.subr.bf16.mxu0 0
    %5894 = vmatpush1.bf16.msra.mxu0 %v5313
    %5895 = vmatprep.subr.bf16.mxu0 0
    %5896 = vmatpush1.bf16.msra.mxu0 %v5314
    %5897 = vmatprep.subr.bf16.mxu0 0
    %5898 = vmatpush1.bf16.msra.mxu0 %v5315
    %5899 = vmatprep.subr.bf16.mxu0 0
    %5900 = vmatpush1.bf16.msra.mxu0 %v5316
    %5901 = vmatprep.subr.bf16.mxu0 0
    %5902 = vmatpush1.bf16.msra.mxu0 %v5317
    %5903 = vmatprep.subr.bf16.mxu0 0
    %5904 = vmatpush1.bf16.msra.mxu0 0
    %5905 = vmatprep.subr.bf16.mxu0 0
    %5906 = vmatpush1.bf16.msra.mxu0 0
    %5907 = vmatprep.subr.bf16.mxu0 0
    %5908 = vmatpush1.bf16.msra.mxu0 0
    %5909 = vmatprep.subr.bf16.mxu0 0
    %5910 = vmatpush1.bf16.msra.mxu0 0
    %5911 = vmatprep.subr.bf16.mxu0 0
    %5912 = vmatpush1.bf16.msra.mxu0 0
    %5913 = vmatprep.subr.bf16.mxu0 0
    %5914 = vmatpush1.bf16.msra.mxu0 0
    %5915 = vmatprep.subr.bf16.mxu0 0
    %5916 = vmatpush1.bf16.msra.mxu0 0
    %5917 = vmatprep.subr.bf16.mxu0 0
    %5918 = vmatpush1.bf16.msra.mxu0 0
    %5919 = vmatprep.mubr.bf16.mxu0 0
    %5920 = vmatmul.mubr.bf16.gmra.mrb[0].mxu0 %v5886
    %v5921 = vpop.f32.mrb[0].mxu0
    %v5922 = vadd.f32 %v5868, %v5921
    %v5923 = vpop.f32.mrb[0].mxu0
    %v5924 = vpop.f32.mrb[0].mxu0
    %v5925 = vpop.f32.mrb[0].mxu0
    %5926 = vdwg.mxu0
    %v5927 = vmul.f32 %v43, %v5922
    %v5928 = vtanh.pop %v5927
    %v5929 = vmul.f32 %v43, %v5928
    %v5930 = vadd.f32 %v5929, %v44
    %v5931 = vmul.f32 %v5930, %v5819
    %5933 = vrot.lane.b32.xlu0 %v5930, 64
    %v5934 = vpop.permute.xlu0 %5933
    %v5936 = vmul.f32 %v5930, %v5934
    %5938 = vrot.lane.b32.xlu0 %v5936, 32
    %v5939 = vpop.permute.xlu0 %5938
    %v5941 = vadd.f32 %v5931, %v5939
    %v5942 = vtanh.pop %v5941
    %5944 = vrot.lane.b32.xlu0 %v5942, 64
    %v5945 = vpop.permute.xlu0 %5944
    %v5947 = vmul.f32 %v5930, %v5945
    %v5948 = vpack.c.bf16 %v5947, %v5947
    %5950 = vrot.lane.b32.xlu0 %v5948, 32
    %v5951 = vpop.permute.xlu0 %5950
    %v5953 = vsel %vm212, %v5951, 0
    %5955 = vmatprep.subr.bf16.mxu0 %v5345
    %5956 = vmatpush1.bf16.msra.mxu0 %v5344
    %5957 = vmatprep.subr.bf16.mxu0 %v5347
    %5958 = vmatpush1.bf16.msra.mxu0 %v5346
    %5959 = vmatprep.subr.bf16.mxu0 0
    %5960 = vmatpush1.bf16.msra.mxu0 0
    %5961 = vmatprep.subr.bf16.mxu0 0
    %5962 = vmatpush1.bf16.msra.mxu0 0
    %5963 = vmatprep.subr.bf16.mxu0 0
    %5964 = vmatpush1.bf16.msra.mxu0 0
    %5965 = vmatprep.subr.bf16.mxu0 0
    %5966 = vmatpush1.bf16.msra.mxu0 0
    %5967 = vmatprep.subr.bf16.mxu0 0
    %5968 = vmatpush1.bf16.msra.mxu0 0
    %5969 = vmatprep.subr.bf16.mxu0 0
    %5970 = vmatpush1.bf16.msra.mxu0 0
    %5971 = vmatprep.subr.bf16.mxu0 0
    %5972 = vmatpush1.bf16.msra.mxu0 0
    %5973 = vmatprep.subr.bf16.mxu0 0
    %5974 = vmatpush1.bf16.msra.mxu0 0
    %5975 = vmatprep.subr.bf16.mxu0 0
    %5976 = vmatpush1.bf16.msra.mxu0 0
    %5977 = vmatprep.subr.bf16.mxu0 0
    %5978 = vmatpush1.bf16.msra.mxu0 0
    %5979 = vmatprep.subr.bf16.mxu0 0
    %5980 = vmatpush1.bf16.msra.mxu0 0
    %5981 = vmatprep.subr.bf16.mxu0 0
    %5982 = vmatpush1.bf16.msra.mxu0 0
    %5983 = vmatprep.subr.bf16.mxu0 0
    %5984 = vmatpush1.bf16.msra.mxu0 0
    %5985 = vmatprep.subr.bf16.mxu0 0
    %5986 = vmatpush1.bf16.msra.mxu0 0
    %5987 = vmatprep.mubr.bf16.mxu0 0
    %5988 = vmatmul.mubr.bf16.gmra.mrb[0].mxu0 %v5953
    %v5989 = vpop.f32.mrb[0].mxu0
    %v5990 = vadd.f32 0.0, %v5989
    %v5991 = vpop.f32.mrb[0].mxu0
    %v5992 = vadd.f32 0.0, %v5991
    %v5993 = vpop.f32.mrb[0].mxu0
    %v5994 = vpop.f32.mrb[0].mxu0
    %5995 = vdwg.mxu0
    %v5996 = vadd.f32 %v5992, %v53
    %v5997 = vsel %vm5508, %v5996, -inf
    %5998 = vmax.xlane.f32.xlu0 %v5997
    %v5999 = vpop.xlane.xlu0 %5998
    %vm6000 = vcmp.ge.f32.partialorder %v5996, %v5999
    %v6001 = vsel %vm6000, %v5318, 128.0
    %v6002 = vsel %vm5508, %v6001, inf
    %6003 = vmin.xlane.f32.xlu0 %v6002
    %v6004 = vpop.xlane.xlu0 %6003
    %vm6005 = vcmp.eq.f32.partialorder %v5318, %v6004
    %v6006 = vsel %vm6005, 1, 0
    %v6007 = vcvt.s32.f32 %v6006
    %v6008 = vpack.c.bf16 %v6007, %v6007
    %6009 = vmatprep.subr.bf16.mxu0 0
    %6010 = vmatpush1.bf16.msra.mxu0 %v5310
    %6011 = vmatprep.subr.bf16.mxu0 0
    %6012 = vmatpush1.bf16.msra.mxu0 %v5311
    %6013 = vmatprep.subr.bf16.mxu0 0
    %6014 = vmatpush1.bf16.msra.mxu0 %v5312
    %6015 = vmatprep.subr.bf16.mxu0 0
    %6016 = vmatpush1.bf16.msra.mxu0 %v5313
    %6017 = vmatprep.subr.bf16.mxu0 0
    %6018 = vmatpush1.bf16.msra.mxu0 %v5314
    %6019 = vmatprep.subr.bf16.mxu0 0
    %6020 = vmatpush1.bf16.msra.mxu0 %v5315
    %6021 = vmatprep.subr.bf16.mxu0 0
    %6022 = vmatpush1.bf16.msra.mxu0 %v5316
    %6023 = vmatprep.subr.bf16.mxu0 0
    %6024 = vmatpush1.bf16.msra.mxu0 %v5317
    %6025 = vmatprep.subr.bf16.mxu0 0
    %6026 = vmatpush1.bf16.msra.mxu0 0
    %6027 = vmatprep.subr.bf16.mxu0 0
    %6028 = vmatpush1.bf16.msra.mxu0 0
    %6029 = vmatprep.subr.bf16.mxu0 0
    %6030 = vmatpush1.bf16.msra.mxu0 0
    %6031 = vmatprep.subr.bf16.mxu0 0
    %6032 = vmatpush1.bf16.msra.mxu0 0
    %6033 = vmatprep.subr.bf16.mxu0 0
    %6034 = vmatpush1.bf16.msra.mxu0 0
    %6035 = vmatprep.subr.bf16.mxu0 0
    %6036 = vmatpush1.bf16.msra.mxu0 0
    %6037 = vmatprep.subr.bf16.mxu0 0
    %6038 = vmatpush1.bf16.msra.mxu0 0
    %6039 = vmatprep.subr.bf16.mxu0 0
    %6040 = vmatpush1.bf16.msra.mxu0 0
    %6041 = vmatprep.mubr.bf16.mxu0 0
    %6042 = vmatmul.mubr.bf16.gmra.mrb[0].mxu0 %v6008
    %v6043 = vpop.f32.mrb[0].mxu0
    %v6044 = vadd.f32 %v5990, %v6043
    %v6045 = vpop.f32.mrb[0].mxu0
    %v6046 = vpop.f32.mrb[0].mxu0
    %v6047 = vpop.f32.mrb[0].mxu0
    %6048 = vdwg.mxu0
    %v6049 = vmul.f32 %v43, %v6044
    %v6050 = vtanh.pop %v6049
    %v6051 = vmul.f32 %v43, %v6050
    %v6052 = vadd.f32 %v6051, %v44
    %v6053 = vmul.f32 %v6052, %v5941
    %6055 = vrot.lane.b32.xlu0 %v6052, 64
    %v6056 = vpop.permute.xlu0 %6055
    %v6058 = vmul.f32 %v6052, %v6056
    %6060 = vrot.lane.b32.xlu0 %v6058, 32
    %v6061 = vpop.permute.xlu0 %6060
    %v6063 = vadd.f32 %v6053, %v6061
    %v6064 = vtanh.pop %v6063
    %6066 = vrot.lane.b32.xlu0 %v6064, 64
    %v6067 = vpop.permute.xlu0 %6066
    %v6069 = vmul.f32 %v6052, %v6067
    %v6070 = vpack.c.bf16 %v6069, %v6069
    %6072 = vrot.lane.b32.xlu0 %v6070, 32
    %v6073 = vpop.permute.xlu0 %6072
    %v6075 = vsel %vm212, %v6073, 0
    %6077 = vmatprep.subr.bf16.mxu0 %v5345
    %6078 = vmatpush1.bf16.msra.mxu0 %v5344
    %6079 = vmatprep.subr.bf16.mxu0 %v5347
    %6080 = vmatpush1.bf16.msra.mxu0 %v5346
    %6081 = vmatprep.subr.bf16.mxu0 0
    %6082 = vmatpush1.bf16.msra.mxu0 0
    %6083 = vmatprep.subr.bf16.mxu0 0
    %6084 = vmatpush1.bf16.msra.mxu0 0
    %6085 = vmatprep.subr.bf16.mxu0 0
    %6086 = vmatpush1.bf16.msra.mxu0 0
    %6087 = vmatprep.subr.bf16.mxu0 0
    %6088 = vmatpush1.bf16.msra.mxu0 0
    %6089 = vmatprep.subr.bf16.mxu0 0
    %6090 = vmatpush1.bf16.msra.mxu0 0
    %6091 = vmatprep.subr.bf16.mxu0 0
    %6092 = vmatpush1.bf16.msra.mxu0 0
    %6093 = vmatprep.subr.bf16.mxu0 0
    %6094 = vmatpush1.bf16.msra.mxu0 0
    %6095 = vmatprep.subr.bf16.mxu0 0
    %6096 = vmatpush1.bf16.msra.mxu0 0
    %6097 = vmatprep.subr.bf16.mxu0 0
    %6098 = vmatpush1.bf16.msra.mxu0 0
    %6099 = vmatprep.subr.bf16.mxu0 0
    %6100 = vmatpush1.bf16.msra.mxu0 0
    %6101 = vmatprep.subr.bf16.mxu0 0
    %6102 = vmatpush1.bf16.msra.mxu0 0
    %6103 = vmatprep.subr.bf16.mxu0 0
    %6104 = vmatpush1.bf16.msra.mxu0 0
    %6105 = vmatprep.subr.bf16.mxu0 0
    %6106 = vmatpush1.bf16.msra.mxu0 0
    %6107 = vmatprep.subr.bf16.mxu0 0
    %6108 = vmatpush1.bf16.msra.mxu0 0
    %6109 = vmatprep.mubr.bf16.mxu0 0
    %6110 = vmatmul.mubr.bf16.gmra.mrb[0].mxu0 %v6075
    %v6111 = vpop.f32.mrb[0].mxu0
    %v6112 = vadd.f32 0.0, %v6111
    %v6113 = vpop.f32.mrb[0].mxu0
    %v6114 = vadd.f32 0.0, %v6113
    %v6115 = vpop.f32.mrb[0].mxu0
    %v6116 = vpop.f32.mrb[0].mxu0
    %6117 = vdwg.mxu0
    %v6118 = vadd.f32 %v6114, %v53
    %v6119 = vsel %vm5508, %v6118, -inf
    %6120 = vmax.xlane.f32.xlu0 %v6119
    %v6121 = vpop.xlane.xlu0 %6120
    %vm6122 = vcmp.ge.f32.partialorder %v6118, %v6121
    %v6123 = vsel %vm6122, %v5318, 128.0
    %v6124 = vsel %vm5508, %v6123, inf
    %6125 = vmin.xlane.f32.xlu0 %v6124
    %v6126 = vpop.xlane.xlu0 %6125
    %vm6127 = vcmp.eq.f32.partialorder %v5318, %v6126
    %v6128 = vsel %vm6127, 1, 0
    %v6129 = vcvt.s32.f32 %v6128
    %v6130 = vpack.c.bf16 %v6129, %v6129
    %6131 = vmatprep.subr.bf16.mxu0 0
    %6132 = vmatpush1.bf16.msra.mxu0 %v5310
    %6133 = vmatprep.subr.bf16.mxu0 0
    %6134 = vmatpush1.bf16.msra.mxu0 %v5311
    %6135 = vmatprep.subr.bf16.mxu0 0
    %6136 = vmatpush1.bf16.msra.mxu0 %v5312
    %6137 = vmatprep.subr.bf16.mxu0 0
    %6138 = vmatpush1.bf16.msra.mxu0 %v5313
    %6139 = vmatprep.subr.bf16.mxu0 0
    %6140 = vmatpush1.bf16.msra.mxu0 %v5314
    %6141 = vmatprep.subr.bf16.mxu0 0
    %6142 = vmatpush1.bf16.msra.mxu0 %v5315
    %6143 = vmatprep.subr.bf16.mxu0 0
    %6144 = vmatpush1.bf16.msra.mxu0 %v5316
    %6145 = vmatprep.subr.bf16.mxu0 0
    %6146 = vmatpush1.bf16.msra.mxu0 %v5317
    %6147 = vmatprep.subr.bf16.mxu0 0
    %6148 = vmatpush1.bf16.msra.mxu0 0
    %6149 = vmatprep.subr.bf16.mxu0 0
    %6150 = vmatpush1.bf16.msra.mxu0 0
    %6151 = vmatprep.subr.bf16.mxu0 0
    %6152 = vmatpush1.bf16.msra.mxu0 0
    %6153 = vmatprep.subr.bf16.mxu0 0
    %6154 = vmatpush1.bf16.msra.mxu0 0
    %6155 = vmatprep.subr.bf16.mxu0 0
    %6156 = vmatpush1.bf16.msra.mxu0 0
    %6157 = vmatprep.subr.bf16.mxu0 0
    %6158 = vmatpush1.bf16.msra.mxu0 0
    %6159 = vmatprep.subr.bf16.mxu0 0
    %6160 = vmatpush1.bf16.msra.mxu0 0
    %6161 = vmatprep.subr.bf16.mxu0 0
    %6162 = vmatpush1.bf16.msra.mxu0 0
    %6163 = vmatprep.mubr.bf16.mxu0 0
    %6164 = vmatmul.mubr.bf16.gmra.mrb[0].mxu0 %v6130
    %v6165 = vpop.f32.mrb[0].mxu0
    %v6166 = vadd.f32 %v6112, %v6165
    %v6167 = vpop.f32.mrb[0].mxu0
    %v6168 = vpop.f32.mrb[0].mxu0
    %v6169 = vpop.f32.mrb[0].mxu0
    %6170 = vdwg.mxu0
    %v6171 = vmul.f32 %v43, %v6166
    %v6172 = vtanh.pop %v6171
    %v6173 = vmul.f32 %v43, %v6172
    %v6174 = vadd.f32 %v6173, %v44
    %v6175 = vmul.f32 %v6174, %v6063
    %6177 = vrot.lane.b32.xlu0 %v6174, 64
    %v6178 = vpop.permute.xlu0 %6177
    %v6180 = vmul.f32 %v6174, %v6178
    %6182 = vrot.lane.b32.xlu0 %v6180, 32
    %v6183 = vpop.permute.xlu0 %6182
    %v6185 = vadd.f32 %v6175, %v6183
    %v6186 = vtanh.pop %v6185
    %6188 = vrot.lane.b32.xlu0 %v6186, 64
    %v6189 = vpop.permute.xlu0 %6188
    %v6191 = vmul.f32 %v6174, %v6189
    %v6192 = vpack.c.bf16 %v6191, %v6191
    %6194 = vrot.lane.b32.xlu0 %v6192, 32
    %v6195 = vpop.permute.xlu0 %6194
    %v6197 = vsel %vm212, %v6195, 0
    %6199 = vmatprep.subr.bf16.mxu0 %v5345
    %6200 = vmatpush1.bf16.msra.mxu0 %v5344
    %6201 = vmatprep.subr.bf16.mxu0 %v5347
    %6202 = vmatpush1.bf16.msra.mxu0 %v5346
    %6203 = vmatprep.subr.bf16.mxu0 0
    %6204 = vmatpush1.bf16.msra.mxu0 0
    %6205 = vmatprep.subr.bf16.mxu0 0
    %6206 = vmatpush1.bf16.msra.mxu0 0
    %6207 = vmatprep.subr.bf16.mxu0 0
    %6208 = vmatpush1.bf16.msra.mxu0 0
    %6209 = vmatprep.subr.bf16.mxu0 0
    %6210 = vmatpush1.bf16.msra.mxu0 0
    %6211 = vmatprep.subr.bf16.mxu0 0
    %6212 = vmatpush1.bf16.msra.mxu0 0
    %6213 = vmatprep.subr.bf16.mxu0 0
    %6214 = vmatpush1.bf16.msra.mxu0 0
    %6215 = vmatprep.subr.bf16.mxu0 0
    %6216 = vmatpush1.bf16.msra.mxu0 0
    %6217 = vmatprep.subr.bf16.mxu0 0
    %6218 = vmatpush1.bf16.msra.mxu0 0
    %6219 = vmatprep.subr.bf16.mxu0 0
    %6220 = vmatpush1.bf16.msra.mxu0 0
    %6221 = vmatprep.subr.bf16.mxu0 0
    %6222 = vmatpush1.bf16.msra.mxu0 0
    %6223 = vmatprep.subr.bf16.mxu0 0
    %6224 = vmatpush1.bf16.msra.mxu0 0
    %6225 = vmatprep.subr.bf16.mxu0 0
    %6226 = vmatpush1.bf16.msra.mxu0 0
    %6227 = vmatprep.subr.bf16.mxu0 0
    %6228 = vmatpush1.bf16.msra.mxu0 0
    %6229 = vmatprep.subr.bf16.mxu0 0
    %6230 = vmatpush1.bf16.msra.mxu0 0
    %6231 = vmatprep.mubr.bf16.mxu0 0
    %6232 = vmatmul.mubr.bf16.gmra.mrb[0].mxu0 %v6197
    %v6233 = vpop.f32.mrb[0].mxu0
    %v6234 = vpop.f32.mrb[0].mxu0
    %v6235 = vadd.f32 0.0, %v6234
    %v6236 = vpop.f32.mrb[0].mxu0
    %v6237 = vpop.f32.mrb[0].mxu0
    %6238 = vdwg.mxu0
    %v6239 = vadd.f32 %v6235, %v53
    %v6241 = vrot.slane %v5507, 7
    %v6244 = vrot.slane %v5630, 6
    %v6247 = vrot.slane %v5752, 5
    %v6250 = vrot.slane %v5874, 4
    %v6253 = vrot.slane %v5996, 3
    %v6256 = vrot.slane %v6118, 2
    %v6259 = vrot.slane %v6239, 1
    %v6261 = vsel %vm5508, 0.0, %v6241
    %vm6262 = vcmask 1041408
    %v6263 = vsel %vm6262, %v6261, %v6244
    %vm6264 = vcmask 1042432
    %v6265 = vsel %vm6264, %v6263, %v6247
    %vm6266 = vcmask 1043456
    %v6267 = vsel %vm6266, %v6265, %v6250
    %vm6268 = vcmask 1044480
    %v6269 = vsel %vm6268, %v6267, %v6253
    %vm6270 = vcmask 1045504
    %v6271 = vsel %vm6270, %v6269, %v6256
    %vm6272 = vcmask 1046528
    %v6273 = vsel %vm6272, %v6271, %v6259
    %6274 = vst [vmem:[#allocation3] sm:$0xff] %v6273
    // Predicated region
    $region42: #{encoder_decoder_forward.1} parent=1 // pred_check
      _
    $region43: #{encoder_decoder_forward.1} parent=1 // pred_check_branch
      %6276 = sbr.rel (0) target = $region45
    $region44: #{encoder_decoder_forward.1} parent=1 // pred_region
      %s6278 = ssub.s32 128, 128
      %6279 = vsyncadd [#allocation4], %s6278
      %s6281 = sshll.u32 [#allocation3], 4
      %s6282 = int_to_ptr.vmem [resolvable:$true] %s6281
      %6284 = dma.vmem_to_hbm [thread:$0]  %s6282, 128, %s10, [#allocation4]
    $region45: #{encoder_decoder_forward.1} parent=1 // pred_fallthru
      _
    // Predicated region
    $region46: #{encoder_decoder_forward.1} parent=1 // pred_check
      _
    $region47: #{encoder_decoder_forward.1} parent=1 // pred_check_branch
      %6286 = sbr.rel (0) target = $region49
    $region48: #{encoder_decoder_forward.1} parent=1 // pred_region
      %6287 = dma.done [#allocation4], 128
    $region49: #{encoder_decoder_forward.1} parent=1 // pred_fallthru
      _
    %6288 = vsyncpa [#allocation4], 1

</llo_original>
